<compile_context>
chip_gen: v7x
topology: tpu7x:2x2x1
jax: 0.10.0
libtpu: 0.0.40
codegen_flags: <defaults>
</compile_context>

<pallas_src>
import numpy as np

import jax
import jax.numpy as jnp
from jax.experimental import pallas as pl
from jax.experimental.pallas import tpu as pltpu

LEAKY_SLOPE = 0.2
BN_EPS = 1e-5
KH = KW = 4           # all convs in this model are 4x4


# ------------------------------ small helpers -------------------------------

def _round_up(x, m):
    return (x + m - 1) // m * m


def _im2col(x, kh, kw, stride, pad):
    """x: (N, C, H, W) -> patches (N*Ho*Wo, C*kh*kw) with K index = c*(kh*kw)+t."""
    n, c, h, w = x.shape
    xp = jnp.pad(x, ((0, 0), (0, 0), (pad, pad), (pad, pad)))
    ho = (h + 2 * pad - kh) // stride + 1
    wo = (w + 2 * pad - kw) // stride + 1
    cols = []
    for i in range(kh):
        for j in range(kw):
            cols.append(xp[:, :, i:i + stride * ho:stride, j:j + stride * wo:stride])
    p = jnp.stack(cols, axis=2)                        # (N, C, T, Ho, Wo)
    p = p.transpose(0, 3, 4, 1, 2).reshape(n * ho * wo, c * kh * kw)
    return p, ho, wo


# ------------------------------ fused kernel --------------------------------

def _make_fused_kernel(n_prog, m_valid):
    """Build the fused forward kernel.

    Input refs (all f32, whole arrays resident in VMEM, dims pre-padded):
      p1    (M1p, K1p)          layer-1 im2col patches of the raw input
      w1    (K1p, C1p)          layer-1 weight, pre-transposed (K-major)
      per prog block b:
        g_b   (16, Mo_p, Mi_p)  0/1 gather matrix per 4x4 tap (in-kernel im2col)
        w_b   (16, Ci_p, Co_p)  weight slice per tap
        gam_b (1, Co_p)         BN gamma  } padded with ZEROS so padded channel
        bet_b (1, Co_p)         BN beta   } lanes stay exactly 0 after BN
      w3t   (Mlast_p, Clast_p)  fc weight scattered to (row, channel) positions
      spool (Np, Mlast_p)       per-image 0/1 pooling matrix
    Output: (Np, 128) with sigmoid(logit) broadcast across lanes; host reads [:N,0].
    """
    taps = KH * KW

    def kernel(*refs):
        o_ref = refs[-1]
        p1_ref, w1_ref = refs[0], refs[1]

        # ---- from_rgb: conv-as-GEMM + LeakyReLU(0.2) ----
        h = jnp.dot(p1_ref[...], w1_ref[...], preferred_element_type=jnp.float32)
        h = jnp.maximum(h, LEAKY_SLOPE * h)

        # ---- prog blocks: conv (gather matmuls) + BatchNorm + LeakyReLU ----
        idx = 2
        for b in range(n_prog):
            g_ref, w_ref, gam_ref, bet_ref = refs[idx:idx + 4]
            idx += 4
            y = None
            for t in range(taps):
                pt = jnp.dot(g_ref[t], h, preferred_element_type=jnp.float32)
                term = jnp.dot(pt, w_ref[t], preferred_element_type=jnp.float32)
                y = term if y is None else y + term

            # BatchNorm2d, training-mode batch statistics (biased variance).
            # Padded output rows of y are exactly 0 (gather rows are 0 there),
            # so sums over the padded tile equal sums over valid rows.
            mo_p = y.shape[0]
            inv_m = 1.0 / float(m_valid[b])                       # compile-time const
            mean = jnp.sum(y, axis=0, keepdims=True) * inv_m
            rows = jax.lax.broadcasted_iota(jnp.int32, (mo_p, 1), 0)
            d = jnp.where(rows < m_valid[b], y - mean, 0.0)       # two-pass variance
            var = jnp.sum(d * d, axis=0, keepdims=True) * inv_m
            yhat = (y - mean) * jax.lax.rsqrt(var + BN_EPS) * gam_ref[...] + bet_ref[...]
            h = jnp.maximum(yhat, LEAKY_SLOPE * yhat)

        # ---- fc (Cout=1): epilogue reduction + per-image pooling + sigmoid ----
        w3_ref, sp_ref = refs[idx], refs[idx + 1]
        z = jnp.dot(sp_ref[...], h * w3_ref[...], preferred_element_type=jnp.float32)
        logit = jnp.sum(z, axis=1, keepdims=True)                 # (Np, 1)
        o_ref[...] = jnp.broadcast_to(jax.nn.sigmoid(logit), o_ref.shape)

    return kernel


# ------------------------- one-time packing (init) ---------------------------

def _gather_matrices(n, h_in, w_in, stride, pad, m_in_p):
    """Per-tap 0/1 row-gather matrices: patches[tap] = G[tap] @ activation."""
    ho = (h_in + 2 * pad - KH) // stride + 1
    wo = (w_in + 2 * pad - KW) // stride + 1
    m_out = n * ho * wo
    m_out_p = _round_up(m_out, 128)
    g = np.zeros((KH * KW, m_out_p, m_in_p), np.float32)
    for nn in range(n):
        for yo in range(ho):
            for xo in range(wo):
                mo = (nn * ho + yo) * wo + xo
                for ki in range(KH):
                    for kj in range(KW):
                        yy = stride * yo - pad + ki
                        xx = stride * xo - pad + kj
                        if 0 <= yy < h_in and 0 <= xx < w_in:
                            g[ki * KW + kj, mo, (nn * h_in + yy) * w_in + xx] = 1.0
    return g, ho, wo, m_out


def pack_discriminator(params, n, h, w, nc=3):
    """Pre-pad / pre-transpose all weights and build gather/pool matrices once."""
    # from_rgb weight -> (K1p, C1p) GEMM operand.
    w1 = np.asarray(params["from_rgb_w"])                 # (c1, nc, 4, 4)
    c1 = int(w1.shape[0])
    k1 = nc * KH * KW
    k1p, c1p = _round_up(k1, 128), _round_up(c1, 128)
    w1p = np.zeros((k1p, c1p), np.float32)
    w1p[:k1, :c1] = w1.reshape(c1, k1).T
    ho = (h + 2 - KH) // 2 + 1
    wo = (w + 2 - KW) // 2 + 1
    m1 = n * ho * wo
    m1p = _round_up(m1, 128)

    tensors = [jnp.asarray(w1p)]
    m_valid = []
    cur_c, cur_cp, cur_h, cur_w, cur_mp = c1, c1p, ho, wo, m1p

    for (wt, gamma, beta) in params["prog"]:
        wt = np.asarray(wt)                               # (cout, cin, 4, 4)
        cout, cin = int(wt.shape[0]), int(wt.shape[1])
        assert cin == cur_c
        coutp = _round_up(cout, 128)
        g, gho, gwo, m_out = _gather_matrices(n, cur_h, cur_w, 2, 1, cur_mp)
        wstack = np.zeros((KH * KW, cur_cp, coutp), np.float32)
        for ki in range(KH):
            for kj in range(KW):
                wstack[ki * KW + kj, :cin, :cout] = wt[:, :, ki, kj].T
        # NOTE: gamma/beta are padded with ZEROS on purpose: padded output
        # channels then stay exactly 0 after BN (padding gamma with 1.0 would
        # leak rsqrt(eps)-scaled garbage into the padded lanes).
        gp = np.zeros((1, coutp), np.float32); gp[0, :cout] = np.asarray(gamma)
        bp = np.zeros((1, coutp), np.float32); bp[0, :cout] = np.asarray(beta)
        tensors += [jnp.asarray(g), jnp.asarray(wstack), jnp.asarray(gp), jnp.asarray(bp)]
        m_valid.append(m_out)
        cur_c, cur_cp, cur_h, cur_w, cur_mp = cout, coutp, gho, gwo, g.shape[1]

    # fc layer: Conv2d(nf, 1, 4, 1, 0) on a 4x4 map -> 1x1 per image.
    wf = np.asarray(params["fc_w"])                       # (1, cin, 4, 4)
    assert cur_h == KH and cur_w == KW, "fc layer expects a 4x4 spatial input"
    w3t = np.zeros((cur_mp, cur_cp), np.float32)
    for nn in range(n):
        for yy in range(cur_h):
            for xx in range(cur_w):
                w3t[(nn * cur_h + yy) * cur_w + xx, :cur_c] = wf[0, :, yy, xx]
    out_rows = _round_up(n, 8)
    spool = np.zeros((out_rows, cur_mp), np.float32)
    for nn in range(n):
        spool[nn, nn * cur_h * cur_w:(nn + 1) * cur_h * cur_w] = 1.0
    tensors += [jnp.asarray(w3t), jnp.asarray(spool)]

    meta = dict(n=n, k1=k1, k1p=k1p, m1=m1, m1p=m1p,
                n_prog=len(params["prog"]), m_valid=tuple(m_valid),
                out_rows=out_rows)
    return tensors, meta


# ----------------------------- forward wrapper -------------------------------

def make_discriminator_forward(params, n, h, w):
    tensors, meta = pack_discriminator(params, n, h, w)
    kernel = _make_fused_kernel(meta["n_prog"], meta["m_valid"])
    n_in = 1 + len(tensors)
    call = pl.pallas_call(
        kernel,
        out_shape=jax.ShapeDtypeStruct((meta["out_rows"], 128), jnp.float32),
        in_specs=[pl.BlockSpec(memory_space=pltpu.MemorySpace.VMEM)] * n_in,
        out_specs=pl.BlockSpec(memory_space=pltpu.MemorySpace.VMEM),
    )
    # TODO(synk): for large batch/resolution, tile the row (M) dimension with a
    # 'parallel' grid axis (+ vmem_limit_bytes) so megacore (v7x) shards rows
    # and VMEM stays bounded; at N=2 / 16x16 the whole net is <3 MiB of VMEM.
    # TODO(synk): cast GEMM operands to bf16 (f32 accumulation) when scaling up.

    def _fwd(x, *ts):
        p1, _, _ = _im2col(x, KH, KW, 2, 1)       # only the raw input, in-jit
        p1 = jnp.pad(p1, ((0, meta["m1p"] - meta["m1"]),
                          (0, meta["k1p"] - meta["k1"])))
        out = call(p1, *ts)
        return out[:meta["n"], 0]                 # == output.view(-1,1).squeeze(1)

    fwd = jax.jit(_fwd)
    return lambda x: fwd(x, *tensors)


# ---------------------------- params & reference -----------------------------

def init_discriminator_params(key, nz=32, n_scales=2):
    nc, min_f = 3, 16
    keys = jax.random.split(key, 2 * n_scales + 4)
    ki = iter(keys)
    params = {}
    params["from_rgb_w"] = 0.05 * jax.random.normal(
        next(ki), (min_f, nc, 4, 4), jnp.float32)
    prog = []
    nf = min_f
    for _ in range(n_scales - 1):
        nfo = min(nz, nf * 2)
        wt = 0.05 * jax.random.normal(next(ki), (nfo, nf, 4, 4), jnp.float32)
        gamma = 1.0 + 0.1 * jax.random.normal(next(ki), (nfo,), jnp.float32)
        beta = 0.1 * jax.random.normal(next(ki), (nfo,), jnp.float32)
        prog.append((wt, gamma, beta))
        nf = nfo
    params["prog"] = prog
    params["fc_w"] = 0.05 * jax.random.normal(next(ki), (1, nf, 4, 4), jnp.float32)
    return params


def _reference_forward(x, params):
    def conv(a, wt, stride, pad):
        return jax.lax.conv_general_dilated(
            a, wt, (stride, stride), [(pad, pad), (pad, pad)],
            dimension_numbers=("NCHW", "OIHW", "NCHW"))

    h = conv(x, params["from_rgb_w"], 2, 1)
    h = jnp.where(h > 0, h, LEAKY_SLOPE * h)
    for (wt, g, b) in params["prog"]:
        y = conv(h, wt, 2, 1)
        mean = y.mean(axis=(0, 2, 3), keepdims=True)
        var = y.var(axis=(0, 2, 3), keepdims=True)
        y = (y - mean) / jnp.sqrt(var + BN_EPS) * g.reshape(1, -1, 1, 1) \
            + b.reshape(1, -1, 1, 1)
        h = jnp.where(y > 0, y, LEAKY_SLOPE * y)
    y = conv(h, params["fc_w"], 1, 0)
    return jax.nn.sigmoid(y).reshape(-1)


# ---------------------------------- main -------------------------------------

if __name__ == "__main__":
    key = jax.random.PRNGKey(0)
    k_params, k_x = jax.random.split(key)

    # Discriminator(ngpu=1, nz=32, N_scales=2); input (2, 3, 16, 16) NCHW.
    # 16x16 -> from_rgb -> 8x8 -> prog block (BN, LeakyReLU) -> 4x4 -> fc -> 1x1.
    params = init_discriminator_params(k_params, nz=32, n_scales=2)
    x = jax.random.normal(k_x, (2, 3, 16, 16), jnp.float32)

    forward = make_discriminator_forward(params, n=2, h=16, w=16)
    out = jax.block_until_ready(forward(x))
    assert out.shape == (2,), out.shape

    ref = jax.block_until_ready(_reference_forward(x, params))
    assert jnp.allclose(out, ref, atol=1e-4, rtol=1e-3), (out, ref)

    print("KERNEL_OK")
</pallas_src>

<mosaic_0001>
module attributes {stable_mosaic.version = 11 : i64} {
  func.func @kernel(%arg0: memref<128x128xf32, #tpu.memory_space<vmem>>, %arg1: memref<128x128xf32, #tpu.memory_space<vmem>>, %arg2: memref<16x128x128xf32, #tpu.memory_space<vmem>>, %arg3: memref<16x128x128xf32, #tpu.memory_space<vmem>>, %arg4: memref<1x128xf32, #tpu.memory_space<vmem>>, %arg5: memref<1x128xf32, #tpu.memory_space<vmem>>, %arg6: memref<128x128xf32, #tpu.memory_space<vmem>>, %arg7: memref<8x128xf32, #tpu.memory_space<vmem>>, %arg8: memref<8x128xf32, #tpu.memory_space<vmem>>) attributes {dimension_semantics = [], scalar_prefetch = 0 : i64, scratch_operands = 0 : i64, tpu.core_type = #tpu.core_type<tc>} {
    %c0 = arith.constant 0 : index
    %c0_0 = arith.constant 0 : index
    %0 = vector.load %arg0[%c0, %c0_0] : memref<128x128xf32, #tpu.memory_space<vmem>>, vector<128x128xf32>
    %c0_1 = arith.constant 0 : index
    %c0_2 = arith.constant 0 : index
    %1 = vector.load %arg1[%c0_1, %c0_2] : memref<128x128xf32, #tpu.memory_space<vmem>>, vector<128x128xf32>
    %cst = arith.constant dense<0.000000e+00> : vector<128x128xf32>
    %2 = tpu.matmul %0, %1, %cst {dimension_numbers = #tpu.dot_dimension_numbers<[1], [0], [0], [1], [0, 0, 1, 1], [], []>} : vector<128x128xf32>, vector<128x128xf32>, vector<128x128xf32> -> vector<128x128xf32>
    %cst_3 = arith.constant 2.000000e-01 : f32
    %3 = vector.broadcast %cst_3 : f32 to vector<128x128xf32>
    %4 = arith.mulf %3, %2 : vector<128x128xf32>
    %5 = arith.maximumf %2, %4 : vector<128x128xf32>
    %c0_4 = arith.constant 0 : index
    %c0_5 = arith.constant 0 : index
    %c0_6 = arith.constant 0 : index
    %6 = vector.load %arg2[%c0_4, %c0_5, %c0_6] : memref<16x128x128xf32, #tpu.memory_space<vmem>>, vector<1x128x128xf32>
    %7 = vector.shape_cast %6 : vector<1x128x128xf32> to vector<128x128xf32>
    %cst_7 = arith.constant dense<0.000000e+00> : vector<128x128xf32>
    %8 = tpu.matmul %7, %5, %cst_7 {dimension_numbers = #tpu.dot_dimension_numbers<[1], [0], [0], [1], [0, 0, 1, 1], [], []>} : vector<128x128xf32>, vector<128x128xf32>, vector<128x128xf32> -> vector<128x128xf32>
    %c0_8 = arith.constant 0 : index
    %c0_9 = arith.constant 0 : index
    %c0_10 = arith.constant 0 : index
    %9 = vector.load %arg3[%c0_8, %c0_9, %c0_10] : memref<16x128x128xf32, #tpu.memory_space<vmem>>, vector<1x128x128xf32>
    %10 = vector.shape_cast %9 : vector<1x128x128xf32> to vector<128x128xf32>
    %cst_11 = arith.constant dense<0.000000e+00> : vector<128x128xf32>
    %11 = tpu.matmul %8, %10, %cst_11 {dimension_numbers = #tpu.dot_dimension_numbers<[1], [0], [0], [1], [0, 0, 1, 1], [], []>} : vector<128x128xf32>, vector<128x128xf32>, vector<128x128xf32> -> vector<128x128xf32>
    %c1 = arith.constant 1 : index
    %c0_12 = arith.constant 0 : index
    %c0_13 = arith.constant 0 : index
    %12 = vector.load %arg2[%c1, %c0_12, %c0_13] : memref<16x128x128xf32, #tpu.memory_space<vmem>>, vector<1x128x128xf32>
    %13 = vector.shape_cast %12 : vector<1x128x128xf32> to vector<128x128xf32>
    %cst_14 = arith.constant dense<0.000000e+00> : vector<128x128xf32>
    %14 = tpu.matmul %13, %5, %cst_14 {dimension_numbers = #tpu.dot_dimension_numbers<[1], [0], [0], [1], [0, 0, 1, 1], [], []>} : vector<128x128xf32>, vector<128x128xf32>, vector<128x128xf32> -> vector<128x128xf32>
    %c1_15 = arith.constant 1 : index
    %c0_16 = arith.constant 0 : index
    %c0_17 = arith.constant 0 : index
    %15 = vector.load %arg3[%c1_15, %c0_16, %c0_17] : memref<16x128x128xf32, #tpu.memory_space<vmem>>, vector<1x128x128xf32>
    %16 = vector.shape_cast %15 : vector<1x128x128xf32> to vector<128x128xf32>
    %cst_18 = arith.constant dense<0.000000e+00> : vector<128x128xf32>
    %17 = tpu.matmul %14, %16, %cst_18 {dimension_numbers = #tpu.dot_dimension_numbers<[1], [0], [0], [1], [0, 0, 1, 1], [], []>} : vector<128x128xf32>, vector<128x128xf32>, vector<128x128xf32> -> vector<128x128xf32>
    %18 = arith.addf %11, %17 : vector<128x128xf32>
    %c2 = arith.constant 2 : index
    %c0_19 = arith.constant 0 : index
    %c0_20 = arith.constant 0 : index
    %19 = vector.load %arg2[%c2, %c0_19, %c0_20] : memref<16x128x128xf32, #tpu.memory_space<vmem>>, vector<1x128x128xf32>
    %20 = vector.shape_cast %19 : vector<1x128x128xf32> to vector<128x128xf32>
    %cst_21 = arith.constant dense<0.000000e+00> : vector<128x128xf32>
    %21 = tpu.matmul %20, %5, %cst_21 {dimension_numbers = #tpu.dot_dimension_numbers<[1], [0], [0], [1], [0, 0, 1, 1], [], []>} : vector<128x128xf32>, vector<128x128xf32>, vector<128x128xf32> -> vector<128x128xf32>
    %c2_22 = arith.constant 2 : index
    %c0_23 = arith.constant 0 : index
    %c0_24 = arith.constant 0 : index
    %22 = vector.load %arg3[%c2_22, %c0_23, %c0_24] : memref<16x128x128xf32, #tpu.memory_space<vmem>>, vector<1x128x128xf32>
    %23 = vector.shape_cast %22 : vector<1x128x128xf32> to vector<128x128xf32>
    %cst_25 = arith.constant dense<0.000000e+00> : vector<128x128xf32>
    %24 = tpu.matmul %21, %23, %cst_25 {dimension_numbers = #tpu.dot_dimension_numbers<[1], [0], [0], [1], [0, 0, 1, 1], [], []>} : vector<128x128xf32>, vector<128x128xf32>, vector<128x128xf32> -> vector<128x128xf32>
    %25 = arith.addf %18, %24 : vector<128x128xf32>
    %c3 = arith.constant 3 : index
    %c0_26 = arith.constant 0 : index
    %c0_27 = arith.constant 0 : index
    %26 = vector.load %arg2[%c3, %c0_26, %c0_27] : memref<16x128x128xf32, #tpu.memory_space<vmem>>, vector<1x128x128xf32>
    %27 = vector.shape_cast %26 : vector<1x128x128xf32> to vector<128x128xf32>
    %cst_28 = arith.constant dense<0.000000e+00> : vector<128x128xf32>
    %28 = tpu.matmul %27, %5, %cst_28 {dimension_numbers = #tpu.dot_dimension_numbers<[1], [0], [0], [1], [0, 0, 1, 1], [], []>} : vector<128x128xf32>, vector<128x128xf32>, vector<128x128xf32> -> vector<128x128xf32>
    %c3_29 = arith.constant 3 : index
    %c0_30 = arith.constant 0 : index
    %c0_31 = arith.constant 0 : index
    %29 = vector.load %arg3[%c3_29, %c0_30, %c0_31] : memref<16x128x128xf32, #tpu.memory_space<vmem>>, vector<1x128x128xf32>
    %30 = vector.shape_cast %29 : vector<1x128x128xf32> to vector<128x128xf32>
    %cst_32 = arith.constant dense<0.000000e+00> : vector<128x128xf32>
    %31 = tpu.matmul %28, %30, %cst_32 {dimension_numbers = #tpu.dot_dimension_numbers<[1], [0], [0], [1], [0, 0, 1, 1], [], []>} : vector<128x128xf32>, vector<128x128xf32>, vector<128x128xf32> -> vector<128x128xf32>
    %32 = arith.addf %25, %31 : vector<128x128xf32>
    %c4 = arith.constant 4 : index
    %c0_33 = arith.constant 0 : index
    %c0_34 = arith.constant 0 : index
    %33 = vector.load %arg2[%c4, %c0_33, %c0_34] : memref<16x128x128xf32, #tpu.memory_space<vmem>>, vector<1x128x128xf32>
    %34 = vector.shape_cast %33 : vector<1x128x128xf32> to vector<128x128xf32>
    %cst_35 = arith.constant dense<0.000000e+00> : vector<128x128xf32>
    %35 = tpu.matmul %34, %5, %cst_35 {dimension_numbers = #tpu.dot_dimension_numbers<[1], [0], [0], [1], [0, 0, 1, 1], [], []>} : vector<128x128xf32>, vector<128x128xf32>, vector<128x128xf32> -> vector<128x128xf32>
    %c4_36 = arith.constant 4 : index
    %c0_37 = arith.constant 0 : index
    %c0_38 = arith.constant 0 : index
    %36 = vector.load %arg3[%c4_36, %c0_37, %c0_38] : memref<16x128x128xf32, #tpu.memory_space<vmem>>, vector<1x128x128xf32>
    %37 = vector.shape_cast %36 : vector<1x128x128xf32> to vector<128x128xf32>
    %cst_39 = arith.constant dense<0.000000e+00> : vector<128x128xf32>
    %38 = tpu.matmul %35, %37, %cst_39 {dimension_numbers = #tpu.dot_dimension_numbers<[1], [0], [0], [1], [0, 0, 1, 1], [], []>} : vector<128x128xf32>, vector<128x128xf32>, vector<128x128xf32> -> vector<128x128xf32>
    %39 = arith.addf %32, %38 : vector<128x128xf32>
    %c5 = arith.constant 5 : index
    %c0_40 = arith.constant 0 : index
    %c0_41 = arith.constant 0 : index
    %40 = vector.load %arg2[%c5, %c0_40, %c0_41] : memref<16x128x128xf32, #tpu.memory_space<vmem>>, vector<1x128x128xf32>
    %41 = vector.shape_cast %40 : vector<1x128x128xf32> to vector<128x128xf32>
    %cst_42 = arith.constant dense<0.000000e+00> : vector<128x128xf32>
    %42 = tpu.matmul %41, %5, %cst_42 {dimension_numbers = #tpu.dot_dimension_numbers<[1], [0], [0], [1], [0, 0, 1, 1], [], []>} : vector<128x128xf32>, vector<128x128xf32>, vector<128x128xf32> -> vector<128x128xf32>
    %c5_43 = arith.constant 5 : index
    %c0_44 = arith.constant 0 : index
    %c0_45 = arith.constant 0 : index
    %43 = vector.load %arg3[%c5_43, %c0_44, %c0_45] : memref<16x128x128xf32, #tpu.memory_space<vmem>>, vector<1x128x128xf32>
    %44 = vector.shape_cast %43 : vector<1x128x128xf32> to vector<128x128xf32>
    %cst_46 = arith.constant dense<0.000000e+00> : vector<128x128xf32>
    %45 = tpu.matmul %42, %44, %cst_46 {dimension_numbers = #tpu.dot_dimension_numbers<[1], [0], [0], [1], [0, 0, 1, 1], [], []>} : vector<128x128xf32>, vector<128x128xf32>, vector<128x128xf32> -> vector<128x128xf32>
    %46 = arith.addf %39, %45 : vector<128x128xf32>
    %c6 = arith.constant 6 : index
    %c0_47 = arith.constant 0 : index
    %c0_48 = arith.constant 0 : index
    %47 = vector.load %arg2[%c6, %c0_47, %c0_48] : memref<16x128x128xf32, #tpu.memory_space<vmem>>, vector<1x128x128xf32>
    %48 = vector.shape_cast %47 : vector<1x128x128xf32> to vector<128x128xf32>
    %cst_49 = arith.constant dense<0.000000e+00> : vector<128x128xf32>
    %49 = tpu.matmul %48, %5, %cst_49 {dimension_numbers = #tpu.dot_dimension_numbers<[1], [0], [0], [1], [0, 0, 1, 1], [], []>} : vector<128x128xf32>, vector<128x128xf32>, vector<128x128xf32> -> vector<128x128xf32>
    %c6_50 = arith.constant 6 : index
    %c0_51 = arith.constant 0 : index
    %c0_52 = arith.constant 0 : index
    %50 = vector.load %arg3[%c6_50, %c0_51, %c0_52] : memref<16x128x128xf32, #tpu.memory_space<vmem>>, vector<1x128x128xf32>
    %51 = vector.shape_cast %50 : vector<1x128x128xf32> to vector<128x128xf32>
    %cst_53 = arith.constant dense<0.000000e+00> : vector<128x128xf32>
    %52 = tpu.matmul %49, %51, %cst_53 {dimension_numbers = #tpu.dot_dimension_numbers<[1], [0], [0], [1], [0, 0, 1, 1], [], []>} : vector<128x128xf32>, vector<128x128xf32>, vector<128x128xf32> -> vector<128x128xf32>
    %53 = arith.addf %46, %52 : vector<128x128xf32>
    %c7 = arith.constant 7 : index
    %c0_54 = arith.constant 0 : index
    %c0_55 = arith.constant 0 : index
    %54 = vector.load %arg2[%c7, %c0_54, %c0_55] : memref<16x128x128xf32, #tpu.memory_space<vmem>>, vector<1x128x128xf32>
    %55 = vector.shape_cast %54 : vector<1x128x128xf32> to vector<128x128xf32>
    %cst_56 = arith.constant dense<0.000000e+00> : vector<128x128xf32>
    %56 = tpu.matmul %55, %5, %cst_56 {dimension_numbers = #tpu.dot_dimension_numbers<[1], [0], [0], [1], [0, 0, 1, 1], [], []>} : vector<128x128xf32>, vector<128x128xf32>, vector<128x128xf32> -> vector<128x128xf32>
    %c7_57 = arith.constant 7 : index
    %c0_58 = arith.constant 0 : index
    %c0_59 = arith.constant 0 : index
    %57 = vector.load %arg3[%c7_57, %c0_58, %c0_59] : memref<16x128x128xf32, #tpu.memory_space<vmem>>, vector<1x128x128xf32>
    %58 = vector.shape_cast %57 : vector<1x128x128xf32> to vector<128x128xf32>
    %cst_60 = arith.constant dense<0.000000e+00> : vector<128x128xf32>
    %59 = tpu.matmul %56, %58, %cst_60 {dimension_numbers = #tpu.dot_dimension_numbers<[1], [0], [0], [1], [0, 0, 1, 1], [], []>} : vector<128x128xf32>, vector<128x128xf32>, vector<128x128xf32> -> vector<128x128xf32>
    %60 = arith.addf %53, %59 : vector<128x128xf32>
    %c8 = arith.constant 8 : index
    %c0_61 = arith.constant 0 : index
    %c0_62 = arith.constant 0 : index
    %61 = vector.load %arg2[%c8, %c0_61, %c0_62] : memref<16x128x128xf32, #tpu.memory_space<vmem>>, vector<1x128x128xf32>
    %62 = vector.shape_cast %61 : vector<1x128x128xf32> to vector<128x128xf32>
    %cst_63 = arith.constant dense<0.000000e+00> : vector<128x128xf32>
    %63 = tpu.matmul %62, %5, %cst_63 {dimension_numbers = #tpu.dot_dimension_numbers<[1], [0], [0], [1], [0, 0, 1, 1], [], []>} : vector<128x128xf32>, vector<128x128xf32>, vector<128x128xf32> -> vector<128x128xf32>
    %c8_64 = arith.constant 8 : index
    %c0_65 = arith.constant 0 : index
    %c0_66 = arith.constant 0 : index
    %64 = vector.load %arg3[%c8_64, %c0_65, %c0_66] : memref<16x128x128xf32, #tpu.memory_space<vmem>>, vector<1x128x128xf32>
    %65 = vector.shape_cast %64 : vector<1x128x128xf32> to vector<128x128xf32>
    %cst_67 = arith.constant dense<0.000000e+00> : vector<128x128xf32>
    %66 = tpu.matmul %63, %65, %cst_67 {dimension_numbers = #tpu.dot_dimension_numbers<[1], [0], [0], [1], [0, 0, 1, 1], [], []>} : vector<128x128xf32>, vector<128x128xf32>, vector<128x128xf32> -> vector<128x128xf32>
    %67 = arith.addf %60, %66 : vector<128x128xf32>
    %c9 = arith.constant 9 : index
    %c0_68 = arith.constant 0 : index
    %c0_69 = arith.constant 0 : index
    %68 = vector.load %arg2[%c9, %c0_68, %c0_69] : memref<16x128x128xf32, #tpu.memory_space<vmem>>, vector<1x128x128xf32>
    %69 = vector.shape_cast %68 : vector<1x128x128xf32> to vector<128x128xf32>
    %cst_70 = arith.constant dense<0.000000e+00> : vector<128x128xf32>
    %70 = tpu.matmul %69, %5, %cst_70 {dimension_numbers = #tpu.dot_dimension_numbers<[1], [0], [0], [1], [0, 0, 1, 1], [], []>} : vector<128x128xf32>, vector<128x128xf32>, vector<128x128xf32> -> vector<128x128xf32>
    %c9_71 = arith.constant 9 : index
    %c0_72 = arith.constant 0 : index
    %c0_73 = arith.constant 0 : index
    %71 = vector.load %arg3[%c9_71, %c0_72, %c0_73] : memref<16x128x128xf32, #tpu.memory_space<vmem>>, vector<1x128x128xf32>
    %72 = vector.shape_cast %71 : vector<1x128x128xf32> to vector<128x128xf32>
    %cst_74 = arith.constant dense<0.000000e+00> : vector<128x128xf32>
    %73 = tpu.matmul %70, %72, %cst_74 {dimension_numbers = #tpu.dot_dimension_numbers<[1], [0], [0], [1], [0, 0, 1, 1], [], []>} : vector<128x128xf32>, vector<128x128xf32>, vector<128x128xf32> -> vector<128x128xf32>
    %74 = arith.addf %67, %73 : vector<128x128xf32>
    %c10 = arith.constant 10 : index
    %c0_75 = arith.constant 0 : index
    %c0_76 = arith.constant 0 : index
    %75 = vector.load %arg2[%c10, %c0_75, %c0_76] : memref<16x128x128xf32, #tpu.memory_space<vmem>>, vector<1x128x128xf32>
    %76 = vector.shape_cast %75 : vector<1x128x128xf32> to vector<128x128xf32>
    %cst_77 = arith.constant dense<0.000000e+00> : vector<128x128xf32>
    %77 = tpu.matmul %76, %5, %cst_77 {dimension_numbers = #tpu.dot_dimension_numbers<[1], [0], [0], [1], [0, 0, 1, 1], [], []>} : vector<128x128xf32>, vector<128x128xf32>, vector<128x128xf32> -> vector<128x128xf32>
    %c10_78 = arith.constant 10 : index
    %c0_79 = arith.constant 0 : index
    %c0_80 = arith.constant 0 : index
    %78 = vector.load %arg3[%c10_78, %c0_79, %c0_80] : memref<16x128x128xf32, #tpu.memory_space<vmem>>, vector<1x128x128xf32>
    %79 = vector.shape_cast %78 : vector<1x128x128xf32> to vector<128x128xf32>
    %cst_81 = arith.constant dense<0.000000e+00> : vector<128x128xf32>
    %80 = tpu.matmul %77, %79, %cst_81 {dimension_numbers = #tpu.dot_dimension_numbers<[1], [0], [0], [1], [0, 0, 1, 1], [], []>} : vector<128x128xf32>, vector<128x128xf32>, vector<128x128xf32> -> vector<128x128xf32>
    %81 = arith.addf %74, %80 : vector<128x128xf32>
    %c11 = arith.constant 11 : index
    %c0_82 = arith.constant 0 : index
    %c0_83 = arith.constant 0 : index
    %82 = vector.load %arg2[%c11, %c0_82, %c0_83] : memref<16x128x128xf32, #tpu.memory_space<vmem>>, vector<1x128x128xf32>
    %83 = vector.shape_cast %82 : vector<1x128x128xf32> to vector<128x128xf32>
    %cst_84 = arith.constant dense<0.000000e+00> : vector<128x128xf32>
    %84 = tpu.matmul %83, %5, %cst_84 {dimension_numbers = #tpu.dot_dimension_numbers<[1], [0], [0], [1], [0, 0, 1, 1], [], []>} : vector<128x128xf32>, vector<128x128xf32>, vector<128x128xf32> -> vector<128x128xf32>
    %c11_85 = arith.constant 11 : index
    %c0_86 = arith.constant 0 : index
    %c0_87 = arith.constant 0 : index
    %85 = vector.load %arg3[%c11_85, %c0_86, %c0_87] : memref<16x128x128xf32, #tpu.memory_space<vmem>>, vector<1x128x128xf32>
    %86 = vector.shape_cast %85 : vector<1x128x128xf32> to vector<128x128xf32>
    %cst_88 = arith.constant dense<0.000000e+00> : vector<128x128xf32>
    %87 = tpu.matmul %84, %86, %cst_88 {dimension_numbers = #tpu.dot_dimension_numbers<[1], [0], [0], [1], [0, 0, 1, 1], [], []>} : vector<128x128xf32>, vector<128x128xf32>, vector<128x128xf32> -> vector<128x128xf32>
    %88 = arith.addf %81, %87 : vector<128x128xf32>
    %c12 = arith.constant 12 : index
    %c0_89 = arith.constant 0 : index
    %c0_90 = arith.constant 0 : index
    %89 = vector.load %arg2[%c12, %c0_89, %c0_90] : memref<16x128x128xf32, #tpu.memory_space<vmem>>, vector<1x128x128xf32>
    %90 = vector.shape_cast %89 : vector<1x128x128xf32> to vector<128x128xf32>
    %cst_91 = arith.constant dense<0.000000e+00> : vector<128x128xf32>
    %91 = tpu.matmul %90, %5, %cst_91 {dimension_numbers = #tpu.dot_dimension_numbers<[1], [0], [0], [1], [0, 0, 1, 1], [], []>} : vector<128x128xf32>, vector<128x128xf32>, vector<128x128xf32> -> vector<128x128xf32>
    %c12_92 = arith.constant 12 : index
    %c0_93 = arith.constant 0 : index
    %c0_94 = arith.constant 0 : index
    %92 = vector.load %arg3[%c12_92, %c0_93, %c0_94] : memref<16x128x128xf32, #tpu.memory_space<vmem>>, vector<1x128x128xf32>
    %93 = vector.shape_cast %92 : vector<1x128x128xf32> to vector<128x128xf32>
    %cst_95 = arith.constant dense<0.000000e+00> : vector<128x128xf32>
    %94 = tpu.matmul %91, %93, %cst_95 {dimension_numbers = #tpu.dot_dimension_numbers<[1], [0], [0], [1], [0, 0, 1, 1], [], []>} : vector<128x128xf32>, vector<128x128xf32>, vector<128x128xf32> -> vector<128x128xf32>
    %95 = arith.addf %88, %94 : vector<128x128xf32>
    %c13 = arith.constant 13 : index
    %c0_96 = arith.constant 0 : index
    %c0_97 = arith.constant 0 : index
    %96 = vector.load %arg2[%c13, %c0_96, %c0_97] : memref<16x128x128xf32, #tpu.memory_space<vmem>>, vector<1x128x128xf32>
    %97 = vector.shape_cast %96 : vector<1x128x128xf32> to vector<128x128xf32>
    %cst_98 = arith.constant dense<0.000000e+00> : vector<128x128xf32>
    %98 = tpu.matmul %97, %5, %cst_98 {dimension_numbers = #tpu.dot_dimension_numbers<[1], [0], [0], [1], [0, 0, 1, 1], [], []>} : vector<128x128xf32>, vector<128x128xf32>, vector<128x128xf32> -> vector<128x128xf32>
    %c13_99 = arith.constant 13 : index
    %c0_100 = arith.constant 0 : index
    %c0_101 = arith.constant 0 : index
    %99 = vector.load %arg3[%c13_99, %c0_100, %c0_101] : memref<16x128x128xf32, #tpu.memory_space<vmem>>, vector<1x128x128xf32>
    %100 = vector.shape_cast %99 : vector<1x128x128xf32> to vector<128x128xf32>
    %cst_102 = arith.constant dense<0.000000e+00> : vector<128x128xf32>
    %101 = tpu.matmul %98, %100, %cst_102 {dimension_numbers = #tpu.dot_dimension_numbers<[1], [0], [0], [1], [0, 0, 1, 1], [], []>} : vector<128x128xf32>, vector<128x128xf32>, vector<128x128xf32> -> vector<128x128xf32>
    %102 = arith.addf %95, %101 : vector<128x128xf32>
    %c14 = arith.constant 14 : index
    %c0_103 = arith.constant 0 : index
    %c0_104 = arith.constant 0 : index
    %103 = vector.load %arg2[%c14, %c0_103, %c0_104] : memref<16x128x128xf32, #tpu.memory_space<vmem>>, vector<1x128x128xf32>
    %104 = vector.shape_cast %103 : vector<1x128x128xf32> to vector<128x128xf32>
    %cst_105 = arith.constant dense<0.000000e+00> : vector<128x128xf32>
    %105 = tpu.matmul %104, %5, %cst_105 {dimension_numbers = #tpu.dot_dimension_numbers<[1], [0], [0], [1], [0, 0, 1, 1], [], []>} : vector<128x128xf32>, vector<128x128xf32>, vector<128x128xf32> -> vector<128x128xf32>
    %c14_106 = arith.constant 14 : index
    %c0_107 = arith.constant 0 : index
    %c0_108 = arith.constant 0 : index
    %106 = vector.load %arg3[%c14_106, %c0_107, %c0_108] : memref<16x128x128xf32, #tpu.memory_space<vmem>>, vector<1x128x128xf32>
    %107 = vector.shape_cast %106 : vector<1x128x128xf32> to vector<128x128xf32>
    %cst_109 = arith.constant dense<0.000000e+00> : vector<128x128xf32>
    %108 = tpu.matmul %105, %107, %cst_109 {dimension_numbers = #tpu.dot_dimension_numbers<[1], [0], [0], [1], [0, 0, 1, 1], [], []>} : vector<128x128xf32>, vector<128x128xf32>, vector<128x128xf32> -> vector<128x128xf32>
    %109 = arith.addf %102, %108 : vector<128x128xf32>
    %c15 = arith.constant 15 : index
    %c0_110 = arith.constant 0 : index
    %c0_111 = arith.constant 0 : index
    %110 = vector.load %arg2[%c15, %c0_110, %c0_111] : memref<16x128x128xf32, #tpu.memory_space<vmem>>, vector<1x128x128xf32>
    %111 = vector.shape_cast %110 : vector<1x128x128xf32> to vector<128x128xf32>
    %cst_112 = arith.constant dense<0.000000e+00> : vector<128x128xf32>
    %112 = tpu.matmul %111, %5, %cst_112 {dimension_numbers = #tpu.dot_dimension_numbers<[1], [0], [0], [1], [0, 0, 1, 1], [], []>} : vector<128x128xf32>, vector<128x128xf32>, vector<128x128xf32> -> vector<128x128xf32>
    %c15_113 = arith.constant 15 : index
    %c0_114 = arith.constant 0 : index
    %c0_115 = arith.constant 0 : index
    %113 = vector.load %arg3[%c15_113, %c0_114, %c0_115] : memref<16x128x128xf32, #tpu.memory_space<vmem>>, vector<1x128x128xf32>
    %114 = vector.shape_cast %113 : vector<1x128x128xf32> to vector<128x128xf32>
    %cst_116 = arith.constant dense<0.000000e+00> : vector<128x128xf32>
    %115 = tpu.matmul %112, %114, %cst_116 {dimension_numbers = #tpu.dot_dimension_numbers<[1], [0], [0], [1], [0, 0, 1, 1], [], []>} : vector<128x128xf32>, vector<128x128xf32>, vector<128x128xf32> -> vector<128x128xf32>
    %116 = arith.addf %109, %115 : vector<128x128xf32>
    %cst_117 = arith.constant dense<0.000000e+00> : vector<128xf32>
    %117 = vector.multi_reduction <add>, %116, %cst_117 [0] : vector<128x128xf32> to vector<128xf32>
    %118 = vector.shape_cast %117 : vector<128xf32> to vector<1x128xf32>
    %cst_118 = arith.constant 3.125000e-02 : f32
    %119 = vector.broadcast %cst_118 : f32 to vector<1x128xf32>
    %120 = arith.mulf %118, %119 : vector<1x128xf32>
    %121 = tpu.iota {dimensions = array<i32: 0>} : vector<128x1xi32>
    %c32_i32 = arith.constant 32 : i32
    %122 = vector.broadcast %c32_i32 : i32 to vector<128x1xi32>
    %123 = arith.cmpi slt, %121, %122 : vector<128x1xi32>
    %124 = vector.broadcast %120 : vector<1x128xf32> to vector<128x128xf32>
    %125 = arith.subf %116, %124 : vector<128x128xf32>
    %cst_119 = arith.constant 0.000000e+00 : f32
    %126 = vector.shape_cast %123 : vector<128x1xi1> to vector<128x1xi1>
    %127 = vector.broadcast %126 : vector<128x1xi1> to vector<128x128xi1>
    %128 = vector.broadcast %cst_119 : f32 to vector<128x128xf32>
    %129 = arith.select %127, %125, %128 : vector<128x128xi1>, vector<128x128xf32>
    %130 = arith.mulf %129, %129 : vector<128x128xf32>
    %cst_120 = arith.constant dense<0.000000e+00> : vector<128xf32>
    %131 = vector.multi_reduction <add>, %130, %cst_120 [0] : vector<128x128xf32> to vector<128xf32>
    %132 = vector.shape_cast %131 : vector<128xf32> to vector<1x128xf32>
    %cst_121 = arith.constant 3.125000e-02 : f32
    %133 = vector.broadcast %cst_121 : f32 to vector<1x128xf32>
    %134 = arith.mulf %132, %133 : vector<1x128xf32>
    %135 = vector.broadcast %120 : vector<1x128xf32> to vector<128x128xf32>
    %136 = arith.subf %116, %135 : vector<128x128xf32>
    %cst_122 = arith.constant 9.99999974E-6 : f32
    %137 = vector.broadcast %cst_122 : f32 to vector<1x128xf32>
    %138 = arith.addf %134, %137 : vector<1x128xf32>
    %139 = math.rsqrt %138 : vector<1x128xf32>
    %140 = vector.broadcast %139 : vector<1x128xf32> to vector<128x128xf32>
    %141 = arith.mulf %136, %140 : vector<128x128xf32>
    %c0_123 = arith.constant 0 : index
    %c0_124 = arith.constant 0 : index
    %142 = vector.load %arg4[%c0_123, %c0_124] : memref<1x128xf32, #tpu.memory_space<vmem>>, vector<1x128xf32>
    %143 = vector.broadcast %142 : vector<1x128xf32> to vector<128x128xf32>
    %144 = arith.mulf %141, %143 : vector<128x128xf32>
    %c0_125 = arith.constant 0 : index
    %c0_126 = arith.constant 0 : index
    %145 = vector.load %arg5[%c0_125, %c0_126] : memref<1x128xf32, #tpu.memory_space<vmem>>, vector<1x128xf32>
    %146 = vector.broadcast %145 : vector<1x128xf32> to vector<128x128xf32>
    %147 = arith.addf %144, %146 : vector<128x128xf32>
    %cst_127 = arith.constant 2.000000e-01 : f32
    %148 = vector.broadcast %cst_127 : f32 to vector<128x128xf32>
    %149 = arith.mulf %148, %147 : vector<128x128xf32>
    %150 = arith.maximumf %147, %149 : vector<128x128xf32>
    %c0_128 = arith.constant 0 : index
    %c0_129 = arith.constant 0 : index
    %151 = vector.load %arg7[%c0_128, %c0_129] : memref<8x128xf32, #tpu.memory_space<vmem>>, vector<8x128xf32>
    %c0_130 = arith.constant 0 : index
    %c0_131 = arith.constant 0 : index
    %152 = vector.load %arg6[%c0_130, %c0_131] : memref<128x128xf32, #tpu.memory_space<vmem>>, vector<128x128xf32>
    %153 = arith.mulf %150, %152 : vector<128x128xf32>
    %cst_132 = arith.constant dense<0.000000e+00> : vector<8x128xf32>
    %154 = tpu.matmul %151, %153, %cst_132 {dimension_numbers = #tpu.dot_dimension_numbers<[1], [0], [0], [1], [0, 0, 1, 1], [], []>} : vector<8x128xf32>, vector<128x128xf32>, vector<8x128xf32> -> vector<8x128xf32>
    %cst_133 = arith.constant dense<0.000000e+00> : vector<8xf32>
    %155 = vector.multi_reduction <add>, %154, %cst_133 [1] : vector<8x128xf32> to vector<8xf32>
    %156 = vector.shape_cast %155 : vector<8xf32> to vector<8x1xf32>
    %157 = arith.negf %156 : vector<8x1xf32>
    %158 = math.exp %157 : vector<8x1xf32>
    %cst_134 = arith.constant 1.000000e+00 : f32
    %159 = vector.broadcast %cst_134 : f32 to vector<8x1xf32>
    %160 = arith.addf %159, %158 : vector<8x1xf32>
    %161 = arith.divf %159, %160 : vector<8x1xf32>
    %162 = vector.shape_cast %161 : vector<8x1xf32> to vector<8x1xf32>
    %163 = vector.broadcast %162 : vector<8x1xf32> to vector<8x128xf32>
    %c0_135 = arith.constant 0 : index
    %c0_136 = arith.constant 0 : index
    %164 = vector.load %arg8[%c0_135, %c0_136] : memref<8x128xf32, #tpu.memory_space<vmem>>, vector<8x128xf32>
    tpu.vector_store %arg8[%c0_135, %c0_136], %163 {strides = array<i32>} : memref<8x128xf32, #tpu.memory_space<vmem>>, vector<8x128xf32>,
    return
  }
}

</mosaic_0001>

<llo_original>
// kernel: _fwd.1
$region0: #{_fwd.1}
  #allocation0 [shape = 'u32[]', space=smem, size = 0x4, offset = 0x4, fixed_abs, tag = 'smem constant byte address 0x4 - core index']
  #allocation1 [shape = 'u32[144,128]{1,0:T(1,128)}', space=vmem, size = 0x12000, scoped, tag = 'internal scratch']
  %s0 = inlined_call_operand.vmem [shape: f32[128,128], index: 0, kind: input, shape index: {}]
  %s1 = inlined_call_operand.vmem [shape: f32[128,128], index: 1, kind: input, shape index: {}]
  %s2 = inlined_call_operand.vmem [shape: f32[16,128,128], index: 2, kind: input, shape index: {}]
  %s3 = inlined_call_operand.vmem [shape: f32[16,128,128], index: 3, kind: input, shape index: {}]
  %s4 = inlined_call_operand.vmem [shape: f32[1,128], index: 4, kind: input, shape index: {}]
  %s5 = inlined_call_operand.vmem [shape: f32[1,128], index: 5, kind: input, shape index: {}]
  %s6 = inlined_call_operand.vmem [shape: f32[128,128], index: 6, kind: input, shape index: {}]
  %s7 = inlined_call_operand.vmem [shape: f32[8,128], index: 7, kind: input, shape index: {}]
  %s8 = inlined_call_operand.vmem [shape: f32[8,128], index: 8, kind: output, shape index: {}]
  %s9 = sld [smem:[#allocation0]]
  $region42: #{_fwd.1} parent=0
    _
  %s11 = ssub.s32 1, %s9
  %s12 = scalar_select 0, %s11, %s9
  // Predicated region
  $region2: #{_fwd.1} parent=0 // pred_check
    _
  $region3: #{_fwd.1} parent=0 // pred_check_branch
    %14 = sbr.rel (0) target = $region5
  $region4: #{_fwd.1} parent=0 // pred_region
    _
  $region5: #{_fwd.1} parent=0 // pred_fallthru
    _
  // Predicated region
  $region6: #{_fwd.1} parent=0 // pred_check
    _
  $region7: #{_fwd.1} parent=0 // pred_check_branch
    %16 = sbr.rel (0) target = $region9
  $region8: #{_fwd.1} parent=0 // pred_region
    _
  $region9: #{_fwd.1} parent=0 // pred_fallthru
    _
  // Predicated region
  $region10: #{_fwd.1} parent=0 // pred_check
    _
  $region11: #{_fwd.1} parent=0 // pred_check_branch
    %18 = sbr.rel (0) target = $region13
  $region12: #{_fwd.1} parent=0 // pred_region
    _
  $region13: #{_fwd.1} parent=0 // pred_fallthru
    _
  // Predicated region
  $region14: #{_fwd.1} parent=0 // pred_check
    _
  $region15: #{_fwd.1} parent=0 // pred_check_branch
    %20 = sbr.rel (0) target = $region17
  $region16: #{_fwd.1} parent=0 // pred_region
    _
  $region17: #{_fwd.1} parent=0 // pred_fallthru
    _
  // Predicated region
  $region18: #{_fwd.1} parent=0 // pred_check
    _
  $region19: #{_fwd.1} parent=0 // pred_check_branch
    %22 = sbr.rel (0) target = $region21
  $region20: #{_fwd.1} parent=0 // pred_region
    _
  $region21: #{_fwd.1} parent=0 // pred_fallthru
    _
  // Predicated region
  $region22: #{_fwd.1} parent=0 // pred_check
    _
  $region23: #{_fwd.1} parent=0 // pred_check_branch
    %24 = sbr.rel (0) target = $region25
  $region24: #{_fwd.1} parent=0 // pred_region
    _
  $region25: #{_fwd.1} parent=0 // pred_fallthru
    _
  // Predicated region
  $region26: #{_fwd.1} parent=0 // pred_check
    _
  $region27: #{_fwd.1} parent=0 // pred_check_branch
    %26 = sbr.rel (0) target = $region29
  $region28: #{_fwd.1} parent=0 // pred_region
    _
  $region29: #{_fwd.1} parent=0 // pred_fallthru
    _
  // Predicated region
  $region30: #{_fwd.1} parent=0 // pred_check
    _
  $region31: #{_fwd.1} parent=0 // pred_check_branch
    %28 = sbr.rel (0) target = $region33
  $region32: #{_fwd.1} parent=0 // pred_region
    _
  $region33: #{_fwd.1} parent=0 // pred_fallthru
    _
  %v29 = vld [vmem:[%s0] sm:$0xff]
  %v30 = vld [vmem:[%s0 + $0x8] sm:$0xff]
  %v31 = vld [vmem:[%s0 + $0x10] sm:$0xff]
  %v32 = vld [vmem:[%s0 + $0x18] sm:$0xff]
  %v33 = vld [vmem:[%s0 + $0x20] sm:$0xff]
  %v34 = vld [vmem:[%s0 + $0x28] sm:$0xff]
  %v35 = vld [vmem:[%s0 + $0x30] sm:$0xff]
  %v36 = vld [vmem:[%s0 + $0x38] sm:$0xff]
  %v37 = vld [vmem:[%s0 + $0x40] sm:$0xff]
  %v38 = vld [vmem:[%s0 + $0x48] sm:$0xff]
  %v39 = vld [vmem:[%s0 + $0x50] sm:$0xff]
  %v40 = vld [vmem:[%s0 + $0x58] sm:$0xff]
  %v41 = vld [vmem:[%s0 + $0x60] sm:$0xff]
  %v42 = vld [vmem:[%s0 + $0x68] sm:$0xff]
  %v43 = vld [vmem:[%s0 + $0x70] sm:$0xff]
  %v44 = vld [vmem:[%s0 + $0x78] sm:$0xff]
  %v45 = vld [vmem:[%s1] sm:$0xff]
  %v46 = vld [vmem:[%s1 + $0x8] sm:$0xff]
  %v47 = vld [vmem:[%s1 + $0x10] sm:$0xff]
  %v48 = vld [vmem:[%s1 + $0x18] sm:$0xff]
  %v49 = vld [vmem:[%s1 + $0x20] sm:$0xff]
  %v50 = vld [vmem:[%s1 + $0x28] sm:$0xff]
  %v51 = vld [vmem:[%s1 + $0x30] sm:$0xff]
  %v52 = vld [vmem:[%s1 + $0x38] sm:$0xff]
  %v53 = vld [vmem:[%s1 + $0x40] sm:$0xff]
  %v54 = vld [vmem:[%s1 + $0x48] sm:$0xff]
  %v55 = vld [vmem:[%s1 + $0x50] sm:$0xff]
  %v56 = vld [vmem:[%s1 + $0x58] sm:$0xff]
  %v57 = vld [vmem:[%s1 + $0x60] sm:$0xff]
  %v58 = vld [vmem:[%s1 + $0x68] sm:$0xff]
  %v59 = vld [vmem:[%s1 + $0x70] sm:$0xff]
  %v60 = vld [vmem:[%s1 + $0x78] sm:$0xff]
  %61 = vmatprep.subr.mxu0 0.0
  %62 = vmatpush1.msra.mxu0 %v45
  %63 = vmatprep.subr.mxu0 0.0
  %64 = vmatpush1.msra.mxu0 %v46
  %65 = vmatprep.subr.mxu0 0.0
  %66 = vmatpush1.msra.mxu0 %v47
  %67 = vmatprep.subr.mxu0 0.0
  %68 = vmatpush1.msra.mxu0 %v48
  %69 = vmatprep.subr.mxu0 0.0
  %70 = vmatpush1.msra.mxu0 %v49
  %71 = vmatprep.subr.mxu0 0.0
  %72 = vmatpush1.msra.mxu0 %v50
  %73 = vmatprep.subr.mxu0 0.0
  %74 = vmatpush1.msra.mxu0 %v51
  %75 = vmatprep.subr.mxu0 0.0
  %76 = vmatpush1.msra.mxu0 %v52
  %77 = vmatprep.subr.mxu0 0.0
  %78 = vmatpush1.msra.mxu0 %v53
  %79 = vmatprep.subr.mxu0 0.0
  %80 = vmatpush1.msra.mxu0 %v54
  %81 = vmatprep.subr.mxu0 0.0
  %82 = vmatpush1.msra.mxu0 %v55
  %83 = vmatprep.subr.mxu0 0.0
  %84 = vmatpush1.msra.mxu0 %v56
  %85 = vmatprep.subr.mxu0 0.0
  %86 = vmatpush1.msra.mxu0 %v57
  %87 = vmatprep.subr.mxu0 0.0
  %88 = vmatpush1.msra.mxu0 %v58
  %89 = vmatprep.subr.mxu0 0.0
  %90 = vmatpush1.msra.mxu0 %v59
  %91 = vmatprep.subr.mxu0 0.0
  %92 = vmatpush1.msra.mxu0 %v60
  %93 = vmatprep.subr.mxu0 0.0
  %94 = vmatpush1.msra.mxu0 0.0
  %95 = vmatprep.subr.mxu0 0.0
  %96 = vmatpush1.msra.mxu0 0.0
  %97 = vmatprep.subr.mxu0 0.0
  %98 = vmatpush1.msra.mxu0 0.0
  %99 = vmatprep.subr.mxu0 0.0
  %100 = vmatpush1.msra.mxu0 0.0
  %101 = vmatprep.subr.mxu0 0.0
  %102 = vmatpush1.msra.mxu0 0.0
  %103 = vmatprep.subr.mxu0 0.0
  %104 = vmatpush1.msra.mxu0 0.0
  %105 = vmatprep.subr.mxu0 0.0
  %106 = vmatpush1.msra.mxu0 0.0
  %107 = vmatprep.subr.mxu0 0.0
  %108 = vmatpush1.msra.mxu0 0.0
  %109 = vmatprep.subr.mxu0 0.0
  %110 = vmatpush1.msra.mxu0 0.0
  %111 = vmatprep.subr.mxu0 0.0
  %112 = vmatpush1.msra.mxu0 0.0
  %113 = vmatprep.subr.mxu0 0.0
  %114 = vmatpush1.msra.mxu0 0.0
  %115 = vmatprep.subr.mxu0 0.0
  %116 = vmatpush1.msra.mxu0 0.0
  %117 = vmatprep.subr.mxu0 0.0
  %118 = vmatpush1.msra.mxu0 0.0
  %119 = vmatprep.subr.mxu0 0.0
  %120 = vmatpush1.msra.mxu0 0.0
  %121 = vmatprep.subr.mxu0 0.0
  %122 = vmatpush1.msra.mxu0 0.0
  %123 = vmatprep.subr.mxu0 0.0
  %124 = vmatpush1.msra.mxu0 0.0
  %125 = vmatprep.mubr.f32.mxu0 0.0
  %126 = vmatmul.mubr.f32.gmra.mrb[0].mxu0 %v29
  %v127 = vpop.f32.mrb[0].mxu0
  %v128 = vadd.f32 0.0, %v127
  %v129 = vpop.f32.mrb[0].mxu0
  %130 = vmatprep.mubr.f32.mxu0 0.0
  %131 = vmatmul.mubr.f32.gmra.mrb[0].mxu0 %v30
  %v132 = vpop.f32.mrb[0].mxu0
  %v133 = vadd.f32 0.0, %v132
  %v134 = vpop.f32.mrb[0].mxu0
  %135 = vmatprep.mubr.f32.mxu0 0.0
  %136 = vmatmul.mubr.f32.gmra.mrb[0].mxu0 %v31
  %v137 = vpop.f32.mrb[0].mxu0
  %v138 = vadd.f32 0.0, %v137
  %v139 = vpop.f32.mrb[0].mxu0
  %140 = vmatprep.mubr.f32.mxu0 0.0
  %141 = vmatmul.mubr.f32.gmra.mrb[0].mxu0 %v32
  %v142 = vpop.f32.mrb[0].mxu0
  %v143 = vadd.f32 0.0, %v142
  %v144 = vpop.f32.mrb[0].mxu0
  %145 = vmatprep.mubr.f32.mxu0 0.0
  %146 = vmatmul.mubr.f32.gmra.mrb[0].mxu0 %v33
  %v147 = vpop.f32.mrb[0].mxu0
  %v148 = vadd.f32 0.0, %v147
  %v149 = vpop.f32.mrb[0].mxu0
  %150 = vmatprep.mubr.f32.mxu0 0.0
  %151 = vmatmul.mubr.f32.gmra.mrb[0].mxu0 %v34
  %v152 = vpop.f32.mrb[0].mxu0
  %v153 = vadd.f32 0.0, %v152
  %v154 = vpop.f32.mrb[0].mxu0
  %155 = vmatprep.mubr.f32.mxu0 0.0
  %156 = vmatmul.mubr.f32.gmra.mrb[0].mxu0 %v35
  %v157 = vpop.f32.mrb[0].mxu0
  %v158 = vadd.f32 0.0, %v157
  %v159 = vpop.f32.mrb[0].mxu0
  %160 = vmatprep.mubr.f32.mxu0 0.0
  %161 = vmatmul.mubr.f32.gmra.mrb[0].mxu0 %v36
  %v162 = vpop.f32.mrb[0].mxu0
  %v163 = vadd.f32 0.0, %v162
  %v164 = vpop.f32.mrb[0].mxu0
  %165 = vmatprep.mubr.f32.mxu0 0.0
  %166 = vmatmul.mubr.f32.gmra.mrb[0].mxu0 %v37
  %v167 = vpop.f32.mrb[0].mxu0
  %v168 = vadd.f32 0.0, %v167
  %v169 = vpop.f32.mrb[0].mxu0
  %170 = vmatprep.mubr.f32.mxu0 0.0
  %171 = vmatmul.mubr.f32.gmra.mrb[0].mxu0 %v38
  %v172 = vpop.f32.mrb[0].mxu0
  %v173 = vadd.f32 0.0, %v172
  %v174 = vpop.f32.mrb[0].mxu0
  %175 = vmatprep.mubr.f32.mxu0 0.0
  %176 = vmatmul.mubr.f32.gmra.mrb[0].mxu0 %v39
  %v177 = vpop.f32.mrb[0].mxu0
  %v178 = vadd.f32 0.0, %v177
  %v179 = vpop.f32.mrb[0].mxu0
  %180 = vmatprep.mubr.f32.mxu0 0.0
  %181 = vmatmul.mubr.f32.gmra.mrb[0].mxu0 %v40
  %v182 = vpop.f32.mrb[0].mxu0
  %v183 = vadd.f32 0.0, %v182
  %v184 = vpop.f32.mrb[0].mxu0
  %185 = vmatprep.mubr.f32.mxu0 0.0
  %186 = vmatmul.mubr.f32.gmra.mrb[0].mxu0 %v41
  %v187 = vpop.f32.mrb[0].mxu0
  %v188 = vadd.f32 0.0, %v187
  %v189 = vpop.f32.mrb[0].mxu0
  %190 = vmatprep.mubr.f32.mxu0 0.0
  %191 = vmatmul.mubr.f32.gmra.mrb[0].mxu0 %v42
  %v192 = vpop.f32.mrb[0].mxu0
  %v193 = vadd.f32 0.0, %v192
  %v194 = vpop.f32.mrb[0].mxu0
  %195 = vmatprep.mubr.f32.mxu0 0.0
  %196 = vmatmul.mubr.f32.gmra.mrb[0].mxu0 %v43
  %v197 = vpop.f32.mrb[0].mxu0
  %v198 = vadd.f32 0.0, %v197
  %v199 = vpop.f32.mrb[0].mxu0
  %200 = vmatprep.mubr.f32.mxu0 0.0
  %201 = vmatmul.mubr.f32.gmra.mrb[0].mxu0 %v44
  %v202 = vpop.f32.mrb[0].mxu0
  %v203 = vadd.f32 0.0, %v202
  %v204 = vpop.f32.mrb[0].mxu0
  %205 = vdwg.mxu0
  %v206 = vmul.f32 %v128, 0.2
  %v207 = vmul.f32 %v133, 0.2
  %v208 = vmul.f32 %v138, 0.2
  %v209 = vmul.f32 %v143, 0.2
  %v210 = vmul.f32 %v148, 0.2
  %v211 = vmul.f32 %v153, 0.2
  %v212 = vmul.f32 %v158, 0.2
  %v213 = vmul.f32 %v163, 0.2
  %v214 = vmul.f32 %v168, 0.2
  %v215 = vmul.f32 %v173, 0.2
  %v216 = vmul.f32 %v178, 0.2
  %v217 = vmul.f32 %v183, 0.2
  %v218 = vmul.f32 %v188, 0.2
  %v219 = vmul.f32 %v193, 0.2
  %v220 = vmul.f32 %v198, 0.2
  %v221 = vmul.f32 %v203, 0.2
  %v222 = vmax.f32 %v128, %v206
  %v223 = vmax.f32 %v133, %v207
  %v224 = vmax.f32 %v138, %v208
  %v225 = vmax.f32 %v143, %v209
  %v226 = vmax.f32 %v148, %v210
  %v227 = vmax.f32 %v153, %v211
  %v228 = vmax.f32 %v158, %v212
  %v229 = vmax.f32 %v163, %v213
  %v230 = vmax.f32 %v168, %v214
  %v231 = vmax.f32 %v173, %v215
  %v232 = vmax.f32 %v178, %v216
  %v233 = vmax.f32 %v183, %v217
  %v234 = vmax.f32 %v188, %v218
  %v235 = vmax.f32 %v193, %v219
  %v236 = vmax.f32 %v198, %v220
  %v237 = vmax.f32 %v203, %v221
  %v238 = vld [vmem:[%s2] sm:$0xff]
  %v239 = vld [vmem:[%s2 + $0x8] sm:$0xff]
  %v240 = vld [vmem:[%s2 + $0x10] sm:$0xff]
  %v241 = vld [vmem:[%s2 + $0x18] sm:$0xff]
  %v242 = vld [vmem:[%s2 + $0x20] sm:$0xff]
  %v243 = vld [vmem:[%s2 + $0x28] sm:$0xff]
  %v244 = vld [vmem:[%s2 + $0x30] sm:$0xff]
  %v245 = vld [vmem:[%s2 + $0x38] sm:$0xff]
  %v246 = vld [vmem:[%s2 + $0x40] sm:$0xff]
  %v247 = vld [vmem:[%s2 + $0x48] sm:$0xff]
  %v248 = vld [vmem:[%s2 + $0x50] sm:$0xff]
  %v249 = vld [vmem:[%s2 + $0x58] sm:$0xff]
  %v250 = vld [vmem:[%s2 + $0x60] sm:$0xff]
  %v251 = vld [vmem:[%s2 + $0x68] sm:$0xff]
  %v252 = vld [vmem:[%s2 + $0x70] sm:$0xff]
  %v253 = vld [vmem:[%s2 + $0x78] sm:$0xff]
  %254 = vmatprep.subr.mxu0 0.0
  %255 = vmatpush1.msra.mxu0 %v222
  %256 = vmatprep.subr.mxu0 0.0
  %257 = vmatpush1.msra.mxu0 %v223
  %258 = vmatprep.subr.mxu0 0.0
  %259 = vmatpush1.msra.mxu0 %v224
  %260 = vmatprep.subr.mxu0 0.0
  %261 = vmatpush1.msra.mxu0 %v225
  %262 = vmatprep.subr.mxu0 0.0
  %263 = vmatpush1.msra.mxu0 %v226
  %264 = vmatprep.subr.mxu0 0.0
  %265 = vmatpush1.msra.mxu0 %v227
  %266 = vmatprep.subr.mxu0 0.0
  %267 = vmatpush1.msra.mxu0 %v228
  %268 = vmatprep.subr.mxu0 0.0
  %269 = vmatpush1.msra.mxu0 %v229
  %270 = vmatprep.subr.mxu0 0.0
  %271 = vmatpush1.msra.mxu0 %v230
  %272 = vmatprep.subr.mxu0 0.0
  %273 = vmatpush1.msra.mxu0 %v231
  %274 = vmatprep.subr.mxu0 0.0
  %275 = vmatpush1.msra.mxu0 %v232
  %276 = vmatprep.subr.mxu0 0.0
  %277 = vmatpush1.msra.mxu0 %v233
  %278 = vmatprep.subr.mxu0 0.0
  %279 = vmatpush1.msra.mxu0 %v234
  %280 = vmatprep.subr.mxu0 0.0
  %281 = vmatpush1.msra.mxu0 %v235
  %282 = vmatprep.subr.mxu0 0.0
  %283 = vmatpush1.msra.mxu0 %v236
  %284 = vmatprep.subr.mxu0 0.0
  %285 = vmatpush1.msra.mxu0 %v237
  %286 = vmatprep.subr.mxu0 0.0
  %287 = vmatpush1.msra.mxu0 0.0
  %288 = vmatprep.subr.mxu0 0.0
  %289 = vmatpush1.msra.mxu0 0.0
  %290 = vmatprep.subr.mxu0 0.0
  %291 = vmatpush1.msra.mxu0 0.0
  %292 = vmatprep.subr.mxu0 0.0
  %293 = vmatpush1.msra.mxu0 0.0
  %294 = vmatprep.subr.mxu0 0.0
  %295 = vmatpush1.msra.mxu0 0.0
  %296 = vmatprep.subr.mxu0 0.0
  %297 = vmatpush1.msra.mxu0 0.0
  %298 = vmatprep.subr.mxu0 0.0
  %299 = vmatpush1.msra.mxu0 0.0
  %300 = vmatprep.subr.mxu0 0.0
  %301 = vmatpush1.msra.mxu0 0.0
  %302 = vmatprep.subr.mxu0 0.0
  %303 = vmatpush1.msra.mxu0 0.0
  %304 = vmatprep.subr.mxu0 0.0
  %305 = vmatpush1.msra.mxu0 0.0
  %306 = vmatprep.subr.mxu0 0.0
  %307 = vmatpush1.msra.mxu0 0.0
  %308 = vmatprep.subr.mxu0 0.0
  %309 = vmatpush1.msra.mxu0 0.0
  %310 = vmatprep.subr.mxu0 0.0
  %311 = vmatpush1.msra.mxu0 0.0
  %312 = vmatprep.subr.mxu0 0.0
  %313 = vmatpush1.msra.mxu0 0.0
  %314 = vmatprep.subr.mxu0 0.0
  %315 = vmatpush1.msra.mxu0 0.0
  %316 = vmatprep.subr.mxu0 0.0
  %317 = vmatpush1.msra.mxu0 0.0
  %318 = vmatprep.mubr.f32.mxu0 0.0
  %319 = vmatmul.mubr.f32.gmra.mrb[0].mxu0 %v238
  %v320 = vpop.f32.mrb[0].mxu0
  %v321 = vadd.f32 0.0, %v320
  %v322 = vpop.f32.mrb[0].mxu0
  %323 = vmatprep.mubr.f32.mxu0 0.0
  %324 = vmatmul.mubr.f32.gmra.mrb[0].mxu0 %v239
  %v325 = vpop.f32.mrb[0].mxu0
  %v326 = vadd.f32 0.0, %v325
  %v327 = vpop.f32.mrb[0].mxu0
  %328 = vmatprep.mubr.f32.mxu0 0.0
  %329 = vmatmul.mubr.f32.gmra.mrb[0].mxu0 %v240
  %v330 = vpop.f32.mrb[0].mxu0
  %v331 = vadd.f32 0.0, %v330
  %v332 = vpop.f32.mrb[0].mxu0
  %333 = vmatprep.mubr.f32.mxu0 0.0
  %334 = vmatmul.mubr.f32.gmra.mrb[0].mxu0 %v241
  %v335 = vpop.f32.mrb[0].mxu0
  %v336 = vadd.f32 0.0, %v335
  %v337 = vpop.f32.mrb[0].mxu0
  %338 = vmatprep.mubr.f32.mxu0 0.0
  %339 = vmatmul.mubr.f32.gmra.mrb[0].mxu0 %v242
  %v340 = vpop.f32.mrb[0].mxu0
  %v341 = vadd.f32 0.0, %v340
  %v342 = vpop.f32.mrb[0].mxu0
  %343 = vmatprep.mubr.f32.mxu0 0.0
  %344 = vmatmul.mubr.f32.gmra.mrb[0].mxu0 %v243
  %v345 = vpop.f32.mrb[0].mxu0
  %v346 = vadd.f32 0.0, %v345
  %v347 = vpop.f32.mrb[0].mxu0
  %348 = vmatprep.mubr.f32.mxu0 0.0
  %349 = vmatmul.mubr.f32.gmra.mrb[0].mxu0 %v244
  %v350 = vpop.f32.mrb[0].mxu0
  %v351 = vadd.f32 0.0, %v350
  %v352 = vpop.f32.mrb[0].mxu0
  %353 = vmatprep.mubr.f32.mxu0 0.0
  %354 = vmatmul.mubr.f32.gmra.mrb[0].mxu0 %v245
  %v355 = vpop.f32.mrb[0].mxu0
  %v356 = vadd.f32 0.0, %v355
  %v357 = vpop.f32.mrb[0].mxu0
  %358 = vmatprep.mubr.f32.mxu0 0.0
  %359 = vmatmul.mubr.f32.gmra.mrb[0].mxu0 %v246
  %v360 = vpop.f32.mrb[0].mxu0
  %v361 = vadd.f32 0.0, %v360
  %v362 = vpop.f32.mrb[0].mxu0
  %363 = vmatprep.mubr.f32.mxu0 0.0
  %364 = vmatmul.mubr.f32.gmra.mrb[0].mxu0 %v247
  %v365 = vpop.f32.mrb[0].mxu0
  %v366 = vadd.f32 0.0, %v365
  %v367 = vpop.f32.mrb[0].mxu0
  %368 = vmatprep.mubr.f32.mxu0 0.0
  %369 = vmatmul.mubr.f32.gmra.mrb[0].mxu0 %v248
  %v370 = vpop.f32.mrb[0].mxu0
  %v371 = vadd.f32 0.0, %v370
  %v372 = vpop.f32.mrb[0].mxu0
  %373 = vmatprep.mubr.f32.mxu0 0.0
  %374 = vmatmul.mubr.f32.gmra.mrb[0].mxu0 %v249
  %v375 = vpop.f32.mrb[0].mxu0
  %v376 = vadd.f32 0.0, %v375
  %v377 = vpop.f32.mrb[0].mxu0
  %378 = vmatprep.mubr.f32.mxu0 0.0
  %379 = vmatmul.mubr.f32.gmra.mrb[0].mxu0 %v250
  %v380 = vpop.f32.mrb[0].mxu0
  %v381 = vadd.f32 0.0, %v380
  %v382 = vpop.f32.mrb[0].mxu0
  %383 = vmatprep.mubr.f32.mxu0 0.0
  %384 = vmatmul.mubr.f32.gmra.mrb[0].mxu0 %v251
  %v385 = vpop.f32.mrb[0].mxu0
  %v386 = vadd.f32 0.0, %v385
  %v387 = vpop.f32.mrb[0].mxu0
  %388 = vmatprep.mubr.f32.mxu0 0.0
  %389 = vmatmul.mubr.f32.gmra.mrb[0].mxu0 %v252
  %v390 = vpop.f32.mrb[0].mxu0
  %v391 = vadd.f32 0.0, %v390
  %v392 = vpop.f32.mrb[0].mxu0
  %393 = vmatprep.mubr.f32.mxu0 0.0
  %394 = vmatmul.mubr.f32.gmra.mrb[0].mxu0 %v253
  %v395 = vpop.f32.mrb[0].mxu0
  %v396 = vadd.f32 0.0, %v395
  %v397 = vpop.f32.mrb[0].mxu0
  %398 = vdwg.mxu0
  %v399 = vld [vmem:[%s3] sm:$0xff]
  %v400 = vld [vmem:[%s3 + $0x8] sm:$0xff]
  %v401 = vld [vmem:[%s3 + $0x10] sm:$0xff]
  %v402 = vld [vmem:[%s3 + $0x18] sm:$0xff]
  %v403 = vld [vmem:[%s3 + $0x20] sm:$0xff]
  %v404 = vld [vmem:[%s3 + $0x28] sm:$0xff]
  %v405 = vld [vmem:[%s3 + $0x30] sm:$0xff]
  %v406 = vld [vmem:[%s3 + $0x38] sm:$0xff]
  %v407 = vld [vmem:[%s3 + $0x40] sm:$0xff]
  %v408 = vld [vmem:[%s3 + $0x48] sm:$0xff]
  %v409 = vld [vmem:[%s3 + $0x50] sm:$0xff]
  %v410 = vld [vmem:[%s3 + $0x58] sm:$0xff]
  %v411 = vld [vmem:[%s3 + $0x60] sm:$0xff]
  %v412 = vld [vmem:[%s3 + $0x68] sm:$0xff]
  %v413 = vld [vmem:[%s3 + $0x70] sm:$0xff]
  %v414 = vld [vmem:[%s3 + $0x78] sm:$0xff]
  %s415 = scalar_lea.vmem %s2, 128
  %v416 = vld [vmem:[%s415] sm:$0xff]
  %v417 = vld [vmem:[%s415 + $0x8] sm:$0xff]
  %v418 = vld [vmem:[%s415 + $0x10] sm:$0xff]
  %v419 = vld [vmem:[%s415 + $0x18] sm:$0xff]
  %v420 = vld [vmem:[%s415 + $0x20] sm:$0xff]
  %v421 = vld [vmem:[%s415 + $0x28] sm:$0xff]
  %v422 = vld [vmem:[%s415 + $0x30] sm:$0xff]
  %v423 = vld [vmem:[%s415 + $0x38] sm:$0xff]
  %v424 = vld [vmem:[%s415 + $0x40] sm:$0xff]
  %v425 = vld [vmem:[%s415 + $0x48] sm:$0xff]
  %v426 = vld [vmem:[%s415 + $0x50] sm:$0xff]
  %v427 = vld [vmem:[%s415 + $0x58] sm:$0xff]
  %v428 = vld [vmem:[%s415 + $0x60] sm:$0xff]
  %v429 = vld [vmem:[%s415 + $0x68] sm:$0xff]
  %v430 = vld [vmem:[%s415 + $0x70] sm:$0xff]
  %v431 = vld [vmem:[%s415 + $0x78] sm:$0xff]
  %432 = vmatprep.subr.mxu0 0.0
  %433 = vmatpush1.msra.mxu0 %v222
  %434 = vmatprep.subr.mxu0 0.0
  %435 = vmatpush1.msra.mxu0 %v223
  %436 = vmatprep.subr.mxu0 0.0
  %437 = vmatpush1.msra.mxu0 %v224
  %438 = vmatprep.subr.mxu0 0.0
  %439 = vmatpush1.msra.mxu0 %v225
  %440 = vmatprep.subr.mxu0 0.0
  %441 = vmatpush1.msra.mxu0 %v226
  %442 = vmatprep.subr.mxu0 0.0
  %443 = vmatpush1.msra.mxu0 %v227
  %444 = vmatprep.subr.mxu0 0.0
  %445 = vmatpush1.msra.mxu0 %v228
  %446 = vmatprep.subr.mxu0 0.0
  %447 = vmatpush1.msra.mxu0 %v229
  %448 = vmatprep.subr.mxu0 0.0
  %449 = vmatpush1.msra.mxu0 %v230
  %450 = vmatprep.subr.mxu0 0.0
  %451 = vmatpush1.msra.mxu0 %v231
  %452 = vmatprep.subr.mxu0 0.0
  %453 = vmatpush1.msra.mxu0 %v232
  %454 = vmatprep.subr.mxu0 0.0
  %455 = vmatpush1.msra.mxu0 %v233
  %456 = vmatprep.subr.mxu0 0.0
  %457 = vmatpush1.msra.mxu0 %v234
  %458 = vmatprep.subr.mxu0 0.0
  %459 = vmatpush1.msra.mxu0 %v235
  %460 = vmatprep.subr.mxu0 0.0
  %461 = vmatpush1.msra.mxu0 %v236
  %462 = vmatprep.subr.mxu0 0.0
  %463 = vmatpush1.msra.mxu0 %v237
  %464 = vmatprep.subr.mxu0 0.0
  %465 = vmatpush1.msra.mxu0 0.0
  %466 = vmatprep.subr.mxu0 0.0
  %467 = vmatpush1.msra.mxu0 0.0
  %468 = vmatprep.subr.mxu0 0.0
  %469 = vmatpush1.msra.mxu0 0.0
  %470 = vmatprep.subr.mxu0 0.0
  %471 = vmatpush1.msra.mxu0 0.0
  %472 = vmatprep.subr.mxu0 0.0
  %473 = vmatpush1.msra.mxu0 0.0
  %474 = vmatprep.subr.mxu0 0.0
  %475 = vmatpush1.msra.mxu0 0.0
  %476 = vmatprep.subr.mxu0 0.0
  %477 = vmatpush1.msra.mxu0 0.0
  %478 = vmatprep.subr.mxu0 0.0
  %479 = vmatpush1.msra.mxu0 0.0
  %480 = vmatprep.subr.mxu0 0.0
  %481 = vmatpush1.msra.mxu0 0.0
  %482 = vmatprep.subr.mxu0 0.0
  %483 = vmatpush1.msra.mxu0 0.0
  %484 = vmatprep.subr.mxu0 0.0
  %485 = vmatpush1.msra.mxu0 0.0
  %486 = vmatprep.subr.mxu0 0.0
  %487 = vmatpush1.msra.mxu0 0.0
  %488 = vmatprep.subr.mxu0 0.0
  %489 = vmatpush1.msra.mxu0 0.0
  %490 = vmatprep.subr.mxu0 0.0
  %491 = vmatpush1.msra.mxu0 0.0
  %492 = vmatprep.subr.mxu0 0.0
  %493 = vmatpush1.msra.mxu0 0.0
  %494 = vmatprep.subr.mxu0 0.0
  %495 = vmatpush1.msra.mxu0 0.0
  %496 = vmatprep.mubr.f32.mxu0 0.0
  %497 = vmatmul.mubr.f32.gmra.mrb[0].mxu0 %v416
  %v498 = vpop.f32.mrb[0].mxu0
  %v499 = vadd.f32 0.0, %v498
  %v500 = vpop.f32.mrb[0].mxu0
  %501 = vmatprep.mubr.f32.mxu0 0.0
  %502 = vmatmul.mubr.f32.gmra.mrb[0].mxu0 %v417
  %v503 = vpop.f32.mrb[0].mxu0
  %v504 = vadd.f32 0.0, %v503
  %v505 = vpop.f32.mrb[0].mxu0
  %506 = vmatprep.mubr.f32.mxu0 0.0
  %507 = vmatmul.mubr.f32.gmra.mrb[0].mxu0 %v418
  %v508 = vpop.f32.mrb[0].mxu0
  %v509 = vadd.f32 0.0, %v508
  %v510 = vpop.f32.mrb[0].mxu0
  %511 = vmatprep.mubr.f32.mxu0 0.0
  %512 = vmatmul.mubr.f32.gmra.mrb[0].mxu0 %v419
  %v513 = vpop.f32.mrb[0].mxu0
  %v514 = vadd.f32 0.0, %v513
  %v515 = vpop.f32.mrb[0].mxu0
  %516 = vmatprep.mubr.f32.mxu0 0.0
  %517 = vmatmul.mubr.f32.gmra.mrb[0].mxu0 %v420
  %v518 = vpop.f32.mrb[0].mxu0
  %v519 = vadd.f32 0.0, %v518
  %v520 = vpop.f32.mrb[0].mxu0
  %521 = vmatprep.mubr.f32.mxu0 0.0
  %522 = vmatmul.mubr.f32.gmra.mrb[0].mxu0 %v421
  %v523 = vpop.f32.mrb[0].mxu0
  %v524 = vadd.f32 0.0, %v523
  %v525 = vpop.f32.mrb[0].mxu0
  %526 = vmatprep.mubr.f32.mxu0 0.0
  %527 = vmatmul.mubr.f32.gmra.mrb[0].mxu0 %v422
  %v528 = vpop.f32.mrb[0].mxu0
  %v529 = vadd.f32 0.0, %v528
  %v530 = vpop.f32.mrb[0].mxu0
  %531 = vmatprep.mubr.f32.mxu0 0.0
  %532 = vmatmul.mubr.f32.gmra.mrb[0].mxu0 %v423
  %v533 = vpop.f32.mrb[0].mxu0
  %v534 = vadd.f32 0.0, %v533
  %v535 = vpop.f32.mrb[0].mxu0
  %536 = vmatprep.mubr.f32.mxu0 0.0
  %537 = vmatmul.mubr.f32.gmra.mrb[0].mxu0 %v424
  %v538 = vpop.f32.mrb[0].mxu0
  %v539 = vadd.f32 0.0, %v538
  %v540 = vpop.f32.mrb[0].mxu0
  %541 = vmatprep.mubr.f32.mxu0 0.0
  %542 = vmatmul.mubr.f32.gmra.mrb[0].mxu0 %v425
  %v543 = vpop.f32.mrb[0].mxu0
  %v544 = vadd.f32 0.0, %v543
  %v545 = vpop.f32.mrb[0].mxu0
  %546 = vmatprep.mubr.f32.mxu0 0.0
  %547 = vmatmul.mubr.f32.gmra.mrb[0].mxu0 %v426
  %v548 = vpop.f32.mrb[0].mxu0
  %v549 = vadd.f32 0.0, %v548
  %v550 = vpop.f32.mrb[0].mxu0
  %551 = vmatprep.mubr.f32.mxu0 0.0
  %552 = vmatmul.mubr.f32.gmra.mrb[0].mxu0 %v427
  %v553 = vpop.f32.mrb[0].mxu0
  %v554 = vadd.f32 0.0, %v553
  %v555 = vpop.f32.mrb[0].mxu0
  %556 = vmatprep.mubr.f32.mxu0 0.0
  %557 = vmatmul.mubr.f32.gmra.mrb[0].mxu0 %v428
  %v558 = vpop.f32.mrb[0].mxu0
  %v559 = vadd.f32 0.0, %v558
  %v560 = vpop.f32.mrb[0].mxu0
  %561 = vmatprep.mubr.f32.mxu0 0.0
  %562 = vmatmul.mubr.f32.gmra.mrb[0].mxu0 %v429
  %v563 = vpop.f32.mrb[0].mxu0
  %v564 = vadd.f32 0.0, %v563
  %v565 = vpop.f32.mrb[0].mxu0
  %566 = vmatprep.mubr.f32.mxu0 0.0
  %567 = vmatmul.mubr.f32.gmra.mrb[0].mxu0 %v430
  %v568 = vpop.f32.mrb[0].mxu0
  %v569 = vadd.f32 0.0, %v568
  %v570 = vpop.f32.mrb[0].mxu0
  %571 = vmatprep.mubr.f32.mxu0 0.0
  %572 = vmatmul.mubr.f32.gmra.mrb[0].mxu0 %v431
  %v573 = vpop.f32.mrb[0].mxu0
  %v574 = vadd.f32 0.0, %v573
  %v575 = vpop.f32.mrb[0].mxu0
  %576 = vdwg.mxu0
  %s577 = scalar_lea.vmem %s3, 128
  %v578 = vld [vmem:[%s577] sm:$0xff]
  %v579 = vld [vmem:[%s577 + $0x8] sm:$0xff]
  %v580 = vld [vmem:[%s577 + $0x10] sm:$0xff]
  %v581 = vld [vmem:[%s577 + $0x18] sm:$0xff]
  %v582 = vld [vmem:[%s577 + $0x20] sm:$0xff]
  %v583 = vld [vmem:[%s577 + $0x28] sm:$0xff]
  %v584 = vld [vmem:[%s577 + $0x30] sm:$0xff]
  %v585 = vld [vmem:[%s577 + $0x38] sm:$0xff]
  %v586 = vld [vmem:[%s577 + $0x40] sm:$0xff]
  %v587 = vld [vmem:[%s577 + $0x48] sm:$0xff]
  %v588 = vld [vmem:[%s577 + $0x50] sm:$0xff]
  %v589 = vld [vmem:[%s577 + $0x58] sm:$0xff]
  %v590 = vld [vmem:[%s577 + $0x60] sm:$0xff]
  %v591 = vld [vmem:[%s577 + $0x68] sm:$0xff]
  %v592 = vld [vmem:[%s577 + $0x70] sm:$0xff]
  %v593 = vld [vmem:[%s577 + $0x78] sm:$0xff]
  %594 = vmatprep.subr.mxu0 0.0
  %595 = vmatpush1.msra.mxu0 %v578
  %596 = vmatprep.subr.mxu0 0.0
  %597 = vmatpush1.msra.mxu0 %v579
  %598 = vmatprep.subr.mxu0 0.0
  %599 = vmatpush1.msra.mxu0 %v580
  %600 = vmatprep.subr.mxu0 0.0
  %601 = vmatpush1.msra.mxu0 %v581
  %602 = vmatprep.subr.mxu0 0.0
  %603 = vmatpush1.msra.mxu0 %v582
  %604 = vmatprep.subr.mxu0 0.0
  %605 = vmatpush1.msra.mxu0 %v583
  %606 = vmatprep.subr.mxu0 0.0
  %607 = vmatpush1.msra.mxu0 %v584
  %608 = vmatprep.subr.mxu0 0.0
  %609 = vmatpush1.msra.mxu0 %v585
  %610 = vmatprep.subr.mxu0 0.0
  %611 = vmatpush1.msra.mxu0 %v586
  %612 = vmatprep.subr.mxu0 0.0
  %613 = vmatpush1.msra.mxu0 %v587
  %614 = vmatprep.subr.mxu0 0.0
  %615 = vmatpush1.msra.mxu0 %v588
  %616 = vmatprep.subr.mxu0 0.0
  %617 = vmatpush1.msra.mxu0 %v589
  %618 = vmatprep.subr.mxu0 0.0
  %619 = vmatpush1.msra.mxu0 %v590
  %620 = vmatprep.subr.mxu0 0.0
  %621 = vmatpush1.msra.mxu0 %v591
  %622 = vmatprep.subr.mxu0 0.0
  %623 = vmatpush1.msra.mxu0 %v592
  %624 = vmatprep.subr.mxu0 0.0
  %625 = vmatpush1.msra.mxu0 %v593
  %626 = vmatprep.subr.mxu0 0.0
  %627 = vmatpush1.msra.mxu0 0.0
  %628 = vmatprep.subr.mxu0 0.0
  %629 = vmatpush1.msra.mxu0 0.0
  %630 = vmatprep.subr.mxu0 0.0
  %631 = vmatpush1.msra.mxu0 0.0
  %632 = vmatprep.subr.mxu0 0.0
  %633 = vmatpush1.msra.mxu0 0.0
  %634 = vmatprep.subr.mxu0 0.0
  %635 = vmatpush1.msra.mxu0 0.0
  %636 = vmatprep.subr.mxu0 0.0
  %637 = vmatpush1.msra.mxu0 0.0
  %638 = vmatprep.subr.mxu0 0.0
  %639 = vmatpush1.msra.mxu0 0.0
  %640 = vmatprep.subr.mxu0 0.0
  %641 = vmatpush1.msra.mxu0 0.0
  %642 = vmatprep.subr.mxu0 0.0
  %643 = vmatpush1.msra.mxu0 0.0
  %644 = vmatprep.subr.mxu0 0.0
  %645 = vmatpush1.msra.mxu0 0.0
  %646 = vmatprep.subr.mxu0 0.0
  %647 = vmatpush1.msra.mxu0 0.0
  %648 = vmatprep.subr.mxu0 0.0
  %649 = vmatpush1.msra.mxu0 0.0
  %650 = vmatprep.subr.mxu0 0.0
  %651 = vmatpush1.msra.mxu0 0.0
  %652 = vmatprep.subr.mxu0 0.0
  %653 = vmatpush1.msra.mxu0 0.0
  %654 = vmatprep.subr.mxu0 0.0
  %655 = vmatpush1.msra.mxu0 0.0
  %656 = vmatprep.subr.mxu0 0.0
  %657 = vmatpush1.msra.mxu0 0.0
  %658 = vmatprep.mubr.f32.mxu0 0.0
  %659 = vmatmul.mubr.f32.gmra.mrb[0].mxu0 %v499
  %v660 = vpop.f32.mrb[0].mxu0
  %v661 = vadd.f32 0.0, %v660
  %v662 = vpop.f32.mrb[0].mxu0
  %663 = vmatprep.mubr.f32.mxu0 0.0
  %664 = vmatmul.mubr.f32.gmra.mrb[0].mxu0 %v504
  %v665 = vpop.f32.mrb[0].mxu0
  %v666 = vadd.f32 0.0, %v665
  %v667 = vpop.f32.mrb[0].mxu0
  %668 = vmatprep.mubr.f32.mxu0 0.0
  %669 = vmatmul.mubr.f32.gmra.mrb[0].mxu0 %v509
  %v670 = vpop.f32.mrb[0].mxu0
  %v671 = vadd.f32 0.0, %v670
  %v672 = vpop.f32.mrb[0].mxu0
  %673 = vmatprep.mubr.f32.mxu0 0.0
  %674 = vmatmul.mubr.f32.gmra.mrb[0].mxu0 %v514
  %v675 = vpop.f32.mrb[0].mxu0
  %v676 = vadd.f32 0.0, %v675
  %v677 = vpop.f32.mrb[0].mxu0
  %678 = vmatprep.mubr.f32.mxu0 0.0
  %679 = vmatmul.mubr.f32.gmra.mrb[0].mxu0 %v519
  %v680 = vpop.f32.mrb[0].mxu0
  %v681 = vadd.f32 0.0, %v680
  %v682 = vpop.f32.mrb[0].mxu0
  %683 = vmatprep.mubr.f32.mxu0 0.0
  %684 = vmatmul.mubr.f32.gmra.mrb[0].mxu0 %v524
  %v685 = vpop.f32.mrb[0].mxu0
  %v686 = vadd.f32 0.0, %v685
  %v687 = vpop.f32.mrb[0].mxu0
  %688 = vmatprep.mubr.f32.mxu0 0.0
  %689 = vmatmul.mubr.f32.gmra.mrb[0].mxu0 %v529
  %v690 = vpop.f32.mrb[0].mxu0
  %v691 = vadd.f32 0.0, %v690
  %v692 = vpop.f32.mrb[0].mxu0
  %693 = vmatprep.mubr.f32.mxu0 0.0
  %694 = vmatmul.mubr.f32.gmra.mrb[0].mxu0 %v534
  %v695 = vpop.f32.mrb[0].mxu0
  %v696 = vadd.f32 0.0, %v695
  %v697 = vpop.f32.mrb[0].mxu0
  %698 = vmatprep.mubr.f32.mxu0 0.0
  %699 = vmatmul.mubr.f32.gmra.mrb[0].mxu0 %v539
  %v700 = vpop.f32.mrb[0].mxu0
  %v701 = vadd.f32 0.0, %v700
  %v702 = vpop.f32.mrb[0].mxu0
  %703 = vmatprep.mubr.f32.mxu0 0.0
  %704 = vmatmul.mubr.f32.gmra.mrb[0].mxu0 %v544
  %v705 = vpop.f32.mrb[0].mxu0
  %v706 = vadd.f32 0.0, %v705
  %v707 = vpop.f32.mrb[0].mxu0
  %708 = vmatprep.mubr.f32.mxu0 0.0
  %709 = vmatmul.mubr.f32.gmra.mrb[0].mxu0 %v549
  %v710 = vpop.f32.mrb[0].mxu0
  %v711 = vadd.f32 0.0, %v710
  %v712 = vpop.f32.mrb[0].mxu0
  %713 = vmatprep.mubr.f32.mxu0 0.0
  %714 = vmatmul.mubr.f32.gmra.mrb[0].mxu0 %v554
  %v715 = vpop.f32.mrb[0].mxu0
  %v716 = vadd.f32 0.0, %v715
  %v717 = vpop.f32.mrb[0].mxu0
  %718 = vmatprep.mubr.f32.mxu0 0.0
  %719 = vmatmul.mubr.f32.gmra.mrb[0].mxu0 %v559
  %v720 = vpop.f32.mrb[0].mxu0
  %v721 = vadd.f32 0.0, %v720
  %v722 = vpop.f32.mrb[0].mxu0
  %723 = vmatprep.mubr.f32.mxu0 0.0
  %724 = vmatmul.mubr.f32.gmra.mrb[0].mxu0 %v564
  %v725 = vpop.f32.mrb[0].mxu0
  %v726 = vadd.f32 0.0, %v725
  %v727 = vpop.f32.mrb[0].mxu0
  %728 = vmatprep.mubr.f32.mxu0 0.0
  %729 = vmatmul.mubr.f32.gmra.mrb[0].mxu0 %v569
  %v730 = vpop.f32.mrb[0].mxu0
  %v731 = vadd.f32 0.0, %v730
  %v732 = vpop.f32.mrb[0].mxu0
  %733 = vmatprep.mubr.f32.mxu0 0.0
  %734 = vmatmul.mubr.f32.gmra.mrb[0].mxu0 %v574
  %v735 = vpop.f32.mrb[0].mxu0
  %v736 = vadd.f32 0.0, %v735
  %v737 = vpop.f32.mrb[0].mxu0
  %738 = vdwg.mxu0
  %739 = vmatprep.subr.mxu0 0.0
  %740 = vmatpush1.msra.mxu0 %v399
  %741 = vmatprep.subr.mxu0 0.0
  %742 = vmatpush1.msra.mxu0 %v400
  %743 = vmatprep.subr.mxu0 0.0
  %744 = vmatpush1.msra.mxu0 %v401
  %745 = vmatprep.subr.mxu0 0.0
  %746 = vmatpush1.msra.mxu0 %v402
  %747 = vmatprep.subr.mxu0 0.0
  %748 = vmatpush1.msra.mxu0 %v403
  %749 = vmatprep.subr.mxu0 0.0
  %750 = vmatpush1.msra.mxu0 %v404
  %751 = vmatprep.subr.mxu0 0.0
  %752 = vmatpush1.msra.mxu0 %v405
  %753 = vmatprep.subr.mxu0 0.0
  %754 = vmatpush1.msra.mxu0 %v406
  %755 = vmatprep.subr.mxu0 0.0
  %756 = vmatpush1.msra.mxu0 %v407
  %757 = vmatprep.subr.mxu0 0.0
  %758 = vmatpush1.msra.mxu0 %v408
  %759 = vmatprep.subr.mxu0 0.0
  %760 = vmatpush1.msra.mxu0 %v409
  %761 = vmatprep.subr.mxu0 0.0
  %762 = vmatpush1.msra.mxu0 %v410
  %763 = vmatprep.subr.mxu0 0.0
  %764 = vmatpush1.msra.mxu0 %v411
  %765 = vmatprep.subr.mxu0 0.0
  %766 = vmatpush1.msra.mxu0 %v412
  %767 = vmatprep.subr.mxu0 0.0
  %768 = vmatpush1.msra.mxu0 %v413
  %769 = vmatprep.subr.mxu0 0.0
  %770 = vmatpush1.msra.mxu0 %v414
  %771 = vmatprep.subr.mxu0 0.0
  %772 = vmatpush1.msra.mxu0 0.0
  %773 = vmatprep.subr.mxu0 0.0
  %774 = vmatpush1.msra.mxu0 0.0
  %775 = vmatprep.subr.mxu0 0.0
  %776 = vmatpush1.msra.mxu0 0.0
  %777 = vmatprep.subr.mxu0 0.0
  %778 = vmatpush1.msra.mxu0 0.0
  %779 = vmatprep.subr.mxu0 0.0
  %780 = vmatpush1.msra.mxu0 0.0
  %781 = vmatprep.subr.mxu0 0.0
  %782 = vmatpush1.msra.mxu0 0.0
  %783 = vmatprep.subr.mxu0 0.0
  %784 = vmatpush1.msra.mxu0 0.0
  %785 = vmatprep.subr.mxu0 0.0
  %786 = vmatpush1.msra.mxu0 0.0
  %787 = vmatprep.subr.mxu0 0.0
  %788 = vmatpush1.msra.mxu0 0.0
  %789 = vmatprep.subr.mxu0 0.0
  %790 = vmatpush1.msra.mxu0 0.0
  %791 = vmatprep.subr.mxu0 0.0
  %792 = vmatpush1.msra.mxu0 0.0
  %793 = vmatprep.subr.mxu0 0.0
  %794 = vmatpush1.msra.mxu0 0.0
  %795 = vmatprep.subr.mxu0 0.0
  %796 = vmatpush1.msra.mxu0 0.0
  %797 = vmatprep.subr.mxu0 0.0
  %798 = vmatpush1.msra.mxu0 0.0
  %799 = vmatprep.subr.mxu0 0.0
  %800 = vmatpush1.msra.mxu0 0.0
  %801 = vmatprep.subr.mxu0 0.0
  %802 = vmatpush1.msra.mxu0 0.0
  %803 = vmatprep.mubr.f32.mxu0 0.0
  %804 = vmatmul.mubr.f32.gmra.mrb[0].mxu0 %v321
  %v805 = vpop.f32.mrb[0].mxu0
  %v806 = vadd.f32 %v661, %v805
  %v807 = vpop.f32.mrb[0].mxu0
  %808 = vmatprep.mubr.f32.mxu0 0.0
  %809 = vmatmul.mubr.f32.gmra.mrb[0].mxu0 %v326
  %v810 = vpop.f32.mrb[0].mxu0
  %v811 = vadd.f32 %v666, %v810
  %v812 = vpop.f32.mrb[0].mxu0
  %813 = vmatprep.mubr.f32.mxu0 0.0
  %814 = vmatmul.mubr.f32.gmra.mrb[0].mxu0 %v331
  %v815 = vpop.f32.mrb[0].mxu0
  %v816 = vadd.f32 %v671, %v815
  %v817 = vpop.f32.mrb[0].mxu0
  %818 = vmatprep.mubr.f32.mxu0 0.0
  %819 = vmatmul.mubr.f32.gmra.mrb[0].mxu0 %v336
  %v820 = vpop.f32.mrb[0].mxu0
  %v821 = vadd.f32 %v676, %v820
  %v822 = vpop.f32.mrb[0].mxu0
  %823 = vmatprep.mubr.f32.mxu0 0.0
  %824 = vmatmul.mubr.f32.gmra.mrb[0].mxu0 %v341
  %v825 = vpop.f32.mrb[0].mxu0
  %v826 = vadd.f32 %v681, %v825
  %v827 = vpop.f32.mrb[0].mxu0
  %828 = vmatprep.mubr.f32.mxu0 0.0
  %829 = vmatmul.mubr.f32.gmra.mrb[0].mxu0 %v346
  %v830 = vpop.f32.mrb[0].mxu0
  %v831 = vadd.f32 %v686, %v830
  %v832 = vpop.f32.mrb[0].mxu0
  %833 = vmatprep.mubr.f32.mxu0 0.0
  %834 = vmatmul.mubr.f32.gmra.mrb[0].mxu0 %v351
  %v835 = vpop.f32.mrb[0].mxu0
  %v836 = vadd.f32 %v691, %v835
  %v837 = vpop.f32.mrb[0].mxu0
  %838 = vmatprep.mubr.f32.mxu0 0.0
  %839 = vmatmul.mubr.f32.gmra.mrb[0].mxu0 %v356
  %v840 = vpop.f32.mrb[0].mxu0
  %v841 = vadd.f32 %v696, %v840
  %v842 = vpop.f32.mrb[0].mxu0
  %843 = vmatprep.mubr.f32.mxu0 0.0
  %844 = vmatmul.mubr.f32.gmra.mrb[0].mxu0 %v361
  %v845 = vpop.f32.mrb[0].mxu0
  %v846 = vadd.f32 %v701, %v845
  %v847 = vpop.f32.mrb[0].mxu0
  %848 = vmatprep.mubr.f32.mxu0 0.0
  %849 = vmatmul.mubr.f32.gmra.mrb[0].mxu0 %v366
  %v850 = vpop.f32.mrb[0].mxu0
  %v851 = vadd.f32 %v706, %v850
  %v852 = vpop.f32.mrb[0].mxu0
  %853 = vmatprep.mubr.f32.mxu0 0.0
  %854 = vmatmul.mubr.f32.gmra.mrb[0].mxu0 %v371
  %v855 = vpop.f32.mrb[0].mxu0
  %v856 = vadd.f32 %v711, %v855
  %v857 = vpop.f32.mrb[0].mxu0
  %858 = vmatprep.mubr.f32.mxu0 0.0
  %859 = vmatmul.mubr.f32.gmra.mrb[0].mxu0 %v376
  %v860 = vpop.f32.mrb[0].mxu0
  %v861 = vadd.f32 %v716, %v860
  %v862 = vpop.f32.mrb[0].mxu0
  %863 = vmatprep.mubr.f32.mxu0 0.0
  %864 = vmatmul.mubr.f32.gmra.mrb[0].mxu0 %v381
  %v865 = vpop.f32.mrb[0].mxu0
  %v866 = vadd.f32 %v721, %v865
  %v867 = vpop.f32.mrb[0].mxu0
  %868 = vmatprep.mubr.f32.mxu0 0.0
  %869 = vmatmul.mubr.f32.gmra.mrb[0].mxu0 %v386
  %v870 = vpop.f32.mrb[0].mxu0
  %v871 = vadd.f32 %v726, %v870
  %v872 = vpop.f32.mrb[0].mxu0
  %873 = vmatprep.mubr.f32.mxu0 0.0
  %874 = vmatmul.mubr.f32.gmra.mrb[0].mxu0 %v391
  %v875 = vpop.f32.mrb[0].mxu0
  %v876 = vadd.f32 %v731, %v875
  %v877 = vpop.f32.mrb[0].mxu0
  %878 = vmatprep.mubr.f32.mxu0 0.0
  %879 = vmatmul.mubr.f32.gmra.mrb[0].mxu0 %v396
  %v880 = vpop.f32.mrb[0].mxu0
  %v881 = vadd.f32 %v736, %v880
  %v882 = vpop.f32.mrb[0].mxu0
  %883 = vdwg.mxu0
  %s884 = scalar_lea.vmem %s2, 256
  %v885 = vld [vmem:[%s884] sm:$0xff]
  %v886 = vld [vmem:[%s884 + $0x8] sm:$0xff]
  %v887 = vld [vmem:[%s884 + $0x10] sm:$0xff]
  %v888 = vld [vmem:[%s884 + $0x18] sm:$0xff]
  %v889 = vld [vmem:[%s884 + $0x20] sm:$0xff]
  %v890 = vld [vmem:[%s884 + $0x28] sm:$0xff]
  %v891 = vld [vmem:[%s884 + $0x30] sm:$0xff]
  %v892 = vld [vmem:[%s884 + $0x38] sm:$0xff]
  %v893 = vld [vmem:[%s884 + $0x40] sm:$0xff]
  %v894 = vld [vmem:[%s884 + $0x48] sm:$0xff]
  %v895 = vld [vmem:[%s884 + $0x50] sm:$0xff]
  %v896 = vld [vmem:[%s884 + $0x58] sm:$0xff]
  %v897 = vld [vmem:[%s884 + $0x60] sm:$0xff]
  %v898 = vld [vmem:[%s884 + $0x68] sm:$0xff]
  %v899 = vld [vmem:[%s884 + $0x70] sm:$0xff]
  %v900 = vld [vmem:[%s884 + $0x78] sm:$0xff]
  %901 = vmatprep.subr.mxu0 0.0
  %902 = vmatpush1.msra.mxu0 %v222
  %903 = vmatprep.subr.mxu0 0.0
  %904 = vmatpush1.msra.mxu0 %v223
  %905 = vmatprep.subr.mxu0 0.0
  %906 = vmatpush1.msra.mxu0 %v224
  %907 = vmatprep.subr.mxu0 0.0
  %908 = vmatpush1.msra.mxu0 %v225
  %909 = vmatprep.subr.mxu0 0.0
  %910 = vmatpush1.msra.mxu0 %v226
  %911 = vmatprep.subr.mxu0 0.0
  %912 = vmatpush1.msra.mxu0 %v227
  %913 = vmatprep.subr.mxu0 0.0
  %914 = vmatpush1.msra.mxu0 %v228
  %915 = vmatprep.subr.mxu0 0.0
  %916 = vmatpush1.msra.mxu0 %v229
  %917 = vmatprep.subr.mxu0 0.0
  %918 = vmatpush1.msra.mxu0 %v230
  %919 = vmatprep.subr.mxu0 0.0
  %920 = vmatpush1.msra.mxu0 %v231
  %921 = vmatprep.subr.mxu0 0.0
  %922 = vmatpush1.msra.mxu0 %v232
  %923 = vmatprep.subr.mxu0 0.0
  %924 = vmatpush1.msra.mxu0 %v233
  %925 = vmatprep.subr.mxu0 0.0
  %926 = vmatpush1.msra.mxu0 %v234
  %927 = vmatprep.subr.mxu0 0.0
  %928 = vmatpush1.msra.mxu0 %v235
  %929 = vmatprep.subr.mxu0 0.0
  %930 = vmatpush1.msra.mxu0 %v236
  %931 = vmatprep.subr.mxu0 0.0
  %932 = vmatpush1.msra.mxu0 %v237
  %933 = vmatprep.subr.mxu0 0.0
  %934 = vmatpush1.msra.mxu0 0.0
  %935 = vmatprep.subr.mxu0 0.0
  %936 = vmatpush1.msra.mxu0 0.0
  %937 = vmatprep.subr.mxu0 0.0
  %938 = vmatpush1.msra.mxu0 0.0
  %939 = vmatprep.subr.mxu0 0.0
  %940 = vmatpush1.msra.mxu0 0.0
  %941 = vmatprep.subr.mxu0 0.0
  %942 = vmatpush1.msra.mxu0 0.0
  %943 = vmatprep.subr.mxu0 0.0
  %944 = vmatpush1.msra.mxu0 0.0
  %945 = vmatprep.subr.mxu0 0.0
  %946 = vmatpush1.msra.mxu0 0.0
  %947 = vmatprep.subr.mxu0 0.0
  %948 = vmatpush1.msra.mxu0 0.0
  %949 = vmatprep.subr.mxu0 0.0
  %950 = vmatpush1.msra.mxu0 0.0
  %951 = vmatprep.subr.mxu0 0.0
  %952 = vmatpush1.msra.mxu0 0.0
  %953 = vmatprep.subr.mxu0 0.0
  %954 = vmatpush1.msra.mxu0 0.0
  %955 = vmatprep.subr.mxu0 0.0
  %956 = vmatpush1.msra.mxu0 0.0
  %957 = vmatprep.subr.mxu0 0.0
  %958 = vmatpush1.msra.mxu0 0.0
  %959 = vmatprep.subr.mxu0 0.0
  %960 = vmatpush1.msra.mxu0 0.0
  %961 = vmatprep.subr.mxu0 0.0
  %962 = vmatpush1.msra.mxu0 0.0
  %963 = vmatprep.subr.mxu0 0.0
  %964 = vmatpush1.msra.mxu0 0.0
  %965 = vmatprep.mubr.f32.mxu0 0.0
  %966 = vmatmul.mubr.f32.gmra.mrb[0].mxu0 %v885
  %v967 = vpop.f32.mrb[0].mxu0
  %v968 = vadd.f32 0.0, %v967
  %v969 = vpop.f32.mrb[0].mxu0
  %970 = vmatprep.mubr.f32.mxu0 0.0
  %971 = vmatmul.mubr.f32.gmra.mrb[0].mxu0 %v886
  %v972 = vpop.f32.mrb[0].mxu0
  %v973 = vadd.f32 0.0, %v972
  %v974 = vpop.f32.mrb[0].mxu0
  %975 = vmatprep.mubr.f32.mxu0 0.0
  %976 = vmatmul.mubr.f32.gmra.mrb[0].mxu0 %v887
  %v977 = vpop.f32.mrb[0].mxu0
  %v978 = vadd.f32 0.0, %v977
  %v979 = vpop.f32.mrb[0].mxu0
  %980 = vmatprep.mubr.f32.mxu0 0.0
  %981 = vmatmul.mubr.f32.gmra.mrb[0].mxu0 %v888
  %v982 = vpop.f32.mrb[0].mxu0
  %v983 = vadd.f32 0.0, %v982
  %v984 = vpop.f32.mrb[0].mxu0
  %985 = vmatprep.mubr.f32.mxu0 0.0
  %986 = vmatmul.mubr.f32.gmra.mrb[0].mxu0 %v889
  %v987 = vpop.f32.mrb[0].mxu0
  %v988 = vadd.f32 0.0, %v987
  %v989 = vpop.f32.mrb[0].mxu0
  %990 = vmatprep.mubr.f32.mxu0 0.0
  %991 = vmatmul.mubr.f32.gmra.mrb[0].mxu0 %v890
  %v992 = vpop.f32.mrb[0].mxu0
  %v993 = vadd.f32 0.0, %v992
  %v994 = vpop.f32.mrb[0].mxu0
  %995 = vmatprep.mubr.f32.mxu0 0.0
  %996 = vmatmul.mubr.f32.gmra.mrb[0].mxu0 %v891
  %v997 = vpop.f32.mrb[0].mxu0
  %v998 = vadd.f32 0.0, %v997
  %v999 = vpop.f32.mrb[0].mxu0
  %1000 = vmatprep.mubr.f32.mxu0 0.0
  %1001 = vmatmul.mubr.f32.gmra.mrb[0].mxu0 %v892
  %v1002 = vpop.f32.mrb[0].mxu0
  %v1003 = vadd.f32 0.0, %v1002
  %v1004 = vpop.f32.mrb[0].mxu0
  %1005 = vmatprep.mubr.f32.mxu0 0.0
  %1006 = vmatmul.mubr.f32.gmra.mrb[0].mxu0 %v893
  %v1007 = vpop.f32.mrb[0].mxu0
  %v1008 = vadd.f32 0.0, %v1007
  %v1009 = vpop.f32.mrb[0].mxu0
  %1010 = vmatprep.mubr.f32.mxu0 0.0
  %1011 = vmatmul.mubr.f32.gmra.mrb[0].mxu0 %v894
  %v1012 = vpop.f32.mrb[0].mxu0
  %v1013 = vadd.f32 0.0, %v1012
  %v1014 = vpop.f32.mrb[0].mxu0
  %1015 = vmatprep.mubr.f32.mxu0 0.0
  %1016 = vmatmul.mubr.f32.gmra.mrb[0].mxu0 %v895
  %v1017 = vpop.f32.mrb[0].mxu0
  %v1018 = vadd.f32 0.0, %v1017
  %v1019 = vpop.f32.mrb[0].mxu0
  %1020 = vmatprep.mubr.f32.mxu0 0.0
  %1021 = vmatmul.mubr.f32.gmra.mrb[0].mxu0 %v896
  %v1022 = vpop.f32.mrb[0].mxu0
  %v1023 = vadd.f32 0.0, %v1022
  %v1024 = vpop.f32.mrb[0].mxu0
  %1025 = vmatprep.mubr.f32.mxu0 0.0
  %1026 = vmatmul.mubr.f32.gmra.mrb[0].mxu0 %v897
  %v1027 = vpop.f32.mrb[0].mxu0
  %v1028 = vadd.f32 0.0, %v1027
  %v1029 = vpop.f32.mrb[0].mxu0
  %1030 = vmatprep.mubr.f32.mxu0 0.0
  %1031 = vmatmul.mubr.f32.gmra.mrb[0].mxu0 %v898
  %v1032 = vpop.f32.mrb[0].mxu0
  %v1033 = vadd.f32 0.0, %v1032
  %v1034 = vpop.f32.mrb[0].mxu0
  %1035 = vmatprep.mubr.f32.mxu0 0.0
  %1036 = vmatmul.mubr.f32.gmra.mrb[0].mxu0 %v899
  %v1037 = vpop.f32.mrb[0].mxu0
  %v1038 = vadd.f32 0.0, %v1037
  %v1039 = vpop.f32.mrb[0].mxu0
  %1040 = vmatprep.mubr.f32.mxu0 0.0
  %1041 = vmatmul.mubr.f32.gmra.mrb[0].mxu0 %v900
  %v1042 = vpop.f32.mrb[0].mxu0
  %v1043 = vadd.f32 0.0, %v1042
  %v1044 = vpop.f32.mrb[0].mxu0
  %1045 = vdwg.mxu0
  %s1046 = scalar_lea.vmem %s3, 256
  %v1047 = vld [vmem:[%s1046] sm:$0xff]
  %v1048 = vld [vmem:[%s1046 + $0x8] sm:$0xff]
  %v1049 = vld [vmem:[%s1046 + $0x10] sm:$0xff]
  %v1050 = vld [vmem:[%s1046 + $0x18] sm:$0xff]
  %v1051 = vld [vmem:[%s1046 + $0x20] sm:$0xff]
  %v1052 = vld [vmem:[%s1046 + $0x28] sm:$0xff]
  %v1053 = vld [vmem:[%s1046 + $0x30] sm:$0xff]
  %v1054 = vld [vmem:[%s1046 + $0x38] sm:$0xff]
  %v1055 = vld [vmem:[%s1046 + $0x40] sm:$0xff]
  %v1056 = vld [vmem:[%s1046 + $0x48] sm:$0xff]
  %v1057 = vld [vmem:[%s1046 + $0x50] sm:$0xff]
  %v1058 = vld [vmem:[%s1046 + $0x58] sm:$0xff]
  %v1059 = vld [vmem:[%s1046 + $0x60] sm:$0xff]
  %v1060 = vld [vmem:[%s1046 + $0x68] sm:$0xff]
  %v1061 = vld [vmem:[%s1046 + $0x70] sm:$0xff]
  %v1062 = vld [vmem:[%s1046 + $0x78] sm:$0xff]
  %1063 = vmatprep.subr.mxu0 0.0
  %1064 = vmatpush1.msra.mxu0 %v1047
  %1065 = vmatprep.subr.mxu0 0.0
  %1066 = vmatpush1.msra.mxu0 %v1048
  %1067 = vmatprep.subr.mxu0 0.0
  %1068 = vmatpush1.msra.mxu0 %v1049
  %1069 = vmatprep.subr.mxu0 0.0
  %1070 = vmatpush1.msra.mxu0 %v1050
  %1071 = vmatprep.subr.mxu0 0.0
  %1072 = vmatpush1.msra.mxu0 %v1051
  %1073 = vmatprep.subr.mxu0 0.0
  %1074 = vmatpush1.msra.mxu0 %v1052
  %1075 = vmatprep.subr.mxu0 0.0
  %1076 = vmatpush1.msra.mxu0 %v1053
  %1077 = vmatprep.subr.mxu0 0.0
  %1078 = vmatpush1.msra.mxu0 %v1054
  %1079 = vmatprep.subr.mxu0 0.0
  %1080 = vmatpush1.msra.mxu0 %v1055
  %1081 = vmatprep.subr.mxu0 0.0
  %1082 = vmatpush1.msra.mxu0 %v1056
  %1083 = vmatprep.subr.mxu0 0.0
  %1084 = vmatpush1.msra.mxu0 %v1057
  %1085 = vmatprep.subr.mxu0 0.0
  %1086 = vmatpush1.msra.mxu0 %v1058
  %1087 = vmatprep.subr.mxu0 0.0
  %1088 = vmatpush1.msra.mxu0 %v1059
  %1089 = vmatprep.subr.mxu0 0.0
  %1090 = vmatpush1.msra.mxu0 %v1060
  %1091 = vmatprep.subr.mxu0 0.0
  %1092 = vmatpush1.msra.mxu0 %v1061
  %1093 = vmatprep.subr.mxu0 0.0
  %1094 = vmatpush1.msra.mxu0 %v1062
  %1095 = vmatprep.subr.mxu0 0.0
  %1096 = vmatpush1.msra.mxu0 0.0
  %1097 = vmatprep.subr.mxu0 0.0
  %1098 = vmatpush1.msra.mxu0 0.0
  %1099 = vmatprep.subr.mxu0 0.0
  %1100 = vmatpush1.msra.mxu0 0.0
  %1101 = vmatprep.subr.mxu0 0.0
  %1102 = vmatpush1.msra.mxu0 0.0
  %1103 = vmatprep.subr.mxu0 0.0
  %1104 = vmatpush1.msra.mxu0 0.0
  %1105 = vmatprep.subr.mxu0 0.0
  %1106 = vmatpush1.msra.mxu0 0.0
  %1107 = vmatprep.subr.mxu0 0.0
  %1108 = vmatpush1.msra.mxu0 0.0
  %1109 = vmatprep.subr.mxu0 0.0
  %1110 = vmatpush1.msra.mxu0 0.0
  %1111 = vmatprep.subr.mxu0 0.0
  %1112 = vmatpush1.msra.mxu0 0.0
  %1113 = vmatprep.subr.mxu0 0.0
  %1114 = vmatpush1.msra.mxu0 0.0
  %1115 = vmatprep.subr.mxu0 0.0
  %1116 = vmatpush1.msra.mxu0 0.0
  %1117 = vmatprep.subr.mxu0 0.0
  %1118 = vmatpush1.msra.mxu0 0.0
  %1119 = vmatprep.subr.mxu0 0.0
  %1120 = vmatpush1.msra.mxu0 0.0
  %1121 = vmatprep.subr.mxu0 0.0
  %1122 = vmatpush1.msra.mxu0 0.0
  %1123 = vmatprep.subr.mxu0 0.0
  %1124 = vmatpush1.msra.mxu0 0.0
  %1125 = vmatprep.subr.mxu0 0.0
  %1126 = vmatpush1.msra.mxu0 0.0
  %1127 = vmatprep.mubr.f32.mxu0 0.0
  %1128 = vmatmul.mubr.f32.gmra.mrb[0].mxu0 %v968
  %v1129 = vpop.f32.mrb[0].mxu0
  %v1130 = vadd.f32 0.0, %v1129
  %v1131 = vpop.f32.mrb[0].mxu0
  %1132 = vmatprep.mubr.f32.mxu0 0.0
  %1133 = vmatmul.mubr.f32.gmra.mrb[0].mxu0 %v973
  %v1134 = vpop.f32.mrb[0].mxu0
  %v1135 = vadd.f32 0.0, %v1134
  %v1136 = vpop.f32.mrb[0].mxu0
  %1137 = vmatprep.mubr.f32.mxu0 0.0
  %1138 = vmatmul.mubr.f32.gmra.mrb[0].mxu0 %v978
  %v1139 = vpop.f32.mrb[0].mxu0
  %v1140 = vadd.f32 0.0, %v1139
  %v1141 = vpop.f32.mrb[0].mxu0
  %1142 = vmatprep.mubr.f32.mxu0 0.0
  %1143 = vmatmul.mubr.f32.gmra.mrb[0].mxu0 %v983
  %v1144 = vpop.f32.mrb[0].mxu0
  %v1145 = vadd.f32 0.0, %v1144
  %v1146 = vpop.f32.mrb[0].mxu0
  %1147 = vmatprep.mubr.f32.mxu0 0.0
  %1148 = vmatmul.mubr.f32.gmra.mrb[0].mxu0 %v988
  %v1149 = vpop.f32.mrb[0].mxu0
  %v1150 = vadd.f32 0.0, %v1149
  %v1151 = vpop.f32.mrb[0].mxu0
  %1152 = vmatprep.mubr.f32.mxu0 0.0
  %1153 = vmatmul.mubr.f32.gmra.mrb[0].mxu0 %v993
  %v1154 = vpop.f32.mrb[0].mxu0
  %v1155 = vadd.f32 0.0, %v1154
  %v1156 = vpop.f32.mrb[0].mxu0
  %1157 = vmatprep.mubr.f32.mxu0 0.0
  %1158 = vmatmul.mubr.f32.gmra.mrb[0].mxu0 %v998
  %v1159 = vpop.f32.mrb[0].mxu0
  %v1160 = vadd.f32 0.0, %v1159
  %v1161 = vpop.f32.mrb[0].mxu0
  %1162 = vmatprep.mubr.f32.mxu0 0.0
  %1163 = vmatmul.mubr.f32.gmra.mrb[0].mxu0 %v1003
  %v1164 = vpop.f32.mrb[0].mxu0
  %v1165 = vadd.f32 0.0, %v1164
  %v1166 = vpop.f32.mrb[0].mxu0
  %1167 = vmatprep.mubr.f32.mxu0 0.0
  %1168 = vmatmul.mubr.f32.gmra.mrb[0].mxu0 %v1008
  %v1169 = vpop.f32.mrb[0].mxu0
  %v1170 = vadd.f32 0.0, %v1169
  %v1171 = vpop.f32.mrb[0].mxu0
  %1172 = vmatprep.mubr.f32.mxu0 0.0
  %1173 = vmatmul.mubr.f32.gmra.mrb[0].mxu0 %v1013
  %v1174 = vpop.f32.mrb[0].mxu0
  %v1175 = vadd.f32 0.0, %v1174
  %v1176 = vpop.f32.mrb[0].mxu0
  %1177 = vmatprep.mubr.f32.mxu0 0.0
  %1178 = vmatmul.mubr.f32.gmra.mrb[0].mxu0 %v1018
  %v1179 = vpop.f32.mrb[0].mxu0
  %v1180 = vadd.f32 0.0, %v1179
  %v1181 = vpop.f32.mrb[0].mxu0
  %1182 = vmatprep.mubr.f32.mxu0 0.0
  %1183 = vmatmul.mubr.f32.gmra.mrb[0].mxu0 %v1023
  %v1184 = vpop.f32.mrb[0].mxu0
  %v1185 = vadd.f32 0.0, %v1184
  %v1186 = vpop.f32.mrb[0].mxu0
  %1187 = vmatprep.mubr.f32.mxu0 0.0
  %1188 = vmatmul.mubr.f32.gmra.mrb[0].mxu0 %v1028
  %v1189 = vpop.f32.mrb[0].mxu0
  %v1190 = vadd.f32 0.0, %v1189
  %v1191 = vpop.f32.mrb[0].mxu0
  %1192 = vmatprep.mubr.f32.mxu0 0.0
  %1193 = vmatmul.mubr.f32.gmra.mrb[0].mxu0 %v1033
  %v1194 = vpop.f32.mrb[0].mxu0
  %v1195 = vadd.f32 0.0, %v1194
  %v1196 = vpop.f32.mrb[0].mxu0
  %1197 = vmatprep.mubr.f32.mxu0 0.0
  %1198 = vmatmul.mubr.f32.gmra.mrb[0].mxu0 %v1038
  %v1199 = vpop.f32.mrb[0].mxu0
  %v1200 = vadd.f32 0.0, %v1199
  %v1201 = vpop.f32.mrb[0].mxu0
  %1202 = vmatprep.mubr.f32.mxu0 0.0
  %1203 = vmatmul.mubr.f32.gmra.mrb[0].mxu0 %v1043
  %v1204 = vpop.f32.mrb[0].mxu0
  %v1205 = vadd.f32 0.0, %v1204
  %v1206 = vpop.f32.mrb[0].mxu0
  %1207 = vdwg.mxu0
  %v1208 = vadd.f32 %v806, %v1130
  %v1209 = vadd.f32 %v811, %v1135
  %v1210 = vadd.f32 %v816, %v1140
  %v1211 = vadd.f32 %v821, %v1145
  %v1212 = vadd.f32 %v826, %v1150
  %v1213 = vadd.f32 %v831, %v1155
  %v1214 = vadd.f32 %v836, %v1160
  %v1215 = vadd.f32 %v841, %v1165
  %v1216 = vadd.f32 %v846, %v1170
  %v1217 = vadd.f32 %v851, %v1175
  %v1218 = vadd.f32 %v856, %v1180
  %v1219 = vadd.f32 %v861, %v1185
  %v1220 = vadd.f32 %v866, %v1190
  %v1221 = vadd.f32 %v871, %v1195
  %v1222 = vadd.f32 %v876, %v1200
  %v1223 = vadd.f32 %v881, %v1205
  %s1224 = scalar_lea.vmem %s2, 384
  %v1225 = vld [vmem:[%s1224] sm:$0xff]
  %v1226 = vld [vmem:[%s1224 + $0x8] sm:$0xff]
  %v1227 = vld [vmem:[%s1224 + $0x10] sm:$0xff]
  %v1228 = vld [vmem:[%s1224 + $0x18] sm:$0xff]
  %v1229 = vld [vmem:[%s1224 + $0x20] sm:$0xff]
  %v1230 = vld [vmem:[%s1224 + $0x28] sm:$0xff]
  %v1231 = vld [vmem:[%s1224 + $0x30] sm:$0xff]
  %v1232 = vld [vmem:[%s1224 + $0x38] sm:$0xff]
  %v1233 = vld [vmem:[%s1224 + $0x40] sm:$0xff]
  %v1234 = vld [vmem:[%s1224 + $0x48] sm:$0xff]
  %v1235 = vld [vmem:[%s1224 + $0x50] sm:$0xff]
  %v1236 = vld [vmem:[%s1224 + $0x58] sm:$0xff]
  %v1237 = vld [vmem:[%s1224 + $0x60] sm:$0xff]
  %v1238 = vld [vmem:[%s1224 + $0x68] sm:$0xff]
  %v1239 = vld [vmem:[%s1224 + $0x70] sm:$0xff]
  %v1240 = vld [vmem:[%s1224 + $0x78] sm:$0xff]
  %1241 = vmatprep.subr.mxu0 0.0
  %1242 = vmatpush1.msra.mxu0 %v222
  %1243 = vmatprep.subr.mxu0 0.0
  %1244 = vmatpush1.msra.mxu0 %v223
  %1245 = vmatprep.subr.mxu0 0.0
  %1246 = vmatpush1.msra.mxu0 %v224
  %1247 = vmatprep.subr.mxu0 0.0
  %1248 = vmatpush1.msra.mxu0 %v225
  %1249 = vmatprep.subr.mxu0 0.0
  %1250 = vmatpush1.msra.mxu0 %v226
  %1251 = vmatprep.subr.mxu0 0.0
  %1252 = vmatpush1.msra.mxu0 %v227
  %1253 = vmatprep.subr.mxu0 0.0
  %1254 = vmatpush1.msra.mxu0 %v228
  %1255 = vmatprep.subr.mxu0 0.0
  %1256 = vmatpush1.msra.mxu0 %v229
  %1257 = vmatprep.subr.mxu0 0.0
  %1258 = vmatpush1.msra.mxu0 %v230
  %1259 = vmatprep.subr.mxu0 0.0
  %1260 = vmatpush1.msra.mxu0 %v231
  %1261 = vmatprep.subr.mxu0 0.0
  %1262 = vmatpush1.msra.mxu0 %v232
  %1263 = vmatprep.subr.mxu0 0.0
  %1264 = vmatpush1.msra.mxu0 %v233
  %1265 = vmatprep.subr.mxu0 0.0
  %1266 = vmatpush1.msra.mxu0 %v234
  %1267 = vmatprep.subr.mxu0 0.0
  %1268 = vmatpush1.msra.mxu0 %v235
  %1269 = vmatprep.subr.mxu0 0.0
  %1270 = vmatpush1.msra.mxu0 %v236
  %1271 = vmatprep.subr.mxu0 0.0
  %1272 = vmatpush1.msra.mxu0 %v237
  %1273 = vmatprep.subr.mxu0 0.0
  %1274 = vmatpush1.msra.mxu0 0.0
  %1275 = vmatprep.subr.mxu0 0.0
  %1276 = vmatpush1.msra.mxu0 0.0
  %1277 = vmatprep.subr.mxu0 0.0
  %1278 = vmatpush1.msra.mxu0 0.0
  %1279 = vmatprep.subr.mxu0 0.0
  %1280 = vmatpush1.msra.mxu0 0.0
  %1281 = vmatprep.subr.mxu0 0.0
  %1282 = vmatpush1.msra.mxu0 0.0
  %1283 = vmatprep.subr.mxu0 0.0
  %1284 = vmatpush1.msra.mxu0 0.0
  %1285 = vmatprep.subr.mxu0 0.0
  %1286 = vmatpush1.msra.mxu0 0.0
  %1287 = vmatprep.subr.mxu0 0.0
  %1288 = vmatpush1.msra.mxu0 0.0
  %1289 = vmatprep.subr.mxu0 0.0
  %1290 = vmatpush1.msra.mxu0 0.0
  %1291 = vmatprep.subr.mxu0 0.0
  %1292 = vmatpush1.msra.mxu0 0.0
  %1293 = vmatprep.subr.mxu0 0.0
  %1294 = vmatpush1.msra.mxu0 0.0
  %1295 = vmatprep.subr.mxu0 0.0
  %1296 = vmatpush1.msra.mxu0 0.0
  %1297 = vmatprep.subr.mxu0 0.0
  %1298 = vmatpush1.msra.mxu0 0.0
  %1299 = vmatprep.subr.mxu0 0.0
  %1300 = vmatpush1.msra.mxu0 0.0
  %1301 = vmatprep.subr.mxu0 0.0
  %1302 = vmatpush1.msra.mxu0 0.0
  %1303 = vmatprep.subr.mxu0 0.0
  %1304 = vmatpush1.msra.mxu0 0.0
  %1305 = vmatprep.mubr.f32.mxu0 0.0
  %1306 = vmatmul.mubr.f32.gmra.mrb[0].mxu0 %v1225
  %v1307 = vpop.f32.mrb[0].mxu0
  %v1308 = vadd.f32 0.0, %v1307
  %v1309 = vpop.f32.mrb[0].mxu0
  %1310 = vmatprep.mubr.f32.mxu0 0.0
  %1311 = vmatmul.mubr.f32.gmra.mrb[0].mxu0 %v1226
  %v1312 = vpop.f32.mrb[0].mxu0
  %v1313 = vadd.f32 0.0, %v1312
  %v1314 = vpop.f32.mrb[0].mxu0
  %1315 = vmatprep.mubr.f32.mxu0 0.0
  %1316 = vmatmul.mubr.f32.gmra.mrb[0].mxu0 %v1227
  %v1317 = vpop.f32.mrb[0].mxu0
  %v1318 = vadd.f32 0.0, %v1317
  %v1319 = vpop.f32.mrb[0].mxu0
  %1320 = vmatprep.mubr.f32.mxu0 0.0
  %1321 = vmatmul.mubr.f32.gmra.mrb[0].mxu0 %v1228
  %v1322 = vpop.f32.mrb[0].mxu0
  %v1323 = vadd.f32 0.0, %v1322
  %v1324 = vpop.f32.mrb[0].mxu0
  %1325 = vmatprep.mubr.f32.mxu0 0.0
  %1326 = vmatmul.mubr.f32.gmra.mrb[0].mxu0 %v1229
  %v1327 = vpop.f32.mrb[0].mxu0
  %v1328 = vadd.f32 0.0, %v1327
  %v1329 = vpop.f32.mrb[0].mxu0
  %1330 = vmatprep.mubr.f32.mxu0 0.0
  %1331 = vmatmul.mubr.f32.gmra.mrb[0].mxu0 %v1230
  %v1332 = vpop.f32.mrb[0].mxu0
  %v1333 = vadd.f32 0.0, %v1332
  %v1334 = vpop.f32.mrb[0].mxu0
  %1335 = vmatprep.mubr.f32.mxu0 0.0
  %1336 = vmatmul.mubr.f32.gmra.mrb[0].mxu0 %v1231
  %v1337 = vpop.f32.mrb[0].mxu0
  %v1338 = vadd.f32 0.0, %v1337
  %v1339 = vpop.f32.mrb[0].mxu0
  %1340 = vmatprep.mubr.f32.mxu0 0.0
  %1341 = vmatmul.mubr.f32.gmra.mrb[0].mxu0 %v1232
  %v1342 = vpop.f32.mrb[0].mxu0
  %v1343 = vadd.f32 0.0, %v1342
  %v1344 = vpop.f32.mrb[0].mxu0
  %1345 = vmatprep.mubr.f32.mxu0 0.0
  %1346 = vmatmul.mubr.f32.gmra.mrb[0].mxu0 %v1233
  %v1347 = vpop.f32.mrb[0].mxu0
  %v1348 = vadd.f32 0.0, %v1347
  %v1349 = vpop.f32.mrb[0].mxu0
  %1350 = vmatprep.mubr.f32.mxu0 0.0
  %1351 = vmatmul.mubr.f32.gmra.mrb[0].mxu0 %v1234
  %v1352 = vpop.f32.mrb[0].mxu0
  %v1353 = vadd.f32 0.0, %v1352
  %v1354 = vpop.f32.mrb[0].mxu0
  %1355 = vmatprep.mubr.f32.mxu0 0.0
  %1356 = vmatmul.mubr.f32.gmra.mrb[0].mxu0 %v1235
  %v1357 = vpop.f32.mrb[0].mxu0
  %v1358 = vadd.f32 0.0, %v1357
  %v1359 = vpop.f32.mrb[0].mxu0
  %1360 = vmatprep.mubr.f32.mxu0 0.0
  %1361 = vmatmul.mubr.f32.gmra.mrb[0].mxu0 %v1236
  %v1362 = vpop.f32.mrb[0].mxu0
  %v1363 = vadd.f32 0.0, %v1362
  %v1364 = vpop.f32.mrb[0].mxu0
  %1365 = vmatprep.mubr.f32.mxu0 0.0
  %1366 = vmatmul.mubr.f32.gmra.mrb[0].mxu0 %v1237
  %v1367 = vpop.f32.mrb[0].mxu0
  %v1368 = vadd.f32 0.0, %v1367
  %v1369 = vpop.f32.mrb[0].mxu0
  %1370 = vmatprep.mubr.f32.mxu0 0.0
  %1371 = vmatmul.mubr.f32.gmra.mrb[0].mxu0 %v1238
  %v1372 = vpop.f32.mrb[0].mxu0
  %v1373 = vadd.f32 0.0, %v1372
  %v1374 = vpop.f32.mrb[0].mxu0
  %1375 = vmatprep.mubr.f32.mxu0 0.0
  %1376 = vmatmul.mubr.f32.gmra.mrb[0].mxu0 %v1239
  %v1377 = vpop.f32.mrb[0].mxu0
  %v1378 = vadd.f32 0.0, %v1377
  %v1379 = vpop.f32.mrb[0].mxu0
  %1380 = vmatprep.mubr.f32.mxu0 0.0
  %1381 = vmatmul.mubr.f32.gmra.mrb[0].mxu0 %v1240
  %v1382 = vpop.f32.mrb[0].mxu0
  %v1383 = vadd.f32 0.0, %v1382
  %v1384 = vpop.f32.mrb[0].mxu0
  %1385 = vdwg.mxu0
  %s1386 = scalar_lea.vmem %s3, 384
  %v1387 = vld [vmem:[%s1386] sm:$0xff]
  %v1388 = vld [vmem:[%s1386 + $0x8] sm:$0xff]
  %v1389 = vld [vmem:[%s1386 + $0x10] sm:$0xff]
  %v1390 = vld [vmem:[%s1386 + $0x18] sm:$0xff]
  %v1391 = vld [vmem:[%s1386 + $0x20] sm:$0xff]
  %v1392 = vld [vmem:[%s1386 + $0x28] sm:$0xff]
  %v1393 = vld [vmem:[%s1386 + $0x30] sm:$0xff]
  %v1394 = vld [vmem:[%s1386 + $0x38] sm:$0xff]
  %v1395 = vld [vmem:[%s1386 + $0x40] sm:$0xff]
  %v1396 = vld [vmem:[%s1386 + $0x48] sm:$0xff]
  %v1397 = vld [vmem:[%s1386 + $0x50] sm:$0xff]
  %v1398 = vld [vmem:[%s1386 + $0x58] sm:$0xff]
  %v1399 = vld [vmem:[%s1386 + $0x60] sm:$0xff]
  %v1400 = vld [vmem:[%s1386 + $0x68] sm:$0xff]
  %v1401 = vld [vmem:[%s1386 + $0x70] sm:$0xff]
  %v1402 = vld [vmem:[%s1386 + $0x78] sm:$0xff]
  %1403 = vmatprep.subr.mxu0 0.0
  %1404 = vmatpush1.msra.mxu0 %v1387
  %1405 = vmatprep.subr.mxu0 0.0
  %1406 = vmatpush1.msra.mxu0 %v1388
  %1407 = vmatprep.subr.mxu0 0.0
  %1408 = vmatpush1.msra.mxu0 %v1389
  %1409 = vmatprep.subr.mxu0 0.0
  %1410 = vmatpush1.msra.mxu0 %v1390
  %1411 = vmatprep.subr.mxu0 0.0
  %1412 = vmatpush1.msra.mxu0 %v1391
  %1413 = vmatprep.subr.mxu0 0.0
  %1414 = vmatpush1.msra.mxu0 %v1392
  %1415 = vmatprep.subr.mxu0 0.0
  %1416 = vmatpush1.msra.mxu0 %v1393
  %1417 = vmatprep.subr.mxu0 0.0
  %1418 = vmatpush1.msra.mxu0 %v1394
  %1419 = vmatprep.subr.mxu0 0.0
  %1420 = vmatpush1.msra.mxu0 %v1395
  %1421 = vmatprep.subr.mxu0 0.0
  %1422 = vmatpush1.msra.mxu0 %v1396
  %1423 = vmatprep.subr.mxu0 0.0
  %1424 = vmatpush1.msra.mxu0 %v1397
  %1425 = vmatprep.subr.mxu0 0.0
  %1426 = vmatpush1.msra.mxu0 %v1398
  %1427 = vmatprep.subr.mxu0 0.0
  %1428 = vmatpush1.msra.mxu0 %v1399
  %1429 = vmatprep.subr.mxu0 0.0
  %1430 = vmatpush1.msra.mxu0 %v1400
  %1431 = vmatprep.subr.mxu0 0.0
  %1432 = vmatpush1.msra.mxu0 %v1401
  %1433 = vmatprep.subr.mxu0 0.0
  %1434 = vmatpush1.msra.mxu0 %v1402
  %1435 = vmatprep.subr.mxu0 0.0
  %1436 = vmatpush1.msra.mxu0 0.0
  %1437 = vmatprep.subr.mxu0 0.0
  %1438 = vmatpush1.msra.mxu0 0.0
  %1439 = vmatprep.subr.mxu0 0.0
  %1440 = vmatpush1.msra.mxu0 0.0
  %1441 = vmatprep.subr.mxu0 0.0
  %1442 = vmatpush1.msra.mxu0 0.0
  %1443 = vmatprep.subr.mxu0 0.0
  %1444 = vmatpush1.msra.mxu0 0.0
  %1445 = vmatprep.subr.mxu0 0.0
  %1446 = vmatpush1.msra.mxu0 0.0
  %1447 = vmatprep.subr.mxu0 0.0
  %1448 = vmatpush1.msra.mxu0 0.0
  %1449 = vmatprep.subr.mxu0 0.0
  %1450 = vmatpush1.msra.mxu0 0.0
  %1451 = vmatprep.subr.mxu0 0.0
  %1452 = vmatpush1.msra.mxu0 0.0
  %1453 = vmatprep.subr.mxu0 0.0
  %1454 = vmatpush1.msra.mxu0 0.0
  %1455 = vmatprep.subr.mxu0 0.0
  %1456 = vmatpush1.msra.mxu0 0.0
  %1457 = vmatprep.subr.mxu0 0.0
  %1458 = vmatpush1.msra.mxu0 0.0
  %1459 = vmatprep.subr.mxu0 0.0
  %1460 = vmatpush1.msra.mxu0 0.0
  %1461 = vmatprep.subr.mxu0 0.0
  %1462 = vmatpush1.msra.mxu0 0.0
  %1463 = vmatprep.subr.mxu0 0.0
  %1464 = vmatpush1.msra.mxu0 0.0
  %1465 = vmatprep.subr.mxu0 0.0
  %1466 = vmatpush1.msra.mxu0 0.0
  %1467 = vmatprep.mubr.f32.mxu0 0.0
  %1468 = vmatmul.mubr.f32.gmra.mrb[0].mxu0 %v1308
  %v1469 = vpop.f32.mrb[0].mxu0
  %v1470 = vadd.f32 0.0, %v1469
  %v1471 = vpop.f32.mrb[0].mxu0
  %1472 = vmatprep.mubr.f32.mxu0 0.0
  %1473 = vmatmul.mubr.f32.gmra.mrb[0].mxu0 %v1313
  %v1474 = vpop.f32.mrb[0].mxu0
  %v1475 = vadd.f32 0.0, %v1474
  %v1476 = vpop.f32.mrb[0].mxu0
  %1477 = vmatprep.mubr.f32.mxu0 0.0
  %1478 = vmatmul.mubr.f32.gmra.mrb[0].mxu0 %v1318
  %v1479 = vpop.f32.mrb[0].mxu0
  %v1480 = vadd.f32 0.0, %v1479
  %v1481 = vpop.f32.mrb[0].mxu0
  %1482 = vmatprep.mubr.f32.mxu0 0.0
  %1483 = vmatmul.mubr.f32.gmra.mrb[0].mxu0 %v1323
  %v1484 = vpop.f32.mrb[0].mxu0
  %v1485 = vadd.f32 0.0, %v1484
  %v1486 = vpop.f32.mrb[0].mxu0
  %1487 = vmatprep.mubr.f32.mxu0 0.0
  %1488 = vmatmul.mubr.f32.gmra.mrb[0].mxu0 %v1328
  %v1489 = vpop.f32.mrb[0].mxu0
  %v1490 = vadd.f32 0.0, %v1489
  %v1491 = vpop.f32.mrb[0].mxu0
  %1492 = vmatprep.mubr.f32.mxu0 0.0
  %1493 = vmatmul.mubr.f32.gmra.mrb[0].mxu0 %v1333
  %v1494 = vpop.f32.mrb[0].mxu0
  %v1495 = vadd.f32 0.0, %v1494
  %v1496 = vpop.f32.mrb[0].mxu0
  %1497 = vmatprep.mubr.f32.mxu0 0.0
  %1498 = vmatmul.mubr.f32.gmra.mrb[0].mxu0 %v1338
  %v1499 = vpop.f32.mrb[0].mxu0
  %v1500 = vadd.f32 0.0, %v1499
  %v1501 = vpop.f32.mrb[0].mxu0
  %1502 = vmatprep.mubr.f32.mxu0 0.0
  %1503 = vmatmul.mubr.f32.gmra.mrb[0].mxu0 %v1343
  %v1504 = vpop.f32.mrb[0].mxu0
  %v1505 = vadd.f32 0.0, %v1504
  %v1506 = vpop.f32.mrb[0].mxu0
  %1507 = vmatprep.mubr.f32.mxu0 0.0
  %1508 = vmatmul.mubr.f32.gmra.mrb[0].mxu0 %v1348
  %v1509 = vpop.f32.mrb[0].mxu0
  %v1510 = vadd.f32 0.0, %v1509
  %v1511 = vpop.f32.mrb[0].mxu0
  %1512 = vmatprep.mubr.f32.mxu0 0.0
  %1513 = vmatmul.mubr.f32.gmra.mrb[0].mxu0 %v1353
  %v1514 = vpop.f32.mrb[0].mxu0
  %v1515 = vadd.f32 0.0, %v1514
  %v1516 = vpop.f32.mrb[0].mxu0
  %1517 = vmatprep.mubr.f32.mxu0 0.0
  %1518 = vmatmul.mubr.f32.gmra.mrb[0].mxu0 %v1358
  %v1519 = vpop.f32.mrb[0].mxu0
  %v1520 = vadd.f32 0.0, %v1519
  %v1521 = vpop.f32.mrb[0].mxu0
  %1522 = vmatprep.mubr.f32.mxu0 0.0
  %1523 = vmatmul.mubr.f32.gmra.mrb[0].mxu0 %v1363
  %v1524 = vpop.f32.mrb[0].mxu0
  %v1525 = vadd.f32 0.0, %v1524
  %v1526 = vpop.f32.mrb[0].mxu0
  %1527 = vmatprep.mubr.f32.mxu0 0.0
  %1528 = vmatmul.mubr.f32.gmra.mrb[0].mxu0 %v1368
  %v1529 = vpop.f32.mrb[0].mxu0
  %v1530 = vadd.f32 0.0, %v1529
  %v1531 = vpop.f32.mrb[0].mxu0
  %1532 = vmatprep.mubr.f32.mxu0 0.0
  %1533 = vmatmul.mubr.f32.gmra.mrb[0].mxu0 %v1373
  %v1534 = vpop.f32.mrb[0].mxu0
  %v1535 = vadd.f32 0.0, %v1534
  %v1536 = vpop.f32.mrb[0].mxu0
  %1537 = vmatprep.mubr.f32.mxu0 0.0
  %1538 = vmatmul.mubr.f32.gmra.mrb[0].mxu0 %v1378
  %v1539 = vpop.f32.mrb[0].mxu0
  %v1540 = vadd.f32 0.0, %v1539
  %v1541 = vpop.f32.mrb[0].mxu0
  %1542 = vmatprep.mubr.f32.mxu0 0.0
  %1543 = vmatmul.mubr.f32.gmra.mrb[0].mxu0 %v1383
  %v1544 = vpop.f32.mrb[0].mxu0
  %v1545 = vadd.f32 0.0, %v1544
  %v1546 = vpop.f32.mrb[0].mxu0
  %1547 = vdwg.mxu0
  %v1548 = vadd.f32 %v1208, %v1470
  %v1549 = vadd.f32 %v1209, %v1475
  %v1550 = vadd.f32 %v1210, %v1480
  %v1551 = vadd.f32 %v1211, %v1485
  %v1552 = vadd.f32 %v1212, %v1490
  %v1553 = vadd.f32 %v1213, %v1495
  %v1554 = vadd.f32 %v1214, %v1500
  %v1555 = vadd.f32 %v1215, %v1505
  %v1556 = vadd.f32 %v1216, %v1510
  %v1557 = vadd.f32 %v1217, %v1515
  %v1558 = vadd.f32 %v1218, %v1520
  %v1559 = vadd.f32 %v1219, %v1525
  %v1560 = vadd.f32 %v1220, %v1530
  %v1561 = vadd.f32 %v1221, %v1535
  %v1562 = vadd.f32 %v1222, %v1540
  %v1563 = vadd.f32 %v1223, %v1545
  %s1564 = scalar_lea.vmem %s2, 512
  %v1565 = vld [vmem:[%s1564] sm:$0xff]
  %v1566 = vld [vmem:[%s1564 + $0x8] sm:$0xff]
  %v1567 = vld [vmem:[%s1564 + $0x10] sm:$0xff]
  %v1568 = vld [vmem:[%s1564 + $0x18] sm:$0xff]
  %v1569 = vld [vmem:[%s1564 + $0x20] sm:$0xff]
  %v1570 = vld [vmem:[%s1564 + $0x28] sm:$0xff]
  %v1571 = vld [vmem:[%s1564 + $0x30] sm:$0xff]
  %v1572 = vld [vmem:[%s1564 + $0x38] sm:$0xff]
  %v1573 = vld [vmem:[%s1564 + $0x40] sm:$0xff]
  %v1574 = vld [vmem:[%s1564 + $0x48] sm:$0xff]
  %v1575 = vld [vmem:[%s1564 + $0x50] sm:$0xff]
  %v1576 = vld [vmem:[%s1564 + $0x58] sm:$0xff]
  %v1577 = vld [vmem:[%s1564 + $0x60] sm:$0xff]
  %v1578 = vld [vmem:[%s1564 + $0x68] sm:$0xff]
  %v1579 = vld [vmem:[%s1564 + $0x70] sm:$0xff]
  %v1580 = vld [vmem:[%s1564 + $0x78] sm:$0xff]
  %1581 = vmatprep.subr.mxu0 0.0
  %1582 = vmatpush1.msra.mxu0 %v222
  %1583 = vmatprep.subr.mxu0 0.0
  %1584 = vmatpush1.msra.mxu0 %v223
  %1585 = vmatprep.subr.mxu0 0.0
  %1586 = vmatpush1.msra.mxu0 %v224
  %1587 = vmatprep.subr.mxu0 0.0
  %1588 = vmatpush1.msra.mxu0 %v225
  %1589 = vmatprep.subr.mxu0 0.0
  %1590 = vmatpush1.msra.mxu0 %v226
  %1591 = vmatprep.subr.mxu0 0.0
  %1592 = vmatpush1.msra.mxu0 %v227
  %1593 = vmatprep.subr.mxu0 0.0
  %1594 = vmatpush1.msra.mxu0 %v228
  %1595 = vmatprep.subr.mxu0 0.0
  %1596 = vmatpush1.msra.mxu0 %v229
  %1597 = vmatprep.subr.mxu0 0.0
  %1598 = vmatpush1.msra.mxu0 %v230
  %1599 = vmatprep.subr.mxu0 0.0
  %1600 = vmatpush1.msra.mxu0 %v231
  %1601 = vmatprep.subr.mxu0 0.0
  %1602 = vmatpush1.msra.mxu0 %v232
  %1603 = vmatprep.subr.mxu0 0.0
  %1604 = vmatpush1.msra.mxu0 %v233
  %1605 = vmatprep.subr.mxu0 0.0
  %1606 = vmatpush1.msra.mxu0 %v234
  %1607 = vmatprep.subr.mxu0 0.0
  %1608 = vmatpush1.msra.mxu0 %v235
  %1609 = vmatprep.subr.mxu0 0.0
  %1610 = vmatpush1.msra.mxu0 %v236
  %1611 = vmatprep.subr.mxu0 0.0
  %1612 = vmatpush1.msra.mxu0 %v237
  %1613 = vmatprep.subr.mxu0 0.0
  %1614 = vmatpush1.msra.mxu0 0.0
  %1615 = vmatprep.subr.mxu0 0.0
  %1616 = vmatpush1.msra.mxu0 0.0
  %1617 = vmatprep.subr.mxu0 0.0
  %1618 = vmatpush1.msra.mxu0 0.0
  %1619 = vmatprep.subr.mxu0 0.0
  %1620 = vmatpush1.msra.mxu0 0.0
  %1621 = vmatprep.subr.mxu0 0.0
  %1622 = vmatpush1.msra.mxu0 0.0
  %1623 = vmatprep.subr.mxu0 0.0
  %1624 = vmatpush1.msra.mxu0 0.0
  %1625 = vmatprep.subr.mxu0 0.0
  %1626 = vmatpush1.msra.mxu0 0.0
  %1627 = vmatprep.subr.mxu0 0.0
  %1628 = vmatpush1.msra.mxu0 0.0
  %1629 = vmatprep.subr.mxu0 0.0
  %1630 = vmatpush1.msra.mxu0 0.0
  %1631 = vmatprep.subr.mxu0 0.0
  %1632 = vmatpush1.msra.mxu0 0.0
  %1633 = vmatprep.subr.mxu0 0.0
  %1634 = vmatpush1.msra.mxu0 0.0
  %1635 = vmatprep.subr.mxu0 0.0
  %1636 = vmatpush1.msra.mxu0 0.0
  %1637 = vmatprep.subr.mxu0 0.0
  %1638 = vmatpush1.msra.mxu0 0.0
  %1639 = vmatprep.subr.mxu0 0.0
  %1640 = vmatpush1.msra.mxu0 0.0
  %1641 = vmatprep.subr.mxu0 0.0
  %1642 = vmatpush1.msra.mxu0 0.0
  %1643 = vmatprep.subr.mxu0 0.0
  %1644 = vmatpush1.msra.mxu0 0.0
  %1645 = vmatprep.mubr.f32.mxu0 0.0
  %1646 = vmatmul.mubr.f32.gmra.mrb[0].mxu0 %v1565
  %v1647 = vpop.f32.mrb[0].mxu0
  %v1648 = vadd.f32 0.0, %v1647
  %v1649 = vpop.f32.mrb[0].mxu0
  %1650 = vmatprep.mubr.f32.mxu0 0.0
  %1651 = vmatmul.mubr.f32.gmra.mrb[0].mxu0 %v1566
  %v1652 = vpop.f32.mrb[0].mxu0
  %v1653 = vadd.f32 0.0, %v1652
  %v1654 = vpop.f32.mrb[0].mxu0
  %1655 = vmatprep.mubr.f32.mxu0 0.0
  %1656 = vmatmul.mubr.f32.gmra.mrb[0].mxu0 %v1567
  %v1657 = vpop.f32.mrb[0].mxu0
  %v1658 = vadd.f32 0.0, %v1657
  %v1659 = vpop.f32.mrb[0].mxu0
  %1660 = vmatprep.mubr.f32.mxu0 0.0
  %1661 = vmatmul.mubr.f32.gmra.mrb[0].mxu0 %v1568
  %v1662 = vpop.f32.mrb[0].mxu0
  %v1663 = vadd.f32 0.0, %v1662
  %v1664 = vpop.f32.mrb[0].mxu0
  %1665 = vmatprep.mubr.f32.mxu0 0.0
  %1666 = vmatmul.mubr.f32.gmra.mrb[0].mxu0 %v1569
  %v1667 = vpop.f32.mrb[0].mxu0
  %v1668 = vadd.f32 0.0, %v1667
  %v1669 = vpop.f32.mrb[0].mxu0
  %1670 = vmatprep.mubr.f32.mxu0 0.0
  %1671 = vmatmul.mubr.f32.gmra.mrb[0].mxu0 %v1570
  %v1672 = vpop.f32.mrb[0].mxu0
  %v1673 = vadd.f32 0.0, %v1672
  %v1674 = vpop.f32.mrb[0].mxu0
  %1675 = vmatprep.mubr.f32.mxu0 0.0
  %1676 = vmatmul.mubr.f32.gmra.mrb[0].mxu0 %v1571
  %v1677 = vpop.f32.mrb[0].mxu0
  %v1678 = vadd.f32 0.0, %v1677
  %v1679 = vpop.f32.mrb[0].mxu0
  %1680 = vmatprep.mubr.f32.mxu0 0.0
  %1681 = vmatmul.mubr.f32.gmra.mrb[0].mxu0 %v1572
  %v1682 = vpop.f32.mrb[0].mxu0
  %v1683 = vadd.f32 0.0, %v1682
  %v1684 = vpop.f32.mrb[0].mxu0
  %1685 = vmatprep.mubr.f32.mxu0 0.0
  %1686 = vmatmul.mubr.f32.gmra.mrb[0].mxu0 %v1573
  %v1687 = vpop.f32.mrb[0].mxu0
  %v1688 = vadd.f32 0.0, %v1687
  %v1689 = vpop.f32.mrb[0].mxu0
  %1690 = vmatprep.mubr.f32.mxu0 0.0
  %1691 = vmatmul.mubr.f32.gmra.mrb[0].mxu0 %v1574
  %v1692 = vpop.f32.mrb[0].mxu0
  %v1693 = vadd.f32 0.0, %v1692
  %v1694 = vpop.f32.mrb[0].mxu0
  %1695 = vmatprep.mubr.f32.mxu0 0.0
  %1696 = vmatmul.mubr.f32.gmra.mrb[0].mxu0 %v1575
  %v1697 = vpop.f32.mrb[0].mxu0
  %v1698 = vadd.f32 0.0, %v1697
  %v1699 = vpop.f32.mrb[0].mxu0
  %1700 = vmatprep.mubr.f32.mxu0 0.0
  %1701 = vmatmul.mubr.f32.gmra.mrb[0].mxu0 %v1576
  %v1702 = vpop.f32.mrb[0].mxu0
  %v1703 = vadd.f32 0.0, %v1702
  %v1704 = vpop.f32.mrb[0].mxu0
  %1705 = vmatprep.mubr.f32.mxu0 0.0
  %1706 = vmatmul.mubr.f32.gmra.mrb[0].mxu0 %v1577
  %v1707 = vpop.f32.mrb[0].mxu0
  %v1708 = vadd.f32 0.0, %v1707
  %v1709 = vpop.f32.mrb[0].mxu0
  %1710 = vmatprep.mubr.f32.mxu0 0.0
  %1711 = vmatmul.mubr.f32.gmra.mrb[0].mxu0 %v1578
  %v1712 = vpop.f32.mrb[0].mxu0
  %v1713 = vadd.f32 0.0, %v1712
  %v1714 = vpop.f32.mrb[0].mxu0
  %1715 = vmatprep.mubr.f32.mxu0 0.0
  %1716 = vmatmul.mubr.f32.gmra.mrb[0].mxu0 %v1579
  %v1717 = vpop.f32.mrb[0].mxu0
  %v1718 = vadd.f32 0.0, %v1717
  %v1719 = vpop.f32.mrb[0].mxu0
  %1720 = vmatprep.mubr.f32.mxu0 0.0
  %1721 = vmatmul.mubr.f32.gmra.mrb[0].mxu0 %v1580
  %v1722 = vpop.f32.mrb[0].mxu0
  %v1723 = vadd.f32 0.0, %v1722
  %v1724 = vpop.f32.mrb[0].mxu0
  %1725 = vdwg.mxu0
  %s1726 = scalar_lea.vmem %s3, 512
  %v1727 = vld [vmem:[%s1726] sm:$0xff]
  %v1728 = vld [vmem:[%s1726 + $0x8] sm:$0xff]
  %v1729 = vld [vmem:[%s1726 + $0x10] sm:$0xff]
  %v1730 = vld [vmem:[%s1726 + $0x18] sm:$0xff]
  %v1731 = vld [vmem:[%s1726 + $0x20] sm:$0xff]
  %v1732 = vld [vmem:[%s1726 + $0x28] sm:$0xff]
  %v1733 = vld [vmem:[%s1726 + $0x30] sm:$0xff]
  %v1734 = vld [vmem:[%s1726 + $0x38] sm:$0xff]
  %v1735 = vld [vmem:[%s1726 + $0x40] sm:$0xff]
  %v1736 = vld [vmem:[%s1726 + $0x48] sm:$0xff]
  %v1737 = vld [vmem:[%s1726 + $0x50] sm:$0xff]
  %v1738 = vld [vmem:[%s1726 + $0x58] sm:$0xff]
  %v1739 = vld [vmem:[%s1726 + $0x60] sm:$0xff]
  %v1740 = vld [vmem:[%s1726 + $0x68] sm:$0xff]
  %v1741 = vld [vmem:[%s1726 + $0x70] sm:$0xff]
  %v1742 = vld [vmem:[%s1726 + $0x78] sm:$0xff]
  %1743 = vmatprep.subr.mxu0 0.0
  %1744 = vmatpush1.msra.mxu0 %v1727
  %1745 = vmatprep.subr.mxu0 0.0
  %1746 = vmatpush1.msra.mxu0 %v1728
  %1747 = vmatprep.subr.mxu0 0.0
  %1748 = vmatpush1.msra.mxu0 %v1729
  %1749 = vmatprep.subr.mxu0 0.0
  %1750 = vmatpush1.msra.mxu0 %v1730
  %1751 = vmatprep.subr.mxu0 0.0
  %1752 = vmatpush1.msra.mxu0 %v1731
  %1753 = vmatprep.subr.mxu0 0.0
  %1754 = vmatpush1.msra.mxu0 %v1732
  %1755 = vmatprep.subr.mxu0 0.0
  %1756 = vmatpush1.msra.mxu0 %v1733
  %1757 = vmatprep.subr.mxu0 0.0
  %1758 = vmatpush1.msra.mxu0 %v1734
  %1759 = vmatprep.subr.mxu0 0.0
  %1760 = vmatpush1.msra.mxu0 %v1735
  %1761 = vmatprep.subr.mxu0 0.0
  %1762 = vmatpush1.msra.mxu0 %v1736
  %1763 = vmatprep.subr.mxu0 0.0
  %1764 = vmatpush1.msra.mxu0 %v1737
  %1765 = vmatprep.subr.mxu0 0.0
  %1766 = vmatpush1.msra.mxu0 %v1738
  %1767 = vmatprep.subr.mxu0 0.0
  %1768 = vmatpush1.msra.mxu0 %v1739
  %1769 = vmatprep.subr.mxu0 0.0
  %1770 = vmatpush1.msra.mxu0 %v1740
  %1771 = vmatprep.subr.mxu0 0.0
  %1772 = vmatpush1.msra.mxu0 %v1741
  %1773 = vmatprep.subr.mxu0 0.0
  %1774 = vmatpush1.msra.mxu0 %v1742
  %1775 = vmatprep.subr.mxu0 0.0
  %1776 = vmatpush1.msra.mxu0 0.0
  %1777 = vmatprep.subr.mxu0 0.0
  %1778 = vmatpush1.msra.mxu0 0.0
  %1779 = vmatprep.subr.mxu0 0.0
  %1780 = vmatpush1.msra.mxu0 0.0
  %1781 = vmatprep.subr.mxu0 0.0
  %1782 = vmatpush1.msra.mxu0 0.0
  %1783 = vmatprep.subr.mxu0 0.0
  %1784 = vmatpush1.msra.mxu0 0.0
  %1785 = vmatprep.subr.mxu0 0.0
  %1786 = vmatpush1.msra.mxu0 0.0
  %1787 = vmatprep.subr.mxu0 0.0
  %1788 = vmatpush1.msra.mxu0 0.0
  %1789 = vmatprep.subr.mxu0 0.0
  %1790 = vmatpush1.msra.mxu0 0.0
  %1791 = vmatprep.subr.mxu0 0.0
  %1792 = vmatpush1.msra.mxu0 0.0
  %1793 = vmatprep.subr.mxu0 0.0
  %1794 = vmatpush1.msra.mxu0 0.0
  %1795 = vmatprep.subr.mxu0 0.0
  %1796 = vmatpush1.msra.mxu0 0.0
  %1797 = vmatprep.subr.mxu0 0.0
  %1798 = vmatpush1.msra.mxu0 0.0
  %1799 = vmatprep.subr.mxu0 0.0
  %1800 = vmatpush1.msra.mxu0 0.0
  %1801 = vmatprep.subr.mxu0 0.0
  %1802 = vmatpush1.msra.mxu0 0.0
  %1803 = vmatprep.subr.mxu0 0.0
  %1804 = vmatpush1.msra.mxu0 0.0
  %1805 = vmatprep.subr.mxu0 0.0
  %1806 = vmatpush1.msra.mxu0 0.0
  %1807 = vmatprep.mubr.f32.mxu0 0.0
  %1808 = vmatmul.mubr.f32.gmra.mrb[0].mxu0 %v1648
  %v1809 = vpop.f32.mrb[0].mxu0
  %v1810 = vadd.f32 0.0, %v1809
  %v1811 = vpop.f32.mrb[0].mxu0
  %1812 = vmatprep.mubr.f32.mxu0 0.0
  %1813 = vmatmul.mubr.f32.gmra.mrb[0].mxu0 %v1653
  %v1814 = vpop.f32.mrb[0].mxu0
  %v1815 = vadd.f32 0.0, %v1814
  %v1816 = vpop.f32.mrb[0].mxu0
  %1817 = vmatprep.mubr.f32.mxu0 0.0
  %1818 = vmatmul.mubr.f32.gmra.mrb[0].mxu0 %v1658
  %v1819 = vpop.f32.mrb[0].mxu0
  %v1820 = vadd.f32 0.0, %v1819
  %v1821 = vpop.f32.mrb[0].mxu0
  %1822 = vmatprep.mubr.f32.mxu0 0.0
  %1823 = vmatmul.mubr.f32.gmra.mrb[0].mxu0 %v1663
  %v1824 = vpop.f32.mrb[0].mxu0
  %v1825 = vadd.f32 0.0, %v1824
  %v1826 = vpop.f32.mrb[0].mxu0
  %1827 = vmatprep.mubr.f32.mxu0 0.0
  %1828 = vmatmul.mubr.f32.gmra.mrb[0].mxu0 %v1668
  %v1829 = vpop.f32.mrb[0].mxu0
  %v1830 = vadd.f32 0.0, %v1829
  %v1831 = vpop.f32.mrb[0].mxu0
  %1832 = vmatprep.mubr.f32.mxu0 0.0
  %1833 = vmatmul.mubr.f32.gmra.mrb[0].mxu0 %v1673
  %v1834 = vpop.f32.mrb[0].mxu0
  %v1835 = vadd.f32 0.0, %v1834
  %v1836 = vpop.f32.mrb[0].mxu0
  %1837 = vmatprep.mubr.f32.mxu0 0.0
  %1838 = vmatmul.mubr.f32.gmra.mrb[0].mxu0 %v1678
  %v1839 = vpop.f32.mrb[0].mxu0
  %v1840 = vadd.f32 0.0, %v1839
  %v1841 = vpop.f32.mrb[0].mxu0
  %1842 = vmatprep.mubr.f32.mxu0 0.0
  %1843 = vmatmul.mubr.f32.gmra.mrb[0].mxu0 %v1683
  %v1844 = vpop.f32.mrb[0].mxu0
  %v1845 = vadd.f32 0.0, %v1844
  %v1846 = vpop.f32.mrb[0].mxu0
  %1847 = vmatprep.mubr.f32.mxu0 0.0
  %1848 = vmatmul.mubr.f32.gmra.mrb[0].mxu0 %v1688
  %v1849 = vpop.f32.mrb[0].mxu0
  %v1850 = vadd.f32 0.0, %v1849
  %v1851 = vpop.f32.mrb[0].mxu0
  %1852 = vmatprep.mubr.f32.mxu0 0.0
  %1853 = vmatmul.mubr.f32.gmra.mrb[0].mxu0 %v1693
  %v1854 = vpop.f32.mrb[0].mxu0
  %v1855 = vadd.f32 0.0, %v1854
  %v1856 = vpop.f32.mrb[0].mxu0
  %1857 = vmatprep.mubr.f32.mxu0 0.0
  %1858 = vmatmul.mubr.f32.gmra.mrb[0].mxu0 %v1698
  %v1859 = vpop.f32.mrb[0].mxu0
  %v1860 = vadd.f32 0.0, %v1859
  %v1861 = vpop.f32.mrb[0].mxu0
  %1862 = vmatprep.mubr.f32.mxu0 0.0
  %1863 = vmatmul.mubr.f32.gmra.mrb[0].mxu0 %v1703
  %v1864 = vpop.f32.mrb[0].mxu0
  %v1865 = vadd.f32 0.0, %v1864
  %v1866 = vpop.f32.mrb[0].mxu0
  %1867 = vmatprep.mubr.f32.mxu0 0.0
  %1868 = vmatmul.mubr.f32.gmra.mrb[0].mxu0 %v1708
  %v1869 = vpop.f32.mrb[0].mxu0
  %v1870 = vadd.f32 0.0, %v1869
  %v1871 = vpop.f32.mrb[0].mxu0
  %1872 = vmatprep.mubr.f32.mxu0 0.0
  %1873 = vmatmul.mubr.f32.gmra.mrb[0].mxu0 %v1713
  %v1874 = vpop.f32.mrb[0].mxu0
  %v1875 = vadd.f32 0.0, %v1874
  %v1876 = vpop.f32.mrb[0].mxu0
  %1877 = vmatprep.mubr.f32.mxu0 0.0
  %1878 = vmatmul.mubr.f32.gmra.mrb[0].mxu0 %v1718
  %v1879 = vpop.f32.mrb[0].mxu0
  %v1880 = vadd.f32 0.0, %v1879
  %v1881 = vpop.f32.mrb[0].mxu0
  %1882 = vmatprep.mubr.f32.mxu0 0.0
  %1883 = vmatmul.mubr.f32.gmra.mrb[0].mxu0 %v1723
  %v1884 = vpop.f32.mrb[0].mxu0
  %v1885 = vadd.f32 0.0, %v1884
  %v1886 = vpop.f32.mrb[0].mxu0
  %1887 = vdwg.mxu0
  %v1888 = vadd.f32 %v1548, %v1810
  %v1889 = vadd.f32 %v1549, %v1815
  %v1890 = vadd.f32 %v1550, %v1820
  %v1891 = vadd.f32 %v1551, %v1825
  %v1892 = vadd.f32 %v1552, %v1830
  %v1893 = vadd.f32 %v1553, %v1835
  %v1894 = vadd.f32 %v1554, %v1840
  %v1895 = vadd.f32 %v1555, %v1845
  %v1896 = vadd.f32 %v1556, %v1850
  %v1897 = vadd.f32 %v1557, %v1855
  %v1898 = vadd.f32 %v1558, %v1860
  %v1899 = vadd.f32 %v1559, %v1865
  %v1900 = vadd.f32 %v1560, %v1870
  %v1901 = vadd.f32 %v1561, %v1875
  %v1902 = vadd.f32 %v1562, %v1880
  %v1903 = vadd.f32 %v1563, %v1885
  %s1904 = scalar_lea.vmem %s2, 640
  %v1905 = vld [vmem:[%s1904] sm:$0xff]
  %v1906 = vld [vmem:[%s1904 + $0x8] sm:$0xff]
  %v1907 = vld [vmem:[%s1904 + $0x10] sm:$0xff]
  %v1908 = vld [vmem:[%s1904 + $0x18] sm:$0xff]
  %v1909 = vld [vmem:[%s1904 + $0x20] sm:$0xff]
  %v1910 = vld [vmem:[%s1904 + $0x28] sm:$0xff]
  %v1911 = vld [vmem:[%s1904 + $0x30] sm:$0xff]
  %v1912 = vld [vmem:[%s1904 + $0x38] sm:$0xff]
  %v1913 = vld [vmem:[%s1904 + $0x40] sm:$0xff]
  %v1914 = vld [vmem:[%s1904 + $0x48] sm:$0xff]
  %v1915 = vld [vmem:[%s1904 + $0x50] sm:$0xff]
  %v1916 = vld [vmem:[%s1904 + $0x58] sm:$0xff]
  %v1917 = vld [vmem:[%s1904 + $0x60] sm:$0xff]
  %v1918 = vld [vmem:[%s1904 + $0x68] sm:$0xff]
  %v1919 = vld [vmem:[%s1904 + $0x70] sm:$0xff]
  %v1920 = vld [vmem:[%s1904 + $0x78] sm:$0xff]
  %1921 = vmatprep.subr.mxu0 0.0
  %1922 = vmatpush1.msra.mxu0 %v222
  %1923 = vmatprep.subr.mxu0 0.0
  %1924 = vmatpush1.msra.mxu0 %v223
  %1925 = vmatprep.subr.mxu0 0.0
  %1926 = vmatpush1.msra.mxu0 %v224
  %1927 = vmatprep.subr.mxu0 0.0
  %1928 = vmatpush1.msra.mxu0 %v225
  %1929 = vmatprep.subr.mxu0 0.0
  %1930 = vmatpush1.msra.mxu0 %v226
  %1931 = vmatprep.subr.mxu0 0.0
  %1932 = vmatpush1.msra.mxu0 %v227
  %1933 = vmatprep.subr.mxu0 0.0
  %1934 = vmatpush1.msra.mxu0 %v228
  %1935 = vmatprep.subr.mxu0 0.0
  %1936 = vmatpush1.msra.mxu0 %v229
  %1937 = vmatprep.subr.mxu0 0.0
  %1938 = vmatpush1.msra.mxu0 %v230
  %1939 = vmatprep.subr.mxu0 0.0
  %1940 = vmatpush1.msra.mxu0 %v231
  %1941 = vmatprep.subr.mxu0 0.0
  %1942 = vmatpush1.msra.mxu0 %v232
  %1943 = vmatprep.subr.mxu0 0.0
  %1944 = vmatpush1.msra.mxu0 %v233
  %1945 = vmatprep.subr.mxu0 0.0
  %1946 = vmatpush1.msra.mxu0 %v234
  %1947 = vmatprep.subr.mxu0 0.0
  %1948 = vmatpush1.msra.mxu0 %v235
  %1949 = vmatprep.subr.mxu0 0.0
  %1950 = vmatpush1.msra.mxu0 %v236
  %1951 = vmatprep.subr.mxu0 0.0
  %1952 = vmatpush1.msra.mxu0 %v237
  %1953 = vmatprep.subr.mxu0 0.0
  %1954 = vmatpush1.msra.mxu0 0.0
  %1955 = vmatprep.subr.mxu0 0.0
  %1956 = vmatpush1.msra.mxu0 0.0
  %1957 = vmatprep.subr.mxu0 0.0
  %1958 = vmatpush1.msra.mxu0 0.0
  %1959 = vmatprep.subr.mxu0 0.0
  %1960 = vmatpush1.msra.mxu0 0.0
  %1961 = vmatprep.subr.mxu0 0.0
  %1962 = vmatpush1.msra.mxu0 0.0
  %1963 = vmatprep.subr.mxu0 0.0
  %1964 = vmatpush1.msra.mxu0 0.0
  %1965 = vmatprep.subr.mxu0 0.0
  %1966 = vmatpush1.msra.mxu0 0.0
  %1967 = vmatprep.subr.mxu0 0.0
  %1968 = vmatpush1.msra.mxu0 0.0
  %1969 = vmatprep.subr.mxu0 0.0
  %1970 = vmatpush1.msra.mxu0 0.0
  %1971 = vmatprep.subr.mxu0 0.0
  %1972 = vmatpush1.msra.mxu0 0.0
  %1973 = vmatprep.subr.mxu0 0.0
  %1974 = vmatpush1.msra.mxu0 0.0
  %1975 = vmatprep.subr.mxu0 0.0
  %1976 = vmatpush1.msra.mxu0 0.0
  %1977 = vmatprep.subr.mxu0 0.0
  %1978 = vmatpush1.msra.mxu0 0.0
  %1979 = vmatprep.subr.mxu0 0.0
  %1980 = vmatpush1.msra.mxu0 0.0
  %1981 = vmatprep.subr.mxu0 0.0
  %1982 = vmatpush1.msra.mxu0 0.0
  %1983 = vmatprep.subr.mxu0 0.0
  %1984 = vmatpush1.msra.mxu0 0.0
  %1985 = vmatprep.mubr.f32.mxu0 0.0
  %1986 = vmatmul.mubr.f32.gmra.mrb[0].mxu0 %v1905
  %v1987 = vpop.f32.mrb[0].mxu0
  %v1988 = vadd.f32 0.0, %v1987
  %v1989 = vpop.f32.mrb[0].mxu0
  %1990 = vmatprep.mubr.f32.mxu0 0.0
  %1991 = vmatmul.mubr.f32.gmra.mrb[0].mxu0 %v1906
  %v1992 = vpop.f32.mrb[0].mxu0
  %v1993 = vadd.f32 0.0, %v1992
  %v1994 = vpop.f32.mrb[0].mxu0
  %1995 = vmatprep.mubr.f32.mxu0 0.0
  %1996 = vmatmul.mubr.f32.gmra.mrb[0].mxu0 %v1907
  %v1997 = vpop.f32.mrb[0].mxu0
  %v1998 = vadd.f32 0.0, %v1997
  %v1999 = vpop.f32.mrb[0].mxu0
  %2000 = vmatprep.mubr.f32.mxu0 0.0
  %2001 = vmatmul.mubr.f32.gmra.mrb[0].mxu0 %v1908
  %v2002 = vpop.f32.mrb[0].mxu0
  %v2003 = vadd.f32 0.0, %v2002
  %v2004 = vpop.f32.mrb[0].mxu0
  %2005 = vmatprep.mubr.f32.mxu0 0.0
  %2006 = vmatmul.mubr.f32.gmra.mrb[0].mxu0 %v1909
  %v2007 = vpop.f32.mrb[0].mxu0
  %v2008 = vadd.f32 0.0, %v2007
  %v2009 = vpop.f32.mrb[0].mxu0
  %2010 = vmatprep.mubr.f32.mxu0 0.0
  %2011 = vmatmul.mubr.f32.gmra.mrb[0].mxu0 %v1910
  %v2012 = vpop.f32.mrb[0].mxu0
  %v2013 = vadd.f32 0.0, %v2012
  %v2014 = vpop.f32.mrb[0].mxu0
  %2015 = vmatprep.mubr.f32.mxu0 0.0
  %2016 = vmatmul.mubr.f32.gmra.mrb[0].mxu0 %v1911
  %v2017 = vpop.f32.mrb[0].mxu0
  %v2018 = vadd.f32 0.0, %v2017
  %v2019 = vpop.f32.mrb[0].mxu0
  %2020 = vmatprep.mubr.f32.mxu0 0.0
  %2021 = vmatmul.mubr.f32.gmra.mrb[0].mxu0 %v1912
  %v2022 = vpop.f32.mrb[0].mxu0
  %v2023 = vadd.f32 0.0, %v2022
  %v2024 = vpop.f32.mrb[0].mxu0
  %2025 = vmatprep.mubr.f32.mxu0 0.0
  %2026 = vmatmul.mubr.f32.gmra.mrb[0].mxu0 %v1913
  %v2027 = vpop.f32.mrb[0].mxu0
  %v2028 = vadd.f32 0.0, %v2027
  %v2029 = vpop.f32.mrb[0].mxu0
  %2030 = vmatprep.mubr.f32.mxu0 0.0
  %2031 = vmatmul.mubr.f32.gmra.mrb[0].mxu0 %v1914
  %v2032 = vpop.f32.mrb[0].mxu0
  %v2033 = vadd.f32 0.0, %v2032
  %v2034 = vpop.f32.mrb[0].mxu0
  %2035 = vmatprep.mubr.f32.mxu0 0.0
  %2036 = vmatmul.mubr.f32.gmra.mrb[0].mxu0 %v1915
  %v2037 = vpop.f32.mrb[0].mxu0
  %v2038 = vadd.f32 0.0, %v2037
  %v2039 = vpop.f32.mrb[0].mxu0
  %2040 = vmatprep.mubr.f32.mxu0 0.0
  %2041 = vmatmul.mubr.f32.gmra.mrb[0].mxu0 %v1916
  %v2042 = vpop.f32.mrb[0].mxu0
  %v2043 = vadd.f32 0.0, %v2042
  %v2044 = vpop.f32.mrb[0].mxu0
  %2045 = vmatprep.mubr.f32.mxu0 0.0
  %2046 = vmatmul.mubr.f32.gmra.mrb[0].mxu0 %v1917
  %v2047 = vpop.f32.mrb[0].mxu0
  %v2048 = vadd.f32 0.0, %v2047
  %v2049 = vpop.f32.mrb[0].mxu0
  %2050 = vmatprep.mubr.f32.mxu0 0.0
  %2051 = vmatmul.mubr.f32.gmra.mrb[0].mxu0 %v1918
  %v2052 = vpop.f32.mrb[0].mxu0
  %v2053 = vadd.f32 0.0, %v2052
  %v2054 = vpop.f32.mrb[0].mxu0
  %2055 = vmatprep.mubr.f32.mxu0 0.0
  %2056 = vmatmul.mubr.f32.gmra.mrb[0].mxu0 %v1919
  %v2057 = vpop.f32.mrb[0].mxu0
  %v2058 = vadd.f32 0.0, %v2057
  %v2059 = vpop.f32.mrb[0].mxu0
  %2060 = vmatprep.mubr.f32.mxu0 0.0
  %2061 = vmatmul.mubr.f32.gmra.mrb[0].mxu0 %v1920
  %v2062 = vpop.f32.mrb[0].mxu0
  %v2063 = vadd.f32 0.0, %v2062
  %v2064 = vpop.f32.mrb[0].mxu0
  %2065 = vdwg.mxu0
  %s2066 = scalar_lea.vmem %s3, 640
  %v2067 = vld [vmem:[%s2066] sm:$0xff]
  %v2068 = vld [vmem:[%s2066 + $0x8] sm:$0xff]
  %v2069 = vld [vmem:[%s2066 + $0x10] sm:$0xff]
  %v2070 = vld [vmem:[%s2066 + $0x18] sm:$0xff]
  %v2071 = vld [vmem:[%s2066 + $0x20] sm:$0xff]
  %v2072 = vld [vmem:[%s2066 + $0x28] sm:$0xff]
  %v2073 = vld [vmem:[%s2066 + $0x30] sm:$0xff]
  %v2074 = vld [vmem:[%s2066 + $0x38] sm:$0xff]
  %v2075 = vld [vmem:[%s2066 + $0x40] sm:$0xff]
  %v2076 = vld [vmem:[%s2066 + $0x48] sm:$0xff]
  %v2077 = vld [vmem:[%s2066 + $0x50] sm:$0xff]
  %v2078 = vld [vmem:[%s2066 + $0x58] sm:$0xff]
  %v2079 = vld [vmem:[%s2066 + $0x60] sm:$0xff]
  %v2080 = vld [vmem:[%s2066 + $0x68] sm:$0xff]
  %v2081 = vld [vmem:[%s2066 + $0x70] sm:$0xff]
  %v2082 = vld [vmem:[%s2066 + $0x78] sm:$0xff]
  %2083 = vmatprep.subr.mxu0 0.0
  %2084 = vmatpush1.msra.mxu0 %v2067
  %2085 = vmatprep.subr.mxu0 0.0
  %2086 = vmatpush1.msra.mxu0 %v2068
  %2087 = vmatprep.subr.mxu0 0.0
  %2088 = vmatpush1.msra.mxu0 %v2069
  %2089 = vmatprep.subr.mxu0 0.0
  %2090 = vmatpush1.msra.mxu0 %v2070
  %2091 = vmatprep.subr.mxu0 0.0
  %2092 = vmatpush1.msra.mxu0 %v2071
  %2093 = vmatprep.subr.mxu0 0.0
  %2094 = vmatpush1.msra.mxu0 %v2072
  %2095 = vmatprep.subr.mxu0 0.0
  %2096 = vmatpush1.msra.mxu0 %v2073
  %2097 = vmatprep.subr.mxu0 0.0
  %2098 = vmatpush1.msra.mxu0 %v2074
  %2099 = vmatprep.subr.mxu0 0.0
  %2100 = vmatpush1.msra.mxu0 %v2075
  %2101 = vmatprep.subr.mxu0 0.0
  %2102 = vmatpush1.msra.mxu0 %v2076
  %2103 = vmatprep.subr.mxu0 0.0
  %2104 = vmatpush1.msra.mxu0 %v2077
  %2105 = vmatprep.subr.mxu0 0.0
  %2106 = vmatpush1.msra.mxu0 %v2078
  %2107 = vmatprep.subr.mxu0 0.0
  %2108 = vmatpush1.msra.mxu0 %v2079
  %2109 = vmatprep.subr.mxu0 0.0
  %2110 = vmatpush1.msra.mxu0 %v2080
  %2111 = vmatprep.subr.mxu0 0.0
  %2112 = vmatpush1.msra.mxu0 %v2081
  %2113 = vmatprep.subr.mxu0 0.0
  %2114 = vmatpush1.msra.mxu0 %v2082
  %2115 = vmatprep.subr.mxu0 0.0
  %2116 = vmatpush1.msra.mxu0 0.0
  %2117 = vmatprep.subr.mxu0 0.0
  %2118 = vmatpush1.msra.mxu0 0.0
  %2119 = vmatprep.subr.mxu0 0.0
  %2120 = vmatpush1.msra.mxu0 0.0
  %2121 = vmatprep.subr.mxu0 0.0
  %2122 = vmatpush1.msra.mxu0 0.0
  %2123 = vmatprep.subr.mxu0 0.0
  %2124 = vmatpush1.msra.mxu0 0.0
  %2125 = vmatprep.subr.mxu0 0.0
  %2126 = vmatpush1.msra.mxu0 0.0
  %2127 = vmatprep.subr.mxu0 0.0
  %2128 = vmatpush1.msra.mxu0 0.0
  %2129 = vmatprep.subr.mxu0 0.0
  %2130 = vmatpush1.msra.mxu0 0.0
  %2131 = vmatprep.subr.mxu0 0.0
  %2132 = vmatpush1.msra.mxu0 0.0
  %2133 = vmatprep.subr.mxu0 0.0
  %2134 = vmatpush1.msra.mxu0 0.0
  %2135 = vmatprep.subr.mxu0 0.0
  %2136 = vmatpush1.msra.mxu0 0.0
  %2137 = vmatprep.subr.mxu0 0.0
  %2138 = vmatpush1.msra.mxu0 0.0
  %2139 = vmatprep.subr.mxu0 0.0
  %2140 = vmatpush1.msra.mxu0 0.0
  %2141 = vmatprep.subr.mxu0 0.0
  %2142 = vmatpush1.msra.mxu0 0.0
  %2143 = vmatprep.subr.mxu0 0.0
  %2144 = vmatpush1.msra.mxu0 0.0
  %2145 = vmatprep.subr.mxu0 0.0
  %2146 = vmatpush1.msra.mxu0 0.0
  %2147 = vmatprep.mubr.f32.mxu0 0.0
  %2148 = vmatmul.mubr.f32.gmra.mrb[0].mxu0 %v1988
  %v2149 = vpop.f32.mrb[0].mxu0
  %v2150 = vadd.f32 0.0, %v2149
  %v2151 = vpop.f32.mrb[0].mxu0
  %2152 = vmatprep.mubr.f32.mxu0 0.0
  %2153 = vmatmul.mubr.f32.gmra.mrb[0].mxu0 %v1993
  %v2154 = vpop.f32.mrb[0].mxu0
  %v2155 = vadd.f32 0.0, %v2154
  %v2156 = vpop.f32.mrb[0].mxu0
  %2157 = vmatprep.mubr.f32.mxu0 0.0
  %2158 = vmatmul.mubr.f32.gmra.mrb[0].mxu0 %v1998
  %v2159 = vpop.f32.mrb[0].mxu0
  %v2160 = vadd.f32 0.0, %v2159
  %v2161 = vpop.f32.mrb[0].mxu0
  %2162 = vmatprep.mubr.f32.mxu0 0.0
  %2163 = vmatmul.mubr.f32.gmra.mrb[0].mxu0 %v2003
  %v2164 = vpop.f32.mrb[0].mxu0
  %v2165 = vadd.f32 0.0, %v2164
  %v2166 = vpop.f32.mrb[0].mxu0
  %2167 = vmatprep.mubr.f32.mxu0 0.0
  %2168 = vmatmul.mubr.f32.gmra.mrb[0].mxu0 %v2008
  %v2169 = vpop.f32.mrb[0].mxu0
  %v2170 = vadd.f32 0.0, %v2169
  %v2171 = vpop.f32.mrb[0].mxu0
  %2172 = vmatprep.mubr.f32.mxu0 0.0
  %2173 = vmatmul.mubr.f32.gmra.mrb[0].mxu0 %v2013
  %v2174 = vpop.f32.mrb[0].mxu0
  %v2175 = vadd.f32 0.0, %v2174
  %v2176 = vpop.f32.mrb[0].mxu0
  %2177 = vmatprep.mubr.f32.mxu0 0.0
  %2178 = vmatmul.mubr.f32.gmra.mrb[0].mxu0 %v2018
  %v2179 = vpop.f32.mrb[0].mxu0
  %v2180 = vadd.f32 0.0, %v2179
  %v2181 = vpop.f32.mrb[0].mxu0
  %2182 = vmatprep.mubr.f32.mxu0 0.0
  %2183 = vmatmul.mubr.f32.gmra.mrb[0].mxu0 %v2023
  %v2184 = vpop.f32.mrb[0].mxu0
  %v2185 = vadd.f32 0.0, %v2184
  %v2186 = vpop.f32.mrb[0].mxu0
  %2187 = vmatprep.mubr.f32.mxu0 0.0
  %2188 = vmatmul.mubr.f32.gmra.mrb[0].mxu0 %v2028
  %v2189 = vpop.f32.mrb[0].mxu0
  %v2190 = vadd.f32 0.0, %v2189
  %v2191 = vpop.f32.mrb[0].mxu0
  %2192 = vmatprep.mubr.f32.mxu0 0.0
  %2193 = vmatmul.mubr.f32.gmra.mrb[0].mxu0 %v2033
  %v2194 = vpop.f32.mrb[0].mxu0
  %v2195 = vadd.f32 0.0, %v2194
  %v2196 = vpop.f32.mrb[0].mxu0
  %2197 = vmatprep.mubr.f32.mxu0 0.0
  %2198 = vmatmul.mubr.f32.gmra.mrb[0].mxu0 %v2038
  %v2199 = vpop.f32.mrb[0].mxu0
  %v2200 = vadd.f32 0.0, %v2199
  %v2201 = vpop.f32.mrb[0].mxu0
  %2202 = vmatprep.mubr.f32.mxu0 0.0
  %2203 = vmatmul.mubr.f32.gmra.mrb[0].mxu0 %v2043
  %v2204 = vpop.f32.mrb[0].mxu0
  %v2205 = vadd.f32 0.0, %v2204
  %v2206 = vpop.f32.mrb[0].mxu0
  %2207 = vmatprep.mubr.f32.mxu0 0.0
  %2208 = vmatmul.mubr.f32.gmra.mrb[0].mxu0 %v2048
  %v2209 = vpop.f32.mrb[0].mxu0
  %v2210 = vadd.f32 0.0, %v2209
  %v2211 = vpop.f32.mrb[0].mxu0
  %2212 = vmatprep.mubr.f32.mxu0 0.0
  %2213 = vmatmul.mubr.f32.gmra.mrb[0].mxu0 %v2053
  %v2214 = vpop.f32.mrb[0].mxu0
  %v2215 = vadd.f32 0.0, %v2214
  %v2216 = vpop.f32.mrb[0].mxu0
  %2217 = vmatprep.mubr.f32.mxu0 0.0
  %2218 = vmatmul.mubr.f32.gmra.mrb[0].mxu0 %v2058
  %v2219 = vpop.f32.mrb[0].mxu0
  %v2220 = vadd.f32 0.0, %v2219
  %v2221 = vpop.f32.mrb[0].mxu0
  %2222 = vmatprep.mubr.f32.mxu0 0.0
  %2223 = vmatmul.mubr.f32.gmra.mrb[0].mxu0 %v2063
  %v2224 = vpop.f32.mrb[0].mxu0
  %v2225 = vadd.f32 0.0, %v2224
  %v2226 = vpop.f32.mrb[0].mxu0
  %2227 = vdwg.mxu0
  %v2228 = vadd.f32 %v1888, %v2150
  %v2229 = vadd.f32 %v1889, %v2155
  %v2230 = vadd.f32 %v1890, %v2160
  %v2231 = vadd.f32 %v1891, %v2165
  %v2232 = vadd.f32 %v1892, %v2170
  %v2233 = vadd.f32 %v1893, %v2175
  %v2234 = vadd.f32 %v1894, %v2180
  %v2235 = vadd.f32 %v1895, %v2185
  %v2236 = vadd.f32 %v1896, %v2190
  %v2237 = vadd.f32 %v1897, %v2195
  %v2238 = vadd.f32 %v1898, %v2200
  %v2239 = vadd.f32 %v1899, %v2205
  %v2240 = vadd.f32 %v1900, %v2210
  %v2241 = vadd.f32 %v1901, %v2215
  %v2242 = vadd.f32 %v1902, %v2220
  %v2243 = vadd.f32 %v1903, %v2225
  %s2244 = scalar_lea.vmem %s2, 768
  %v2245 = vld [vmem:[%s2244] sm:$0xff]
  %v2246 = vld [vmem:[%s2244 + $0x8] sm:$0xff]
  %v2247 = vld [vmem:[%s2244 + $0x10] sm:$0xff]
  %v2248 = vld [vmem:[%s2244 + $0x18] sm:$0xff]
  %v2249 = vld [vmem:[%s2244 + $0x20] sm:$0xff]
  %v2250 = vld [vmem:[%s2244 + $0x28] sm:$0xff]
  %v2251 = vld [vmem:[%s2244 + $0x30] sm:$0xff]
  %v2252 = vld [vmem:[%s2244 + $0x38] sm:$0xff]
  %v2253 = vld [vmem:[%s2244 + $0x40] sm:$0xff]
  %v2254 = vld [vmem:[%s2244 + $0x48] sm:$0xff]
  %v2255 = vld [vmem:[%s2244 + $0x50] sm:$0xff]
  %v2256 = vld [vmem:[%s2244 + $0x58] sm:$0xff]
  %v2257 = vld [vmem:[%s2244 + $0x60] sm:$0xff]
  %v2258 = vld [vmem:[%s2244 + $0x68] sm:$0xff]
  %v2259 = vld [vmem:[%s2244 + $0x70] sm:$0xff]
  %v2260 = vld [vmem:[%s2244 + $0x78] sm:$0xff]
  %2261 = vmatprep.subr.mxu0 0.0
  %2262 = vmatpush1.msra.mxu0 %v222
  %2263 = vmatprep.subr.mxu0 0.0
  %2264 = vmatpush1.msra.mxu0 %v223
  %2265 = vmatprep.subr.mxu0 0.0
  %2266 = vmatpush1.msra.mxu0 %v224
  %2267 = vmatprep.subr.mxu0 0.0
  %2268 = vmatpush1.msra.mxu0 %v225
  %2269 = vmatprep.subr.mxu0 0.0
  %2270 = vmatpush1.msra.mxu0 %v226
  %2271 = vmatprep.subr.mxu0 0.0
  %2272 = vmatpush1.msra.mxu0 %v227
  %2273 = vmatprep.subr.mxu0 0.0
  %2274 = vmatpush1.msra.mxu0 %v228
  %2275 = vmatprep.subr.mxu0 0.0
  %2276 = vmatpush1.msra.mxu0 %v229
  %2277 = vmatprep.subr.mxu0 0.0
  %2278 = vmatpush1.msra.mxu0 %v230
  %2279 = vmatprep.subr.mxu0 0.0
  %2280 = vmatpush1.msra.mxu0 %v231
  %2281 = vmatprep.subr.mxu0 0.0
  %2282 = vmatpush1.msra.mxu0 %v232
  %2283 = vmatprep.subr.mxu0 0.0
  %2284 = vmatpush1.msra.mxu0 %v233
  %2285 = vmatprep.subr.mxu0 0.0
  %2286 = vmatpush1.msra.mxu0 %v234
  %2287 = vmatprep.subr.mxu0 0.0
  %2288 = vmatpush1.msra.mxu0 %v235
  %2289 = vmatprep.subr.mxu0 0.0
  %2290 = vmatpush1.msra.mxu0 %v236
  %2291 = vmatprep.subr.mxu0 0.0
  %2292 = vmatpush1.msra.mxu0 %v237
  %2293 = vmatprep.subr.mxu0 0.0
  %2294 = vmatpush1.msra.mxu0 0.0
  %2295 = vmatprep.subr.mxu0 0.0
  %2296 = vmatpush1.msra.mxu0 0.0
  %2297 = vmatprep.subr.mxu0 0.0
  %2298 = vmatpush1.msra.mxu0 0.0
  %2299 = vmatprep.subr.mxu0 0.0
  %2300 = vmatpush1.msra.mxu0 0.0
  %2301 = vmatprep.subr.mxu0 0.0
  %2302 = vmatpush1.msra.mxu0 0.0
  %2303 = vmatprep.subr.mxu0 0.0
  %2304 = vmatpush1.msra.mxu0 0.0
  %2305 = vmatprep.subr.mxu0 0.0
  %2306 = vmatpush1.msra.mxu0 0.0
  %2307 = vmatprep.subr.mxu0 0.0
  %2308 = vmatpush1.msra.mxu0 0.0
  %2309 = vmatprep.subr.mxu0 0.0
  %2310 = vmatpush1.msra.mxu0 0.0
  %2311 = vmatprep.subr.mxu0 0.0
  %2312 = vmatpush1.msra.mxu0 0.0
  %2313 = vmatprep.subr.mxu0 0.0
  %2314 = vmatpush1.msra.mxu0 0.0
  %2315 = vmatprep.subr.mxu0 0.0
  %2316 = vmatpush1.msra.mxu0 0.0
  %2317 = vmatprep.subr.mxu0 0.0
  %2318 = vmatpush1.msra.mxu0 0.0
  %2319 = vmatprep.subr.mxu0 0.0
  %2320 = vmatpush1.msra.mxu0 0.0
  %2321 = vmatprep.subr.mxu0 0.0
  %2322 = vmatpush1.msra.mxu0 0.0
  %2323 = vmatprep.subr.mxu0 0.0
  %2324 = vmatpush1.msra.mxu0 0.0
  %2325 = vmatprep.mubr.f32.mxu0 0.0
  %2326 = vmatmul.mubr.f32.gmra.mrb[0].mxu0 %v2245
  %v2327 = vpop.f32.mrb[0].mxu0
  %v2328 = vadd.f32 0.0, %v2327
  %v2329 = vpop.f32.mrb[0].mxu0
  %2330 = vmatprep.mubr.f32.mxu0 0.0
  %2331 = vmatmul.mubr.f32.gmra.mrb[0].mxu0 %v2246
  %v2332 = vpop.f32.mrb[0].mxu0
  %v2333 = vadd.f32 0.0, %v2332
  %v2334 = vpop.f32.mrb[0].mxu0
  %2335 = vmatprep.mubr.f32.mxu0 0.0
  %2336 = vmatmul.mubr.f32.gmra.mrb[0].mxu0 %v2247
  %v2337 = vpop.f32.mrb[0].mxu0
  %v2338 = vadd.f32 0.0, %v2337
  %v2339 = vpop.f32.mrb[0].mxu0
  %2340 = vmatprep.mubr.f32.mxu0 0.0
  %2341 = vmatmul.mubr.f32.gmra.mrb[0].mxu0 %v2248
  %v2342 = vpop.f32.mrb[0].mxu0
  %v2343 = vadd.f32 0.0, %v2342
  %v2344 = vpop.f32.mrb[0].mxu0
  %2345 = vmatprep.mubr.f32.mxu0 0.0
  %2346 = vmatmul.mubr.f32.gmra.mrb[0].mxu0 %v2249
  %v2347 = vpop.f32.mrb[0].mxu0
  %v2348 = vadd.f32 0.0, %v2347
  %v2349 = vpop.f32.mrb[0].mxu0
  %2350 = vmatprep.mubr.f32.mxu0 0.0
  %2351 = vmatmul.mubr.f32.gmra.mrb[0].mxu0 %v2250
  %v2352 = vpop.f32.mrb[0].mxu0
  %v2353 = vadd.f32 0.0, %v2352
  %v2354 = vpop.f32.mrb[0].mxu0
  %2355 = vmatprep.mubr.f32.mxu0 0.0
  %2356 = vmatmul.mubr.f32.gmra.mrb[0].mxu0 %v2251
  %v2357 = vpop.f32.mrb[0].mxu0
  %v2358 = vadd.f32 0.0, %v2357
  %v2359 = vpop.f32.mrb[0].mxu0
  %2360 = vmatprep.mubr.f32.mxu0 0.0
  %2361 = vmatmul.mubr.f32.gmra.mrb[0].mxu0 %v2252
  %v2362 = vpop.f32.mrb[0].mxu0
  %v2363 = vadd.f32 0.0, %v2362
  %v2364 = vpop.f32.mrb[0].mxu0
  %2365 = vmatprep.mubr.f32.mxu0 0.0
  %2366 = vmatmul.mubr.f32.gmra.mrb[0].mxu0 %v2253
  %v2367 = vpop.f32.mrb[0].mxu0
  %v2368 = vadd.f32 0.0, %v2367
  %v2369 = vpop.f32.mrb[0].mxu0
  %2370 = vmatprep.mubr.f32.mxu0 0.0
  %2371 = vmatmul.mubr.f32.gmra.mrb[0].mxu0 %v2254
  %v2372 = vpop.f32.mrb[0].mxu0
  %v2373 = vadd.f32 0.0, %v2372
  %v2374 = vpop.f32.mrb[0].mxu0
  %2375 = vmatprep.mubr.f32.mxu0 0.0
  %2376 = vmatmul.mubr.f32.gmra.mrb[0].mxu0 %v2255
  %v2377 = vpop.f32.mrb[0].mxu0
  %v2378 = vadd.f32 0.0, %v2377
  %v2379 = vpop.f32.mrb[0].mxu0
  %2380 = vmatprep.mubr.f32.mxu0 0.0
  %2381 = vmatmul.mubr.f32.gmra.mrb[0].mxu0 %v2256
  %v2382 = vpop.f32.mrb[0].mxu0
  %v2383 = vadd.f32 0.0, %v2382
  %v2384 = vpop.f32.mrb[0].mxu0
  %2385 = vmatprep.mubr.f32.mxu0 0.0
  %2386 = vmatmul.mubr.f32.gmra.mrb[0].mxu0 %v2257
  %v2387 = vpop.f32.mrb[0].mxu0
  %v2388 = vadd.f32 0.0, %v2387
  %v2389 = vpop.f32.mrb[0].mxu0
  %2390 = vmatprep.mubr.f32.mxu0 0.0
  %2391 = vmatmul.mubr.f32.gmra.mrb[0].mxu0 %v2258
  %v2392 = vpop.f32.mrb[0].mxu0
  %v2393 = vadd.f32 0.0, %v2392
  %v2394 = vpop.f32.mrb[0].mxu0
  %2395 = vmatprep.mubr.f32.mxu0 0.0
  %2396 = vmatmul.mubr.f32.gmra.mrb[0].mxu0 %v2259
  %v2397 = vpop.f32.mrb[0].mxu0
  %v2398 = vadd.f32 0.0, %v2397
  %v2399 = vpop.f32.mrb[0].mxu0
  %2400 = vmatprep.mubr.f32.mxu0 0.0
  %2401 = vmatmul.mubr.f32.gmra.mrb[0].mxu0 %v2260
  %v2402 = vpop.f32.mrb[0].mxu0
  %v2403 = vadd.f32 0.0, %v2402
  %v2404 = vpop.f32.mrb[0].mxu0
  %2405 = vdwg.mxu0
  %s2406 = scalar_lea.vmem %s3, 768
  %v2407 = vld [vmem:[%s2406] sm:$0xff]
  %v2408 = vld [vmem:[%s2406 + $0x8] sm:$0xff]
  %v2409 = vld [vmem:[%s2406 + $0x10] sm:$0xff]
  %v2410 = vld [vmem:[%s2406 + $0x18] sm:$0xff]
  %v2411 = vld [vmem:[%s2406 + $0x20] sm:$0xff]
  %v2412 = vld [vmem:[%s2406 + $0x28] sm:$0xff]
  %v2413 = vld [vmem:[%s2406 + $0x30] sm:$0xff]
  %v2414 = vld [vmem:[%s2406 + $0x38] sm:$0xff]
  %v2415 = vld [vmem:[%s2406 + $0x40] sm:$0xff]
  %v2416 = vld [vmem:[%s2406 + $0x48] sm:$0xff]
  %v2417 = vld [vmem:[%s2406 + $0x50] sm:$0xff]
  %v2418 = vld [vmem:[%s2406 + $0x58] sm:$0xff]
  %v2419 = vld [vmem:[%s2406 + $0x60] sm:$0xff]
  %v2420 = vld [vmem:[%s2406 + $0x68] sm:$0xff]
  %v2421 = vld [vmem:[%s2406 + $0x70] sm:$0xff]
  %v2422 = vld [vmem:[%s2406 + $0x78] sm:$0xff]
  %2423 = vmatprep.subr.mxu0 0.0
  %2424 = vmatpush1.msra.mxu0 %v2407
  %2425 = vmatprep.subr.mxu0 0.0
  %2426 = vmatpush1.msra.mxu0 %v2408
  %2427 = vmatprep.subr.mxu0 0.0
  %2428 = vmatpush1.msra.mxu0 %v2409
  %2429 = vmatprep.subr.mxu0 0.0
  %2430 = vmatpush1.msra.mxu0 %v2410
  %2431 = vmatprep.subr.mxu0 0.0
  %2432 = vmatpush1.msra.mxu0 %v2411
  %2433 = vmatprep.subr.mxu0 0.0
  %2434 = vmatpush1.msra.mxu0 %v2412
  %2435 = vmatprep.subr.mxu0 0.0
  %2436 = vmatpush1.msra.mxu0 %v2413
  %2437 = vmatprep.subr.mxu0 0.0
  %2438 = vmatpush1.msra.mxu0 %v2414
  %2439 = vmatprep.subr.mxu0 0.0
  %2440 = vmatpush1.msra.mxu0 %v2415
  %2441 = vmatprep.subr.mxu0 0.0
  %2442 = vmatpush1.msra.mxu0 %v2416
  %2443 = vmatprep.subr.mxu0 0.0
  %2444 = vmatpush1.msra.mxu0 %v2417
  %2445 = vmatprep.subr.mxu0 0.0
  %2446 = vmatpush1.msra.mxu0 %v2418
  %2447 = vmatprep.subr.mxu0 0.0
  %2448 = vmatpush1.msra.mxu0 %v2419
  %2449 = vmatprep.subr.mxu0 0.0
  %2450 = vmatpush1.msra.mxu0 %v2420
  %2451 = vmatprep.subr.mxu0 0.0
  %2452 = vmatpush1.msra.mxu0 %v2421
  %2453 = vmatprep.subr.mxu0 0.0
  %2454 = vmatpush1.msra.mxu0 %v2422
  %2455 = vmatprep.subr.mxu0 0.0
  %2456 = vmatpush1.msra.mxu0 0.0
  %2457 = vmatprep.subr.mxu0 0.0
  %2458 = vmatpush1.msra.mxu0 0.0
  %2459 = vmatprep.subr.mxu0 0.0
  %2460 = vmatpush1.msra.mxu0 0.0
  %2461 = vmatprep.subr.mxu0 0.0
  %2462 = vmatpush1.msra.mxu0 0.0
  %2463 = vmatprep.subr.mxu0 0.0
  %2464 = vmatpush1.msra.mxu0 0.0
  %2465 = vmatprep.subr.mxu0 0.0
  %2466 = vmatpush1.msra.mxu0 0.0
  %2467 = vmatprep.subr.mxu0 0.0
  %2468 = vmatpush1.msra.mxu0 0.0
  %2469 = vmatprep.subr.mxu0 0.0
  %2470 = vmatpush1.msra.mxu0 0.0
  %2471 = vmatprep.subr.mxu0 0.0
  %2472 = vmatpush1.msra.mxu0 0.0
  %2473 = vmatprep.subr.mxu0 0.0
  %2474 = vmatpush1.msra.mxu0 0.0
  %2475 = vmatprep.subr.mxu0 0.0
  %2476 = vmatpush1.msra.mxu0 0.0
  %2477 = vmatprep.subr.mxu0 0.0
  %2478 = vmatpush1.msra.mxu0 0.0
  %2479 = vmatprep.subr.mxu0 0.0
  %2480 = vmatpush1.msra.mxu0 0.0
  %2481 = vmatprep.subr.mxu0 0.0
  %2482 = vmatpush1.msra.mxu0 0.0
  %2483 = vmatprep.subr.mxu0 0.0
  %2484 = vmatpush1.msra.mxu0 0.0
  %2485 = vmatprep.subr.mxu0 0.0
  %2486 = vmatpush1.msra.mxu0 0.0
  %2487 = vmatprep.mubr.f32.mxu0 0.0
  %2488 = vmatmul.mubr.f32.gmra.mrb[0].mxu0 %v2328
  %v2489 = vpop.f32.mrb[0].mxu0
  %v2490 = vadd.f32 0.0, %v2489
  %v2491 = vpop.f32.mrb[0].mxu0
  %2492 = vmatprep.mubr.f32.mxu0 0.0
  %2493 = vmatmul.mubr.f32.gmra.mrb[0].mxu0 %v2333
  %v2494 = vpop.f32.mrb[0].mxu0
  %v2495 = vadd.f32 0.0, %v2494
  %v2496 = vpop.f32.mrb[0].mxu0
  %2497 = vmatprep.mubr.f32.mxu0 0.0
  %2498 = vmatmul.mubr.f32.gmra.mrb[0].mxu0 %v2338
  %v2499 = vpop.f32.mrb[0].mxu0
  %v2500 = vadd.f32 0.0, %v2499
  %v2501 = vpop.f32.mrb[0].mxu0
  %2502 = vmatprep.mubr.f32.mxu0 0.0
  %2503 = vmatmul.mubr.f32.gmra.mrb[0].mxu0 %v2343
  %v2504 = vpop.f32.mrb[0].mxu0
  %v2505 = vadd.f32 0.0, %v2504
  %v2506 = vpop.f32.mrb[0].mxu0
  %2507 = vmatprep.mubr.f32.mxu0 0.0
  %2508 = vmatmul.mubr.f32.gmra.mrb[0].mxu0 %v2348
  %v2509 = vpop.f32.mrb[0].mxu0
  %v2510 = vadd.f32 0.0, %v2509
  %v2511 = vpop.f32.mrb[0].mxu0
  %2512 = vmatprep.mubr.f32.mxu0 0.0
  %2513 = vmatmul.mubr.f32.gmra.mrb[0].mxu0 %v2353
  %v2514 = vpop.f32.mrb[0].mxu0
  %v2515 = vadd.f32 0.0, %v2514
  %v2516 = vpop.f32.mrb[0].mxu0
  %2517 = vmatprep.mubr.f32.mxu0 0.0
  %2518 = vmatmul.mubr.f32.gmra.mrb[0].mxu0 %v2358
  %v2519 = vpop.f32.mrb[0].mxu0
  %v2520 = vadd.f32 0.0, %v2519
  %v2521 = vpop.f32.mrb[0].mxu0
  %2522 = vmatprep.mubr.f32.mxu0 0.0
  %2523 = vmatmul.mubr.f32.gmra.mrb[0].mxu0 %v2363
  %v2524 = vpop.f32.mrb[0].mxu0
  %v2525 = vadd.f32 0.0, %v2524
  %v2526 = vpop.f32.mrb[0].mxu0
  %2527 = vmatprep.mubr.f32.mxu0 0.0
  %2528 = vmatmul.mubr.f32.gmra.mrb[0].mxu0 %v2368
  %v2529 = vpop.f32.mrb[0].mxu0
  %v2530 = vadd.f32 0.0, %v2529
  %v2531 = vpop.f32.mrb[0].mxu0
  %2532 = vmatprep.mubr.f32.mxu0 0.0
  %2533 = vmatmul.mubr.f32.gmra.mrb[0].mxu0 %v2373
  %v2534 = vpop.f32.mrb[0].mxu0
  %v2535 = vadd.f32 0.0, %v2534
  %v2536 = vpop.f32.mrb[0].mxu0
  %2537 = vmatprep.mubr.f32.mxu0 0.0
  %2538 = vmatmul.mubr.f32.gmra.mrb[0].mxu0 %v2378
  %v2539 = vpop.f32.mrb[0].mxu0
  %v2540 = vadd.f32 0.0, %v2539
  %v2541 = vpop.f32.mrb[0].mxu0
  %2542 = vmatprep.mubr.f32.mxu0 0.0
  %2543 = vmatmul.mubr.f32.gmra.mrb[0].mxu0 %v2383
  %v2544 = vpop.f32.mrb[0].mxu0
  %v2545 = vadd.f32 0.0, %v2544
  %v2546 = vpop.f32.mrb[0].mxu0
  %2547 = vmatprep.mubr.f32.mxu0 0.0
  %2548 = vmatmul.mubr.f32.gmra.mrb[0].mxu0 %v2388
  %v2549 = vpop.f32.mrb[0].mxu0
  %v2550 = vadd.f32 0.0, %v2549
  %v2551 = vpop.f32.mrb[0].mxu0
  %2552 = vmatprep.mubr.f32.mxu0 0.0
  %2553 = vmatmul.mubr.f32.gmra.mrb[0].mxu0 %v2393
  %v2554 = vpop.f32.mrb[0].mxu0
  %v2555 = vadd.f32 0.0, %v2554
  %v2556 = vpop.f32.mrb[0].mxu0
  %2557 = vmatprep.mubr.f32.mxu0 0.0
  %2558 = vmatmul.mubr.f32.gmra.mrb[0].mxu0 %v2398
  %v2559 = vpop.f32.mrb[0].mxu0
  %v2560 = vadd.f32 0.0, %v2559
  %v2561 = vpop.f32.mrb[0].mxu0
  %2562 = vmatprep.mubr.f32.mxu0 0.0
  %2563 = vmatmul.mubr.f32.gmra.mrb[0].mxu0 %v2403
  %v2564 = vpop.f32.mrb[0].mxu0
  %v2565 = vadd.f32 0.0, %v2564
  %v2566 = vpop.f32.mrb[0].mxu0
  %2567 = vdwg.mxu0
  %v2568 = vadd.f32 %v2228, %v2490
  %v2569 = vadd.f32 %v2229, %v2495
  %v2570 = vadd.f32 %v2230, %v2500
  %v2571 = vadd.f32 %v2231, %v2505
  %v2572 = vadd.f32 %v2232, %v2510
  %v2573 = vadd.f32 %v2233, %v2515
  %v2574 = vadd.f32 %v2234, %v2520
  %v2575 = vadd.f32 %v2235, %v2525
  %v2576 = vadd.f32 %v2236, %v2530
  %v2577 = vadd.f32 %v2237, %v2535
  %v2578 = vadd.f32 %v2238, %v2540
  %v2579 = vadd.f32 %v2239, %v2545
  %v2580 = vadd.f32 %v2240, %v2550
  %v2581 = vadd.f32 %v2241, %v2555
  %v2582 = vadd.f32 %v2242, %v2560
  %v2583 = vadd.f32 %v2243, %v2565
  %s2584 = scalar_lea.vmem %s2, 896
  %v2585 = vld [vmem:[%s2584] sm:$0xff]
  %v2586 = vld [vmem:[%s2584 + $0x8] sm:$0xff]
  %v2587 = vld [vmem:[%s2584 + $0x10] sm:$0xff]
  %v2588 = vld [vmem:[%s2584 + $0x18] sm:$0xff]
  %v2589 = vld [vmem:[%s2584 + $0x20] sm:$0xff]
  %v2590 = vld [vmem:[%s2584 + $0x28] sm:$0xff]
  %v2591 = vld [vmem:[%s2584 + $0x30] sm:$0xff]
  %v2592 = vld [vmem:[%s2584 + $0x38] sm:$0xff]
  %v2593 = vld [vmem:[%s2584 + $0x40] sm:$0xff]
  %v2594 = vld [vmem:[%s2584 + $0x48] sm:$0xff]
  %v2595 = vld [vmem:[%s2584 + $0x50] sm:$0xff]
  %v2596 = vld [vmem:[%s2584 + $0x58] sm:$0xff]
  %v2597 = vld [vmem:[%s2584 + $0x60] sm:$0xff]
  %v2598 = vld [vmem:[%s2584 + $0x68] sm:$0xff]
  %v2599 = vld [vmem:[%s2584 + $0x70] sm:$0xff]
  %v2600 = vld [vmem:[%s2584 + $0x78] sm:$0xff]
  %2601 = vmatprep.subr.mxu0 0.0
  %2602 = vmatpush1.msra.mxu0 %v222
  %2603 = vmatprep.subr.mxu0 0.0
  %2604 = vmatpush1.msra.mxu0 %v223
  %2605 = vmatprep.subr.mxu0 0.0
  %2606 = vmatpush1.msra.mxu0 %v224
  %2607 = vmatprep.subr.mxu0 0.0
  %2608 = vmatpush1.msra.mxu0 %v225
  %2609 = vmatprep.subr.mxu0 0.0
  %2610 = vmatpush1.msra.mxu0 %v226
  %2611 = vmatprep.subr.mxu0 0.0
  %2612 = vmatpush1.msra.mxu0 %v227
  %2613 = vmatprep.subr.mxu0 0.0
  %2614 = vmatpush1.msra.mxu0 %v228
  %2615 = vmatprep.subr.mxu0 0.0
  %2616 = vmatpush1.msra.mxu0 %v229
  %2617 = vmatprep.subr.mxu0 0.0
  %2618 = vmatpush1.msra.mxu0 %v230
  %2619 = vmatprep.subr.mxu0 0.0
  %2620 = vmatpush1.msra.mxu0 %v231
  %2621 = vmatprep.subr.mxu0 0.0
  %2622 = vmatpush1.msra.mxu0 %v232
  %2623 = vmatprep.subr.mxu0 0.0
  %2624 = vmatpush1.msra.mxu0 %v233
  %2625 = vmatprep.subr.mxu0 0.0
  %2626 = vmatpush1.msra.mxu0 %v234
  %2627 = vmatprep.subr.mxu0 0.0
  %2628 = vmatpush1.msra.mxu0 %v235
  %2629 = vmatprep.subr.mxu0 0.0
  %2630 = vmatpush1.msra.mxu0 %v236
  %2631 = vmatprep.subr.mxu0 0.0
  %2632 = vmatpush1.msra.mxu0 %v237
  %2633 = vmatprep.subr.mxu0 0.0
  %2634 = vmatpush1.msra.mxu0 0.0
  %2635 = vmatprep.subr.mxu0 0.0
  %2636 = vmatpush1.msra.mxu0 0.0
  %2637 = vmatprep.subr.mxu0 0.0
  %2638 = vmatpush1.msra.mxu0 0.0
  %2639 = vmatprep.subr.mxu0 0.0
  %2640 = vmatpush1.msra.mxu0 0.0
  %2641 = vmatprep.subr.mxu0 0.0
  %2642 = vmatpush1.msra.mxu0 0.0
  %2643 = vmatprep.subr.mxu0 0.0
  %2644 = vmatpush1.msra.mxu0 0.0
  %2645 = vmatprep.subr.mxu0 0.0
  %2646 = vmatpush1.msra.mxu0 0.0
  %2647 = vmatprep.subr.mxu0 0.0
  %2648 = vmatpush1.msra.mxu0 0.0
  %2649 = vmatprep.subr.mxu0 0.0
  %2650 = vmatpush1.msra.mxu0 0.0
  %2651 = vmatprep.subr.mxu0 0.0
  %2652 = vmatpush1.msra.mxu0 0.0
  %2653 = vmatprep.subr.mxu0 0.0
  %2654 = vmatpush1.msra.mxu0 0.0
  %2655 = vmatprep.subr.mxu0 0.0
  %2656 = vmatpush1.msra.mxu0 0.0
  %2657 = vmatprep.subr.mxu0 0.0
  %2658 = vmatpush1.msra.mxu0 0.0
  %2659 = vmatprep.subr.mxu0 0.0
  %2660 = vmatpush1.msra.mxu0 0.0
  %2661 = vmatprep.subr.mxu0 0.0
  %2662 = vmatpush1.msra.mxu0 0.0
  %2663 = vmatprep.subr.mxu0 0.0
  %2664 = vmatpush1.msra.mxu0 0.0
  %2665 = vmatprep.mubr.f32.mxu0 0.0
  %2666 = vmatmul.mubr.f32.gmra.mrb[0].mxu0 %v2585
  %v2667 = vpop.f32.mrb[0].mxu0
  %v2668 = vadd.f32 0.0, %v2667
  %v2669 = vpop.f32.mrb[0].mxu0
  %2670 = vmatprep.mubr.f32.mxu0 0.0
  %2671 = vmatmul.mubr.f32.gmra.mrb[0].mxu0 %v2586
  %v2672 = vpop.f32.mrb[0].mxu0
  %v2673 = vadd.f32 0.0, %v2672
  %v2674 = vpop.f32.mrb[0].mxu0
  %2675 = vmatprep.mubr.f32.mxu0 0.0
  %2676 = vmatmul.mubr.f32.gmra.mrb[0].mxu0 %v2587
  %v2677 = vpop.f32.mrb[0].mxu0
  %v2678 = vadd.f32 0.0, %v2677
  %v2679 = vpop.f32.mrb[0].mxu0
  %2680 = vmatprep.mubr.f32.mxu0 0.0
  %2681 = vmatmul.mubr.f32.gmra.mrb[0].mxu0 %v2588
  %v2682 = vpop.f32.mrb[0].mxu0
  %v2683 = vadd.f32 0.0, %v2682
  %v2684 = vpop.f32.mrb[0].mxu0
  %2685 = vmatprep.mubr.f32.mxu0 0.0
  %2686 = vmatmul.mubr.f32.gmra.mrb[0].mxu0 %v2589
  %v2687 = vpop.f32.mrb[0].mxu0
  %v2688 = vadd.f32 0.0, %v2687
  %v2689 = vpop.f32.mrb[0].mxu0
  %2690 = vmatprep.mubr.f32.mxu0 0.0
  %2691 = vmatmul.mubr.f32.gmra.mrb[0].mxu0 %v2590
  %v2692 = vpop.f32.mrb[0].mxu0
  %v2693 = vadd.f32 0.0, %v2692
  %v2694 = vpop.f32.mrb[0].mxu0
  %2695 = vmatprep.mubr.f32.mxu0 0.0
  %2696 = vmatmul.mubr.f32.gmra.mrb[0].mxu0 %v2591
  %v2697 = vpop.f32.mrb[0].mxu0
  %v2698 = vadd.f32 0.0, %v2697
  %v2699 = vpop.f32.mrb[0].mxu0
  %2700 = vmatprep.mubr.f32.mxu0 0.0
  %2701 = vmatmul.mubr.f32.gmra.mrb[0].mxu0 %v2592
  %v2702 = vpop.f32.mrb[0].mxu0
  %v2703 = vadd.f32 0.0, %v2702
  %v2704 = vpop.f32.mrb[0].mxu0
  %2705 = vmatprep.mubr.f32.mxu0 0.0
  %2706 = vmatmul.mubr.f32.gmra.mrb[0].mxu0 %v2593
  %v2707 = vpop.f32.mrb[0].mxu0
  %v2708 = vadd.f32 0.0, %v2707
  %v2709 = vpop.f32.mrb[0].mxu0
  %2710 = vmatprep.mubr.f32.mxu0 0.0
  %2711 = vmatmul.mubr.f32.gmra.mrb[0].mxu0 %v2594
  %v2712 = vpop.f32.mrb[0].mxu0
  %v2713 = vadd.f32 0.0, %v2712
  %v2714 = vpop.f32.mrb[0].mxu0
  %2715 = vmatprep.mubr.f32.mxu0 0.0
  %2716 = vmatmul.mubr.f32.gmra.mrb[0].mxu0 %v2595
  %v2717 = vpop.f32.mrb[0].mxu0
  %v2718 = vadd.f32 0.0, %v2717
  %v2719 = vpop.f32.mrb[0].mxu0
  %2720 = vmatprep.mubr.f32.mxu0 0.0
  %2721 = vmatmul.mubr.f32.gmra.mrb[0].mxu0 %v2596
  %v2722 = vpop.f32.mrb[0].mxu0
  %v2723 = vadd.f32 0.0, %v2722
  %v2724 = vpop.f32.mrb[0].mxu0
  %2725 = vmatprep.mubr.f32.mxu0 0.0
  %2726 = vmatmul.mubr.f32.gmra.mrb[0].mxu0 %v2597
  %v2727 = vpop.f32.mrb[0].mxu0
  %v2728 = vadd.f32 0.0, %v2727
  %v2729 = vpop.f32.mrb[0].mxu0
  %2730 = vmatprep.mubr.f32.mxu0 0.0
  %2731 = vmatmul.mubr.f32.gmra.mrb[0].mxu0 %v2598
  %v2732 = vpop.f32.mrb[0].mxu0
  %v2733 = vadd.f32 0.0, %v2732
  %v2734 = vpop.f32.mrb[0].mxu0
  %2735 = vmatprep.mubr.f32.mxu0 0.0
  %2736 = vmatmul.mubr.f32.gmra.mrb[0].mxu0 %v2599
  %v2737 = vpop.f32.mrb[0].mxu0
  %v2738 = vadd.f32 0.0, %v2737
  %v2739 = vpop.f32.mrb[0].mxu0
  %2740 = vmatprep.mubr.f32.mxu0 0.0
  %2741 = vmatmul.mubr.f32.gmra.mrb[0].mxu0 %v2600
  %v2742 = vpop.f32.mrb[0].mxu0
  %v2743 = vadd.f32 0.0, %v2742
  %v2744 = vpop.f32.mrb[0].mxu0
  %2745 = vdwg.mxu0
  %s2746 = scalar_lea.vmem %s3, 896
  %v2747 = vld [vmem:[%s2746] sm:$0xff]
  %v2748 = vld [vmem:[%s2746 + $0x8] sm:$0xff]
  %v2749 = vld [vmem:[%s2746 + $0x10] sm:$0xff]
  %v2750 = vld [vmem:[%s2746 + $0x18] sm:$0xff]
  %v2751 = vld [vmem:[%s2746 + $0x20] sm:$0xff]
  %v2752 = vld [vmem:[%s2746 + $0x28] sm:$0xff]
  %v2753 = vld [vmem:[%s2746 + $0x30] sm:$0xff]
  %v2754 = vld [vmem:[%s2746 + $0x38] sm:$0xff]
  %v2755 = vld [vmem:[%s2746 + $0x40] sm:$0xff]
  %v2756 = vld [vmem:[%s2746 + $0x48] sm:$0xff]
  %v2757 = vld [vmem:[%s2746 + $0x50] sm:$0xff]
  %v2758 = vld [vmem:[%s2746 + $0x58] sm:$0xff]
  %v2759 = vld [vmem:[%s2746 + $0x60] sm:$0xff]
  %v2760 = vld [vmem:[%s2746 + $0x68] sm:$0xff]
  %v2761 = vld [vmem:[%s2746 + $0x70] sm:$0xff]
  %v2762 = vld [vmem:[%s2746 + $0x78] sm:$0xff]
  %2763 = vmatprep.subr.mxu0 0.0
  %2764 = vmatpush1.msra.mxu0 %v2747
  %2765 = vmatprep.subr.mxu0 0.0
  %2766 = vmatpush1.msra.mxu0 %v2748
  %2767 = vmatprep.subr.mxu0 0.0
  %2768 = vmatpush1.msra.mxu0 %v2749
  %2769 = vmatprep.subr.mxu0 0.0
  %2770 = vmatpush1.msra.mxu0 %v2750
  %2771 = vmatprep.subr.mxu0 0.0
  %2772 = vmatpush1.msra.mxu0 %v2751
  %2773 = vmatprep.subr.mxu0 0.0
  %2774 = vmatpush1.msra.mxu0 %v2752
  %2775 = vmatprep.subr.mxu0 0.0
  %2776 = vmatpush1.msra.mxu0 %v2753
  %2777 = vmatprep.subr.mxu0 0.0
  %2778 = vmatpush1.msra.mxu0 %v2754
  %2779 = vmatprep.subr.mxu0 0.0
  %2780 = vmatpush1.msra.mxu0 %v2755
  %2781 = vmatprep.subr.mxu0 0.0
  %2782 = vmatpush1.msra.mxu0 %v2756
  %2783 = vmatprep.subr.mxu0 0.0
  %2784 = vmatpush1.msra.mxu0 %v2757
  %2785 = vmatprep.subr.mxu0 0.0
  %2786 = vmatpush1.msra.mxu0 %v2758
  %2787 = vmatprep.subr.mxu0 0.0
  %2788 = vmatpush1.msra.mxu0 %v2759
  %2789 = vmatprep.subr.mxu0 0.0
  %2790 = vmatpush1.msra.mxu0 %v2760
  %2791 = vmatprep.subr.mxu0 0.0
  %2792 = vmatpush1.msra.mxu0 %v2761
  %2793 = vmatprep.subr.mxu0 0.0
  %2794 = vmatpush1.msra.mxu0 %v2762
  %2795 = vmatprep.subr.mxu0 0.0
  %2796 = vmatpush1.msra.mxu0 0.0
  %2797 = vmatprep.subr.mxu0 0.0
  %2798 = vmatpush1.msra.mxu0 0.0
  %2799 = vmatprep.subr.mxu0 0.0
  %2800 = vmatpush1.msra.mxu0 0.0
  %2801 = vmatprep.subr.mxu0 0.0
  %2802 = vmatpush1.msra.mxu0 0.0
  %2803 = vmatprep.subr.mxu0 0.0
  %2804 = vmatpush1.msra.mxu0 0.0
  %2805 = vmatprep.subr.mxu0 0.0
  %2806 = vmatpush1.msra.mxu0 0.0
  %2807 = vmatprep.subr.mxu0 0.0
  %2808 = vmatpush1.msra.mxu0 0.0
  %2809 = vmatprep.subr.mxu0 0.0
  %2810 = vmatpush1.msra.mxu0 0.0
  %2811 = vmatprep.subr.mxu0 0.0
  %2812 = vmatpush1.msra.mxu0 0.0
  %2813 = vmatprep.subr.mxu0 0.0
  %2814 = vmatpush1.msra.mxu0 0.0
  %2815 = vmatprep.subr.mxu0 0.0
  %2816 = vmatpush1.msra.mxu0 0.0
  %2817 = vmatprep.subr.mxu0 0.0
  %2818 = vmatpush1.msra.mxu0 0.0
  %2819 = vmatprep.subr.mxu0 0.0
  %2820 = vmatpush1.msra.mxu0 0.0
  %2821 = vmatprep.subr.mxu0 0.0
  %2822 = vmatpush1.msra.mxu0 0.0
  %2823 = vmatprep.subr.mxu0 0.0
  %2824 = vmatpush1.msra.mxu0 0.0
  %2825 = vmatprep.subr.mxu0 0.0
  %2826 = vmatpush1.msra.mxu0 0.0
  %2827 = vmatprep.mubr.f32.mxu0 0.0
  %2828 = vmatmul.mubr.f32.gmra.mrb[0].mxu0 %v2668
  %v2829 = vpop.f32.mrb[0].mxu0
  %v2830 = vadd.f32 0.0, %v2829
  %v2831 = vpop.f32.mrb[0].mxu0
  %2832 = vmatprep.mubr.f32.mxu0 0.0
  %2833 = vmatmul.mubr.f32.gmra.mrb[0].mxu0 %v2673
  %v2834 = vpop.f32.mrb[0].mxu0
  %v2835 = vadd.f32 0.0, %v2834
  %v2836 = vpop.f32.mrb[0].mxu0
  %2837 = vmatprep.mubr.f32.mxu0 0.0
  %2838 = vmatmul.mubr.f32.gmra.mrb[0].mxu0 %v2678
  %v2839 = vpop.f32.mrb[0].mxu0
  %v2840 = vadd.f32 0.0, %v2839
  %v2841 = vpop.f32.mrb[0].mxu0
  %2842 = vmatprep.mubr.f32.mxu0 0.0
  %2843 = vmatmul.mubr.f32.gmra.mrb[0].mxu0 %v2683
  %v2844 = vpop.f32.mrb[0].mxu0
  %v2845 = vadd.f32 0.0, %v2844
  %v2846 = vpop.f32.mrb[0].mxu0
  %2847 = vmatprep.mubr.f32.mxu0 0.0
  %2848 = vmatmul.mubr.f32.gmra.mrb[0].mxu0 %v2688
  %v2849 = vpop.f32.mrb[0].mxu0
  %v2850 = vadd.f32 0.0, %v2849
  %v2851 = vpop.f32.mrb[0].mxu0
  %2852 = vmatprep.mubr.f32.mxu0 0.0
  %2853 = vmatmul.mubr.f32.gmra.mrb[0].mxu0 %v2693
  %v2854 = vpop.f32.mrb[0].mxu0
  %v2855 = vadd.f32 0.0, %v2854
  %v2856 = vpop.f32.mrb[0].mxu0
  %2857 = vmatprep.mubr.f32.mxu0 0.0
  %2858 = vmatmul.mubr.f32.gmra.mrb[0].mxu0 %v2698
  %v2859 = vpop.f32.mrb[0].mxu0
  %v2860 = vadd.f32 0.0, %v2859
  %v2861 = vpop.f32.mrb[0].mxu0
  %2862 = vmatprep.mubr.f32.mxu0 0.0
  %2863 = vmatmul.mubr.f32.gmra.mrb[0].mxu0 %v2703
  %v2864 = vpop.f32.mrb[0].mxu0
  %v2865 = vadd.f32 0.0, %v2864
  %v2866 = vpop.f32.mrb[0].mxu0
  %2867 = vmatprep.mubr.f32.mxu0 0.0
  %2868 = vmatmul.mubr.f32.gmra.mrb[0].mxu0 %v2708
  %v2869 = vpop.f32.mrb[0].mxu0
  %v2870 = vadd.f32 0.0, %v2869
  %v2871 = vpop.f32.mrb[0].mxu0
  %2872 = vmatprep.mubr.f32.mxu0 0.0
  %2873 = vmatmul.mubr.f32.gmra.mrb[0].mxu0 %v2713
  %v2874 = vpop.f32.mrb[0].mxu0
  %v2875 = vadd.f32 0.0, %v2874
  %v2876 = vpop.f32.mrb[0].mxu0
  %2877 = vmatprep.mubr.f32.mxu0 0.0
  %2878 = vmatmul.mubr.f32.gmra.mrb[0].mxu0 %v2718
  %v2879 = vpop.f32.mrb[0].mxu0
  %v2880 = vadd.f32 0.0, %v2879
  %v2881 = vpop.f32.mrb[0].mxu0
  %2882 = vmatprep.mubr.f32.mxu0 0.0
  %2883 = vmatmul.mubr.f32.gmra.mrb[0].mxu0 %v2723
  %v2884 = vpop.f32.mrb[0].mxu0
  %v2885 = vadd.f32 0.0, %v2884
  %v2886 = vpop.f32.mrb[0].mxu0
  %2887 = vmatprep.mubr.f32.mxu0 0.0
  %2888 = vmatmul.mubr.f32.gmra.mrb[0].mxu0 %v2728
  %v2889 = vpop.f32.mrb[0].mxu0
  %v2890 = vadd.f32 0.0, %v2889
  %v2891 = vpop.f32.mrb[0].mxu0
  %2892 = vmatprep.mubr.f32.mxu0 0.0
  %2893 = vmatmul.mubr.f32.gmra.mrb[0].mxu0 %v2733
  %v2894 = vpop.f32.mrb[0].mxu0
  %v2895 = vadd.f32 0.0, %v2894
  %v2896 = vpop.f32.mrb[0].mxu0
  %2897 = vmatprep.mubr.f32.mxu0 0.0
  %2898 = vmatmul.mubr.f32.gmra.mrb[0].mxu0 %v2738
  %v2899 = vpop.f32.mrb[0].mxu0
  %v2900 = vadd.f32 0.0, %v2899
  %v2901 = vpop.f32.mrb[0].mxu0
  %2902 = vmatprep.mubr.f32.mxu0 0.0
  %2903 = vmatmul.mubr.f32.gmra.mrb[0].mxu0 %v2743
  %v2904 = vpop.f32.mrb[0].mxu0
  %v2905 = vadd.f32 0.0, %v2904
  %v2906 = vpop.f32.mrb[0].mxu0
  %2907 = vdwg.mxu0
  %v2908 = vadd.f32 %v2568, %v2830
  %v2909 = vadd.f32 %v2569, %v2835
  %v2910 = vadd.f32 %v2570, %v2840
  %v2911 = vadd.f32 %v2571, %v2845
  %v2912 = vadd.f32 %v2572, %v2850
  %v2913 = vadd.f32 %v2573, %v2855
  %v2914 = vadd.f32 %v2574, %v2860
  %v2915 = vadd.f32 %v2575, %v2865
  %v2916 = vadd.f32 %v2576, %v2870
  %v2917 = vadd.f32 %v2577, %v2875
  %v2918 = vadd.f32 %v2578, %v2880
  %v2919 = vadd.f32 %v2579, %v2885
  %v2920 = vadd.f32 %v2580, %v2890
  %v2921 = vadd.f32 %v2581, %v2895
  %v2922 = vadd.f32 %v2582, %v2900
  %v2923 = vadd.f32 %v2583, %v2905
  %s2924 = scalar_lea.vmem %s2, 1024
  %v2925 = vld [vmem:[%s2924] sm:$0xff]
  %v2926 = vld [vmem:[%s2924 + $0x8] sm:$0xff]
  %v2927 = vld [vmem:[%s2924 + $0x10] sm:$0xff]
  %v2928 = vld [vmem:[%s2924 + $0x18] sm:$0xff]
  %v2929 = vld [vmem:[%s2924 + $0x20] sm:$0xff]
  %v2930 = vld [vmem:[%s2924 + $0x28] sm:$0xff]
  %v2931 = vld [vmem:[%s2924 + $0x30] sm:$0xff]
  %v2932 = vld [vmem:[%s2924 + $0x38] sm:$0xff]
  %v2933 = vld [vmem:[%s2924 + $0x40] sm:$0xff]
  %v2934 = vld [vmem:[%s2924 + $0x48] sm:$0xff]
  %v2935 = vld [vmem:[%s2924 + $0x50] sm:$0xff]
  %v2936 = vld [vmem:[%s2924 + $0x58] sm:$0xff]
  %v2937 = vld [vmem:[%s2924 + $0x60] sm:$0xff]
  %v2938 = vld [vmem:[%s2924 + $0x68] sm:$0xff]
  %v2939 = vld [vmem:[%s2924 + $0x70] sm:$0xff]
  %v2940 = vld [vmem:[%s2924 + $0x78] sm:$0xff]
  %2941 = vmatprep.subr.mxu0 0.0
  %2942 = vmatpush1.msra.mxu0 %v222
  %2943 = vmatprep.subr.mxu0 0.0
  %2944 = vmatpush1.msra.mxu0 %v223
  %2945 = vmatprep.subr.mxu0 0.0
  %2946 = vmatpush1.msra.mxu0 %v224
  %2947 = vmatprep.subr.mxu0 0.0
  %2948 = vmatpush1.msra.mxu0 %v225
  %2949 = vmatprep.subr.mxu0 0.0
  %2950 = vmatpush1.msra.mxu0 %v226
  %2951 = vmatprep.subr.mxu0 0.0
  %2952 = vmatpush1.msra.mxu0 %v227
  %2953 = vmatprep.subr.mxu0 0.0
  %2954 = vmatpush1.msra.mxu0 %v228
  %2955 = vmatprep.subr.mxu0 0.0
  %2956 = vmatpush1.msra.mxu0 %v229
  %2957 = vmatprep.subr.mxu0 0.0
  %2958 = vmatpush1.msra.mxu0 %v230
  %2959 = vmatprep.subr.mxu0 0.0
  %2960 = vmatpush1.msra.mxu0 %v231
  %2961 = vmatprep.subr.mxu0 0.0
  %2962 = vmatpush1.msra.mxu0 %v232
  %2963 = vmatprep.subr.mxu0 0.0
  %2964 = vmatpush1.msra.mxu0 %v233
  %2965 = vmatprep.subr.mxu0 0.0
  %2966 = vmatpush1.msra.mxu0 %v234
  %2967 = vmatprep.subr.mxu0 0.0
  %2968 = vmatpush1.msra.mxu0 %v235
  %2969 = vmatprep.subr.mxu0 0.0
  %2970 = vmatpush1.msra.mxu0 %v236
  %2971 = vmatprep.subr.mxu0 0.0
  %2972 = vmatpush1.msra.mxu0 %v237
  %2973 = vmatprep.subr.mxu0 0.0
  %2974 = vmatpush1.msra.mxu0 0.0
  %2975 = vmatprep.subr.mxu0 0.0
  %2976 = vmatpush1.msra.mxu0 0.0
  %2977 = vmatprep.subr.mxu0 0.0
  %2978 = vmatpush1.msra.mxu0 0.0
  %2979 = vmatprep.subr.mxu0 0.0
  %2980 = vmatpush1.msra.mxu0 0.0
  %2981 = vmatprep.subr.mxu0 0.0
  %2982 = vmatpush1.msra.mxu0 0.0
  %2983 = vmatprep.subr.mxu0 0.0
  %2984 = vmatpush1.msra.mxu0 0.0
  %2985 = vmatprep.subr.mxu0 0.0
  %2986 = vmatpush1.msra.mxu0 0.0
  %2987 = vmatprep.subr.mxu0 0.0
  %2988 = vmatpush1.msra.mxu0 0.0
  %2989 = vmatprep.subr.mxu0 0.0
  %2990 = vmatpush1.msra.mxu0 0.0
  %2991 = vmatprep.subr.mxu0 0.0
  %2992 = vmatpush1.msra.mxu0 0.0
  %2993 = vmatprep.subr.mxu0 0.0
  %2994 = vmatpush1.msra.mxu0 0.0
  %2995 = vmatprep.subr.mxu0 0.0
  %2996 = vmatpush1.msra.mxu0 0.0
  %2997 = vmatprep.subr.mxu0 0.0
  %2998 = vmatpush1.msra.mxu0 0.0
  %2999 = vmatprep.subr.mxu0 0.0
  %3000 = vmatpush1.msra.mxu0 0.0
  %3001 = vmatprep.subr.mxu0 0.0
  %3002 = vmatpush1.msra.mxu0 0.0
  %3003 = vmatprep.subr.mxu0 0.0
  %3004 = vmatpush1.msra.mxu0 0.0
  %3005 = vmatprep.mubr.f32.mxu0 0.0
  %3006 = vmatmul.mubr.f32.gmra.mrb[0].mxu0 %v2925
  %v3007 = vpop.f32.mrb[0].mxu0
  %v3008 = vadd.f32 0.0, %v3007
  %v3009 = vpop.f32.mrb[0].mxu0
  %3010 = vmatprep.mubr.f32.mxu0 0.0
  %3011 = vmatmul.mubr.f32.gmra.mrb[0].mxu0 %v2926
  %v3012 = vpop.f32.mrb[0].mxu0
  %v3013 = vadd.f32 0.0, %v3012
  %v3014 = vpop.f32.mrb[0].mxu0
  %3015 = vmatprep.mubr.f32.mxu0 0.0
  %3016 = vmatmul.mubr.f32.gmra.mrb[0].mxu0 %v2927
  %v3017 = vpop.f32.mrb[0].mxu0
  %v3018 = vadd.f32 0.0, %v3017
  %v3019 = vpop.f32.mrb[0].mxu0
  %3020 = vmatprep.mubr.f32.mxu0 0.0
  %3021 = vmatmul.mubr.f32.gmra.mrb[0].mxu0 %v2928
  %v3022 = vpop.f32.mrb[0].mxu0
  %v3023 = vadd.f32 0.0, %v3022
  %v3024 = vpop.f32.mrb[0].mxu0
  %3025 = vmatprep.mubr.f32.mxu0 0.0
  %3026 = vmatmul.mubr.f32.gmra.mrb[0].mxu0 %v2929
  %v3027 = vpop.f32.mrb[0].mxu0
  %v3028 = vadd.f32 0.0, %v3027
  %v3029 = vpop.f32.mrb[0].mxu0
  %3030 = vmatprep.mubr.f32.mxu0 0.0
  %3031 = vmatmul.mubr.f32.gmra.mrb[0].mxu0 %v2930
  %v3032 = vpop.f32.mrb[0].mxu0
  %v3033 = vadd.f32 0.0, %v3032
  %v3034 = vpop.f32.mrb[0].mxu0
  %3035 = vmatprep.mubr.f32.mxu0 0.0
  %3036 = vmatmul.mubr.f32.gmra.mrb[0].mxu0 %v2931
  %v3037 = vpop.f32.mrb[0].mxu0
  %v3038 = vadd.f32 0.0, %v3037
  %v3039 = vpop.f32.mrb[0].mxu0
  %3040 = vmatprep.mubr.f32.mxu0 0.0
  %3041 = vmatmul.mubr.f32.gmra.mrb[0].mxu0 %v2932
  %v3042 = vpop.f32.mrb[0].mxu0
  %v3043 = vadd.f32 0.0, %v3042
  %v3044 = vpop.f32.mrb[0].mxu0
  %3045 = vmatprep.mubr.f32.mxu0 0.0
  %3046 = vmatmul.mubr.f32.gmra.mrb[0].mxu0 %v2933
  %v3047 = vpop.f32.mrb[0].mxu0
  %v3048 = vadd.f32 0.0, %v3047
  %v3049 = vpop.f32.mrb[0].mxu0
  %3050 = vmatprep.mubr.f32.mxu0 0.0
  %3051 = vmatmul.mubr.f32.gmra.mrb[0].mxu0 %v2934
  %v3052 = vpop.f32.mrb[0].mxu0
  %v3053 = vadd.f32 0.0, %v3052
  %v3054 = vpop.f32.mrb[0].mxu0
  %3055 = vmatprep.mubr.f32.mxu0 0.0
  %3056 = vmatmul.mubr.f32.gmra.mrb[0].mxu0 %v2935
  %v3057 = vpop.f32.mrb[0].mxu0
  %v3058 = vadd.f32 0.0, %v3057
  %v3059 = vpop.f32.mrb[0].mxu0
  %3060 = vmatprep.mubr.f32.mxu0 0.0
  %3061 = vmatmul.mubr.f32.gmra.mrb[0].mxu0 %v2936
  %v3062 = vpop.f32.mrb[0].mxu0
  %v3063 = vadd.f32 0.0, %v3062
  %v3064 = vpop.f32.mrb[0].mxu0
  %3065 = vmatprep.mubr.f32.mxu0 0.0
  %3066 = vmatmul.mubr.f32.gmra.mrb[0].mxu0 %v2937
  %v3067 = vpop.f32.mrb[0].mxu0
  %v3068 = vadd.f32 0.0, %v3067
  %v3069 = vpop.f32.mrb[0].mxu0
  %3070 = vmatprep.mubr.f32.mxu0 0.0
  %3071 = vmatmul.mubr.f32.gmra.mrb[0].mxu0 %v2938
  %v3072 = vpop.f32.mrb[0].mxu0
  %v3073 = vadd.f32 0.0, %v3072
  %v3074 = vpop.f32.mrb[0].mxu0
  %3075 = vmatprep.mubr.f32.mxu0 0.0
  %3076 = vmatmul.mubr.f32.gmra.mrb[0].mxu0 %v2939
  %v3077 = vpop.f32.mrb[0].mxu0
  %v3078 = vadd.f32 0.0, %v3077
  %v3079 = vpop.f32.mrb[0].mxu0
  %3080 = vmatprep.mubr.f32.mxu0 0.0
  %3081 = vmatmul.mubr.f32.gmra.mrb[0].mxu0 %v2940
  %v3082 = vpop.f32.mrb[0].mxu0
  %v3083 = vadd.f32 0.0, %v3082
  %v3084 = vpop.f32.mrb[0].mxu0
  %3085 = vdwg.mxu0
  %s3086 = scalar_lea.vmem %s3, 1024
  %v3087 = vld [vmem:[%s3086] sm:$0xff]
  %v3088 = vld [vmem:[%s3086 + $0x8] sm:$0xff]
  %v3089 = vld [vmem:[%s3086 + $0x10] sm:$0xff]
  %v3090 = vld [vmem:[%s3086 + $0x18] sm:$0xff]
  %v3091 = vld [vmem:[%s3086 + $0x20] sm:$0xff]
  %v3092 = vld [vmem:[%s3086 + $0x28] sm:$0xff]
  %v3093 = vld [vmem:[%s3086 + $0x30] sm:$0xff]
  %v3094 = vld [vmem:[%s3086 + $0x38] sm:$0xff]
  %v3095 = vld [vmem:[%s3086 + $0x40] sm:$0xff]
  %v3096 = vld [vmem:[%s3086 + $0x48] sm:$0xff]
  %v3097 = vld [vmem:[%s3086 + $0x50] sm:$0xff]
  %v3098 = vld [vmem:[%s3086 + $0x58] sm:$0xff]
  %v3099 = vld [vmem:[%s3086 + $0x60] sm:$0xff]
  %v3100 = vld [vmem:[%s3086 + $0x68] sm:$0xff]
  %v3101 = vld [vmem:[%s3086 + $0x70] sm:$0xff]
  %v3102 = vld [vmem:[%s3086 + $0x78] sm:$0xff]
  %3103 = vmatprep.subr.mxu0 0.0
  %3104 = vmatpush1.msra.mxu0 %v3087
  %3105 = vmatprep.subr.mxu0 0.0
  %3106 = vmatpush1.msra.mxu0 %v3088
  %3107 = vmatprep.subr.mxu0 0.0
  %3108 = vmatpush1.msra.mxu0 %v3089
  %3109 = vmatprep.subr.mxu0 0.0
  %3110 = vmatpush1.msra.mxu0 %v3090
  %3111 = vmatprep.subr.mxu0 0.0
  %3112 = vmatpush1.msra.mxu0 %v3091
  %3113 = vmatprep.subr.mxu0 0.0
  %3114 = vmatpush1.msra.mxu0 %v3092
  %3115 = vmatprep.subr.mxu0 0.0
  %3116 = vmatpush1.msra.mxu0 %v3093
  %3117 = vmatprep.subr.mxu0 0.0
  %3118 = vmatpush1.msra.mxu0 %v3094
  %3119 = vmatprep.subr.mxu0 0.0
  %3120 = vmatpush1.msra.mxu0 %v3095
  %3121 = vmatprep.subr.mxu0 0.0
  %3122 = vmatpush1.msra.mxu0 %v3096
  %3123 = vmatprep.subr.mxu0 0.0
  %3124 = vmatpush1.msra.mxu0 %v3097
  %3125 = vmatprep.subr.mxu0 0.0
  %3126 = vmatpush1.msra.mxu0 %v3098
  %3127 = vmatprep.subr.mxu0 0.0
  %3128 = vmatpush1.msra.mxu0 %v3099
  %3129 = vmatprep.subr.mxu0 0.0
  %3130 = vmatpush1.msra.mxu0 %v3100
  %3131 = vmatprep.subr.mxu0 0.0
  %3132 = vmatpush1.msra.mxu0 %v3101
  %3133 = vmatprep.subr.mxu0 0.0
  %3134 = vmatpush1.msra.mxu0 %v3102
  %3135 = vmatprep.subr.mxu0 0.0
  %3136 = vmatpush1.msra.mxu0 0.0
  %3137 = vmatprep.subr.mxu0 0.0
  %3138 = vmatpush1.msra.mxu0 0.0
  %3139 = vmatprep.subr.mxu0 0.0
  %3140 = vmatpush1.msra.mxu0 0.0
  %3141 = vmatprep.subr.mxu0 0.0
  %3142 = vmatpush1.msra.mxu0 0.0
  %3143 = vmatprep.subr.mxu0 0.0
  %3144 = vmatpush1.msra.mxu0 0.0
  %3145 = vmatprep.subr.mxu0 0.0
  %3146 = vmatpush1.msra.mxu0 0.0
  %3147 = vmatprep.subr.mxu0 0.0
  %3148 = vmatpush1.msra.mxu0 0.0
  %3149 = vmatprep.subr.mxu0 0.0
  %3150 = vmatpush1.msra.mxu0 0.0
  %3151 = vmatprep.subr.mxu0 0.0
  %3152 = vmatpush1.msra.mxu0 0.0
  %3153 = vmatprep.subr.mxu0 0.0
  %3154 = vmatpush1.msra.mxu0 0.0
  %3155 = vmatprep.subr.mxu0 0.0
  %3156 = vmatpush1.msra.mxu0 0.0
  %3157 = vmatprep.subr.mxu0 0.0
  %3158 = vmatpush1.msra.mxu0 0.0
  %3159 = vmatprep.subr.mxu0 0.0
  %3160 = vmatpush1.msra.mxu0 0.0
  %3161 = vmatprep.subr.mxu0 0.0
  %3162 = vmatpush1.msra.mxu0 0.0
  %3163 = vmatprep.subr.mxu0 0.0
  %3164 = vmatpush1.msra.mxu0 0.0
  %3165 = vmatprep.subr.mxu0 0.0
  %3166 = vmatpush1.msra.mxu0 0.0
  %3167 = vmatprep.mubr.f32.mxu0 0.0
  %3168 = vmatmul.mubr.f32.gmra.mrb[0].mxu0 %v3008
  %v3169 = vpop.f32.mrb[0].mxu0
  %v3170 = vadd.f32 0.0, %v3169
  %v3171 = vpop.f32.mrb[0].mxu0
  %3172 = vmatprep.mubr.f32.mxu0 0.0
  %3173 = vmatmul.mubr.f32.gmra.mrb[0].mxu0 %v3013
  %v3174 = vpop.f32.mrb[0].mxu0
  %v3175 = vadd.f32 0.0, %v3174
  %v3176 = vpop.f32.mrb[0].mxu0
  %3177 = vmatprep.mubr.f32.mxu0 0.0
  %3178 = vmatmul.mubr.f32.gmra.mrb[0].mxu0 %v3018
  %v3179 = vpop.f32.mrb[0].mxu0
  %v3180 = vadd.f32 0.0, %v3179
  %v3181 = vpop.f32.mrb[0].mxu0
  %3182 = vmatprep.mubr.f32.mxu0 0.0
  %3183 = vmatmul.mubr.f32.gmra.mrb[0].mxu0 %v3023
  %v3184 = vpop.f32.mrb[0].mxu0
  %v3185 = vadd.f32 0.0, %v3184
  %v3186 = vpop.f32.mrb[0].mxu0
  %3187 = vmatprep.mubr.f32.mxu0 0.0
  %3188 = vmatmul.mubr.f32.gmra.mrb[0].mxu0 %v3028
  %v3189 = vpop.f32.mrb[0].mxu0
  %v3190 = vadd.f32 0.0, %v3189
  %v3191 = vpop.f32.mrb[0].mxu0
  %3192 = vmatprep.mubr.f32.mxu0 0.0
  %3193 = vmatmul.mubr.f32.gmra.mrb[0].mxu0 %v3033
  %v3194 = vpop.f32.mrb[0].mxu0
  %v3195 = vadd.f32 0.0, %v3194
  %v3196 = vpop.f32.mrb[0].mxu0
  %3197 = vmatprep.mubr.f32.mxu0 0.0
  %3198 = vmatmul.mubr.f32.gmra.mrb[0].mxu0 %v3038
  %v3199 = vpop.f32.mrb[0].mxu0
  %v3200 = vadd.f32 0.0, %v3199
  %v3201 = vpop.f32.mrb[0].mxu0
  %3202 = vmatprep.mubr.f32.mxu0 0.0
  %3203 = vmatmul.mubr.f32.gmra.mrb[0].mxu0 %v3043
  %v3204 = vpop.f32.mrb[0].mxu0
  %v3205 = vadd.f32 0.0, %v3204
  %v3206 = vpop.f32.mrb[0].mxu0
  %3207 = vmatprep.mubr.f32.mxu0 0.0
  %3208 = vmatmul.mubr.f32.gmra.mrb[0].mxu0 %v3048
  %v3209 = vpop.f32.mrb[0].mxu0
  %v3210 = vadd.f32 0.0, %v3209
  %v3211 = vpop.f32.mrb[0].mxu0
  %3212 = vmatprep.mubr.f32.mxu0 0.0
  %3213 = vmatmul.mubr.f32.gmra.mrb[0].mxu0 %v3053
  %v3214 = vpop.f32.mrb[0].mxu0
  %v3215 = vadd.f32 0.0, %v3214
  %v3216 = vpop.f32.mrb[0].mxu0
  %3217 = vmatprep.mubr.f32.mxu0 0.0
  %3218 = vmatmul.mubr.f32.gmra.mrb[0].mxu0 %v3058
  %v3219 = vpop.f32.mrb[0].mxu0
  %v3220 = vadd.f32 0.0, %v3219
  %v3221 = vpop.f32.mrb[0].mxu0
  %3222 = vmatprep.mubr.f32.mxu0 0.0
  %3223 = vmatmul.mubr.f32.gmra.mrb[0].mxu0 %v3063
  %v3224 = vpop.f32.mrb[0].mxu0
  %v3225 = vadd.f32 0.0, %v3224
  %v3226 = vpop.f32.mrb[0].mxu0
  %3227 = vmatprep.mubr.f32.mxu0 0.0
  %3228 = vmatmul.mubr.f32.gmra.mrb[0].mxu0 %v3068
  %v3229 = vpop.f32.mrb[0].mxu0
  %v3230 = vadd.f32 0.0, %v3229
  %v3231 = vpop.f32.mrb[0].mxu0
  %3232 = vmatprep.mubr.f32.mxu0 0.0
  %3233 = vmatmul.mubr.f32.gmra.mrb[0].mxu0 %v3073
  %v3234 = vpop.f32.mrb[0].mxu0
  %v3235 = vadd.f32 0.0, %v3234
  %v3236 = vpop.f32.mrb[0].mxu0
  %3237 = vmatprep.mubr.f32.mxu0 0.0
  %3238 = vmatmul.mubr.f32.gmra.mrb[0].mxu0 %v3078
  %v3239 = vpop.f32.mrb[0].mxu0
  %v3240 = vadd.f32 0.0, %v3239
  %v3241 = vpop.f32.mrb[0].mxu0
  %3242 = vmatprep.mubr.f32.mxu0 0.0
  %3243 = vmatmul.mubr.f32.gmra.mrb[0].mxu0 %v3083
  %v3244 = vpop.f32.mrb[0].mxu0
  %v3245 = vadd.f32 0.0, %v3244
  %v3246 = vpop.f32.mrb[0].mxu0
  %3247 = vdwg.mxu0
  %v3248 = vadd.f32 %v2908, %v3170
  %v3249 = vadd.f32 %v2909, %v3175
  %v3250 = vadd.f32 %v2910, %v3180
  %v3251 = vadd.f32 %v2911, %v3185
  %v3252 = vadd.f32 %v2912, %v3190
  %v3253 = vadd.f32 %v2913, %v3195
  %v3254 = vadd.f32 %v2914, %v3200
  %v3255 = vadd.f32 %v2915, %v3205
  %v3256 = vadd.f32 %v2916, %v3210
  %v3257 = vadd.f32 %v2917, %v3215
  %v3258 = vadd.f32 %v2918, %v3220
  %v3259 = vadd.f32 %v2919, %v3225
  %v3260 = vadd.f32 %v2920, %v3230
  %v3261 = vadd.f32 %v2921, %v3235
  %v3262 = vadd.f32 %v2922, %v3240
  %v3263 = vadd.f32 %v2923, %v3245
  %s3264 = scalar_lea.vmem %s2, 1152
  %v3265 = vld [vmem:[%s3264] sm:$0xff]
  %v3266 = vld [vmem:[%s3264 + $0x8] sm:$0xff]
  %v3267 = vld [vmem:[%s3264 + $0x10] sm:$0xff]
  %v3268 = vld [vmem:[%s3264 + $0x18] sm:$0xff]
  %v3269 = vld [vmem:[%s3264 + $0x20] sm:$0xff]
  %v3270 = vld [vmem:[%s3264 + $0x28] sm:$0xff]
  %v3271 = vld [vmem:[%s3264 + $0x30] sm:$0xff]
  %v3272 = vld [vmem:[%s3264 + $0x38] sm:$0xff]
  %v3273 = vld [vmem:[%s3264 + $0x40] sm:$0xff]
  %v3274 = vld [vmem:[%s3264 + $0x48] sm:$0xff]
  %v3275 = vld [vmem:[%s3264 + $0x50] sm:$0xff]
  %v3276 = vld [vmem:[%s3264 + $0x58] sm:$0xff]
  %v3277 = vld [vmem:[%s3264 + $0x60] sm:$0xff]
  %v3278 = vld [vmem:[%s3264 + $0x68] sm:$0xff]
  %v3279 = vld [vmem:[%s3264 + $0x70] sm:$0xff]
  %v3280 = vld [vmem:[%s3264 + $0x78] sm:$0xff]
  %3281 = vmatprep.subr.mxu0 0.0
  %3282 = vmatpush1.msra.mxu0 %v222
  %3283 = vmatprep.subr.mxu0 0.0
  %3284 = vmatpush1.msra.mxu0 %v223
  %3285 = vmatprep.subr.mxu0 0.0
  %3286 = vmatpush1.msra.mxu0 %v224
  %3287 = vmatprep.subr.mxu0 0.0
  %3288 = vmatpush1.msra.mxu0 %v225
  %3289 = vmatprep.subr.mxu0 0.0
  %3290 = vmatpush1.msra.mxu0 %v226
  %3291 = vmatprep.subr.mxu0 0.0
  %3292 = vmatpush1.msra.mxu0 %v227
  %3293 = vmatprep.subr.mxu0 0.0
  %3294 = vmatpush1.msra.mxu0 %v228
  %3295 = vmatprep.subr.mxu0 0.0
  %3296 = vmatpush1.msra.mxu0 %v229
  %3297 = vmatprep.subr.mxu0 0.0
  %3298 = vmatpush1.msra.mxu0 %v230
  %3299 = vmatprep.subr.mxu0 0.0
  %3300 = vmatpush1.msra.mxu0 %v231
  %3301 = vmatprep.subr.mxu0 0.0
  %3302 = vmatpush1.msra.mxu0 %v232
  %3303 = vmatprep.subr.mxu0 0.0
  %3304 = vmatpush1.msra.mxu0 %v233
  %3305 = vmatprep.subr.mxu0 0.0
  %3306 = vmatpush1.msra.mxu0 %v234
  %3307 = vmatprep.subr.mxu0 0.0
  %3308 = vmatpush1.msra.mxu0 %v235
  %3309 = vmatprep.subr.mxu0 0.0
  %3310 = vmatpush1.msra.mxu0 %v236
  %3311 = vmatprep.subr.mxu0 0.0
  %3312 = vmatpush1.msra.mxu0 %v237
  %3313 = vmatprep.subr.mxu0 0.0
  %3314 = vmatpush1.msra.mxu0 0.0
  %3315 = vmatprep.subr.mxu0 0.0
  %3316 = vmatpush1.msra.mxu0 0.0
  %3317 = vmatprep.subr.mxu0 0.0
  %3318 = vmatpush1.msra.mxu0 0.0
  %3319 = vmatprep.subr.mxu0 0.0
  %3320 = vmatpush1.msra.mxu0 0.0
  %3321 = vmatprep.subr.mxu0 0.0
  %3322 = vmatpush1.msra.mxu0 0.0
  %3323 = vmatprep.subr.mxu0 0.0
  %3324 = vmatpush1.msra.mxu0 0.0
  %3325 = vmatprep.subr.mxu0 0.0
  %3326 = vmatpush1.msra.mxu0 0.0
  %3327 = vmatprep.subr.mxu0 0.0
  %3328 = vmatpush1.msra.mxu0 0.0
  %3329 = vmatprep.subr.mxu0 0.0
  %3330 = vmatpush1.msra.mxu0 0.0
  %3331 = vmatprep.subr.mxu0 0.0
  %3332 = vmatpush1.msra.mxu0 0.0
  %3333 = vmatprep.subr.mxu0 0.0
  %3334 = vmatpush1.msra.mxu0 0.0
  %3335 = vmatprep.subr.mxu0 0.0
  %3336 = vmatpush1.msra.mxu0 0.0
  %3337 = vmatprep.subr.mxu0 0.0
  %3338 = vmatpush1.msra.mxu0 0.0
  %3339 = vmatprep.subr.mxu0 0.0
  %3340 = vmatpush1.msra.mxu0 0.0
  %3341 = vmatprep.subr.mxu0 0.0
  %3342 = vmatpush1.msra.mxu0 0.0
  %3343 = vmatprep.subr.mxu0 0.0
  %3344 = vmatpush1.msra.mxu0 0.0
  %3345 = vmatprep.mubr.f32.mxu0 0.0
  %3346 = vmatmul.mubr.f32.gmra.mrb[0].mxu0 %v3265
  %v3347 = vpop.f32.mrb[0].mxu0
  %v3348 = vadd.f32 0.0, %v3347
  %v3349 = vpop.f32.mrb[0].mxu0
  %3350 = vmatprep.mubr.f32.mxu0 0.0
  %3351 = vmatmul.mubr.f32.gmra.mrb[0].mxu0 %v3266
  %v3352 = vpop.f32.mrb[0].mxu0
  %v3353 = vadd.f32 0.0, %v3352
  %v3354 = vpop.f32.mrb[0].mxu0
  %3355 = vmatprep.mubr.f32.mxu0 0.0
  %3356 = vmatmul.mubr.f32.gmra.mrb[0].mxu0 %v3267
  %v3357 = vpop.f32.mrb[0].mxu0
  %v3358 = vadd.f32 0.0, %v3357
  %v3359 = vpop.f32.mrb[0].mxu0
  %3360 = vmatprep.mubr.f32.mxu0 0.0
  %3361 = vmatmul.mubr.f32.gmra.mrb[0].mxu0 %v3268
  %v3362 = vpop.f32.mrb[0].mxu0
  %v3363 = vadd.f32 0.0, %v3362
  %v3364 = vpop.f32.mrb[0].mxu0
  %3365 = vmatprep.mubr.f32.mxu0 0.0
  %3366 = vmatmul.mubr.f32.gmra.mrb[0].mxu0 %v3269
  %v3367 = vpop.f32.mrb[0].mxu0
  %v3368 = vadd.f32 0.0, %v3367
  %v3369 = vpop.f32.mrb[0].mxu0
  %3370 = vmatprep.mubr.f32.mxu0 0.0
  %3371 = vmatmul.mubr.f32.gmra.mrb[0].mxu0 %v3270
  %v3372 = vpop.f32.mrb[0].mxu0
  %v3373 = vadd.f32 0.0, %v3372
  %v3374 = vpop.f32.mrb[0].mxu0
  %3375 = vmatprep.mubr.f32.mxu0 0.0
  %3376 = vmatmul.mubr.f32.gmra.mrb[0].mxu0 %v3271
  %v3377 = vpop.f32.mrb[0].mxu0
  %v3378 = vadd.f32 0.0, %v3377
  %v3379 = vpop.f32.mrb[0].mxu0
  %3380 = vmatprep.mubr.f32.mxu0 0.0
  %3381 = vmatmul.mubr.f32.gmra.mrb[0].mxu0 %v3272
  %v3382 = vpop.f32.mrb[0].mxu0
  %v3383 = vadd.f32 0.0, %v3382
  %v3384 = vpop.f32.mrb[0].mxu0
  %3385 = vmatprep.mubr.f32.mxu0 0.0
  %3386 = vmatmul.mubr.f32.gmra.mrb[0].mxu0 %v3273
  %v3387 = vpop.f32.mrb[0].mxu0
  %v3388 = vadd.f32 0.0, %v3387
  %v3389 = vpop.f32.mrb[0].mxu0
  %3390 = vmatprep.mubr.f32.mxu0 0.0
  %3391 = vmatmul.mubr.f32.gmra.mrb[0].mxu0 %v3274
  %v3392 = vpop.f32.mrb[0].mxu0
  %v3393 = vadd.f32 0.0, %v3392
  %v3394 = vpop.f32.mrb[0].mxu0
  %3395 = vmatprep.mubr.f32.mxu0 0.0
  %3396 = vmatmul.mubr.f32.gmra.mrb[0].mxu0 %v3275
  %v3397 = vpop.f32.mrb[0].mxu0
  %v3398 = vadd.f32 0.0, %v3397
  %v3399 = vpop.f32.mrb[0].mxu0
  %3400 = vmatprep.mubr.f32.mxu0 0.0
  %3401 = vmatmul.mubr.f32.gmra.mrb[0].mxu0 %v3276
  %v3402 = vpop.f32.mrb[0].mxu0
  %v3403 = vadd.f32 0.0, %v3402
  %v3404 = vpop.f32.mrb[0].mxu0
  %3405 = vmatprep.mubr.f32.mxu0 0.0
  %3406 = vmatmul.mubr.f32.gmra.mrb[0].mxu0 %v3277
  %v3407 = vpop.f32.mrb[0].mxu0
  %v3408 = vadd.f32 0.0, %v3407
  %v3409 = vpop.f32.mrb[0].mxu0
  %3410 = vmatprep.mubr.f32.mxu0 0.0
  %3411 = vmatmul.mubr.f32.gmra.mrb[0].mxu0 %v3278
  %v3412 = vpop.f32.mrb[0].mxu0
  %v3413 = vadd.f32 0.0, %v3412
  %v3414 = vpop.f32.mrb[0].mxu0
  %3415 = vmatprep.mubr.f32.mxu0 0.0
  %3416 = vmatmul.mubr.f32.gmra.mrb[0].mxu0 %v3279
  %v3417 = vpop.f32.mrb[0].mxu0
  %v3418 = vadd.f32 0.0, %v3417
  %v3419 = vpop.f32.mrb[0].mxu0
  %3420 = vmatprep.mubr.f32.mxu0 0.0
  %3421 = vmatmul.mubr.f32.gmra.mrb[0].mxu0 %v3280
  %v3422 = vpop.f32.mrb[0].mxu0
  %v3423 = vadd.f32 0.0, %v3422
  %v3424 = vpop.f32.mrb[0].mxu0
  %3425 = vdwg.mxu0
  %s3426 = scalar_lea.vmem %s3, 1152
  %v3427 = vld [vmem:[%s3426] sm:$0xff]
  %v3428 = vld [vmem:[%s3426 + $0x8] sm:$0xff]
  %v3429 = vld [vmem:[%s3426 + $0x10] sm:$0xff]
  %v3430 = vld [vmem:[%s3426 + $0x18] sm:$0xff]
  %v3431 = vld [vmem:[%s3426 + $0x20] sm:$0xff]
  %v3432 = vld [vmem:[%s3426 + $0x28] sm:$0xff]
  %v3433 = vld [vmem:[%s3426 + $0x30] sm:$0xff]
  %v3434 = vld [vmem:[%s3426 + $0x38] sm:$0xff]
  %v3435 = vld [vmem:[%s3426 + $0x40] sm:$0xff]
  %v3436 = vld [vmem:[%s3426 + $0x48] sm:$0xff]
  %v3437 = vld [vmem:[%s3426 + $0x50] sm:$0xff]
  %v3438 = vld [vmem:[%s3426 + $0x58] sm:$0xff]
  %v3439 = vld [vmem:[%s3426 + $0x60] sm:$0xff]
  %v3440 = vld [vmem:[%s3426 + $0x68] sm:$0xff]
  %v3441 = vld [vmem:[%s3426 + $0x70] sm:$0xff]
  %v3442 = vld [vmem:[%s3426 + $0x78] sm:$0xff]
  %3443 = vmatprep.subr.mxu0 0.0
  %3444 = vmatpush1.msra.mxu0 %v3427
  %3445 = vmatprep.subr.mxu0 0.0
  %3446 = vmatpush1.msra.mxu0 %v3428
  %3447 = vmatprep.subr.mxu0 0.0
  %3448 = vmatpush1.msra.mxu0 %v3429
  %3449 = vmatprep.subr.mxu0 0.0
  %3450 = vmatpush1.msra.mxu0 %v3430
  %3451 = vmatprep.subr.mxu0 0.0
  %3452 = vmatpush1.msra.mxu0 %v3431
  %3453 = vmatprep.subr.mxu0 0.0
  %3454 = vmatpush1.msra.mxu0 %v3432
  %3455 = vmatprep.subr.mxu0 0.0
  %3456 = vmatpush1.msra.mxu0 %v3433
  %3457 = vmatprep.subr.mxu0 0.0
  %3458 = vmatpush1.msra.mxu0 %v3434
  %3459 = vmatprep.subr.mxu0 0.0
  %3460 = vmatpush1.msra.mxu0 %v3435
  %3461 = vmatprep.subr.mxu0 0.0
  %3462 = vmatpush1.msra.mxu0 %v3436
  %3463 = vmatprep.subr.mxu0 0.0
  %3464 = vmatpush1.msra.mxu0 %v3437
  %3465 = vmatprep.subr.mxu0 0.0
  %3466 = vmatpush1.msra.mxu0 %v3438
  %3467 = vmatprep.subr.mxu0 0.0
  %3468 = vmatpush1.msra.mxu0 %v3439
  %3469 = vmatprep.subr.mxu0 0.0
  %3470 = vmatpush1.msra.mxu0 %v3440
  %3471 = vmatprep.subr.mxu0 0.0
  %3472 = vmatpush1.msra.mxu0 %v3441
  %3473 = vmatprep.subr.mxu0 0.0
  %3474 = vmatpush1.msra.mxu0 %v3442
  %3475 = vmatprep.subr.mxu0 0.0
  %3476 = vmatpush1.msra.mxu0 0.0
  %3477 = vmatprep.subr.mxu0 0.0
  %3478 = vmatpush1.msra.mxu0 0.0
  %3479 = vmatprep.subr.mxu0 0.0
  %3480 = vmatpush1.msra.mxu0 0.0
  %3481 = vmatprep.subr.mxu0 0.0
  %3482 = vmatpush1.msra.mxu0 0.0
  %3483 = vmatprep.subr.mxu0 0.0
  %3484 = vmatpush1.msra.mxu0 0.0
  %3485 = vmatprep.subr.mxu0 0.0
  %3486 = vmatpush1.msra.mxu0 0.0
  %3487 = vmatprep.subr.mxu0 0.0
  %3488 = vmatpush1.msra.mxu0 0.0
  %3489 = vmatprep.subr.mxu0 0.0
  %3490 = vmatpush1.msra.mxu0 0.0
  %3491 = vmatprep.subr.mxu0 0.0
  %3492 = vmatpush1.msra.mxu0 0.0
  %3493 = vmatprep.subr.mxu0 0.0
  %3494 = vmatpush1.msra.mxu0 0.0
  %3495 = vmatprep.subr.mxu0 0.0
  %3496 = vmatpush1.msra.mxu0 0.0
  %3497 = vmatprep.subr.mxu0 0.0
  %3498 = vmatpush1.msra.mxu0 0.0
  %3499 = vmatprep.subr.mxu0 0.0
  %3500 = vmatpush1.msra.mxu0 0.0
  %3501 = vmatprep.subr.mxu0 0.0
  %3502 = vmatpush1.msra.mxu0 0.0
  %3503 = vmatprep.subr.mxu0 0.0
  %3504 = vmatpush1.msra.mxu0 0.0
  %3505 = vmatprep.subr.mxu0 0.0
  %3506 = vmatpush1.msra.mxu0 0.0
  %3507 = vmatprep.mubr.f32.mxu0 0.0
  %3508 = vmatmul.mubr.f32.gmra.mrb[0].mxu0 %v3348
  %v3509 = vpop.f32.mrb[0].mxu0
  %v3510 = vadd.f32 0.0, %v3509
  %v3511 = vpop.f32.mrb[0].mxu0
  %3512 = vmatprep.mubr.f32.mxu0 0.0
  %3513 = vmatmul.mubr.f32.gmra.mrb[0].mxu0 %v3353
  %v3514 = vpop.f32.mrb[0].mxu0
  %v3515 = vadd.f32 0.0, %v3514
  %v3516 = vpop.f32.mrb[0].mxu0
  %3517 = vmatprep.mubr.f32.mxu0 0.0
  %3518 = vmatmul.mubr.f32.gmra.mrb[0].mxu0 %v3358
  %v3519 = vpop.f32.mrb[0].mxu0
  %v3520 = vadd.f32 0.0, %v3519
  %v3521 = vpop.f32.mrb[0].mxu0
  %3522 = vmatprep.mubr.f32.mxu0 0.0
  %3523 = vmatmul.mubr.f32.gmra.mrb[0].mxu0 %v3363
  %v3524 = vpop.f32.mrb[0].mxu0
  %v3525 = vadd.f32 0.0, %v3524
  %v3526 = vpop.f32.mrb[0].mxu0
  %3527 = vmatprep.mubr.f32.mxu0 0.0
  %3528 = vmatmul.mubr.f32.gmra.mrb[0].mxu0 %v3368
  %v3529 = vpop.f32.mrb[0].mxu0
  %v3530 = vadd.f32 0.0, %v3529
  %v3531 = vpop.f32.mrb[0].mxu0
  %3532 = vmatprep.mubr.f32.mxu0 0.0
  %3533 = vmatmul.mubr.f32.gmra.mrb[0].mxu0 %v3373
  %v3534 = vpop.f32.mrb[0].mxu0
  %v3535 = vadd.f32 0.0, %v3534
  %v3536 = vpop.f32.mrb[0].mxu0
  %3537 = vmatprep.mubr.f32.mxu0 0.0
  %3538 = vmatmul.mubr.f32.gmra.mrb[0].mxu0 %v3378
  %v3539 = vpop.f32.mrb[0].mxu0
  %v3540 = vadd.f32 0.0, %v3539
  %v3541 = vpop.f32.mrb[0].mxu0
  %3542 = vmatprep.mubr.f32.mxu0 0.0
  %3543 = vmatmul.mubr.f32.gmra.mrb[0].mxu0 %v3383
  %v3544 = vpop.f32.mrb[0].mxu0
  %v3545 = vadd.f32 0.0, %v3544
  %v3546 = vpop.f32.mrb[0].mxu0
  %3547 = vmatprep.mubr.f32.mxu0 0.0
  %3548 = vmatmul.mubr.f32.gmra.mrb[0].mxu0 %v3388
  %v3549 = vpop.f32.mrb[0].mxu0
  %v3550 = vadd.f32 0.0, %v3549
  %v3551 = vpop.f32.mrb[0].mxu0
  %3552 = vmatprep.mubr.f32.mxu0 0.0
  %3553 = vmatmul.mubr.f32.gmra.mrb[0].mxu0 %v3393
  %v3554 = vpop.f32.mrb[0].mxu0
  %v3555 = vadd.f32 0.0, %v3554
  %v3556 = vpop.f32.mrb[0].mxu0
  %3557 = vmatprep.mubr.f32.mxu0 0.0
  %3558 = vmatmul.mubr.f32.gmra.mrb[0].mxu0 %v3398
  %v3559 = vpop.f32.mrb[0].mxu0
  %v3560 = vadd.f32 0.0, %v3559
  %v3561 = vpop.f32.mrb[0].mxu0
  %3562 = vmatprep.mubr.f32.mxu0 0.0
  %3563 = vmatmul.mubr.f32.gmra.mrb[0].mxu0 %v3403
  %v3564 = vpop.f32.mrb[0].mxu0
  %v3565 = vadd.f32 0.0, %v3564
  %v3566 = vpop.f32.mrb[0].mxu0
  %3567 = vmatprep.mubr.f32.mxu0 0.0
  %3568 = vmatmul.mubr.f32.gmra.mrb[0].mxu0 %v3408
  %v3569 = vpop.f32.mrb[0].mxu0
  %v3570 = vadd.f32 0.0, %v3569
  %v3571 = vpop.f32.mrb[0].mxu0
  %3572 = vmatprep.mubr.f32.mxu0 0.0
  %3573 = vmatmul.mubr.f32.gmra.mrb[0].mxu0 %v3413
  %v3574 = vpop.f32.mrb[0].mxu0
  %v3575 = vadd.f32 0.0, %v3574
  %v3576 = vpop.f32.mrb[0].mxu0
  %3577 = vmatprep.mubr.f32.mxu0 0.0
  %3578 = vmatmul.mubr.f32.gmra.mrb[0].mxu0 %v3418
  %v3579 = vpop.f32.mrb[0].mxu0
  %v3580 = vadd.f32 0.0, %v3579
  %v3581 = vpop.f32.mrb[0].mxu0
  %3582 = vmatprep.mubr.f32.mxu0 0.0
  %3583 = vmatmul.mubr.f32.gmra.mrb[0].mxu0 %v3423
  %v3584 = vpop.f32.mrb[0].mxu0
  %v3585 = vadd.f32 0.0, %v3584
  %v3586 = vpop.f32.mrb[0].mxu0
  %3587 = vdwg.mxu0
  %v3588 = vadd.f32 %v3248, %v3510
  %v3589 = vadd.f32 %v3249, %v3515
  %v3590 = vadd.f32 %v3250, %v3520
  %v3591 = vadd.f32 %v3251, %v3525
  %v3592 = vadd.f32 %v3252, %v3530
  %v3593 = vadd.f32 %v3253, %v3535
  %v3594 = vadd.f32 %v3254, %v3540
  %v3595 = vadd.f32 %v3255, %v3545
  %v3596 = vadd.f32 %v3256, %v3550
  %v3597 = vadd.f32 %v3257, %v3555
  %v3598 = vadd.f32 %v3258, %v3560
  %v3599 = vadd.f32 %v3259, %v3565
  %v3600 = vadd.f32 %v3260, %v3570
  %v3601 = vadd.f32 %v3261, %v3575
  %v3602 = vadd.f32 %v3262, %v3580
  %v3603 = vadd.f32 %v3263, %v3585
  %s3604 = scalar_lea.vmem %s2, 1280
  %v3605 = vld [vmem:[%s3604] sm:$0xff]
  %v3606 = vld [vmem:[%s3604 + $0x8] sm:$0xff]
  %v3607 = vld [vmem:[%s3604 + $0x10] sm:$0xff]
  %v3608 = vld [vmem:[%s3604 + $0x18] sm:$0xff]
  %v3609 = vld [vmem:[%s3604 + $0x20] sm:$0xff]
  %v3610 = vld [vmem:[%s3604 + $0x28] sm:$0xff]
  %v3611 = vld [vmem:[%s3604 + $0x30] sm:$0xff]
  %v3612 = vld [vmem:[%s3604 + $0x38] sm:$0xff]
  %v3613 = vld [vmem:[%s3604 + $0x40] sm:$0xff]
  %v3614 = vld [vmem:[%s3604 + $0x48] sm:$0xff]
  %v3615 = vld [vmem:[%s3604 + $0x50] sm:$0xff]
  %v3616 = vld [vmem:[%s3604 + $0x58] sm:$0xff]
  %v3617 = vld [vmem:[%s3604 + $0x60] sm:$0xff]
  %v3618 = vld [vmem:[%s3604 + $0x68] sm:$0xff]
  %v3619 = vld [vmem:[%s3604 + $0x70] sm:$0xff]
  %v3620 = vld [vmem:[%s3604 + $0x78] sm:$0xff]
  %3621 = vmatprep.subr.mxu0 0.0
  %3622 = vmatpush1.msra.mxu0 %v222
  %3623 = vmatprep.subr.mxu0 0.0
  %3624 = vmatpush1.msra.mxu0 %v223
  %3625 = vmatprep.subr.mxu0 0.0
  %3626 = vmatpush1.msra.mxu0 %v224
  %3627 = vmatprep.subr.mxu0 0.0
  %3628 = vmatpush1.msra.mxu0 %v225
  %3629 = vmatprep.subr.mxu0 0.0
  %3630 = vmatpush1.msra.mxu0 %v226
  %3631 = vmatprep.subr.mxu0 0.0
  %3632 = vmatpush1.msra.mxu0 %v227
  %3633 = vmatprep.subr.mxu0 0.0
  %3634 = vmatpush1.msra.mxu0 %v228
  %3635 = vmatprep.subr.mxu0 0.0
  %3636 = vmatpush1.msra.mxu0 %v229
  %3637 = vmatprep.subr.mxu0 0.0
  %3638 = vmatpush1.msra.mxu0 %v230
  %3639 = vmatprep.subr.mxu0 0.0
  %3640 = vmatpush1.msra.mxu0 %v231
  %3641 = vmatprep.subr.mxu0 0.0
  %3642 = vmatpush1.msra.mxu0 %v232
  %3643 = vmatprep.subr.mxu0 0.0
  %3644 = vmatpush1.msra.mxu0 %v233
  %3645 = vmatprep.subr.mxu0 0.0
  %3646 = vmatpush1.msra.mxu0 %v234
  %3647 = vmatprep.subr.mxu0 0.0
  %3648 = vmatpush1.msra.mxu0 %v235
  %3649 = vmatprep.subr.mxu0 0.0
  %3650 = vmatpush1.msra.mxu0 %v236
  %3651 = vmatprep.subr.mxu0 0.0
  %3652 = vmatpush1.msra.mxu0 %v237
  %3653 = vmatprep.subr.mxu0 0.0
  %3654 = vmatpush1.msra.mxu0 0.0
  %3655 = vmatprep.subr.mxu0 0.0
  %3656 = vmatpush1.msra.mxu0 0.0
  %3657 = vmatprep.subr.mxu0 0.0
  %3658 = vmatpush1.msra.mxu0 0.0
  %3659 = vmatprep.subr.mxu0 0.0
  %3660 = vmatpush1.msra.mxu0 0.0
  %3661 = vmatprep.subr.mxu0 0.0
  %3662 = vmatpush1.msra.mxu0 0.0
  %3663 = vmatprep.subr.mxu0 0.0
  %3664 = vmatpush1.msra.mxu0 0.0
  %3665 = vmatprep.subr.mxu0 0.0
  %3666 = vmatpush1.msra.mxu0 0.0
  %3667 = vmatprep.subr.mxu0 0.0
  %3668 = vmatpush1.msra.mxu0 0.0
  %3669 = vmatprep.subr.mxu0 0.0
  %3670 = vmatpush1.msra.mxu0 0.0
  %3671 = vmatprep.subr.mxu0 0.0
  %3672 = vmatpush1.msra.mxu0 0.0
  %3673 = vmatprep.subr.mxu0 0.0
  %3674 = vmatpush1.msra.mxu0 0.0
  %3675 = vmatprep.subr.mxu0 0.0
  %3676 = vmatpush1.msra.mxu0 0.0
  %3677 = vmatprep.subr.mxu0 0.0
  %3678 = vmatpush1.msra.mxu0 0.0
  %3679 = vmatprep.subr.mxu0 0.0
  %3680 = vmatpush1.msra.mxu0 0.0
  %3681 = vmatprep.subr.mxu0 0.0
  %3682 = vmatpush1.msra.mxu0 0.0
  %3683 = vmatprep.subr.mxu0 0.0
  %3684 = vmatpush1.msra.mxu0 0.0
  %3685 = vmatprep.mubr.f32.mxu0 0.0
  %3686 = vmatmul.mubr.f32.gmra.mrb[0].mxu0 %v3605
  %v3687 = vpop.f32.mrb[0].mxu0
  %v3688 = vadd.f32 0.0, %v3687
  %v3689 = vpop.f32.mrb[0].mxu0
  %3690 = vmatprep.mubr.f32.mxu0 0.0
  %3691 = vmatmul.mubr.f32.gmra.mrb[0].mxu0 %v3606
  %v3692 = vpop.f32.mrb[0].mxu0
  %v3693 = vadd.f32 0.0, %v3692
  %v3694 = vpop.f32.mrb[0].mxu0
  %3695 = vmatprep.mubr.f32.mxu0 0.0
  %3696 = vmatmul.mubr.f32.gmra.mrb[0].mxu0 %v3607
  %v3697 = vpop.f32.mrb[0].mxu0
  %v3698 = vadd.f32 0.0, %v3697
  %v3699 = vpop.f32.mrb[0].mxu0
  %3700 = vmatprep.mubr.f32.mxu0 0.0
  %3701 = vmatmul.mubr.f32.gmra.mrb[0].mxu0 %v3608
  %v3702 = vpop.f32.mrb[0].mxu0
  %v3703 = vadd.f32 0.0, %v3702
  %v3704 = vpop.f32.mrb[0].mxu0
  %3705 = vmatprep.mubr.f32.mxu0 0.0
  %3706 = vmatmul.mubr.f32.gmra.mrb[0].mxu0 %v3609
  %v3707 = vpop.f32.mrb[0].mxu0
  %v3708 = vadd.f32 0.0, %v3707
  %v3709 = vpop.f32.mrb[0].mxu0
  %3710 = vmatprep.mubr.f32.mxu0 0.0
  %3711 = vmatmul.mubr.f32.gmra.mrb[0].mxu0 %v3610
  %v3712 = vpop.f32.mrb[0].mxu0
  %v3713 = vadd.f32 0.0, %v3712
  %v3714 = vpop.f32.mrb[0].mxu0
  %3715 = vmatprep.mubr.f32.mxu0 0.0
  %3716 = vmatmul.mubr.f32.gmra.mrb[0].mxu0 %v3611
  %v3717 = vpop.f32.mrb[0].mxu0
  %v3718 = vadd.f32 0.0, %v3717
  %v3719 = vpop.f32.mrb[0].mxu0
  %3720 = vmatprep.mubr.f32.mxu0 0.0
  %3721 = vmatmul.mubr.f32.gmra.mrb[0].mxu0 %v3612
  %v3722 = vpop.f32.mrb[0].mxu0
  %v3723 = vadd.f32 0.0, %v3722
  %v3724 = vpop.f32.mrb[0].mxu0
  %3725 = vmatprep.mubr.f32.mxu0 0.0
  %3726 = vmatmul.mubr.f32.gmra.mrb[0].mxu0 %v3613
  %v3727 = vpop.f32.mrb[0].mxu0
  %v3728 = vadd.f32 0.0, %v3727
  %v3729 = vpop.f32.mrb[0].mxu0
  %3730 = vmatprep.mubr.f32.mxu0 0.0
  %3731 = vmatmul.mubr.f32.gmra.mrb[0].mxu0 %v3614
  %v3732 = vpop.f32.mrb[0].mxu0
  %v3733 = vadd.f32 0.0, %v3732
  %v3734 = vpop.f32.mrb[0].mxu0
  %3735 = vmatprep.mubr.f32.mxu0 0.0
  %3736 = vmatmul.mubr.f32.gmra.mrb[0].mxu0 %v3615
  %v3737 = vpop.f32.mrb[0].mxu0
  %v3738 = vadd.f32 0.0, %v3737
  %v3739 = vpop.f32.mrb[0].mxu0
  %3740 = vmatprep.mubr.f32.mxu0 0.0
  %3741 = vmatmul.mubr.f32.gmra.mrb[0].mxu0 %v3616
  %v3742 = vpop.f32.mrb[0].mxu0
  %v3743 = vadd.f32 0.0, %v3742
  %v3744 = vpop.f32.mrb[0].mxu0
  %3745 = vmatprep.mubr.f32.mxu0 0.0
  %3746 = vmatmul.mubr.f32.gmra.mrb[0].mxu0 %v3617
  %v3747 = vpop.f32.mrb[0].mxu0
  %v3748 = vadd.f32 0.0, %v3747
  %v3749 = vpop.f32.mrb[0].mxu0
  %3750 = vmatprep.mubr.f32.mxu0 0.0
  %3751 = vmatmul.mubr.f32.gmra.mrb[0].mxu0 %v3618
  %v3752 = vpop.f32.mrb[0].mxu0
  %v3753 = vadd.f32 0.0, %v3752
  %v3754 = vpop.f32.mrb[0].mxu0
  %3755 = vmatprep.mubr.f32.mxu0 0.0
  %3756 = vmatmul.mubr.f32.gmra.mrb[0].mxu0 %v3619
  %v3757 = vpop.f32.mrb[0].mxu0
  %v3758 = vadd.f32 0.0, %v3757
  %v3759 = vpop.f32.mrb[0].mxu0
  %3760 = vmatprep.mubr.f32.mxu0 0.0
  %3761 = vmatmul.mubr.f32.gmra.mrb[0].mxu0 %v3620
  %v3762 = vpop.f32.mrb[0].mxu0
  %v3763 = vadd.f32 0.0, %v3762
  %v3764 = vpop.f32.mrb[0].mxu0
  %3765 = vdwg.mxu0
  %s3766 = scalar_lea.vmem %s3, 1280
  %v3767 = vld [vmem:[%s3766] sm:$0xff]
  %v3768 = vld [vmem:[%s3766 + $0x8] sm:$0xff]
  %v3769 = vld [vmem:[%s3766 + $0x10] sm:$0xff]
  %v3770 = vld [vmem:[%s3766 + $0x18] sm:$0xff]
  %v3771 = vld [vmem:[%s3766 + $0x20] sm:$0xff]
  %v3772 = vld [vmem:[%s3766 + $0x28] sm:$0xff]
  %v3773 = vld [vmem:[%s3766 + $0x30] sm:$0xff]
  %v3774 = vld [vmem:[%s3766 + $0x38] sm:$0xff]
  %v3775 = vld [vmem:[%s3766 + $0x40] sm:$0xff]
  %v3776 = vld [vmem:[%s3766 + $0x48] sm:$0xff]
  %v3777 = vld [vmem:[%s3766 + $0x50] sm:$0xff]
  %v3778 = vld [vmem:[%s3766 + $0x58] sm:$0xff]
  %v3779 = vld [vmem:[%s3766 + $0x60] sm:$0xff]
  %v3780 = vld [vmem:[%s3766 + $0x68] sm:$0xff]
  %v3781 = vld [vmem:[%s3766 + $0x70] sm:$0xff]
  %v3782 = vld [vmem:[%s3766 + $0x78] sm:$0xff]
  %3783 = vmatprep.subr.mxu0 0.0
  %3784 = vmatpush1.msra.mxu0 %v3767
  %3785 = vmatprep.subr.mxu0 0.0
  %3786 = vmatpush1.msra.mxu0 %v3768
  %3787 = vmatprep.subr.mxu0 0.0
  %3788 = vmatpush1.msra.mxu0 %v3769
  %3789 = vmatprep.subr.mxu0 0.0
  %3790 = vmatpush1.msra.mxu0 %v3770
  %3791 = vmatprep.subr.mxu0 0.0
  %3792 = vmatpush1.msra.mxu0 %v3771
  %3793 = vmatprep.subr.mxu0 0.0
  %3794 = vmatpush1.msra.mxu0 %v3772
  %3795 = vmatprep.subr.mxu0 0.0
  %3796 = vmatpush1.msra.mxu0 %v3773
  %3797 = vmatprep.subr.mxu0 0.0
  %3798 = vmatpush1.msra.mxu0 %v3774
  %3799 = vmatprep.subr.mxu0 0.0
  %3800 = vmatpush1.msra.mxu0 %v3775
  %3801 = vmatprep.subr.mxu0 0.0
  %3802 = vmatpush1.msra.mxu0 %v3776
  %3803 = vmatprep.subr.mxu0 0.0
  %3804 = vmatpush1.msra.mxu0 %v3777
  %3805 = vmatprep.subr.mxu0 0.0
  %3806 = vmatpush1.msra.mxu0 %v3778
  %3807 = vmatprep.subr.mxu0 0.0
  %3808 = vmatpush1.msra.mxu0 %v3779
  %3809 = vmatprep.subr.mxu0 0.0
  %3810 = vmatpush1.msra.mxu0 %v3780
  %3811 = vmatprep.subr.mxu0 0.0
  %3812 = vmatpush1.msra.mxu0 %v3781
  %3813 = vmatprep.subr.mxu0 0.0
  %3814 = vmatpush1.msra.mxu0 %v3782
  %3815 = vmatprep.subr.mxu0 0.0
  %3816 = vmatpush1.msra.mxu0 0.0
  %3817 = vmatprep.subr.mxu0 0.0
  %3818 = vmatpush1.msra.mxu0 0.0
  %3819 = vmatprep.subr.mxu0 0.0
  %3820 = vmatpush1.msra.mxu0 0.0
  %3821 = vmatprep.subr.mxu0 0.0
  %3822 = vmatpush1.msra.mxu0 0.0
  %3823 = vmatprep.subr.mxu0 0.0
  %3824 = vmatpush1.msra.mxu0 0.0
  %3825 = vmatprep.subr.mxu0 0.0
  %3826 = vmatpush1.msra.mxu0 0.0
  %3827 = vmatprep.subr.mxu0 0.0
  %3828 = vmatpush1.msra.mxu0 0.0
  %3829 = vmatprep.subr.mxu0 0.0
  %3830 = vmatpush1.msra.mxu0 0.0
  %3831 = vmatprep.subr.mxu0 0.0
  %3832 = vmatpush1.msra.mxu0 0.0
  %3833 = vmatprep.subr.mxu0 0.0
  %3834 = vmatpush1.msra.mxu0 0.0
  %3835 = vmatprep.subr.mxu0 0.0
  %3836 = vmatpush1.msra.mxu0 0.0
  %3837 = vmatprep.subr.mxu0 0.0
  %3838 = vmatpush1.msra.mxu0 0.0
  %3839 = vmatprep.subr.mxu0 0.0
  %3840 = vmatpush1.msra.mxu0 0.0
  %3841 = vmatprep.subr.mxu0 0.0
  %3842 = vmatpush1.msra.mxu0 0.0
  %3843 = vmatprep.subr.mxu0 0.0
  %3844 = vmatpush1.msra.mxu0 0.0
  %3845 = vmatprep.subr.mxu0 0.0
  %3846 = vmatpush1.msra.mxu0 0.0
  %3847 = vmatprep.mubr.f32.mxu0 0.0
  %3848 = vmatmul.mubr.f32.gmra.mrb[0].mxu0 %v3688
  %v3849 = vpop.f32.mrb[0].mxu0
  %v3850 = vadd.f32 0.0, %v3849
  %v3851 = vpop.f32.mrb[0].mxu0
  %3852 = vmatprep.mubr.f32.mxu0 0.0
  %3853 = vmatmul.mubr.f32.gmra.mrb[0].mxu0 %v3693
  %v3854 = vpop.f32.mrb[0].mxu0
  %v3855 = vadd.f32 0.0, %v3854
  %v3856 = vpop.f32.mrb[0].mxu0
  %3857 = vmatprep.mubr.f32.mxu0 0.0
  %3858 = vmatmul.mubr.f32.gmra.mrb[0].mxu0 %v3698
  %v3859 = vpop.f32.mrb[0].mxu0
  %v3860 = vadd.f32 0.0, %v3859
  %v3861 = vpop.f32.mrb[0].mxu0
  %3862 = vmatprep.mubr.f32.mxu0 0.0
  %3863 = vmatmul.mubr.f32.gmra.mrb[0].mxu0 %v3703
  %v3864 = vpop.f32.mrb[0].mxu0
  %v3865 = vadd.f32 0.0, %v3864
  %v3866 = vpop.f32.mrb[0].mxu0
  %3867 = vmatprep.mubr.f32.mxu0 0.0
  %3868 = vmatmul.mubr.f32.gmra.mrb[0].mxu0 %v3708
  %v3869 = vpop.f32.mrb[0].mxu0
  %v3870 = vadd.f32 0.0, %v3869
  %v3871 = vpop.f32.mrb[0].mxu0
  %3872 = vmatprep.mubr.f32.mxu0 0.0
  %3873 = vmatmul.mubr.f32.gmra.mrb[0].mxu0 %v3713
  %v3874 = vpop.f32.mrb[0].mxu0
  %v3875 = vadd.f32 0.0, %v3874
  %v3876 = vpop.f32.mrb[0].mxu0
  %3877 = vmatprep.mubr.f32.mxu0 0.0
  %3878 = vmatmul.mubr.f32.gmra.mrb[0].mxu0 %v3718
  %v3879 = vpop.f32.mrb[0].mxu0
  %v3880 = vadd.f32 0.0, %v3879
  %v3881 = vpop.f32.mrb[0].mxu0
  %3882 = vmatprep.mubr.f32.mxu0 0.0
  %3883 = vmatmul.mubr.f32.gmra.mrb[0].mxu0 %v3723
  %v3884 = vpop.f32.mrb[0].mxu0
  %v3885 = vadd.f32 0.0, %v3884
  %v3886 = vpop.f32.mrb[0].mxu0
  %3887 = vmatprep.mubr.f32.mxu0 0.0
  %3888 = vmatmul.mubr.f32.gmra.mrb[0].mxu0 %v3728
  %v3889 = vpop.f32.mrb[0].mxu0
  %v3890 = vadd.f32 0.0, %v3889
  %v3891 = vpop.f32.mrb[0].mxu0
  %3892 = vmatprep.mubr.f32.mxu0 0.0
  %3893 = vmatmul.mubr.f32.gmra.mrb[0].mxu0 %v3733
  %v3894 = vpop.f32.mrb[0].mxu0
  %v3895 = vadd.f32 0.0, %v3894
  %v3896 = vpop.f32.mrb[0].mxu0
  %3897 = vmatprep.mubr.f32.mxu0 0.0
  %3898 = vmatmul.mubr.f32.gmra.mrb[0].mxu0 %v3738
  %v3899 = vpop.f32.mrb[0].mxu0
  %v3900 = vadd.f32 0.0, %v3899
  %v3901 = vpop.f32.mrb[0].mxu0
  %3902 = vmatprep.mubr.f32.mxu0 0.0
  %3903 = vmatmul.mubr.f32.gmra.mrb[0].mxu0 %v3743
  %v3904 = vpop.f32.mrb[0].mxu0
  %v3905 = vadd.f32 0.0, %v3904
  %v3906 = vpop.f32.mrb[0].mxu0
  %3907 = vmatprep.mubr.f32.mxu0 0.0
  %3908 = vmatmul.mubr.f32.gmra.mrb[0].mxu0 %v3748
  %v3909 = vpop.f32.mrb[0].mxu0
  %v3910 = vadd.f32 0.0, %v3909
  %v3911 = vpop.f32.mrb[0].mxu0
  %3912 = vmatprep.mubr.f32.mxu0 0.0
  %3913 = vmatmul.mubr.f32.gmra.mrb[0].mxu0 %v3753
  %v3914 = vpop.f32.mrb[0].mxu0
  %v3915 = vadd.f32 0.0, %v3914
  %v3916 = vpop.f32.mrb[0].mxu0
  %3917 = vmatprep.mubr.f32.mxu0 0.0
  %3918 = vmatmul.mubr.f32.gmra.mrb[0].mxu0 %v3758
  %v3919 = vpop.f32.mrb[0].mxu0
  %v3920 = vadd.f32 0.0, %v3919
  %v3921 = vpop.f32.mrb[0].mxu0
  %3922 = vmatprep.mubr.f32.mxu0 0.0
  %3923 = vmatmul.mubr.f32.gmra.mrb[0].mxu0 %v3763
  %v3924 = vpop.f32.mrb[0].mxu0
  %v3925 = vadd.f32 0.0, %v3924
  %v3926 = vpop.f32.mrb[0].mxu0
  %3927 = vdwg.mxu0
  %v3928 = vadd.f32 %v3588, %v3850
  %v3929 = vadd.f32 %v3589, %v3855
  %v3930 = vadd.f32 %v3590, %v3860
  %v3931 = vadd.f32 %v3591, %v3865
  %v3932 = vadd.f32 %v3592, %v3870
  %v3933 = vadd.f32 %v3593, %v3875
  %v3934 = vadd.f32 %v3594, %v3880
  %v3935 = vadd.f32 %v3595, %v3885
  %v3936 = vadd.f32 %v3596, %v3890
  %v3937 = vadd.f32 %v3597, %v3895
  %v3938 = vadd.f32 %v3598, %v3900
  %v3939 = vadd.f32 %v3599, %v3905
  %v3940 = vadd.f32 %v3600, %v3910
  %v3941 = vadd.f32 %v3601, %v3915
  %v3942 = vadd.f32 %v3602, %v3920
  %v3943 = vadd.f32 %v3603, %v3925
  %s3944 = scalar_lea.vmem %s2, 1408
  %v3945 = vld [vmem:[%s3944] sm:$0xff]
  %v3946 = vld [vmem:[%s3944 + $0x8] sm:$0xff]
  %v3947 = vld [vmem:[%s3944 + $0x10] sm:$0xff]
  %v3948 = vld [vmem:[%s3944 + $0x18] sm:$0xff]
  %v3949 = vld [vmem:[%s3944 + $0x20] sm:$0xff]
  %v3950 = vld [vmem:[%s3944 + $0x28] sm:$0xff]
  %v3951 = vld [vmem:[%s3944 + $0x30] sm:$0xff]
  %v3952 = vld [vmem:[%s3944 + $0x38] sm:$0xff]
  %v3953 = vld [vmem:[%s3944 + $0x40] sm:$0xff]
  %v3954 = vld [vmem:[%s3944 + $0x48] sm:$0xff]
  %v3955 = vld [vmem:[%s3944 + $0x50] sm:$0xff]
  %v3956 = vld [vmem:[%s3944 + $0x58] sm:$0xff]
  %v3957 = vld [vmem:[%s3944 + $0x60] sm:$0xff]
  %v3958 = vld [vmem:[%s3944 + $0x68] sm:$0xff]
  %v3959 = vld [vmem:[%s3944 + $0x70] sm:$0xff]
  %v3960 = vld [vmem:[%s3944 + $0x78] sm:$0xff]
  %3961 = vmatprep.subr.mxu0 0.0
  %3962 = vmatpush1.msra.mxu0 %v222
  %3963 = vmatprep.subr.mxu0 0.0
  %3964 = vmatpush1.msra.mxu0 %v223
  %3965 = vmatprep.subr.mxu0 0.0
  %3966 = vmatpush1.msra.mxu0 %v224
  %3967 = vmatprep.subr.mxu0 0.0
  %3968 = vmatpush1.msra.mxu0 %v225
  %3969 = vmatprep.subr.mxu0 0.0
  %3970 = vmatpush1.msra.mxu0 %v226
  %3971 = vmatprep.subr.mxu0 0.0
  %3972 = vmatpush1.msra.mxu0 %v227
  %3973 = vmatprep.subr.mxu0 0.0
  %3974 = vmatpush1.msra.mxu0 %v228
  %3975 = vmatprep.subr.mxu0 0.0
  %3976 = vmatpush1.msra.mxu0 %v229
  %3977 = vmatprep.subr.mxu0 0.0
  %3978 = vmatpush1.msra.mxu0 %v230
  %3979 = vmatprep.subr.mxu0 0.0
  %3980 = vmatpush1.msra.mxu0 %v231
  %3981 = vmatprep.subr.mxu0 0.0
  %3982 = vmatpush1.msra.mxu0 %v232
  %3983 = vmatprep.subr.mxu0 0.0
  %3984 = vmatpush1.msra.mxu0 %v233
  %3985 = vmatprep.subr.mxu0 0.0
  %3986 = vmatpush1.msra.mxu0 %v234
  %3987 = vmatprep.subr.mxu0 0.0
  %3988 = vmatpush1.msra.mxu0 %v235
  %3989 = vmatprep.subr.mxu0 0.0
  %3990 = vmatpush1.msra.mxu0 %v236
  %3991 = vmatprep.subr.mxu0 0.0
  %3992 = vmatpush1.msra.mxu0 %v237
  %3993 = vmatprep.subr.mxu0 0.0
  %3994 = vmatpush1.msra.mxu0 0.0
  %3995 = vmatprep.subr.mxu0 0.0
  %3996 = vmatpush1.msra.mxu0 0.0
  %3997 = vmatprep.subr.mxu0 0.0
  %3998 = vmatpush1.msra.mxu0 0.0
  %3999 = vmatprep.subr.mxu0 0.0
  %4000 = vmatpush1.msra.mxu0 0.0
  %4001 = vmatprep.subr.mxu0 0.0
  %4002 = vmatpush1.msra.mxu0 0.0
  %4003 = vmatprep.subr.mxu0 0.0
  %4004 = vmatpush1.msra.mxu0 0.0
  %4005 = vmatprep.subr.mxu0 0.0
  %4006 = vmatpush1.msra.mxu0 0.0
  %4007 = vmatprep.subr.mxu0 0.0
  %4008 = vmatpush1.msra.mxu0 0.0
  %4009 = vmatprep.subr.mxu0 0.0
  %4010 = vmatpush1.msra.mxu0 0.0
  %4011 = vmatprep.subr.mxu0 0.0
  %4012 = vmatpush1.msra.mxu0 0.0
  %4013 = vmatprep.subr.mxu0 0.0
  %4014 = vmatpush1.msra.mxu0 0.0
  %4015 = vmatprep.subr.mxu0 0.0
  %4016 = vmatpush1.msra.mxu0 0.0
  %4017 = vmatprep.subr.mxu0 0.0
  %4018 = vmatpush1.msra.mxu0 0.0
  %4019 = vmatprep.subr.mxu0 0.0
  %4020 = vmatpush1.msra.mxu0 0.0
  %4021 = vmatprep.subr.mxu0 0.0
  %4022 = vmatpush1.msra.mxu0 0.0
  %4023 = vmatprep.subr.mxu0 0.0
  %4024 = vmatpush1.msra.mxu0 0.0
  %4025 = vmatprep.mubr.f32.mxu0 0.0
  %4026 = vmatmul.mubr.f32.gmra.mrb[0].mxu0 %v3945
  %v4027 = vpop.f32.mrb[0].mxu0
  %v4028 = vadd.f32 0.0, %v4027
  %v4029 = vpop.f32.mrb[0].mxu0
  %4030 = vmatprep.mubr.f32.mxu0 0.0
  %4031 = vmatmul.mubr.f32.gmra.mrb[0].mxu0 %v3946
  %v4032 = vpop.f32.mrb[0].mxu0
  %v4033 = vadd.f32 0.0, %v4032
  %v4034 = vpop.f32.mrb[0].mxu0
  %4035 = vmatprep.mubr.f32.mxu0 0.0
  %4036 = vmatmul.mubr.f32.gmra.mrb[0].mxu0 %v3947
  %v4037 = vpop.f32.mrb[0].mxu0
  %v4038 = vadd.f32 0.0, %v4037
  %v4039 = vpop.f32.mrb[0].mxu0
  %4040 = vmatprep.mubr.f32.mxu0 0.0
  %4041 = vmatmul.mubr.f32.gmra.mrb[0].mxu0 %v3948
  %v4042 = vpop.f32.mrb[0].mxu0
  %v4043 = vadd.f32 0.0, %v4042
  %v4044 = vpop.f32.mrb[0].mxu0
  %4045 = vmatprep.mubr.f32.mxu0 0.0
  %4046 = vmatmul.mubr.f32.gmra.mrb[0].mxu0 %v3949
  %v4047 = vpop.f32.mrb[0].mxu0
  %v4048 = vadd.f32 0.0, %v4047
  %v4049 = vpop.f32.mrb[0].mxu0
  %4050 = vmatprep.mubr.f32.mxu0 0.0
  %4051 = vmatmul.mubr.f32.gmra.mrb[0].mxu0 %v3950
  %v4052 = vpop.f32.mrb[0].mxu0
  %v4053 = vadd.f32 0.0, %v4052
  %v4054 = vpop.f32.mrb[0].mxu0
  %4055 = vmatprep.mubr.f32.mxu0 0.0
  %4056 = vmatmul.mubr.f32.gmra.mrb[0].mxu0 %v3951
  %v4057 = vpop.f32.mrb[0].mxu0
  %v4058 = vadd.f32 0.0, %v4057
  %v4059 = vpop.f32.mrb[0].mxu0
  %4060 = vmatprep.mubr.f32.mxu0 0.0
  %4061 = vmatmul.mubr.f32.gmra.mrb[0].mxu0 %v3952
  %v4062 = vpop.f32.mrb[0].mxu0
  %v4063 = vadd.f32 0.0, %v4062
  %v4064 = vpop.f32.mrb[0].mxu0
  %4065 = vmatprep.mubr.f32.mxu0 0.0
  %4066 = vmatmul.mubr.f32.gmra.mrb[0].mxu0 %v3953
  %v4067 = vpop.f32.mrb[0].mxu0
  %v4068 = vadd.f32 0.0, %v4067
  %v4069 = vpop.f32.mrb[0].mxu0
  %4070 = vmatprep.mubr.f32.mxu0 0.0
  %4071 = vmatmul.mubr.f32.gmra.mrb[0].mxu0 %v3954
  %v4072 = vpop.f32.mrb[0].mxu0
  %v4073 = vadd.f32 0.0, %v4072
  %v4074 = vpop.f32.mrb[0].mxu0
  %4075 = vmatprep.mubr.f32.mxu0 0.0
  %4076 = vmatmul.mubr.f32.gmra.mrb[0].mxu0 %v3955
  %v4077 = vpop.f32.mrb[0].mxu0
  %v4078 = vadd.f32 0.0, %v4077
  %v4079 = vpop.f32.mrb[0].mxu0
  %4080 = vmatprep.mubr.f32.mxu0 0.0
  %4081 = vmatmul.mubr.f32.gmra.mrb[0].mxu0 %v3956
  %v4082 = vpop.f32.mrb[0].mxu0
  %v4083 = vadd.f32 0.0, %v4082
  %v4084 = vpop.f32.mrb[0].mxu0
  %4085 = vmatprep.mubr.f32.mxu0 0.0
  %4086 = vmatmul.mubr.f32.gmra.mrb[0].mxu0 %v3957
  %v4087 = vpop.f32.mrb[0].mxu0
  %v4088 = vadd.f32 0.0, %v4087
  %v4089 = vpop.f32.mrb[0].mxu0
  %4090 = vmatprep.mubr.f32.mxu0 0.0
  %4091 = vmatmul.mubr.f32.gmra.mrb[0].mxu0 %v3958
  %v4092 = vpop.f32.mrb[0].mxu0
  %v4093 = vadd.f32 0.0, %v4092
  %v4094 = vpop.f32.mrb[0].mxu0
  %4095 = vmatprep.mubr.f32.mxu0 0.0
  %4096 = vmatmul.mubr.f32.gmra.mrb[0].mxu0 %v3959
  %v4097 = vpop.f32.mrb[0].mxu0
  %v4098 = vadd.f32 0.0, %v4097
  %v4099 = vpop.f32.mrb[0].mxu0
  %4100 = vmatprep.mubr.f32.mxu0 0.0
  %4101 = vmatmul.mubr.f32.gmra.mrb[0].mxu0 %v3960
  %v4102 = vpop.f32.mrb[0].mxu0
  %v4103 = vadd.f32 0.0, %v4102
  %v4104 = vpop.f32.mrb[0].mxu0
  %4105 = vdwg.mxu0
  %s4106 = scalar_lea.vmem %s3, 1408
  %v4107 = vld [vmem:[%s4106] sm:$0xff]
  %v4108 = vld [vmem:[%s4106 + $0x8] sm:$0xff]
  %v4109 = vld [vmem:[%s4106 + $0x10] sm:$0xff]
  %v4110 = vld [vmem:[%s4106 + $0x18] sm:$0xff]
  %v4111 = vld [vmem:[%s4106 + $0x20] sm:$0xff]
  %v4112 = vld [vmem:[%s4106 + $0x28] sm:$0xff]
  %v4113 = vld [vmem:[%s4106 + $0x30] sm:$0xff]
  %v4114 = vld [vmem:[%s4106 + $0x38] sm:$0xff]
  %v4115 = vld [vmem:[%s4106 + $0x40] sm:$0xff]
  %v4116 = vld [vmem:[%s4106 + $0x48] sm:$0xff]
  %v4117 = vld [vmem:[%s4106 + $0x50] sm:$0xff]
  %v4118 = vld [vmem:[%s4106 + $0x58] sm:$0xff]
  %v4119 = vld [vmem:[%s4106 + $0x60] sm:$0xff]
  %v4120 = vld [vmem:[%s4106 + $0x68] sm:$0xff]
  %v4121 = vld [vmem:[%s4106 + $0x70] sm:$0xff]
  %v4122 = vld [vmem:[%s4106 + $0x78] sm:$0xff]
  %4123 = vmatprep.subr.mxu0 0.0
  %4124 = vmatpush1.msra.mxu0 %v4107
  %4125 = vmatprep.subr.mxu0 0.0
  %4126 = vmatpush1.msra.mxu0 %v4108
  %4127 = vmatprep.subr.mxu0 0.0
  %4128 = vmatpush1.msra.mxu0 %v4109
  %4129 = vmatprep.subr.mxu0 0.0
  %4130 = vmatpush1.msra.mxu0 %v4110
  %4131 = vmatprep.subr.mxu0 0.0
  %4132 = vmatpush1.msra.mxu0 %v4111
  %4133 = vmatprep.subr.mxu0 0.0
  %4134 = vmatpush1.msra.mxu0 %v4112
  %4135 = vmatprep.subr.mxu0 0.0
  %4136 = vmatpush1.msra.mxu0 %v4113
  %4137 = vmatprep.subr.mxu0 0.0
  %4138 = vmatpush1.msra.mxu0 %v4114
  %4139 = vmatprep.subr.mxu0 0.0
  %4140 = vmatpush1.msra.mxu0 %v4115
  %4141 = vmatprep.subr.mxu0 0.0
  %4142 = vmatpush1.msra.mxu0 %v4116
  %4143 = vmatprep.subr.mxu0 0.0
  %4144 = vmatpush1.msra.mxu0 %v4117
  %4145 = vmatprep.subr.mxu0 0.0
  %4146 = vmatpush1.msra.mxu0 %v4118
  %4147 = vmatprep.subr.mxu0 0.0
  %4148 = vmatpush1.msra.mxu0 %v4119
  %4149 = vmatprep.subr.mxu0 0.0
  %4150 = vmatpush1.msra.mxu0 %v4120
  %4151 = vmatprep.subr.mxu0 0.0
  %4152 = vmatpush1.msra.mxu0 %v4121
  %4153 = vmatprep.subr.mxu0 0.0
  %4154 = vmatpush1.msra.mxu0 %v4122
  %4155 = vmatprep.subr.mxu0 0.0
  %4156 = vmatpush1.msra.mxu0 0.0
  %4157 = vmatprep.subr.mxu0 0.0
  %4158 = vmatpush1.msra.mxu0 0.0
  %4159 = vmatprep.subr.mxu0 0.0
  %4160 = vmatpush1.msra.mxu0 0.0
  %4161 = vmatprep.subr.mxu0 0.0
  %4162 = vmatpush1.msra.mxu0 0.0
  %4163 = vmatprep.subr.mxu0 0.0
  %4164 = vmatpush1.msra.mxu0 0.0
  %4165 = vmatprep.subr.mxu0 0.0
  %4166 = vmatpush1.msra.mxu0 0.0
  %4167 = vmatprep.subr.mxu0 0.0
  %4168 = vmatpush1.msra.mxu0 0.0
  %4169 = vmatprep.subr.mxu0 0.0
  %4170 = vmatpush1.msra.mxu0 0.0
  %4171 = vmatprep.subr.mxu0 0.0
  %4172 = vmatpush1.msra.mxu0 0.0
  %4173 = vmatprep.subr.mxu0 0.0
  %4174 = vmatpush1.msra.mxu0 0.0
  %4175 = vmatprep.subr.mxu0 0.0
  %4176 = vmatpush1.msra.mxu0 0.0
  %4177 = vmatprep.subr.mxu0 0.0
  %4178 = vmatpush1.msra.mxu0 0.0
  %4179 = vmatprep.subr.mxu0 0.0
  %4180 = vmatpush1.msra.mxu0 0.0
  %4181 = vmatprep.subr.mxu0 0.0
  %4182 = vmatpush1.msra.mxu0 0.0
  %4183 = vmatprep.subr.mxu0 0.0
  %4184 = vmatpush1.msra.mxu0 0.0
  %4185 = vmatprep.subr.mxu0 0.0
  %4186 = vmatpush1.msra.mxu0 0.0
  %4187 = vmatprep.mubr.f32.mxu0 0.0
  %4188 = vmatmul.mubr.f32.gmra.mrb[0].mxu0 %v4028
  %v4189 = vpop.f32.mrb[0].mxu0
  %v4190 = vadd.f32 0.0, %v4189
  %v4191 = vpop.f32.mrb[0].mxu0
  %4192 = vmatprep.mubr.f32.mxu0 0.0
  %4193 = vmatmul.mubr.f32.gmra.mrb[0].mxu0 %v4033
  %v4194 = vpop.f32.mrb[0].mxu0
  %v4195 = vadd.f32 0.0, %v4194
  %v4196 = vpop.f32.mrb[0].mxu0
  %4197 = vmatprep.mubr.f32.mxu0 0.0
  %4198 = vmatmul.mubr.f32.gmra.mrb[0].mxu0 %v4038
  %v4199 = vpop.f32.mrb[0].mxu0
  %v4200 = vadd.f32 0.0, %v4199
  %v4201 = vpop.f32.mrb[0].mxu0
  %4202 = vmatprep.mubr.f32.mxu0 0.0
  %4203 = vmatmul.mubr.f32.gmra.mrb[0].mxu0 %v4043
  %v4204 = vpop.f32.mrb[0].mxu0
  %v4205 = vadd.f32 0.0, %v4204
  %v4206 = vpop.f32.mrb[0].mxu0
  %4207 = vmatprep.mubr.f32.mxu0 0.0
  %4208 = vmatmul.mubr.f32.gmra.mrb[0].mxu0 %v4048
  %v4209 = vpop.f32.mrb[0].mxu0
  %v4210 = vadd.f32 0.0, %v4209
  %v4211 = vpop.f32.mrb[0].mxu0
  %4212 = vmatprep.mubr.f32.mxu0 0.0
  %4213 = vmatmul.mubr.f32.gmra.mrb[0].mxu0 %v4053
  %v4214 = vpop.f32.mrb[0].mxu0
  %v4215 = vadd.f32 0.0, %v4214
  %v4216 = vpop.f32.mrb[0].mxu0
  %4217 = vmatprep.mubr.f32.mxu0 0.0
  %4218 = vmatmul.mubr.f32.gmra.mrb[0].mxu0 %v4058
  %v4219 = vpop.f32.mrb[0].mxu0
  %v4220 = vadd.f32 0.0, %v4219
  %v4221 = vpop.f32.mrb[0].mxu0
  %4222 = vmatprep.mubr.f32.mxu0 0.0
  %4223 = vmatmul.mubr.f32.gmra.mrb[0].mxu0 %v4063
  %v4224 = vpop.f32.mrb[0].mxu0
  %v4225 = vadd.f32 0.0, %v4224
  %v4226 = vpop.f32.mrb[0].mxu0
  %4227 = vmatprep.mubr.f32.mxu0 0.0
  %4228 = vmatmul.mubr.f32.gmra.mrb[0].mxu0 %v4068
  %v4229 = vpop.f32.mrb[0].mxu0
  %v4230 = vadd.f32 0.0, %v4229
  %v4231 = vpop.f32.mrb[0].mxu0
  %4232 = vmatprep.mubr.f32.mxu0 0.0
  %4233 = vmatmul.mubr.f32.gmra.mrb[0].mxu0 %v4073
  %v4234 = vpop.f32.mrb[0].mxu0
  %v4235 = vadd.f32 0.0, %v4234
  %v4236 = vpop.f32.mrb[0].mxu0
  %4237 = vmatprep.mubr.f32.mxu0 0.0
  %4238 = vmatmul.mubr.f32.gmra.mrb[0].mxu0 %v4078
  %v4239 = vpop.f32.mrb[0].mxu0
  %v4240 = vadd.f32 0.0, %v4239
  %v4241 = vpop.f32.mrb[0].mxu0
  %4242 = vmatprep.mubr.f32.mxu0 0.0
  %4243 = vmatmul.mubr.f32.gmra.mrb[0].mxu0 %v4083
  %v4244 = vpop.f32.mrb[0].mxu0
  %v4245 = vadd.f32 0.0, %v4244
  %v4246 = vpop.f32.mrb[0].mxu0
  %4247 = vmatprep.mubr.f32.mxu0 0.0
  %4248 = vmatmul.mubr.f32.gmra.mrb[0].mxu0 %v4088
  %v4249 = vpop.f32.mrb[0].mxu0
  %v4250 = vadd.f32 0.0, %v4249
  %v4251 = vpop.f32.mrb[0].mxu0
  %4252 = vmatprep.mubr.f32.mxu0 0.0
  %4253 = vmatmul.mubr.f32.gmra.mrb[0].mxu0 %v4093
  %v4254 = vpop.f32.mrb[0].mxu0
  %v4255 = vadd.f32 0.0, %v4254
  %v4256 = vpop.f32.mrb[0].mxu0
  %4257 = vmatprep.mubr.f32.mxu0 0.0
  %4258 = vmatmul.mubr.f32.gmra.mrb[0].mxu0 %v4098
  %v4259 = vpop.f32.mrb[0].mxu0
  %v4260 = vadd.f32 0.0, %v4259
  %v4261 = vpop.f32.mrb[0].mxu0
  %4262 = vmatprep.mubr.f32.mxu0 0.0
  %4263 = vmatmul.mubr.f32.gmra.mrb[0].mxu0 %v4103
  %v4264 = vpop.f32.mrb[0].mxu0
  %v4265 = vadd.f32 0.0, %v4264
  %v4266 = vpop.f32.mrb[0].mxu0
  %4267 = vdwg.mxu0
  %v4268 = vadd.f32 %v3928, %v4190
  %v4269 = vadd.f32 %v3929, %v4195
  %v4270 = vadd.f32 %v3930, %v4200
  %v4271 = vadd.f32 %v3931, %v4205
  %v4272 = vadd.f32 %v3932, %v4210
  %v4273 = vadd.f32 %v3933, %v4215
  %v4274 = vadd.f32 %v3934, %v4220
  %v4275 = vadd.f32 %v3935, %v4225
  %v4276 = vadd.f32 %v3936, %v4230
  %v4277 = vadd.f32 %v3937, %v4235
  %v4278 = vadd.f32 %v3938, %v4240
  %v4279 = vadd.f32 %v3939, %v4245
  %v4280 = vadd.f32 %v3940, %v4250
  %v4281 = vadd.f32 %v3941, %v4255
  %v4282 = vadd.f32 %v3942, %v4260
  %v4283 = vadd.f32 %v3943, %v4265
  %s4284 = scalar_lea.vmem %s2, 1536
  %v4285 = vld [vmem:[%s4284] sm:$0xff]
  %v4286 = vld [vmem:[%s4284 + $0x8] sm:$0xff]
  %v4287 = vld [vmem:[%s4284 + $0x10] sm:$0xff]
  %v4288 = vld [vmem:[%s4284 + $0x18] sm:$0xff]
  %v4289 = vld [vmem:[%s4284 + $0x20] sm:$0xff]
  %v4290 = vld [vmem:[%s4284 + $0x28] sm:$0xff]
  %v4291 = vld [vmem:[%s4284 + $0x30] sm:$0xff]
  %v4292 = vld [vmem:[%s4284 + $0x38] sm:$0xff]
  %v4293 = vld [vmem:[%s4284 + $0x40] sm:$0xff]
  %v4294 = vld [vmem:[%s4284 + $0x48] sm:$0xff]
  %v4295 = vld [vmem:[%s4284 + $0x50] sm:$0xff]
  %v4296 = vld [vmem:[%s4284 + $0x58] sm:$0xff]
  %v4297 = vld [vmem:[%s4284 + $0x60] sm:$0xff]
  %v4298 = vld [vmem:[%s4284 + $0x68] sm:$0xff]
  %v4299 = vld [vmem:[%s4284 + $0x70] sm:$0xff]
  %v4300 = vld [vmem:[%s4284 + $0x78] sm:$0xff]
  %4301 = vmatprep.subr.mxu0 0.0
  %4302 = vmatpush1.msra.mxu0 %v222
  %4303 = vmatprep.subr.mxu0 0.0
  %4304 = vmatpush1.msra.mxu0 %v223
  %4305 = vmatprep.subr.mxu0 0.0
  %4306 = vmatpush1.msra.mxu0 %v224
  %4307 = vmatprep.subr.mxu0 0.0
  %4308 = vmatpush1.msra.mxu0 %v225
  %4309 = vmatprep.subr.mxu0 0.0
  %4310 = vmatpush1.msra.mxu0 %v226
  %4311 = vmatprep.subr.mxu0 0.0
  %4312 = vmatpush1.msra.mxu0 %v227
  %4313 = vmatprep.subr.mxu0 0.0
  %4314 = vmatpush1.msra.mxu0 %v228
  %4315 = vmatprep.subr.mxu0 0.0
  %4316 = vmatpush1.msra.mxu0 %v229
  %4317 = vmatprep.subr.mxu0 0.0
  %4318 = vmatpush1.msra.mxu0 %v230
  %4319 = vmatprep.subr.mxu0 0.0
  %4320 = vmatpush1.msra.mxu0 %v231
  %4321 = vmatprep.subr.mxu0 0.0
  %4322 = vmatpush1.msra.mxu0 %v232
  %4323 = vmatprep.subr.mxu0 0.0
  %4324 = vmatpush1.msra.mxu0 %v233
  %4325 = vmatprep.subr.mxu0 0.0
  %4326 = vmatpush1.msra.mxu0 %v234
  %4327 = vmatprep.subr.mxu0 0.0
  %4328 = vmatpush1.msra.mxu0 %v235
  %4329 = vmatprep.subr.mxu0 0.0
  %4330 = vmatpush1.msra.mxu0 %v236
  %4331 = vmatprep.subr.mxu0 0.0
  %4332 = vmatpush1.msra.mxu0 %v237
  %4333 = vmatprep.subr.mxu0 0.0
  %4334 = vmatpush1.msra.mxu0 0.0
  %4335 = vmatprep.subr.mxu0 0.0
  %4336 = vmatpush1.msra.mxu0 0.0
  %4337 = vmatprep.subr.mxu0 0.0
  %4338 = vmatpush1.msra.mxu0 0.0
  %4339 = vmatprep.subr.mxu0 0.0
  %4340 = vmatpush1.msra.mxu0 0.0
  %4341 = vmatprep.subr.mxu0 0.0
  %4342 = vmatpush1.msra.mxu0 0.0
  %4343 = vmatprep.subr.mxu0 0.0
  %4344 = vmatpush1.msra.mxu0 0.0
  %4345 = vmatprep.subr.mxu0 0.0
  %4346 = vmatpush1.msra.mxu0 0.0
  %4347 = vmatprep.subr.mxu0 0.0
  %4348 = vmatpush1.msra.mxu0 0.0
  %4349 = vmatprep.subr.mxu0 0.0
  %4350 = vmatpush1.msra.mxu0 0.0
  %4351 = vmatprep.subr.mxu0 0.0
  %4352 = vmatpush1.msra.mxu0 0.0
  %4353 = vmatprep.subr.mxu0 0.0
  %4354 = vmatpush1.msra.mxu0 0.0
  %4355 = vmatprep.subr.mxu0 0.0
  %4356 = vmatpush1.msra.mxu0 0.0
  %4357 = vmatprep.subr.mxu0 0.0
  %4358 = vmatpush1.msra.mxu0 0.0
  %4359 = vmatprep.subr.mxu0 0.0
  %4360 = vmatpush1.msra.mxu0 0.0
  %4361 = vmatprep.subr.mxu0 0.0
  %4362 = vmatpush1.msra.mxu0 0.0
  %4363 = vmatprep.subr.mxu0 0.0
  %4364 = vmatpush1.msra.mxu0 0.0
  %4365 = vmatprep.mubr.f32.mxu0 0.0
  %4366 = vmatmul.mubr.f32.gmra.mrb[0].mxu0 %v4285
  %v4367 = vpop.f32.mrb[0].mxu0
  %v4368 = vadd.f32 0.0, %v4367
  %v4369 = vpop.f32.mrb[0].mxu0
  %4370 = vmatprep.mubr.f32.mxu0 0.0
  %4371 = vmatmul.mubr.f32.gmra.mrb[0].mxu0 %v4286
  %v4372 = vpop.f32.mrb[0].mxu0
  %v4373 = vadd.f32 0.0, %v4372
  %v4374 = vpop.f32.mrb[0].mxu0
  %4375 = vmatprep.mubr.f32.mxu0 0.0
  %4376 = vmatmul.mubr.f32.gmra.mrb[0].mxu0 %v4287
  %v4377 = vpop.f32.mrb[0].mxu0
  %v4378 = vadd.f32 0.0, %v4377
  %v4379 = vpop.f32.mrb[0].mxu0
  %4380 = vmatprep.mubr.f32.mxu0 0.0
  %4381 = vmatmul.mubr.f32.gmra.mrb[0].mxu0 %v4288
  %v4382 = vpop.f32.mrb[0].mxu0
  %v4383 = vadd.f32 0.0, %v4382
  %v4384 = vpop.f32.mrb[0].mxu0
  %4385 = vmatprep.mubr.f32.mxu0 0.0
  %4386 = vmatmul.mubr.f32.gmra.mrb[0].mxu0 %v4289
  %v4387 = vpop.f32.mrb[0].mxu0
  %v4388 = vadd.f32 0.0, %v4387
  %v4389 = vpop.f32.mrb[0].mxu0
  %4390 = vmatprep.mubr.f32.mxu0 0.0
  %4391 = vmatmul.mubr.f32.gmra.mrb[0].mxu0 %v4290
  %v4392 = vpop.f32.mrb[0].mxu0
  %v4393 = vadd.f32 0.0, %v4392
  %v4394 = vpop.f32.mrb[0].mxu0
  %4395 = vmatprep.mubr.f32.mxu0 0.0
  %4396 = vmatmul.mubr.f32.gmra.mrb[0].mxu0 %v4291
  %v4397 = vpop.f32.mrb[0].mxu0
  %v4398 = vadd.f32 0.0, %v4397
  %v4399 = vpop.f32.mrb[0].mxu0
  %4400 = vmatprep.mubr.f32.mxu0 0.0
  %4401 = vmatmul.mubr.f32.gmra.mrb[0].mxu0 %v4292
  %v4402 = vpop.f32.mrb[0].mxu0
  %v4403 = vadd.f32 0.0, %v4402
  %v4404 = vpop.f32.mrb[0].mxu0
  %4405 = vmatprep.mubr.f32.mxu0 0.0
  %4406 = vmatmul.mubr.f32.gmra.mrb[0].mxu0 %v4293
  %v4407 = vpop.f32.mrb[0].mxu0
  %v4408 = vadd.f32 0.0, %v4407
  %v4409 = vpop.f32.mrb[0].mxu0
  %4410 = vmatprep.mubr.f32.mxu0 0.0
  %4411 = vmatmul.mubr.f32.gmra.mrb[0].mxu0 %v4294
  %v4412 = vpop.f32.mrb[0].mxu0
  %v4413 = vadd.f32 0.0, %v4412
  %v4414 = vpop.f32.mrb[0].mxu0
  %4415 = vmatprep.mubr.f32.mxu0 0.0
  %4416 = vmatmul.mubr.f32.gmra.mrb[0].mxu0 %v4295
  %v4417 = vpop.f32.mrb[0].mxu0
  %v4418 = vadd.f32 0.0, %v4417
  %v4419 = vpop.f32.mrb[0].mxu0
  %4420 = vmatprep.mubr.f32.mxu0 0.0
  %4421 = vmatmul.mubr.f32.gmra.mrb[0].mxu0 %v4296
  %v4422 = vpop.f32.mrb[0].mxu0
  %v4423 = vadd.f32 0.0, %v4422
  %v4424 = vpop.f32.mrb[0].mxu0
  %4425 = vmatprep.mubr.f32.mxu0 0.0
  %4426 = vmatmul.mubr.f32.gmra.mrb[0].mxu0 %v4297
  %v4427 = vpop.f32.mrb[0].mxu0
  %v4428 = vadd.f32 0.0, %v4427
  %v4429 = vpop.f32.mrb[0].mxu0
  %4430 = vmatprep.mubr.f32.mxu0 0.0
  %4431 = vmatmul.mubr.f32.gmra.mrb[0].mxu0 %v4298
  %v4432 = vpop.f32.mrb[0].mxu0
  %v4433 = vadd.f32 0.0, %v4432
  %v4434 = vpop.f32.mrb[0].mxu0
  %4435 = vmatprep.mubr.f32.mxu0 0.0
  %4436 = vmatmul.mubr.f32.gmra.mrb[0].mxu0 %v4299
  %v4437 = vpop.f32.mrb[0].mxu0
  %v4438 = vadd.f32 0.0, %v4437
  %v4439 = vpop.f32.mrb[0].mxu0
  %4440 = vmatprep.mubr.f32.mxu0 0.0
  %4441 = vmatmul.mubr.f32.gmra.mrb[0].mxu0 %v4300
  %v4442 = vpop.f32.mrb[0].mxu0
  %v4443 = vadd.f32 0.0, %v4442
  %v4444 = vpop.f32.mrb[0].mxu0
  %4445 = vdwg.mxu0
  %s4446 = scalar_lea.vmem %s3, 1536
  %v4447 = vld [vmem:[%s4446] sm:$0xff]
  %v4448 = vld [vmem:[%s4446 + $0x8] sm:$0xff]
  %v4449 = vld [vmem:[%s4446 + $0x10] sm:$0xff]
  %v4450 = vld [vmem:[%s4446 + $0x18] sm:$0xff]
  %v4451 = vld [vmem:[%s4446 + $0x20] sm:$0xff]
  %v4452 = vld [vmem:[%s4446 + $0x28] sm:$0xff]
  %v4453 = vld [vmem:[%s4446 + $0x30] sm:$0xff]
  %v4454 = vld [vmem:[%s4446 + $0x38] sm:$0xff]
  %v4455 = vld [vmem:[%s4446 + $0x40] sm:$0xff]
  %v4456 = vld [vmem:[%s4446 + $0x48] sm:$0xff]
  %v4457 = vld [vmem:[%s4446 + $0x50] sm:$0xff]
  %v4458 = vld [vmem:[%s4446 + $0x58] sm:$0xff]
  %v4459 = vld [vmem:[%s4446 + $0x60] sm:$0xff]
  %v4460 = vld [vmem:[%s4446 + $0x68] sm:$0xff]
  %v4461 = vld [vmem:[%s4446 + $0x70] sm:$0xff]
  %v4462 = vld [vmem:[%s4446 + $0x78] sm:$0xff]
  %4463 = vmatprep.subr.mxu0 0.0
  %4464 = vmatpush1.msra.mxu0 %v4447
  %4465 = vmatprep.subr.mxu0 0.0
  %4466 = vmatpush1.msra.mxu0 %v4448
  %4467 = vmatprep.subr.mxu0 0.0
  %4468 = vmatpush1.msra.mxu0 %v4449
  %4469 = vmatprep.subr.mxu0 0.0
  %4470 = vmatpush1.msra.mxu0 %v4450
  %4471 = vmatprep.subr.mxu0 0.0
  %4472 = vmatpush1.msra.mxu0 %v4451
  %4473 = vmatprep.subr.mxu0 0.0
  %4474 = vmatpush1.msra.mxu0 %v4452
  %4475 = vmatprep.subr.mxu0 0.0
  %4476 = vmatpush1.msra.mxu0 %v4453
  %4477 = vmatprep.subr.mxu0 0.0
  %4478 = vmatpush1.msra.mxu0 %v4454
  %4479 = vmatprep.subr.mxu0 0.0
  %4480 = vmatpush1.msra.mxu0 %v4455
  %4481 = vmatprep.subr.mxu0 0.0
  %4482 = vmatpush1.msra.mxu0 %v4456
  %4483 = vmatprep.subr.mxu0 0.0
  %4484 = vmatpush1.msra.mxu0 %v4457
  %4485 = vmatprep.subr.mxu0 0.0
  %4486 = vmatpush1.msra.mxu0 %v4458
  %4487 = vmatprep.subr.mxu0 0.0
  %4488 = vmatpush1.msra.mxu0 %v4459
  %4489 = vmatprep.subr.mxu0 0.0
  %4490 = vmatpush1.msra.mxu0 %v4460
  %4491 = vmatprep.subr.mxu0 0.0
  %4492 = vmatpush1.msra.mxu0 %v4461
  %4493 = vmatprep.subr.mxu0 0.0
  %4494 = vmatpush1.msra.mxu0 %v4462
  %4495 = vmatprep.subr.mxu0 0.0
  %4496 = vmatpush1.msra.mxu0 0.0
  %4497 = vmatprep.subr.mxu0 0.0
  %4498 = vmatpush1.msra.mxu0 0.0
  %4499 = vmatprep.subr.mxu0 0.0
  %4500 = vmatpush1.msra.mxu0 0.0
  %4501 = vmatprep.subr.mxu0 0.0
  %4502 = vmatpush1.msra.mxu0 0.0
  %4503 = vmatprep.subr.mxu0 0.0
  %4504 = vmatpush1.msra.mxu0 0.0
  %4505 = vmatprep.subr.mxu0 0.0
  %4506 = vmatpush1.msra.mxu0 0.0
  %4507 = vmatprep.subr.mxu0 0.0
  %4508 = vmatpush1.msra.mxu0 0.0
  %4509 = vmatprep.subr.mxu0 0.0
  %4510 = vmatpush1.msra.mxu0 0.0
  %4511 = vmatprep.subr.mxu0 0.0
  %4512 = vmatpush1.msra.mxu0 0.0
  %4513 = vmatprep.subr.mxu0 0.0
  %4514 = vmatpush1.msra.mxu0 0.0
  %4515 = vmatprep.subr.mxu0 0.0
  %4516 = vmatpush1.msra.mxu0 0.0
  %4517 = vmatprep.subr.mxu0 0.0
  %4518 = vmatpush1.msra.mxu0 0.0
  %4519 = vmatprep.subr.mxu0 0.0
  %4520 = vmatpush1.msra.mxu0 0.0
  %4521 = vmatprep.subr.mxu0 0.0
  %4522 = vmatpush1.msra.mxu0 0.0
  %4523 = vmatprep.subr.mxu0 0.0
  %4524 = vmatpush1.msra.mxu0 0.0
  %4525 = vmatprep.subr.mxu0 0.0
  %4526 = vmatpush1.msra.mxu0 0.0
  %4527 = vmatprep.mubr.f32.mxu0 0.0
  %4528 = vmatmul.mubr.f32.gmra.mrb[0].mxu0 %v4368
  %v4529 = vpop.f32.mrb[0].mxu0
  %v4530 = vadd.f32 0.0, %v4529
  %v4531 = vpop.f32.mrb[0].mxu0
  %4532 = vmatprep.mubr.f32.mxu0 0.0
  %4533 = vmatmul.mubr.f32.gmra.mrb[0].mxu0 %v4373
  %v4534 = vpop.f32.mrb[0].mxu0
  %v4535 = vadd.f32 0.0, %v4534
  %v4536 = vpop.f32.mrb[0].mxu0
  %4537 = vmatprep.mubr.f32.mxu0 0.0
  %4538 = vmatmul.mubr.f32.gmra.mrb[0].mxu0 %v4378
  %v4539 = vpop.f32.mrb[0].mxu0
  %v4540 = vadd.f32 0.0, %v4539
  %v4541 = vpop.f32.mrb[0].mxu0
  %4542 = vmatprep.mubr.f32.mxu0 0.0
  %4543 = vmatmul.mubr.f32.gmra.mrb[0].mxu0 %v4383
  %v4544 = vpop.f32.mrb[0].mxu0
  %v4545 = vadd.f32 0.0, %v4544
  %v4546 = vpop.f32.mrb[0].mxu0
  %4547 = vmatprep.mubr.f32.mxu0 0.0
  %4548 = vmatmul.mubr.f32.gmra.mrb[0].mxu0 %v4388
  %v4549 = vpop.f32.mrb[0].mxu0
  %v4550 = vadd.f32 0.0, %v4549
  %v4551 = vpop.f32.mrb[0].mxu0
  %4552 = vmatprep.mubr.f32.mxu0 0.0
  %4553 = vmatmul.mubr.f32.gmra.mrb[0].mxu0 %v4393
  %v4554 = vpop.f32.mrb[0].mxu0
  %v4555 = vadd.f32 0.0, %v4554
  %v4556 = vpop.f32.mrb[0].mxu0
  %4557 = vmatprep.mubr.f32.mxu0 0.0
  %4558 = vmatmul.mubr.f32.gmra.mrb[0].mxu0 %v4398
  %v4559 = vpop.f32.mrb[0].mxu0
  %v4560 = vadd.f32 0.0, %v4559
  %v4561 = vpop.f32.mrb[0].mxu0
  %4562 = vmatprep.mubr.f32.mxu0 0.0
  %4563 = vmatmul.mubr.f32.gmra.mrb[0].mxu0 %v4403
  %v4564 = vpop.f32.mrb[0].mxu0
  %v4565 = vadd.f32 0.0, %v4564
  %v4566 = vpop.f32.mrb[0].mxu0
  %4567 = vmatprep.mubr.f32.mxu0 0.0
  %4568 = vmatmul.mubr.f32.gmra.mrb[0].mxu0 %v4408
  %v4569 = vpop.f32.mrb[0].mxu0
  %v4570 = vadd.f32 0.0, %v4569
  %v4571 = vpop.f32.mrb[0].mxu0
  %4572 = vmatprep.mubr.f32.mxu0 0.0
  %4573 = vmatmul.mubr.f32.gmra.mrb[0].mxu0 %v4413
  %v4574 = vpop.f32.mrb[0].mxu0
  %v4575 = vadd.f32 0.0, %v4574
  %v4576 = vpop.f32.mrb[0].mxu0
  %4577 = vmatprep.mubr.f32.mxu0 0.0
  %4578 = vmatmul.mubr.f32.gmra.mrb[0].mxu0 %v4418
  %v4579 = vpop.f32.mrb[0].mxu0
  %v4580 = vadd.f32 0.0, %v4579
  %v4581 = vpop.f32.mrb[0].mxu0
  %4582 = vmatprep.mubr.f32.mxu0 0.0
  %4583 = vmatmul.mubr.f32.gmra.mrb[0].mxu0 %v4423
  %v4584 = vpop.f32.mrb[0].mxu0
  %v4585 = vadd.f32 0.0, %v4584
  %v4586 = vpop.f32.mrb[0].mxu0
  %4587 = vmatprep.mubr.f32.mxu0 0.0
  %4588 = vmatmul.mubr.f32.gmra.mrb[0].mxu0 %v4428
  %v4589 = vpop.f32.mrb[0].mxu0
  %v4590 = vadd.f32 0.0, %v4589
  %v4591 = vpop.f32.mrb[0].mxu0
  %4592 = vmatprep.mubr.f32.mxu0 0.0
  %4593 = vmatmul.mubr.f32.gmra.mrb[0].mxu0 %v4433
  %v4594 = vpop.f32.mrb[0].mxu0
  %v4595 = vadd.f32 0.0, %v4594
  %v4596 = vpop.f32.mrb[0].mxu0
  %4597 = vmatprep.mubr.f32.mxu0 0.0
  %4598 = vmatmul.mubr.f32.gmra.mrb[0].mxu0 %v4438
  %v4599 = vpop.f32.mrb[0].mxu0
  %v4600 = vadd.f32 0.0, %v4599
  %v4601 = vpop.f32.mrb[0].mxu0
  %4602 = vmatprep.mubr.f32.mxu0 0.0
  %4603 = vmatmul.mubr.f32.gmra.mrb[0].mxu0 %v4443
  %v4604 = vpop.f32.mrb[0].mxu0
  %v4605 = vadd.f32 0.0, %v4604
  %v4606 = vpop.f32.mrb[0].mxu0
  %4607 = vdwg.mxu0
  %v4608 = vadd.f32 %v4268, %v4530
  %v4609 = vadd.f32 %v4269, %v4535
  %v4610 = vadd.f32 %v4270, %v4540
  %v4611 = vadd.f32 %v4271, %v4545
  %v4612 = vadd.f32 %v4272, %v4550
  %v4613 = vadd.f32 %v4273, %v4555
  %v4614 = vadd.f32 %v4274, %v4560
  %v4615 = vadd.f32 %v4275, %v4565
  %v4616 = vadd.f32 %v4276, %v4570
  %v4617 = vadd.f32 %v4277, %v4575
  %v4618 = vadd.f32 %v4278, %v4580
  %v4619 = vadd.f32 %v4279, %v4585
  %v4620 = vadd.f32 %v4280, %v4590
  %v4621 = vadd.f32 %v4281, %v4595
  %v4622 = vadd.f32 %v4282, %v4600
  %v4623 = vadd.f32 %v4283, %v4605
  %s4624 = scalar_lea.vmem %s2, 1664
  %v4625 = vld [vmem:[%s4624] sm:$0xff]
  %v4626 = vld [vmem:[%s4624 + $0x8] sm:$0xff]
  %v4627 = vld [vmem:[%s4624 + $0x10] sm:$0xff]
  %v4628 = vld [vmem:[%s4624 + $0x18] sm:$0xff]
  %v4629 = vld [vmem:[%s4624 + $0x20] sm:$0xff]
  %v4630 = vld [vmem:[%s4624 + $0x28] sm:$0xff]
  %v4631 = vld [vmem:[%s4624 + $0x30] sm:$0xff]
  %v4632 = vld [vmem:[%s4624 + $0x38] sm:$0xff]
  %v4633 = vld [vmem:[%s4624 + $0x40] sm:$0xff]
  %v4634 = vld [vmem:[%s4624 + $0x48] sm:$0xff]
  %v4635 = vld [vmem:[%s4624 + $0x50] sm:$0xff]
  %v4636 = vld [vmem:[%s4624 + $0x58] sm:$0xff]
  %v4637 = vld [vmem:[%s4624 + $0x60] sm:$0xff]
  %v4638 = vld [vmem:[%s4624 + $0x68] sm:$0xff]
  %v4639 = vld [vmem:[%s4624 + $0x70] sm:$0xff]
  %v4640 = vld [vmem:[%s4624 + $0x78] sm:$0xff]
  %4641 = vmatprep.subr.mxu0 0.0
  %4642 = vmatpush1.msra.mxu0 %v222
  %4643 = vmatprep.subr.mxu0 0.0
  %4644 = vmatpush1.msra.mxu0 %v223
  %4645 = vmatprep.subr.mxu0 0.0
  %4646 = vmatpush1.msra.mxu0 %v224
  %4647 = vmatprep.subr.mxu0 0.0
  %4648 = vmatpush1.msra.mxu0 %v225
  %4649 = vmatprep.subr.mxu0 0.0
  %4650 = vmatpush1.msra.mxu0 %v226
  %4651 = vmatprep.subr.mxu0 0.0
  %4652 = vmatpush1.msra.mxu0 %v227
  %4653 = vmatprep.subr.mxu0 0.0
  %4654 = vmatpush1.msra.mxu0 %v228
  %4655 = vmatprep.subr.mxu0 0.0
  %4656 = vmatpush1.msra.mxu0 %v229
  %4657 = vmatprep.subr.mxu0 0.0
  %4658 = vmatpush1.msra.mxu0 %v230
  %4659 = vmatprep.subr.mxu0 0.0
  %4660 = vmatpush1.msra.mxu0 %v231
  %4661 = vmatprep.subr.mxu0 0.0
  %4662 = vmatpush1.msra.mxu0 %v232
  %4663 = vmatprep.subr.mxu0 0.0
  %4664 = vmatpush1.msra.mxu0 %v233
  %4665 = vmatprep.subr.mxu0 0.0
  %4666 = vmatpush1.msra.mxu0 %v234
  %4667 = vmatprep.subr.mxu0 0.0
  %4668 = vmatpush1.msra.mxu0 %v235
  %4669 = vmatprep.subr.mxu0 0.0
  %4670 = vmatpush1.msra.mxu0 %v236
  %4671 = vmatprep.subr.mxu0 0.0
  %4672 = vmatpush1.msra.mxu0 %v237
  %4673 = vmatprep.subr.mxu0 0.0
  %4674 = vmatpush1.msra.mxu0 0.0
  %4675 = vmatprep.subr.mxu0 0.0
  %4676 = vmatpush1.msra.mxu0 0.0
  %4677 = vmatprep.subr.mxu0 0.0
  %4678 = vmatpush1.msra.mxu0 0.0
  %4679 = vmatprep.subr.mxu0 0.0
  %4680 = vmatpush1.msra.mxu0 0.0
  %4681 = vmatprep.subr.mxu0 0.0
  %4682 = vmatpush1.msra.mxu0 0.0
  %4683 = vmatprep.subr.mxu0 0.0
  %4684 = vmatpush1.msra.mxu0 0.0
  %4685 = vmatprep.subr.mxu0 0.0
  %4686 = vmatpush1.msra.mxu0 0.0
  %4687 = vmatprep.subr.mxu0 0.0
  %4688 = vmatpush1.msra.mxu0 0.0
  %4689 = vmatprep.subr.mxu0 0.0
  %4690 = vmatpush1.msra.mxu0 0.0
  %4691 = vmatprep.subr.mxu0 0.0
  %4692 = vmatpush1.msra.mxu0 0.0
  %4693 = vmatprep.subr.mxu0 0.0
  %4694 = vmatpush1.msra.mxu0 0.0
  %4695 = vmatprep.subr.mxu0 0.0
  %4696 = vmatpush1.msra.mxu0 0.0
  %4697 = vmatprep.subr.mxu0 0.0
  %4698 = vmatpush1.msra.mxu0 0.0
  %4699 = vmatprep.subr.mxu0 0.0
  %4700 = vmatpush1.msra.mxu0 0.0
  %4701 = vmatprep.subr.mxu0 0.0
  %4702 = vmatpush1.msra.mxu0 0.0
  %4703 = vmatprep.subr.mxu0 0.0
  %4704 = vmatpush1.msra.mxu0 0.0
  %4705 = vmatprep.mubr.f32.mxu0 0.0
  %4706 = vmatmul.mubr.f32.gmra.mrb[0].mxu0 %v4625
  %v4707 = vpop.f32.mrb[0].mxu0
  %v4708 = vadd.f32 0.0, %v4707
  %v4709 = vpop.f32.mrb[0].mxu0
  %4710 = vmatprep.mubr.f32.mxu0 0.0
  %4711 = vmatmul.mubr.f32.gmra.mrb[0].mxu0 %v4626
  %v4712 = vpop.f32.mrb[0].mxu0
  %v4713 = vadd.f32 0.0, %v4712
  %v4714 = vpop.f32.mrb[0].mxu0
  %4715 = vmatprep.mubr.f32.mxu0 0.0
  %4716 = vmatmul.mubr.f32.gmra.mrb[0].mxu0 %v4627
  %v4717 = vpop.f32.mrb[0].mxu0
  %v4718 = vadd.f32 0.0, %v4717
  %v4719 = vpop.f32.mrb[0].mxu0
  %4720 = vmatprep.mubr.f32.mxu0 0.0
  %4721 = vmatmul.mubr.f32.gmra.mrb[0].mxu0 %v4628
  %v4722 = vpop.f32.mrb[0].mxu0
  %v4723 = vadd.f32 0.0, %v4722
  %v4724 = vpop.f32.mrb[0].mxu0
  %4725 = vmatprep.mubr.f32.mxu0 0.0
  %4726 = vmatmul.mubr.f32.gmra.mrb[0].mxu0 %v4629
  %v4727 = vpop.f32.mrb[0].mxu0
  %v4728 = vadd.f32 0.0, %v4727
  %v4729 = vpop.f32.mrb[0].mxu0
  %4730 = vmatprep.mubr.f32.mxu0 0.0
  %4731 = vmatmul.mubr.f32.gmra.mrb[0].mxu0 %v4630
  %v4732 = vpop.f32.mrb[0].mxu0
  %v4733 = vadd.f32 0.0, %v4732
  %v4734 = vpop.f32.mrb[0].mxu0
  %4735 = vmatprep.mubr.f32.mxu0 0.0
  %4736 = vmatmul.mubr.f32.gmra.mrb[0].mxu0 %v4631
  %v4737 = vpop.f32.mrb[0].mxu0
  %v4738 = vadd.f32 0.0, %v4737
  %v4739 = vpop.f32.mrb[0].mxu0
  %4740 = vmatprep.mubr.f32.mxu0 0.0
  %4741 = vmatmul.mubr.f32.gmra.mrb[0].mxu0 %v4632
  %v4742 = vpop.f32.mrb[0].mxu0
  %v4743 = vadd.f32 0.0, %v4742
  %v4744 = vpop.f32.mrb[0].mxu0
  %4745 = vmatprep.mubr.f32.mxu0 0.0
  %4746 = vmatmul.mubr.f32.gmra.mrb[0].mxu0 %v4633
  %v4747 = vpop.f32.mrb[0].mxu0
  %v4748 = vadd.f32 0.0, %v4747
  %v4749 = vpop.f32.mrb[0].mxu0
  %4750 = vmatprep.mubr.f32.mxu0 0.0
  %4751 = vmatmul.mubr.f32.gmra.mrb[0].mxu0 %v4634
  %v4752 = vpop.f32.mrb[0].mxu0
  %v4753 = vadd.f32 0.0, %v4752
  %v4754 = vpop.f32.mrb[0].mxu0
  %4755 = vmatprep.mubr.f32.mxu0 0.0
  %4756 = vmatmul.mubr.f32.gmra.mrb[0].mxu0 %v4635
  %v4757 = vpop.f32.mrb[0].mxu0
  %v4758 = vadd.f32 0.0, %v4757
  %v4759 = vpop.f32.mrb[0].mxu0
  %4760 = vmatprep.mubr.f32.mxu0 0.0
  %4761 = vmatmul.mubr.f32.gmra.mrb[0].mxu0 %v4636
  %v4762 = vpop.f32.mrb[0].mxu0
  %v4763 = vadd.f32 0.0, %v4762
  %v4764 = vpop.f32.mrb[0].mxu0
  %4765 = vmatprep.mubr.f32.mxu0 0.0
  %4766 = vmatmul.mubr.f32.gmra.mrb[0].mxu0 %v4637
  %v4767 = vpop.f32.mrb[0].mxu0
  %v4768 = vadd.f32 0.0, %v4767
  %v4769 = vpop.f32.mrb[0].mxu0
  %4770 = vmatprep.mubr.f32.mxu0 0.0
  %4771 = vmatmul.mubr.f32.gmra.mrb[0].mxu0 %v4638
  %v4772 = vpop.f32.mrb[0].mxu0
  %v4773 = vadd.f32 0.0, %v4772
  %v4774 = vpop.f32.mrb[0].mxu0
  %4775 = vmatprep.mubr.f32.mxu0 0.0
  %4776 = vmatmul.mubr.f32.gmra.mrb[0].mxu0 %v4639
  %v4777 = vpop.f32.mrb[0].mxu0
  %v4778 = vadd.f32 0.0, %v4777
  %v4779 = vpop.f32.mrb[0].mxu0
  %4780 = vmatprep.mubr.f32.mxu0 0.0
  %4781 = vmatmul.mubr.f32.gmra.mrb[0].mxu0 %v4640
  %v4782 = vpop.f32.mrb[0].mxu0
  %v4783 = vadd.f32 0.0, %v4782
  %v4784 = vpop.f32.mrb[0].mxu0
  %4785 = vdwg.mxu0
  %s4786 = scalar_lea.vmem %s3, 1664
  %v4787 = vld [vmem:[%s4786] sm:$0xff]
  %v4788 = vld [vmem:[%s4786 + $0x8] sm:$0xff]
  %v4789 = vld [vmem:[%s4786 + $0x10] sm:$0xff]
  %v4790 = vld [vmem:[%s4786 + $0x18] sm:$0xff]
  %v4791 = vld [vmem:[%s4786 + $0x20] sm:$0xff]
  %v4792 = vld [vmem:[%s4786 + $0x28] sm:$0xff]
  %v4793 = vld [vmem:[%s4786 + $0x30] sm:$0xff]
  %v4794 = vld [vmem:[%s4786 + $0x38] sm:$0xff]
  %v4795 = vld [vmem:[%s4786 + $0x40] sm:$0xff]
  %v4796 = vld [vmem:[%s4786 + $0x48] sm:$0xff]
  %v4797 = vld [vmem:[%s4786 + $0x50] sm:$0xff]
  %v4798 = vld [vmem:[%s4786 + $0x58] sm:$0xff]
  %v4799 = vld [vmem:[%s4786 + $0x60] sm:$0xff]
  %v4800 = vld [vmem:[%s4786 + $0x68] sm:$0xff]
  %v4801 = vld [vmem:[%s4786 + $0x70] sm:$0xff]
  %v4802 = vld [vmem:[%s4786 + $0x78] sm:$0xff]
  %4803 = vmatprep.subr.mxu0 0.0
  %4804 = vmatpush1.msra.mxu0 %v4787
  %4805 = vmatprep.subr.mxu0 0.0
  %4806 = vmatpush1.msra.mxu0 %v4788
  %4807 = vmatprep.subr.mxu0 0.0
  %4808 = vmatpush1.msra.mxu0 %v4789
  %4809 = vmatprep.subr.mxu0 0.0
  %4810 = vmatpush1.msra.mxu0 %v4790
  %4811 = vmatprep.subr.mxu0 0.0
  %4812 = vmatpush1.msra.mxu0 %v4791
  %4813 = vmatprep.subr.mxu0 0.0
  %4814 = vmatpush1.msra.mxu0 %v4792
  %4815 = vmatprep.subr.mxu0 0.0
  %4816 = vmatpush1.msra.mxu0 %v4793
  %4817 = vmatprep.subr.mxu0 0.0
  %4818 = vmatpush1.msra.mxu0 %v4794
  %4819 = vmatprep.subr.mxu0 0.0
  %4820 = vmatpush1.msra.mxu0 %v4795
  %4821 = vmatprep.subr.mxu0 0.0
  %4822 = vmatpush1.msra.mxu0 %v4796
  %4823 = vmatprep.subr.mxu0 0.0
  %4824 = vmatpush1.msra.mxu0 %v4797
  %4825 = vmatprep.subr.mxu0 0.0
  %4826 = vmatpush1.msra.mxu0 %v4798
  %4827 = vmatprep.subr.mxu0 0.0
  %4828 = vmatpush1.msra.mxu0 %v4799
  %4829 = vmatprep.subr.mxu0 0.0
  %4830 = vmatpush1.msra.mxu0 %v4800
  %4831 = vmatprep.subr.mxu0 0.0
  %4832 = vmatpush1.msra.mxu0 %v4801
  %4833 = vmatprep.subr.mxu0 0.0
  %4834 = vmatpush1.msra.mxu0 %v4802
  %4835 = vmatprep.subr.mxu0 0.0
  %4836 = vmatpush1.msra.mxu0 0.0
  %4837 = vmatprep.subr.mxu0 0.0
  %4838 = vmatpush1.msra.mxu0 0.0
  %4839 = vmatprep.subr.mxu0 0.0
  %4840 = vmatpush1.msra.mxu0 0.0
  %4841 = vmatprep.subr.mxu0 0.0
  %4842 = vmatpush1.msra.mxu0 0.0
  %4843 = vmatprep.subr.mxu0 0.0
  %4844 = vmatpush1.msra.mxu0 0.0
  %4845 = vmatprep.subr.mxu0 0.0
  %4846 = vmatpush1.msra.mxu0 0.0
  %4847 = vmatprep.subr.mxu0 0.0
  %4848 = vmatpush1.msra.mxu0 0.0
  %4849 = vmatprep.subr.mxu0 0.0
  %4850 = vmatpush1.msra.mxu0 0.0
  %4851 = vmatprep.subr.mxu0 0.0
  %4852 = vmatpush1.msra.mxu0 0.0
  %4853 = vmatprep.subr.mxu0 0.0
  %4854 = vmatpush1.msra.mxu0 0.0
  %4855 = vmatprep.subr.mxu0 0.0
  %4856 = vmatpush1.msra.mxu0 0.0
  %4857 = vmatprep.subr.mxu0 0.0
  %4858 = vmatpush1.msra.mxu0 0.0
  %4859 = vmatprep.subr.mxu0 0.0
  %4860 = vmatpush1.msra.mxu0 0.0
  %4861 = vmatprep.subr.mxu0 0.0
  %4862 = vmatpush1.msra.mxu0 0.0
  %4863 = vmatprep.subr.mxu0 0.0
  %4864 = vmatpush1.msra.mxu0 0.0
  %4865 = vmatprep.subr.mxu0 0.0
  %4866 = vmatpush1.msra.mxu0 0.0
  %4867 = vmatprep.mubr.f32.mxu0 0.0
  %4868 = vmatmul.mubr.f32.gmra.mrb[0].mxu0 %v4708
  %v4869 = vpop.f32.mrb[0].mxu0
  %v4870 = vadd.f32 0.0, %v4869
  %v4871 = vpop.f32.mrb[0].mxu0
  %4872 = vmatprep.mubr.f32.mxu0 0.0
  %4873 = vmatmul.mubr.f32.gmra.mrb[0].mxu0 %v4713
  %v4874 = vpop.f32.mrb[0].mxu0
  %v4875 = vadd.f32 0.0, %v4874
  %v4876 = vpop.f32.mrb[0].mxu0
  %4877 = vmatprep.mubr.f32.mxu0 0.0
  %4878 = vmatmul.mubr.f32.gmra.mrb[0].mxu0 %v4718
  %v4879 = vpop.f32.mrb[0].mxu0
  %v4880 = vadd.f32 0.0, %v4879
  %v4881 = vpop.f32.mrb[0].mxu0
  %4882 = vmatprep.mubr.f32.mxu0 0.0
  %4883 = vmatmul.mubr.f32.gmra.mrb[0].mxu0 %v4723
  %v4884 = vpop.f32.mrb[0].mxu0
  %v4885 = vadd.f32 0.0, %v4884
  %v4886 = vpop.f32.mrb[0].mxu0
  %4887 = vmatprep.mubr.f32.mxu0 0.0
  %4888 = vmatmul.mubr.f32.gmra.mrb[0].mxu0 %v4728
  %v4889 = vpop.f32.mrb[0].mxu0
  %v4890 = vadd.f32 0.0, %v4889
  %v4891 = vpop.f32.mrb[0].mxu0
  %4892 = vmatprep.mubr.f32.mxu0 0.0
  %4893 = vmatmul.mubr.f32.gmra.mrb[0].mxu0 %v4733
  %v4894 = vpop.f32.mrb[0].mxu0
  %v4895 = vadd.f32 0.0, %v4894
  %v4896 = vpop.f32.mrb[0].mxu0
  %4897 = vmatprep.mubr.f32.mxu0 0.0
  %4898 = vmatmul.mubr.f32.gmra.mrb[0].mxu0 %v4738
  %v4899 = vpop.f32.mrb[0].mxu0
  %v4900 = vadd.f32 0.0, %v4899
  %v4901 = vpop.f32.mrb[0].mxu0
  %4902 = vmatprep.mubr.f32.mxu0 0.0
  %4903 = vmatmul.mubr.f32.gmra.mrb[0].mxu0 %v4743
  %v4904 = vpop.f32.mrb[0].mxu0
  %v4905 = vadd.f32 0.0, %v4904
  %v4906 = vpop.f32.mrb[0].mxu0
  %4907 = vmatprep.mubr.f32.mxu0 0.0
  %4908 = vmatmul.mubr.f32.gmra.mrb[0].mxu0 %v4748
  %v4909 = vpop.f32.mrb[0].mxu0
  %v4910 = vadd.f32 0.0, %v4909
  %v4911 = vpop.f32.mrb[0].mxu0
  %4912 = vmatprep.mubr.f32.mxu0 0.0
  %4913 = vmatmul.mubr.f32.gmra.mrb[0].mxu0 %v4753
  %v4914 = vpop.f32.mrb[0].mxu0
  %v4915 = vadd.f32 0.0, %v4914
  %v4916 = vpop.f32.mrb[0].mxu0
  %4917 = vmatprep.mubr.f32.mxu0 0.0
  %4918 = vmatmul.mubr.f32.gmra.mrb[0].mxu0 %v4758
  %v4919 = vpop.f32.mrb[0].mxu0
  %v4920 = vadd.f32 0.0, %v4919
  %v4921 = vpop.f32.mrb[0].mxu0
  %4922 = vmatprep.mubr.f32.mxu0 0.0
  %4923 = vmatmul.mubr.f32.gmra.mrb[0].mxu0 %v4763
  %v4924 = vpop.f32.mrb[0].mxu0
  %v4925 = vadd.f32 0.0, %v4924
  %v4926 = vpop.f32.mrb[0].mxu0
  %4927 = vmatprep.mubr.f32.mxu0 0.0
  %4928 = vmatmul.mubr.f32.gmra.mrb[0].mxu0 %v4768
  %v4929 = vpop.f32.mrb[0].mxu0
  %v4930 = vadd.f32 0.0, %v4929
  %v4931 = vpop.f32.mrb[0].mxu0
  %4932 = vmatprep.mubr.f32.mxu0 0.0
  %4933 = vmatmul.mubr.f32.gmra.mrb[0].mxu0 %v4773
  %v4934 = vpop.f32.mrb[0].mxu0
  %v4935 = vadd.f32 0.0, %v4934
  %v4936 = vpop.f32.mrb[0].mxu0
  %4937 = vmatprep.mubr.f32.mxu0 0.0
  %4938 = vmatmul.mubr.f32.gmra.mrb[0].mxu0 %v4778
  %v4939 = vpop.f32.mrb[0].mxu0
  %v4940 = vadd.f32 0.0, %v4939
  %v4941 = vpop.f32.mrb[0].mxu0
  %4942 = vmatprep.mubr.f32.mxu0 0.0
  %4943 = vmatmul.mubr.f32.gmra.mrb[0].mxu0 %v4783
  %v4944 = vpop.f32.mrb[0].mxu0
  %v4945 = vadd.f32 0.0, %v4944
  %v4946 = vpop.f32.mrb[0].mxu0
  %4947 = vdwg.mxu0
  %v4948 = vadd.f32 %v4608, %v4870
  %v4949 = vadd.f32 %v4609, %v4875
  %v4950 = vadd.f32 %v4610, %v4880
  %v4951 = vadd.f32 %v4611, %v4885
  %v4952 = vadd.f32 %v4612, %v4890
  %v4953 = vadd.f32 %v4613, %v4895
  %v4954 = vadd.f32 %v4614, %v4900
  %v4955 = vadd.f32 %v4615, %v4905
  %v4956 = vadd.f32 %v4616, %v4910
  %v4957 = vadd.f32 %v4617, %v4915
  %v4958 = vadd.f32 %v4618, %v4920
  %v4959 = vadd.f32 %v4619, %v4925
  %v4960 = vadd.f32 %v4620, %v4930
  %v4961 = vadd.f32 %v4621, %v4935
  %v4962 = vadd.f32 %v4622, %v4940
  %v4963 = vadd.f32 %v4623, %v4945
  %s4964 = scalar_lea.vmem %s2, 1792
  %v4965 = vld [vmem:[%s4964] sm:$0xff]
  %v4966 = vld [vmem:[%s4964 + $0x8] sm:$0xff]
  %v4967 = vld [vmem:[%s4964 + $0x10] sm:$0xff]
  %v4968 = vld [vmem:[%s4964 + $0x18] sm:$0xff]
  %v4969 = vld [vmem:[%s4964 + $0x20] sm:$0xff]
  %v4970 = vld [vmem:[%s4964 + $0x28] sm:$0xff]
  %v4971 = vld [vmem:[%s4964 + $0x30] sm:$0xff]
  %v4972 = vld [vmem:[%s4964 + $0x38] sm:$0xff]
  %v4973 = vld [vmem:[%s4964 + $0x40] sm:$0xff]
  %v4974 = vld [vmem:[%s4964 + $0x48] sm:$0xff]
  %v4975 = vld [vmem:[%s4964 + $0x50] sm:$0xff]
  %v4976 = vld [vmem:[%s4964 + $0x58] sm:$0xff]
  %v4977 = vld [vmem:[%s4964 + $0x60] sm:$0xff]
  %v4978 = vld [vmem:[%s4964 + $0x68] sm:$0xff]
  %v4979 = vld [vmem:[%s4964 + $0x70] sm:$0xff]
  %v4980 = vld [vmem:[%s4964 + $0x78] sm:$0xff]
  %4981 = vmatprep.subr.mxu0 0.0
  %4982 = vmatpush1.msra.mxu0 %v222
  %4983 = vmatprep.subr.mxu0 0.0
  %4984 = vmatpush1.msra.mxu0 %v223
  %4985 = vmatprep.subr.mxu0 0.0
  %4986 = vmatpush1.msra.mxu0 %v224
  %4987 = vmatprep.subr.mxu0 0.0
  %4988 = vmatpush1.msra.mxu0 %v225
  %4989 = vmatprep.subr.mxu0 0.0
  %4990 = vmatpush1.msra.mxu0 %v226
  %4991 = vmatprep.subr.mxu0 0.0
  %4992 = vmatpush1.msra.mxu0 %v227
  %4993 = vmatprep.subr.mxu0 0.0
  %4994 = vmatpush1.msra.mxu0 %v228
  %4995 = vmatprep.subr.mxu0 0.0
  %4996 = vmatpush1.msra.mxu0 %v229
  %4997 = vmatprep.subr.mxu0 0.0
  %4998 = vmatpush1.msra.mxu0 %v230
  %4999 = vmatprep.subr.mxu0 0.0
  %5000 = vmatpush1.msra.mxu0 %v231
  %5001 = vmatprep.subr.mxu0 0.0
  %5002 = vmatpush1.msra.mxu0 %v232
  %5003 = vmatprep.subr.mxu0 0.0
  %5004 = vmatpush1.msra.mxu0 %v233
  %5005 = vmatprep.subr.mxu0 0.0
  %5006 = vmatpush1.msra.mxu0 %v234
  %5007 = vmatprep.subr.mxu0 0.0
  %5008 = vmatpush1.msra.mxu0 %v235
  %5009 = vmatprep.subr.mxu0 0.0
  %5010 = vmatpush1.msra.mxu0 %v236
  %5011 = vmatprep.subr.mxu0 0.0
  %5012 = vmatpush1.msra.mxu0 %v237
  %5013 = vmatprep.subr.mxu0 0.0
  %5014 = vmatpush1.msra.mxu0 0.0
  %5015 = vmatprep.subr.mxu0 0.0
  %5016 = vmatpush1.msra.mxu0 0.0
  %5017 = vmatprep.subr.mxu0 0.0
  %5018 = vmatpush1.msra.mxu0 0.0
  %5019 = vmatprep.subr.mxu0 0.0
  %5020 = vmatpush1.msra.mxu0 0.0
  %5021 = vmatprep.subr.mxu0 0.0
  %5022 = vmatpush1.msra.mxu0 0.0
  %5023 = vmatprep.subr.mxu0 0.0
  %5024 = vmatpush1.msra.mxu0 0.0
  %5025 = vmatprep.subr.mxu0 0.0
  %5026 = vmatpush1.msra.mxu0 0.0
  %5027 = vmatprep.subr.mxu0 0.0
  %5028 = vmatpush1.msra.mxu0 0.0
  %5029 = vmatprep.subr.mxu0 0.0
  %5030 = vmatpush1.msra.mxu0 0.0
  %5031 = vmatprep.subr.mxu0 0.0
  %5032 = vmatpush1.msra.mxu0 0.0
  %5033 = vmatprep.subr.mxu0 0.0
  %5034 = vmatpush1.msra.mxu0 0.0
  %5035 = vmatprep.subr.mxu0 0.0
  %5036 = vmatpush1.msra.mxu0 0.0
  %5037 = vmatprep.subr.mxu0 0.0
  %5038 = vmatpush1.msra.mxu0 0.0
  %5039 = vmatprep.subr.mxu0 0.0
  %5040 = vmatpush1.msra.mxu0 0.0
  %5041 = vmatprep.subr.mxu0 0.0
  %5042 = vmatpush1.msra.mxu0 0.0
  %5043 = vmatprep.subr.mxu0 0.0
  %5044 = vmatpush1.msra.mxu0 0.0
  %5045 = vmatprep.mubr.f32.mxu0 0.0
  %5046 = vmatmul.mubr.f32.gmra.mrb[0].mxu0 %v4965
  %v5047 = vpop.f32.mrb[0].mxu0
  %v5048 = vadd.f32 0.0, %v5047
  %v5049 = vpop.f32.mrb[0].mxu0
  %5050 = vmatprep.mubr.f32.mxu0 0.0
  %5051 = vmatmul.mubr.f32.gmra.mrb[0].mxu0 %v4966
  %v5052 = vpop.f32.mrb[0].mxu0
  %v5053 = vadd.f32 0.0, %v5052
  %v5054 = vpop.f32.mrb[0].mxu0
  %5055 = vmatprep.mubr.f32.mxu0 0.0
  %5056 = vmatmul.mubr.f32.gmra.mrb[0].mxu0 %v4967
  %v5057 = vpop.f32.mrb[0].mxu0
  %v5058 = vadd.f32 0.0, %v5057
  %v5059 = vpop.f32.mrb[0].mxu0
  %5060 = vmatprep.mubr.f32.mxu0 0.0
  %5061 = vmatmul.mubr.f32.gmra.mrb[0].mxu0 %v4968
  %v5062 = vpop.f32.mrb[0].mxu0
  %v5063 = vadd.f32 0.0, %v5062
  %v5064 = vpop.f32.mrb[0].mxu0
  %5065 = vmatprep.mubr.f32.mxu0 0.0
  %5066 = vmatmul.mubr.f32.gmra.mrb[0].mxu0 %v4969
  %v5067 = vpop.f32.mrb[0].mxu0
  %v5068 = vadd.f32 0.0, %v5067
  %v5069 = vpop.f32.mrb[0].mxu0
  %5070 = vmatprep.mubr.f32.mxu0 0.0
  %5071 = vmatmul.mubr.f32.gmra.mrb[0].mxu0 %v4970
  %v5072 = vpop.f32.mrb[0].mxu0
  %v5073 = vadd.f32 0.0, %v5072
  %v5074 = vpop.f32.mrb[0].mxu0
  %5075 = vmatprep.mubr.f32.mxu0 0.0
  %5076 = vmatmul.mubr.f32.gmra.mrb[0].mxu0 %v4971
  %v5077 = vpop.f32.mrb[0].mxu0
  %v5078 = vadd.f32 0.0, %v5077
  %v5079 = vpop.f32.mrb[0].mxu0
  %5080 = vmatprep.mubr.f32.mxu0 0.0
  %5081 = vmatmul.mubr.f32.gmra.mrb[0].mxu0 %v4972
  %v5082 = vpop.f32.mrb[0].mxu0
  %v5083 = vadd.f32 0.0, %v5082
  %v5084 = vpop.f32.mrb[0].mxu0
  %5085 = vmatprep.mubr.f32.mxu0 0.0
  %5086 = vmatmul.mubr.f32.gmra.mrb[0].mxu0 %v4973
  %v5087 = vpop.f32.mrb[0].mxu0
  %v5088 = vadd.f32 0.0, %v5087
  %v5089 = vpop.f32.mrb[0].mxu0
  %5090 = vmatprep.mubr.f32.mxu0 0.0
  %5091 = vmatmul.mubr.f32.gmra.mrb[0].mxu0 %v4974
  %v5092 = vpop.f32.mrb[0].mxu0
  %v5093 = vadd.f32 0.0, %v5092
  %v5094 = vpop.f32.mrb[0].mxu0
  %5095 = vmatprep.mubr.f32.mxu0 0.0
  %5096 = vmatmul.mubr.f32.gmra.mrb[0].mxu0 %v4975
  %v5097 = vpop.f32.mrb[0].mxu0
  %v5098 = vadd.f32 0.0, %v5097
  %v5099 = vpop.f32.mrb[0].mxu0
  %5100 = vmatprep.mubr.f32.mxu0 0.0
  %5101 = vmatmul.mubr.f32.gmra.mrb[0].mxu0 %v4976
  %v5102 = vpop.f32.mrb[0].mxu0
  %v5103 = vadd.f32 0.0, %v5102
  %v5104 = vpop.f32.mrb[0].mxu0
  %5105 = vmatprep.mubr.f32.mxu0 0.0
  %5106 = vmatmul.mubr.f32.gmra.mrb[0].mxu0 %v4977
  %v5107 = vpop.f32.mrb[0].mxu0
  %v5108 = vadd.f32 0.0, %v5107
  %v5109 = vpop.f32.mrb[0].mxu0
  %5110 = vmatprep.mubr.f32.mxu0 0.0
  %5111 = vmatmul.mubr.f32.gmra.mrb[0].mxu0 %v4978
  %v5112 = vpop.f32.mrb[0].mxu0
  %v5113 = vadd.f32 0.0, %v5112
  %v5114 = vpop.f32.mrb[0].mxu0
  %5115 = vmatprep.mubr.f32.mxu0 0.0
  %5116 = vmatmul.mubr.f32.gmra.mrb[0].mxu0 %v4979
  %v5117 = vpop.f32.mrb[0].mxu0
  %v5118 = vadd.f32 0.0, %v5117
  %v5119 = vpop.f32.mrb[0].mxu0
  %5120 = vmatprep.mubr.f32.mxu0 0.0
  %5121 = vmatmul.mubr.f32.gmra.mrb[0].mxu0 %v4980
  %v5122 = vpop.f32.mrb[0].mxu0
  %v5123 = vadd.f32 0.0, %v5122
  %v5124 = vpop.f32.mrb[0].mxu0
  %5125 = vdwg.mxu0
  %s5126 = scalar_lea.vmem %s3, 1792
  %v5127 = vld [vmem:[%s5126] sm:$0xff]
  %v5128 = vld [vmem:[%s5126 + $0x8] sm:$0xff]
  %v5129 = vld [vmem:[%s5126 + $0x10] sm:$0xff]
  %v5130 = vld [vmem:[%s5126 + $0x18] sm:$0xff]
  %v5131 = vld [vmem:[%s5126 + $0x20] sm:$0xff]
  %v5132 = vld [vmem:[%s5126 + $0x28] sm:$0xff]
  %v5133 = vld [vmem:[%s5126 + $0x30] sm:$0xff]
  %v5134 = vld [vmem:[%s5126 + $0x38] sm:$0xff]
  %v5135 = vld [vmem:[%s5126 + $0x40] sm:$0xff]
  %v5136 = vld [vmem:[%s5126 + $0x48] sm:$0xff]
  %v5137 = vld [vmem:[%s5126 + $0x50] sm:$0xff]
  %v5138 = vld [vmem:[%s5126 + $0x58] sm:$0xff]
  %v5139 = vld [vmem:[%s5126 + $0x60] sm:$0xff]
  %v5140 = vld [vmem:[%s5126 + $0x68] sm:$0xff]
  %v5141 = vld [vmem:[%s5126 + $0x70] sm:$0xff]
  %v5142 = vld [vmem:[%s5126 + $0x78] sm:$0xff]
  %5143 = vmatprep.subr.mxu0 0.0
  %5144 = vmatpush1.msra.mxu0 %v5127
  %5145 = vmatprep.subr.mxu0 0.0
  %5146 = vmatpush1.msra.mxu0 %v5128
  %5147 = vmatprep.subr.mxu0 0.0
  %5148 = vmatpush1.msra.mxu0 %v5129
  %5149 = vmatprep.subr.mxu0 0.0
  %5150 = vmatpush1.msra.mxu0 %v5130
  %5151 = vmatprep.subr.mxu0 0.0
  %5152 = vmatpush1.msra.mxu0 %v5131
  %5153 = vmatprep.subr.mxu0 0.0
  %5154 = vmatpush1.msra.mxu0 %v5132
  %5155 = vmatprep.subr.mxu0 0.0
  %5156 = vmatpush1.msra.mxu0 %v5133
  %5157 = vmatprep.subr.mxu0 0.0
  %5158 = vmatpush1.msra.mxu0 %v5134
  %5159 = vmatprep.subr.mxu0 0.0
  %5160 = vmatpush1.msra.mxu0 %v5135
  %5161 = vmatprep.subr.mxu0 0.0
  %5162 = vmatpush1.msra.mxu0 %v5136
  %5163 = vmatprep.subr.mxu0 0.0
  %5164 = vmatpush1.msra.mxu0 %v5137
  %5165 = vmatprep.subr.mxu0 0.0
  %5166 = vmatpush1.msra.mxu0 %v5138
  %5167 = vmatprep.subr.mxu0 0.0
  %5168 = vmatpush1.msra.mxu0 %v5139
  %5169 = vmatprep.subr.mxu0 0.0
  %5170 = vmatpush1.msra.mxu0 %v5140
  %5171 = vmatprep.subr.mxu0 0.0
  %5172 = vmatpush1.msra.mxu0 %v5141
  %5173 = vmatprep.subr.mxu0 0.0
  %5174 = vmatpush1.msra.mxu0 %v5142
  %5175 = vmatprep.subr.mxu0 0.0
  %5176 = vmatpush1.msra.mxu0 0.0
  %5177 = vmatprep.subr.mxu0 0.0
  %5178 = vmatpush1.msra.mxu0 0.0
  %5179 = vmatprep.subr.mxu0 0.0
  %5180 = vmatpush1.msra.mxu0 0.0
  %5181 = vmatprep.subr.mxu0 0.0
  %5182 = vmatpush1.msra.mxu0 0.0
  %5183 = vmatprep.subr.mxu0 0.0
  %5184 = vmatpush1.msra.mxu0 0.0
  %5185 = vmatprep.subr.mxu0 0.0
  %5186 = vmatpush1.msra.mxu0 0.0
  %5187 = vmatprep.subr.mxu0 0.0
  %5188 = vmatpush1.msra.mxu0 0.0
  %5189 = vmatprep.subr.mxu0 0.0
  %5190 = vmatpush1.msra.mxu0 0.0
  %5191 = vmatprep.subr.mxu0 0.0
  %5192 = vmatpush1.msra.mxu0 0.0
  %5193 = vmatprep.subr.mxu0 0.0
  %5194 = vmatpush1.msra.mxu0 0.0
  %5195 = vmatprep.subr.mxu0 0.0
  %5196 = vmatpush1.msra.mxu0 0.0
  %5197 = vmatprep.subr.mxu0 0.0
  %5198 = vmatpush1.msra.mxu0 0.0
  %5199 = vmatprep.subr.mxu0 0.0
  %5200 = vmatpush1.msra.mxu0 0.0
  %5201 = vmatprep.subr.mxu0 0.0
  %5202 = vmatpush1.msra.mxu0 0.0
  %5203 = vmatprep.subr.mxu0 0.0
  %5204 = vmatpush1.msra.mxu0 0.0
  %5205 = vmatprep.subr.mxu0 0.0
  %5206 = vmatpush1.msra.mxu0 0.0
  %5207 = vmatprep.mubr.f32.mxu0 0.0
  %5208 = vmatmul.mubr.f32.gmra.mrb[0].mxu0 %v5048
  %v5209 = vpop.f32.mrb[0].mxu0
  %v5210 = vadd.f32 0.0, %v5209
  %v5211 = vpop.f32.mrb[0].mxu0
  %5212 = vmatprep.mubr.f32.mxu0 0.0
  %5213 = vmatmul.mubr.f32.gmra.mrb[0].mxu0 %v5053
  %v5214 = vpop.f32.mrb[0].mxu0
  %v5215 = vadd.f32 0.0, %v5214
  %v5216 = vpop.f32.mrb[0].mxu0
  %5217 = vmatprep.mubr.f32.mxu0 0.0
  %5218 = vmatmul.mubr.f32.gmra.mrb[0].mxu0 %v5058
  %v5219 = vpop.f32.mrb[0].mxu0
  %v5220 = vadd.f32 0.0, %v5219
  %v5221 = vpop.f32.mrb[0].mxu0
  %5222 = vmatprep.mubr.f32.mxu0 0.0
  %5223 = vmatmul.mubr.f32.gmra.mrb[0].mxu0 %v5063
  %v5224 = vpop.f32.mrb[0].mxu0
  %v5225 = vadd.f32 0.0, %v5224
  %v5226 = vpop.f32.mrb[0].mxu0
  %5227 = vmatprep.mubr.f32.mxu0 0.0
  %5228 = vmatmul.mubr.f32.gmra.mrb[0].mxu0 %v5068
  %v5229 = vpop.f32.mrb[0].mxu0
  %v5230 = vadd.f32 0.0, %v5229
  %v5231 = vpop.f32.mrb[0].mxu0
  %5232 = vmatprep.mubr.f32.mxu0 0.0
  %5233 = vmatmul.mubr.f32.gmra.mrb[0].mxu0 %v5073
  %v5234 = vpop.f32.mrb[0].mxu0
  %v5235 = vadd.f32 0.0, %v5234
  %v5236 = vpop.f32.mrb[0].mxu0
  %5237 = vmatprep.mubr.f32.mxu0 0.0
  %5238 = vmatmul.mubr.f32.gmra.mrb[0].mxu0 %v5078
  %v5239 = vpop.f32.mrb[0].mxu0
  %v5240 = vadd.f32 0.0, %v5239
  %v5241 = vpop.f32.mrb[0].mxu0
  %5242 = vmatprep.mubr.f32.mxu0 0.0
  %5243 = vmatmul.mubr.f32.gmra.mrb[0].mxu0 %v5083
  %v5244 = vpop.f32.mrb[0].mxu0
  %v5245 = vadd.f32 0.0, %v5244
  %v5246 = vpop.f32.mrb[0].mxu0
  %5247 = vmatprep.mubr.f32.mxu0 0.0
  %5248 = vmatmul.mubr.f32.gmra.mrb[0].mxu0 %v5088
  %v5249 = vpop.f32.mrb[0].mxu0
  %v5250 = vadd.f32 0.0, %v5249
  %v5251 = vpop.f32.mrb[0].mxu0
  %5252 = vmatprep.mubr.f32.mxu0 0.0
  %5253 = vmatmul.mubr.f32.gmra.mrb[0].mxu0 %v5093
  %v5254 = vpop.f32.mrb[0].mxu0
  %v5255 = vadd.f32 0.0, %v5254
  %v5256 = vpop.f32.mrb[0].mxu0
  %5257 = vmatprep.mubr.f32.mxu0 0.0
  %5258 = vmatmul.mubr.f32.gmra.mrb[0].mxu0 %v5098
  %v5259 = vpop.f32.mrb[0].mxu0
  %v5260 = vadd.f32 0.0, %v5259
  %v5261 = vpop.f32.mrb[0].mxu0
  %5262 = vmatprep.mubr.f32.mxu0 0.0
  %5263 = vmatmul.mubr.f32.gmra.mrb[0].mxu0 %v5103
  %v5264 = vpop.f32.mrb[0].mxu0
  %v5265 = vadd.f32 0.0, %v5264
  %v5266 = vpop.f32.mrb[0].mxu0
  %5267 = vmatprep.mubr.f32.mxu0 0.0
  %5268 = vmatmul.mubr.f32.gmra.mrb[0].mxu0 %v5108
  %v5269 = vpop.f32.mrb[0].mxu0
  %v5270 = vadd.f32 0.0, %v5269
  %v5271 = vpop.f32.mrb[0].mxu0
  %5272 = vmatprep.mubr.f32.mxu0 0.0
  %5273 = vmatmul.mubr.f32.gmra.mrb[0].mxu0 %v5113
  %v5274 = vpop.f32.mrb[0].mxu0
  %v5275 = vadd.f32 0.0, %v5274
  %v5276 = vpop.f32.mrb[0].mxu0
  %5277 = vmatprep.mubr.f32.mxu0 0.0
  %5278 = vmatmul.mubr.f32.gmra.mrb[0].mxu0 %v5118
  %v5279 = vpop.f32.mrb[0].mxu0
  %v5280 = vadd.f32 0.0, %v5279
  %v5281 = vpop.f32.mrb[0].mxu0
  %5282 = vmatprep.mubr.f32.mxu0 0.0
  %5283 = vmatmul.mubr.f32.gmra.mrb[0].mxu0 %v5123
  %v5284 = vpop.f32.mrb[0].mxu0
  %v5285 = vadd.f32 0.0, %v5284
  %v5286 = vpop.f32.mrb[0].mxu0
  %5287 = vdwg.mxu0
  %v5288 = vadd.f32 %v4948, %v5210
  %v5289 = vadd.f32 %v4949, %v5215
  %v5290 = vadd.f32 %v4950, %v5220
  %v5291 = vadd.f32 %v4951, %v5225
  %v5292 = vadd.f32 %v4952, %v5230
  %v5293 = vadd.f32 %v4953, %v5235
  %v5294 = vadd.f32 %v4954, %v5240
  %v5295 = vadd.f32 %v4955, %v5245
  %v5296 = vadd.f32 %v4956, %v5250
  %v5297 = vadd.f32 %v4957, %v5255
  %v5298 = vadd.f32 %v4958, %v5260
  %v5299 = vadd.f32 %v4959, %v5265
  %v5300 = vadd.f32 %v4960, %v5270
  %v5301 = vadd.f32 %v4961, %v5275
  %v5302 = vadd.f32 %v4962, %v5280
  %v5303 = vadd.f32 %v4963, %v5285
  %s5304 = scalar_lea.vmem %s2, 1920
  %v5305 = vld [vmem:[%s5304] sm:$0xff]
  %v5306 = vld [vmem:[%s5304 + $0x8] sm:$0xff]
  %v5307 = vld [vmem:[%s5304 + $0x10] sm:$0xff]
  %v5308 = vld [vmem:[%s5304 + $0x18] sm:$0xff]
  %v5309 = vld [vmem:[%s5304 + $0x20] sm:$0xff]
  %v5310 = vld [vmem:[%s5304 + $0x28] sm:$0xff]
  %v5311 = vld [vmem:[%s5304 + $0x30] sm:$0xff]
  %v5312 = vld [vmem:[%s5304 + $0x38] sm:$0xff]
  %v5313 = vld [vmem:[%s5304 + $0x40] sm:$0xff]
  %v5314 = vld [vmem:[%s5304 + $0x48] sm:$0xff]
  %v5315 = vld [vmem:[%s5304 + $0x50] sm:$0xff]
  %v5316 = vld [vmem:[%s5304 + $0x58] sm:$0xff]
  %v5317 = vld [vmem:[%s5304 + $0x60] sm:$0xff]
  %v5318 = vld [vmem:[%s5304 + $0x68] sm:$0xff]
  %v5319 = vld [vmem:[%s5304 + $0x70] sm:$0xff]
  %v5320 = vld [vmem:[%s5304 + $0x78] sm:$0xff]
  %5321 = vmatprep.subr.mxu0 0.0
  %5322 = vmatpush1.msra.mxu0 %v222
  %5323 = vmatprep.subr.mxu0 0.0
  %5324 = vmatpush1.msra.mxu0 %v223
  %5325 = vmatprep.subr.mxu0 0.0
  %5326 = vmatpush1.msra.mxu0 %v224
  %5327 = vmatprep.subr.mxu0 0.0
  %5328 = vmatpush1.msra.mxu0 %v225
  %5329 = vmatprep.subr.mxu0 0.0
  %5330 = vmatpush1.msra.mxu0 %v226
  %5331 = vmatprep.subr.mxu0 0.0
  %5332 = vmatpush1.msra.mxu0 %v227
  %5333 = vmatprep.subr.mxu0 0.0
  %5334 = vmatpush1.msra.mxu0 %v228
  %5335 = vmatprep.subr.mxu0 0.0
  %5336 = vmatpush1.msra.mxu0 %v229
  %5337 = vmatprep.subr.mxu0 0.0
  %5338 = vmatpush1.msra.mxu0 %v230
  %5339 = vmatprep.subr.mxu0 0.0
  %5340 = vmatpush1.msra.mxu0 %v231
  %5341 = vmatprep.subr.mxu0 0.0
  %5342 = vmatpush1.msra.mxu0 %v232
  %5343 = vmatprep.subr.mxu0 0.0
  %5344 = vmatpush1.msra.mxu0 %v233
  %5345 = vmatprep.subr.mxu0 0.0
  %5346 = vmatpush1.msra.mxu0 %v234
  %5347 = vmatprep.subr.mxu0 0.0
  %5348 = vmatpush1.msra.mxu0 %v235
  %5349 = vmatprep.subr.mxu0 0.0
  %5350 = vmatpush1.msra.mxu0 %v236
  %5351 = vmatprep.subr.mxu0 0.0
  %5352 = vmatpush1.msra.mxu0 %v237
  %5353 = vmatprep.subr.mxu0 0.0
  %5354 = vmatpush1.msra.mxu0 0.0
  %5355 = vmatprep.subr.mxu0 0.0
  %5356 = vmatpush1.msra.mxu0 0.0
  %5357 = vmatprep.subr.mxu0 0.0
  %5358 = vmatpush1.msra.mxu0 0.0
  %5359 = vmatprep.subr.mxu0 0.0
  %5360 = vmatpush1.msra.mxu0 0.0
  %5361 = vmatprep.subr.mxu0 0.0
  %5362 = vmatpush1.msra.mxu0 0.0
  %5363 = vmatprep.subr.mxu0 0.0
  %5364 = vmatpush1.msra.mxu0 0.0
  %5365 = vmatprep.subr.mxu0 0.0
  %5366 = vmatpush1.msra.mxu0 0.0
  %5367 = vmatprep.subr.mxu0 0.0
  %5368 = vmatpush1.msra.mxu0 0.0
  %5369 = vmatprep.subr.mxu0 0.0
  %5370 = vmatpush1.msra.mxu0 0.0
  %5371 = vmatprep.subr.mxu0 0.0
  %5372 = vmatpush1.msra.mxu0 0.0
  %5373 = vmatprep.subr.mxu0 0.0
  %5374 = vmatpush1.msra.mxu0 0.0
  %5375 = vmatprep.subr.mxu0 0.0
  %5376 = vmatpush1.msra.mxu0 0.0
  %5377 = vmatprep.subr.mxu0 0.0
  %5378 = vmatpush1.msra.mxu0 0.0
  %5379 = vmatprep.subr.mxu0 0.0
  %5380 = vmatpush1.msra.mxu0 0.0
  %5381 = vmatprep.subr.mxu0 0.0
  %5382 = vmatpush1.msra.mxu0 0.0
  %5383 = vmatprep.subr.mxu0 0.0
  %5384 = vmatpush1.msra.mxu0 0.0
  %5385 = vmatprep.mubr.f32.mxu0 0.0
  %5386 = vmatmul.mubr.f32.gmra.mrb[0].mxu0 %v5305
  %v5387 = vpop.f32.mrb[0].mxu0
  %v5388 = vadd.f32 0.0, %v5387
  %v5389 = vpop.f32.mrb[0].mxu0
  %5390 = vmatprep.mubr.f32.mxu0 0.0
  %5391 = vmatmul.mubr.f32.gmra.mrb[0].mxu0 %v5306
  %v5392 = vpop.f32.mrb[0].mxu0
  %v5393 = vadd.f32 0.0, %v5392
  %v5394 = vpop.f32.mrb[0].mxu0
  %5395 = vmatprep.mubr.f32.mxu0 0.0
  %5396 = vmatmul.mubr.f32.gmra.mrb[0].mxu0 %v5307
  %v5397 = vpop.f32.mrb[0].mxu0
  %v5398 = vadd.f32 0.0, %v5397
  %v5399 = vpop.f32.mrb[0].mxu0
  %5400 = vmatprep.mubr.f32.mxu0 0.0
  %5401 = vmatmul.mubr.f32.gmra.mrb[0].mxu0 %v5308
  %v5402 = vpop.f32.mrb[0].mxu0
  %v5403 = vadd.f32 0.0, %v5402
  %v5404 = vpop.f32.mrb[0].mxu0
  %5405 = vmatprep.mubr.f32.mxu0 0.0
  %5406 = vmatmul.mubr.f32.gmra.mrb[0].mxu0 %v5309
  %v5407 = vpop.f32.mrb[0].mxu0
  %v5408 = vadd.f32 0.0, %v5407
  %v5409 = vpop.f32.mrb[0].mxu0
  %5410 = vmatprep.mubr.f32.mxu0 0.0
  %5411 = vmatmul.mubr.f32.gmra.mrb[0].mxu0 %v5310
  %v5412 = vpop.f32.mrb[0].mxu0
  %v5413 = vadd.f32 0.0, %v5412
  %v5414 = vpop.f32.mrb[0].mxu0
  %5415 = vmatprep.mubr.f32.mxu0 0.0
  %5416 = vmatmul.mubr.f32.gmra.mrb[0].mxu0 %v5311
  %v5417 = vpop.f32.mrb[0].mxu0
  %v5418 = vadd.f32 0.0, %v5417
  %v5419 = vpop.f32.mrb[0].mxu0
  %5420 = vmatprep.mubr.f32.mxu0 0.0
  %5421 = vmatmul.mubr.f32.gmra.mrb[0].mxu0 %v5312
  %v5422 = vpop.f32.mrb[0].mxu0
  %v5423 = vadd.f32 0.0, %v5422
  %v5424 = vpop.f32.mrb[0].mxu0
  %5425 = vmatprep.mubr.f32.mxu0 0.0
  %5426 = vmatmul.mubr.f32.gmra.mrb[0].mxu0 %v5313
  %v5427 = vpop.f32.mrb[0].mxu0
  %v5428 = vadd.f32 0.0, %v5427
  %v5429 = vpop.f32.mrb[0].mxu0
  %5430 = vmatprep.mubr.f32.mxu0 0.0
  %5431 = vmatmul.mubr.f32.gmra.mrb[0].mxu0 %v5314
  %v5432 = vpop.f32.mrb[0].mxu0
  %v5433 = vadd.f32 0.0, %v5432
  %v5434 = vpop.f32.mrb[0].mxu0
  %5435 = vmatprep.mubr.f32.mxu0 0.0
  %5436 = vmatmul.mubr.f32.gmra.mrb[0].mxu0 %v5315
  %v5437 = vpop.f32.mrb[0].mxu0
  %v5438 = vadd.f32 0.0, %v5437
  %v5439 = vpop.f32.mrb[0].mxu0
  %5440 = vmatprep.mubr.f32.mxu0 0.0
  %5441 = vmatmul.mubr.f32.gmra.mrb[0].mxu0 %v5316
  %v5442 = vpop.f32.mrb[0].mxu0
  %v5443 = vadd.f32 0.0, %v5442
  %v5444 = vpop.f32.mrb[0].mxu0
  %5445 = vmatprep.mubr.f32.mxu0 0.0
  %5446 = vmatmul.mubr.f32.gmra.mrb[0].mxu0 %v5317
  %v5447 = vpop.f32.mrb[0].mxu0
  %v5448 = vadd.f32 0.0, %v5447
  %v5449 = vpop.f32.mrb[0].mxu0
  %5450 = vmatprep.mubr.f32.mxu0 0.0
  %5451 = vmatmul.mubr.f32.gmra.mrb[0].mxu0 %v5318
  %v5452 = vpop.f32.mrb[0].mxu0
  %v5453 = vadd.f32 0.0, %v5452
  %v5454 = vpop.f32.mrb[0].mxu0
  %5455 = vmatprep.mubr.f32.mxu0 0.0
  %5456 = vmatmul.mubr.f32.gmra.mrb[0].mxu0 %v5319
  %v5457 = vpop.f32.mrb[0].mxu0
  %v5458 = vadd.f32 0.0, %v5457
  %v5459 = vpop.f32.mrb[0].mxu0
  %5460 = vmatprep.mubr.f32.mxu0 0.0
  %5461 = vmatmul.mubr.f32.gmra.mrb[0].mxu0 %v5320
  %v5462 = vpop.f32.mrb[0].mxu0
  %v5463 = vadd.f32 0.0, %v5462
  %v5464 = vpop.f32.mrb[0].mxu0
  %5465 = vdwg.mxu0
  %s5466 = scalar_lea.vmem %s3, 1920
  %v5467 = vld [vmem:[%s5466] sm:$0xff]
  %v5468 = vld [vmem:[%s5466 + $0x8] sm:$0xff]
  %v5469 = vld [vmem:[%s5466 + $0x10] sm:$0xff]
  %v5470 = vld [vmem:[%s5466 + $0x18] sm:$0xff]
  %v5471 = vld [vmem:[%s5466 + $0x20] sm:$0xff]
  %v5472 = vld [vmem:[%s5466 + $0x28] sm:$0xff]
  %v5473 = vld [vmem:[%s5466 + $0x30] sm:$0xff]
  %v5474 = vld [vmem:[%s5466 + $0x38] sm:$0xff]
  %v5475 = vld [vmem:[%s5466 + $0x40] sm:$0xff]
  %v5476 = vld [vmem:[%s5466 + $0x48] sm:$0xff]
  %v5477 = vld [vmem:[%s5466 + $0x50] sm:$0xff]
  %v5478 = vld [vmem:[%s5466 + $0x58] sm:$0xff]
  %v5479 = vld [vmem:[%s5466 + $0x60] sm:$0xff]
  %v5480 = vld [vmem:[%s5466 + $0x68] sm:$0xff]
  %v5481 = vld [vmem:[%s5466 + $0x70] sm:$0xff]
  %v5482 = vld [vmem:[%s5466 + $0x78] sm:$0xff]
  %5483 = vmatprep.subr.mxu0 0.0
  %5484 = vmatpush1.msra.mxu0 %v5467
  %5485 = vmatprep.subr.mxu0 0.0
  %5486 = vmatpush1.msra.mxu0 %v5468
  %5487 = vmatprep.subr.mxu0 0.0
  %5488 = vmatpush1.msra.mxu0 %v5469
  %5489 = vmatprep.subr.mxu0 0.0
  %5490 = vmatpush1.msra.mxu0 %v5470
  %5491 = vmatprep.subr.mxu0 0.0
  %5492 = vmatpush1.msra.mxu0 %v5471
  %5493 = vmatprep.subr.mxu0 0.0
  %5494 = vmatpush1.msra.mxu0 %v5472
  %5495 = vmatprep.subr.mxu0 0.0
  %5496 = vmatpush1.msra.mxu0 %v5473
  %5497 = vmatprep.subr.mxu0 0.0
  %5498 = vmatpush1.msra.mxu0 %v5474
  %5499 = vmatprep.subr.mxu0 0.0
  %5500 = vmatpush1.msra.mxu0 %v5475
  %5501 = vmatprep.subr.mxu0 0.0
  %5502 = vmatpush1.msra.mxu0 %v5476
  %5503 = vmatprep.subr.mxu0 0.0
  %5504 = vmatpush1.msra.mxu0 %v5477
  %5505 = vmatprep.subr.mxu0 0.0
  %5506 = vmatpush1.msra.mxu0 %v5478
  %5507 = vmatprep.subr.mxu0 0.0
  %5508 = vmatpush1.msra.mxu0 %v5479
  %5509 = vmatprep.subr.mxu0 0.0
  %5510 = vmatpush1.msra.mxu0 %v5480
  %5511 = vmatprep.subr.mxu0 0.0
  %5512 = vmatpush1.msra.mxu0 %v5481
  %5513 = vmatprep.subr.mxu0 0.0
  %5514 = vmatpush1.msra.mxu0 %v5482
  %5515 = vmatprep.subr.mxu0 0.0
  %5516 = vmatpush1.msra.mxu0 0.0
  %5517 = vmatprep.subr.mxu0 0.0
  %5518 = vmatpush1.msra.mxu0 0.0
  %5519 = vmatprep.subr.mxu0 0.0
  %5520 = vmatpush1.msra.mxu0 0.0
  %5521 = vmatprep.subr.mxu0 0.0
  %5522 = vmatpush1.msra.mxu0 0.0
  %5523 = vmatprep.subr.mxu0 0.0
  %5524 = vmatpush1.msra.mxu0 0.0
  %5525 = vmatprep.subr.mxu0 0.0
  %5526 = vmatpush1.msra.mxu0 0.0
  %5527 = vmatprep.subr.mxu0 0.0
  %5528 = vmatpush1.msra.mxu0 0.0
  %5529 = vmatprep.subr.mxu0 0.0
  %5530 = vmatpush1.msra.mxu0 0.0
  %5531 = vmatprep.subr.mxu0 0.0
  %5532 = vmatpush1.msra.mxu0 0.0
  %5533 = vmatprep.subr.mxu0 0.0
  %5534 = vmatpush1.msra.mxu0 0.0
  %5535 = vmatprep.subr.mxu0 0.0
  %5536 = vmatpush1.msra.mxu0 0.0
  %5537 = vmatprep.subr.mxu0 0.0
  %5538 = vmatpush1.msra.mxu0 0.0
  %5539 = vmatprep.subr.mxu0 0.0
  %5540 = vmatpush1.msra.mxu0 0.0
  %5541 = vmatprep.subr.mxu0 0.0
  %5542 = vmatpush1.msra.mxu0 0.0
  %5543 = vmatprep.subr.mxu0 0.0
  %5544 = vmatpush1.msra.mxu0 0.0
  %5545 = vmatprep.subr.mxu0 0.0
  %5546 = vmatpush1.msra.mxu0 0.0
  %5547 = vmatprep.mubr.f32.mxu0 0.0
  %5548 = vmatmul.mubr.f32.gmra.mrb[0].mxu0 %v5388
  %v5549 = vpop.f32.mrb[0].mxu0
  %v5550 = vadd.f32 0.0, %v5549
  %v5551 = vpop.f32.mrb[0].mxu0
  %5552 = vmatprep.mubr.f32.mxu0 0.0
  %5553 = vmatmul.mubr.f32.gmra.mrb[0].mxu0 %v5393
  %v5554 = vpop.f32.mrb[0].mxu0
  %v5555 = vadd.f32 0.0, %v5554
  %v5556 = vpop.f32.mrb[0].mxu0
  %5557 = vmatprep.mubr.f32.mxu0 0.0
  %5558 = vmatmul.mubr.f32.gmra.mrb[0].mxu0 %v5398
  %v5559 = vpop.f32.mrb[0].mxu0
  %v5560 = vadd.f32 0.0, %v5559
  %v5561 = vpop.f32.mrb[0].mxu0
  %5562 = vmatprep.mubr.f32.mxu0 0.0
  %5563 = vmatmul.mubr.f32.gmra.mrb[0].mxu0 %v5403
  %v5564 = vpop.f32.mrb[0].mxu0
  %v5565 = vadd.f32 0.0, %v5564
  %v5566 = vpop.f32.mrb[0].mxu0
  %5567 = vmatprep.mubr.f32.mxu0 0.0
  %5568 = vmatmul.mubr.f32.gmra.mrb[0].mxu0 %v5408
  %v5569 = vpop.f32.mrb[0].mxu0
  %v5570 = vadd.f32 0.0, %v5569
  %v5571 = vpop.f32.mrb[0].mxu0
  %5572 = vmatprep.mubr.f32.mxu0 0.0
  %5573 = vmatmul.mubr.f32.gmra.mrb[0].mxu0 %v5413
  %v5574 = vpop.f32.mrb[0].mxu0
  %v5575 = vadd.f32 0.0, %v5574
  %v5576 = vpop.f32.mrb[0].mxu0
  %5577 = vmatprep.mubr.f32.mxu0 0.0
  %5578 = vmatmul.mubr.f32.gmra.mrb[0].mxu0 %v5418
  %v5579 = vpop.f32.mrb[0].mxu0
  %v5580 = vadd.f32 0.0, %v5579
  %v5581 = vpop.f32.mrb[0].mxu0
  %5582 = vmatprep.mubr.f32.mxu0 0.0
  %5583 = vmatmul.mubr.f32.gmra.mrb[0].mxu0 %v5423
  %v5584 = vpop.f32.mrb[0].mxu0
  %v5585 = vadd.f32 0.0, %v5584
  %v5586 = vpop.f32.mrb[0].mxu0
  %5587 = vmatprep.mubr.f32.mxu0 0.0
  %5588 = vmatmul.mubr.f32.gmra.mrb[0].mxu0 %v5428
  %v5589 = vpop.f32.mrb[0].mxu0
  %v5590 = vadd.f32 0.0, %v5589
  %v5591 = vpop.f32.mrb[0].mxu0
  %5592 = vmatprep.mubr.f32.mxu0 0.0
  %5593 = vmatmul.mubr.f32.gmra.mrb[0].mxu0 %v5433
  %v5594 = vpop.f32.mrb[0].mxu0
  %v5595 = vadd.f32 0.0, %v5594
  %v5596 = vpop.f32.mrb[0].mxu0
  %5597 = vmatprep.mubr.f32.mxu0 0.0
  %5598 = vmatmul.mubr.f32.gmra.mrb[0].mxu0 %v5438
  %v5599 = vpop.f32.mrb[0].mxu0
  %v5600 = vadd.f32 0.0, %v5599
  %v5601 = vpop.f32.mrb[0].mxu0
  %5602 = vmatprep.mubr.f32.mxu0 0.0
  %5603 = vmatmul.mubr.f32.gmra.mrb[0].mxu0 %v5443
  %v5604 = vpop.f32.mrb[0].mxu0
  %v5605 = vadd.f32 0.0, %v5604
  %v5606 = vpop.f32.mrb[0].mxu0
  %5607 = vmatprep.mubr.f32.mxu0 0.0
  %5608 = vmatmul.mubr.f32.gmra.mrb[0].mxu0 %v5448
  %v5609 = vpop.f32.mrb[0].mxu0
  %v5610 = vadd.f32 0.0, %v5609
  %v5611 = vpop.f32.mrb[0].mxu0
  %5612 = vmatprep.mubr.f32.mxu0 0.0
  %5613 = vmatmul.mubr.f32.gmra.mrb[0].mxu0 %v5453
  %v5614 = vpop.f32.mrb[0].mxu0
  %v5615 = vadd.f32 0.0, %v5614
  %v5616 = vpop.f32.mrb[0].mxu0
  %5617 = vmatprep.mubr.f32.mxu0 0.0
  %5618 = vmatmul.mubr.f32.gmra.mrb[0].mxu0 %v5458
  %v5619 = vpop.f32.mrb[0].mxu0
  %v5620 = vadd.f32 0.0, %v5619
  %v5621 = vpop.f32.mrb[0].mxu0
  %5622 = vmatprep.mubr.f32.mxu0 0.0
  %5623 = vmatmul.mubr.f32.gmra.mrb[0].mxu0 %v5463
  %v5624 = vpop.f32.mrb[0].mxu0
  %v5625 = vadd.f32 0.0, %v5624
  %v5626 = vpop.f32.mrb[0].mxu0
  %5627 = vdwg.mxu0
  %v5628 = vadd.f32 %v5288, %v5550
  %v5629 = vadd.f32 %v5289, %v5555
  %v5630 = vadd.f32 %v5290, %v5560
  %v5631 = vadd.f32 %v5291, %v5565
  %v5632 = vadd.f32 %v5292, %v5570
  %v5633 = vadd.f32 %v5293, %v5575
  %v5634 = vadd.f32 %v5294, %v5580
  %v5635 = vadd.f32 %v5295, %v5585
  %v5636 = vadd.f32 %v5296, %v5590
  %v5637 = vadd.f32 %v5297, %v5595
  %v5638 = vadd.f32 %v5298, %v5600
  %v5639 = vadd.f32 %v5299, %v5605
  %v5640 = vadd.f32 %v5300, %v5610
  %v5641 = vadd.f32 %v5301, %v5615
  %v5642 = vadd.f32 %v5302, %v5620
  %v5643 = vadd.f32 %v5303, %v5625
  %v5644 = vadd.f32 %v5628, %v5629
  %v5645 = vadd.f32 %v5644, %v5630
  %v5646 = vadd.f32 %v5645, %v5631
  %v5647 = vadd.f32 %v5646, %v5632
  %v5648 = vadd.f32 %v5647, %v5633
  %v5649 = vadd.f32 %v5648, %v5634
  %v5650 = vadd.f32 %v5649, %v5635
  %v5651 = vadd.f32 %v5650, %v5636
  %v5652 = vadd.f32 %v5651, %v5637
  %v5653 = vadd.f32 %v5652, %v5638
  %v5654 = vadd.f32 %v5653, %v5639
  %v5655 = vadd.f32 %v5654, %v5640
  %v5656 = vadd.f32 %v5655, %v5641
  %v5657 = vadd.f32 %v5656, %v5642
  %v5658 = vadd.f32 %v5657, %v5643
  %v5659 = vrot.slane %v5658, 4
  %v5660 = vadd.f32 %v5658, %v5659
  %v5661 = vrot.slane %v5660, 2
  %v5662 = vadd.f32 %v5660, %v5661
  %v5663 = vrot.slane %v5662, 1
  %v5664 = vadd.f32 %v5662, %v5663
  %v5665 = vmul.f32 %v5664, 0.03125
  %v5666 = vlaneseq
  %v5667 = vshrl.u32 %v5666, 7
  %v5668 = vadd.s32 %v5667, 8
  %v5669 = vadd.s32 %v5667, 16
  %v5670 = vadd.s32 %v5667, 24
  %v5671 = vadd.s32 %v5667, 32
  %v5672 = vadd.s32 %v5667, 40
  %v5673 = vadd.s32 %v5667, 48
  %v5674 = vadd.s32 %v5667, 56
  %v5675 = vadd.s32 %v5667, 64
  %v5676 = vadd.s32 %v5667, 72
  %v5677 = vadd.s32 %v5667, 80
  %v5678 = vadd.s32 %v5667, 88
  %v5679 = vadd.s32 %v5667, 96
  %v5680 = vadd.s32 %v5667, 104
  %v5681 = vadd.s32 %v5667, 112
  %v5682 = vadd.s32 %v5667, 120
  %vm5683 = vcmp.lt.s32.totalorder %v5667, 32
  %vm5684 = vcmp.lt.s32.totalorder %v5668, 32
  %vm5685 = vcmp.lt.s32.totalorder %v5669, 32
  %vm5686 = vcmp.lt.s32.totalorder %v5670, 32
  %vm5687 = vcmp.lt.s32.totalorder %v5671, 32
  %vm5688 = vcmp.lt.s32.totalorder %v5672, 32
  %vm5689 = vcmp.lt.s32.totalorder %v5673, 32
  %vm5690 = vcmp.lt.s32.totalorder %v5674, 32
  %vm5691 = vcmp.lt.s32.totalorder %v5675, 32
  %vm5692 = vcmp.lt.s32.totalorder %v5676, 32
  %vm5693 = vcmp.lt.s32.totalorder %v5677, 32
  %vm5694 = vcmp.lt.s32.totalorder %v5678, 32
  %vm5695 = vcmp.lt.s32.totalorder %v5679, 32
  %vm5696 = vcmp.lt.s32.totalorder %v5680, 32
  %vm5697 = vcmp.lt.s32.totalorder %v5681, 32
  %vm5698 = vcmp.lt.s32.totalorder %v5682, 32
  %v5699 = vsub.f32 %v5628, %v5665
  %v5700 = vsub.f32 %v5629, %v5665
  %v5701 = vsub.f32 %v5630, %v5665
  %v5702 = vsub.f32 %v5631, %v5665
  %v5703 = vsub.f32 %v5632, %v5665
  %v5704 = vsub.f32 %v5633, %v5665
  %v5705 = vsub.f32 %v5634, %v5665
  %v5706 = vsub.f32 %v5635, %v5665
  %v5707 = vsub.f32 %v5636, %v5665
  %v5708 = vsub.f32 %v5637, %v5665
  %v5709 = vsub.f32 %v5638, %v5665
  %v5710 = vsub.f32 %v5639, %v5665
  %v5711 = vsub.f32 %v5640, %v5665
  %v5712 = vsub.f32 %v5641, %v5665
  %v5713 = vsub.f32 %v5642, %v5665
  %v5714 = vsub.f32 %v5643, %v5665
  %v5715 = vsel %vm5683, 1, 0
  %v5716 = vsel %vm5684, 1, 0
  %v5717 = vsel %vm5685, 1, 0
  %v5718 = vsel %vm5686, 1, 0
  %v5719 = vsel %vm5687, 1, 0
  %v5720 = vsel %vm5688, 1, 0
  %v5721 = vsel %vm5689, 1, 0
  %v5722 = vsel %vm5690, 1, 0
  %v5723 = vsel %vm5691, 1, 0
  %v5724 = vsel %vm5692, 1, 0
  %v5725 = vsel %vm5693, 1, 0
  %v5726 = vsel %vm5694, 1, 0
  %v5727 = vsel %vm5695, 1, 0
  %v5728 = vsel %vm5696, 1, 0
  %v5729 = vsel %vm5697, 1, 0
  %v5730 = vsel %vm5698, 1, 0
  %vm5731 = vcmp.eq.s32.totalorder %v5715, 1
  %vm5732 = vcmp.eq.s32.totalorder %v5716, 1
  %vm5733 = vcmp.eq.s32.totalorder %v5717, 1
  %vm5734 = vcmp.eq.s32.totalorder %v5718, 1
  %vm5735 = vcmp.eq.s32.totalorder %v5719, 1
  %vm5736 = vcmp.eq.s32.totalorder %v5720, 1
  %vm5737 = vcmp.eq.s32.totalorder %v5721, 1
  %vm5738 = vcmp.eq.s32.totalorder %v5722, 1
  %vm5739 = vcmp.eq.s32.totalorder %v5723, 1
  %vm5740 = vcmp.eq.s32.totalorder %v5724, 1
  %vm5741 = vcmp.eq.s32.totalorder %v5725, 1
  %vm5742 = vcmp.eq.s32.totalorder %v5726, 1
  %vm5743 = vcmp.eq.s32.totalorder %v5727, 1
  %vm5744 = vcmp.eq.s32.totalorder %v5728, 1
  %vm5745 = vcmp.eq.s32.totalorder %v5729, 1
  %vm5746 = vcmp.eq.s32.totalorder %v5730, 1
  %v5747 = vsel %vm5731, %v5699, 0.0
  %v5748 = vsel %vm5732, %v5700, 0.0
  %v5749 = vsel %vm5733, %v5701, 0.0
  %v5750 = vsel %vm5734, %v5702, 0.0
  %v5751 = vsel %vm5735, %v5703, 0.0
  %v5752 = vsel %vm5736, %v5704, 0.0
  %v5753 = vsel %vm5737, %v5705, 0.0
  %v5754 = vsel %vm5738, %v5706, 0.0
  %v5755 = vsel %vm5739, %v5707, 0.0
  %v5756 = vsel %vm5740, %v5708, 0.0
  %v5757 = vsel %vm5741, %v5709, 0.0
  %v5758 = vsel %vm5742, %v5710, 0.0
  %v5759 = vsel %vm5743, %v5711, 0.0
  %v5760 = vsel %vm5744, %v5712, 0.0
  %v5761 = vsel %vm5745, %v5713, 0.0
  %v5762 = vsel %vm5746, %v5714, 0.0
  %v5763 = vmul.f32 %v5747, %v5747
  %v5764 = vmul.f32 %v5748, %v5748
  %v5765 = vmul.f32 %v5749, %v5749
  %v5766 = vmul.f32 %v5750, %v5750
  %v5767 = vmul.f32 %v5751, %v5751
  %v5768 = vmul.f32 %v5752, %v5752
  %v5769 = vmul.f32 %v5753, %v5753
  %v5770 = vmul.f32 %v5754, %v5754
  %v5771 = vmul.f32 %v5755, %v5755
  %v5772 = vmul.f32 %v5756, %v5756
  %v5773 = vmul.f32 %v5757, %v5757
  %v5774 = vmul.f32 %v5758, %v5758
  %v5775 = vmul.f32 %v5759, %v5759
  %v5776 = vmul.f32 %v5760, %v5760
  %v5777 = vmul.f32 %v5761, %v5761
  %v5778 = vmul.f32 %v5762, %v5762
  %v5779 = vadd.f32 %v5763, %v5764
  %v5780 = vadd.f32 %v5779, %v5765
  %v5781 = vadd.f32 %v5780, %v5766
  %v5782 = vadd.f32 %v5781, %v5767
  %v5783 = vadd.f32 %v5782, %v5768
  %v5784 = vadd.f32 %v5783, %v5769
  %v5785 = vadd.f32 %v5784, %v5770
  %v5786 = vadd.f32 %v5785, %v5771
  %v5787 = vadd.f32 %v5786, %v5772
  %v5788 = vadd.f32 %v5787, %v5773
  %v5789 = vadd.f32 %v5788, %v5774
  %v5790 = vadd.f32 %v5789, %v5775
  %v5791 = vadd.f32 %v5790, %v5776
  %v5792 = vadd.f32 %v5791, %v5777
  %v5793 = vadd.f32 %v5792, %v5778
  %v5794 = vrot.slane %v5793, 4
  %v5795 = vadd.f32 %v5793, %v5794
  %v5796 = vrot.slane %v5795, 2
  %v5797 = vadd.f32 %v5795, %v5796
  %v5798 = vrot.slane %v5797, 1
  %v5799 = vadd.f32 %v5797, %v5798
  %v5800 = vmul.f32 %v5799, 0.03125
  %v5801 = vadd.f32 %v5800, 1e-05
  %v5802 = vrsqrt.pop %v5801
  %v5803 = vmul.f32 %v5699, %v5802
  %v5804 = vmul.f32 %v5700, %v5802
  %v5805 = vmul.f32 %v5701, %v5802
  %v5806 = vmul.f32 %v5702, %v5802
  %v5807 = vmul.f32 %v5703, %v5802
  %v5808 = vmul.f32 %v5704, %v5802
  %v5809 = vmul.f32 %v5705, %v5802
  %v5810 = vmul.f32 %v5706, %v5802
  %v5811 = vmul.f32 %v5707, %v5802
  %v5812 = vmul.f32 %v5708, %v5802
  %v5813 = vmul.f32 %v5709, %v5802
  %v5814 = vmul.f32 %v5710, %v5802
  %v5815 = vmul.f32 %v5711, %v5802
  %v5816 = vmul.f32 %v5712, %v5802
  %v5817 = vmul.f32 %v5713, %v5802
  %v5818 = vmul.f32 %v5714, %v5802
  %v5819 = vld [vmem:[%s4] sm:$0x1]
  %v5821 = vlaneseq
  %v5822 = vshrl.u32 %v5821, 7
  %v5823 = vsub.s32 0, %v5822
  %v5824 = vrot.slane %v5819, %v5823
  %v5826 = vmul.f32 %v5803, %v5824
  %v5827 = vmul.f32 %v5804, %v5824
  %v5828 = vmul.f32 %v5805, %v5824
  %v5829 = vmul.f32 %v5806, %v5824
  %v5830 = vmul.f32 %v5807, %v5824
  %v5831 = vmul.f32 %v5808, %v5824
  %v5832 = vmul.f32 %v5809, %v5824
  %v5833 = vmul.f32 %v5810, %v5824
  %v5834 = vmul.f32 %v5811, %v5824
  %v5835 = vmul.f32 %v5812, %v5824
  %v5836 = vmul.f32 %v5813, %v5824
  %v5837 = vmul.f32 %v5814, %v5824
  %v5838 = vmul.f32 %v5815, %v5824
  %v5839 = vmul.f32 %v5816, %v5824
  %v5840 = vmul.f32 %v5817, %v5824
  %v5841 = vmul.f32 %v5818, %v5824
  %v5842 = vld [vmem:[%s5] sm:$0x1]
  %v5844 = vlaneseq
  %v5845 = vshrl.u32 %v5844, 7
  %v5846 = vsub.s32 0, %v5845
  %v5847 = vrot.slane %v5842, %v5846
  %v5849 = vadd.f32 %v5826, %v5847
  %v5850 = vadd.f32 %v5827, %v5847
  %v5851 = vadd.f32 %v5828, %v5847
  %v5852 = vadd.f32 %v5829, %v5847
  %v5853 = vadd.f32 %v5830, %v5847
  %v5854 = vadd.f32 %v5831, %v5847
  %v5855 = vadd.f32 %v5832, %v5847
  %v5856 = vadd.f32 %v5833, %v5847
  %v5857 = vadd.f32 %v5834, %v5847
  %v5858 = vadd.f32 %v5835, %v5847
  %v5859 = vadd.f32 %v5836, %v5847
  %v5860 = vadd.f32 %v5837, %v5847
  %v5861 = vadd.f32 %v5838, %v5847
  %v5862 = vadd.f32 %v5839, %v5847
  %v5863 = vadd.f32 %v5840, %v5847
  %v5864 = vadd.f32 %v5841, %v5847
  %v5865 = vmul.f32 %v5849, 0.2
  %v5866 = vmul.f32 %v5850, 0.2
  %v5867 = vmul.f32 %v5851, 0.2
  %v5868 = vmul.f32 %v5852, 0.2
  %v5869 = vmul.f32 %v5853, 0.2
  %v5870 = vmul.f32 %v5854, 0.2
  %v5871 = vmul.f32 %v5855, 0.2
  %v5872 = vmul.f32 %v5856, 0.2
  %v5873 = vmul.f32 %v5857, 0.2
  %v5874 = vmul.f32 %v5858, 0.2
  %v5875 = vmul.f32 %v5859, 0.2
  %v5876 = vmul.f32 %v5860, 0.2
  %v5877 = vmul.f32 %v5861, 0.2
  %v5878 = vmul.f32 %v5862, 0.2
  %v5879 = vmul.f32 %v5863, 0.2
  %v5880 = vmul.f32 %v5864, 0.2
  %v5881 = vmax.f32 %v5849, %v5865
  %v5882 = vmax.f32 %v5850, %v5866
  %v5883 = vmax.f32 %v5851, %v5867
  %v5884 = vmax.f32 %v5852, %v5868
  %v5885 = vmax.f32 %v5853, %v5869
  %v5886 = vmax.f32 %v5854, %v5870
  %v5887 = vmax.f32 %v5855, %v5871
  %v5888 = vmax.f32 %v5856, %v5872
  %v5889 = vmax.f32 %v5857, %v5873
  %v5890 = vmax.f32 %v5858, %v5874
  %v5891 = vmax.f32 %v5859, %v5875
  %v5892 = vmax.f32 %v5860, %v5876
  %v5893 = vmax.f32 %v5861, %v5877
  %v5894 = vmax.f32 %v5862, %v5878
  %v5895 = vmax.f32 %v5863, %v5879
  %v5896 = vmax.f32 %v5864, %v5880
  %v5897 = vld [vmem:[%s7] sm:$0xff]
  %v5898 = vld [vmem:[%s6] sm:$0xff]
  %v5899 = vld [vmem:[%s6 + $0x8] sm:$0xff]
  %v5900 = vld [vmem:[%s6 + $0x10] sm:$0xff]
  %v5901 = vld [vmem:[%s6 + $0x18] sm:$0xff]
  %v5902 = vld [vmem:[%s6 + $0x20] sm:$0xff]
  %v5903 = vld [vmem:[%s6 + $0x28] sm:$0xff]
  %v5904 = vld [vmem:[%s6 + $0x30] sm:$0xff]
  %v5905 = vld [vmem:[%s6 + $0x38] sm:$0xff]
  %v5906 = vld [vmem:[%s6 + $0x40] sm:$0xff]
  %v5907 = vld [vmem:[%s6 + $0x48] sm:$0xff]
  %v5908 = vld [vmem:[%s6 + $0x50] sm:$0xff]
  %v5909 = vld [vmem:[%s6 + $0x58] sm:$0xff]
  %v5910 = vld [vmem:[%s6 + $0x60] sm:$0xff]
  %v5911 = vld [vmem:[%s6 + $0x68] sm:$0xff]
  %v5912 = vld [vmem:[%s6 + $0x70] sm:$0xff]
  %v5913 = vld [vmem:[%s6 + $0x78] sm:$0xff]
  %v5914 = vmul.f32 %v5881, %v5898
  %v5915 = vmul.f32 %v5882, %v5899
  %v5916 = vmul.f32 %v5883, %v5900
  %v5917 = vmul.f32 %v5884, %v5901
  %v5918 = vmul.f32 %v5885, %v5902
  %v5919 = vmul.f32 %v5886, %v5903
  %v5920 = vmul.f32 %v5887, %v5904
  %v5921 = vmul.f32 %v5888, %v5905
  %v5922 = vmul.f32 %v5889, %v5906
  %v5923 = vmul.f32 %v5890, %v5907
  %v5924 = vmul.f32 %v5891, %v5908
  %v5925 = vmul.f32 %v5892, %v5909
  %v5926 = vmul.f32 %v5893, %v5910
  %v5927 = vmul.f32 %v5894, %v5911
  %v5928 = vmul.f32 %v5895, %v5912
  %v5929 = vmul.f32 %v5896, %v5913
  %5930 = vmatprep.subr.mxu0 0.0
  %5931 = vmatpush1.msra.mxu0 %v5914
  %5932 = vmatprep.subr.mxu0 0.0
  %5933 = vmatpush1.msra.mxu0 %v5915
  %5934 = vmatprep.subr.mxu0 0.0
  %5935 = vmatpush1.msra.mxu0 %v5916
  %5936 = vmatprep.subr.mxu0 0.0
  %5937 = vmatpush1.msra.mxu0 %v5917
  %5938 = vmatprep.subr.mxu0 0.0
  %5939 = vmatpush1.msra.mxu0 %v5918
  %5940 = vmatprep.subr.mxu0 0.0
  %5941 = vmatpush1.msra.mxu0 %v5919
  %5942 = vmatprep.subr.mxu0 0.0
  %5943 = vmatpush1.msra.mxu0 %v5920
  %5944 = vmatprep.subr.mxu0 0.0
  %5945 = vmatpush1.msra.mxu0 %v5921
  %5946 = vmatprep.subr.mxu0 0.0
  %5947 = vmatpush1.msra.mxu0 %v5922
  %5948 = vmatprep.subr.mxu0 0.0
  %5949 = vmatpush1.msra.mxu0 %v5923
  %5950 = vmatprep.subr.mxu0 0.0
  %5951 = vmatpush1.msra.mxu0 %v5924
  %5952 = vmatprep.subr.mxu0 0.0
  %5953 = vmatpush1.msra.mxu0 %v5925
  %5954 = vmatprep.subr.mxu0 0.0
  %5955 = vmatpush1.msra.mxu0 %v5926
  %5956 = vmatprep.subr.mxu0 0.0
  %5957 = vmatpush1.msra.mxu0 %v5927
  %5958 = vmatprep.subr.mxu0 0.0
  %5959 = vmatpush1.msra.mxu0 %v5928
  %5960 = vmatprep.subr.mxu0 0.0
  %5961 = vmatpush1.msra.mxu0 %v5929
  %5962 = vmatprep.subr.mxu0 0.0
  %5963 = vmatpush1.msra.mxu0 0.0
  %5964 = vmatprep.subr.mxu0 0.0
  %5965 = vmatpush1.msra.mxu0 0.0
  %5966 = vmatprep.subr.mxu0 0.0
  %5967 = vmatpush1.msra.mxu0 0.0
  %5968 = vmatprep.subr.mxu0 0.0
  %5969 = vmatpush1.msra.mxu0 0.0
  %5970 = vmatprep.subr.mxu0 0.0
  %5971 = vmatpush1.msra.mxu0 0.0
  %5972 = vmatprep.subr.mxu0 0.0
  %5973 = vmatpush1.msra.mxu0 0.0
  %5974 = vmatprep.subr.mxu0 0.0
  %5975 = vmatpush1.msra.mxu0 0.0
  %5976 = vmatprep.subr.mxu0 0.0
  %5977 = vmatpush1.msra.mxu0 0.0
  %5978 = vmatprep.subr.mxu0 0.0
  %5979 = vmatpush1.msra.mxu0 0.0
  %5980 = vmatprep.subr.mxu0 0.0
  %5981 = vmatpush1.msra.mxu0 0.0
  %5982 = vmatprep.subr.mxu0 0.0
  %5983 = vmatpush1.msra.mxu0 0.0
  %5984 = vmatprep.subr.mxu0 0.0
  %5985 = vmatpush1.msra.mxu0 0.0
  %5986 = vmatprep.subr.mxu0 0.0
  %5987 = vmatpush1.msra.mxu0 0.0
  %5988 = vmatprep.subr.mxu0 0.0
  %5989 = vmatpush1.msra.mxu0 0.0
  %5990 = vmatprep.subr.mxu0 0.0
  %5991 = vmatpush1.msra.mxu0 0.0
  %5992 = vmatprep.subr.mxu0 0.0
  %5993 = vmatpush1.msra.mxu0 0.0
  %5994 = vmatprep.mubr.f32.mxu0 0.0
  %5995 = vmatmul.mubr.f32.gmra.mrb[0].mxu0 %v5897
  %v5996 = vpop.f32.mrb[0].mxu0
  %v5997 = vadd.f32 0.0, %v5996
  %v5998 = vpop.f32.mrb[0].mxu0
  %5999 = vdwg.mxu0
  %6000 = vadd.xlane.f32.xlu0 %v5997
  %v6001 = vpop.xlane.xlu0 %6000
  %v6002 = vxor.u32 %v6001, 2147483648
  %v6003 = vmul.f32 %v6002, 1.442695
  %v6004 = vpow.pop %v6003
  %v6005 = vadd.f32 %v6004, 1.0
  %v6006 = vrcp.pop %v6005
  %v6007 = vmul.f32 1.0, %v6006
  %6008 = vst [vmem:[%s8] sm:$0xff] %v6007
  // Predicated region
  $region34: #{_fwd.1} parent=0 // pred_check
    _
  $region35: #{_fwd.1} parent=0 // pred_check_branch
    %6010 = sbr.rel (0) target = $region37
  $region36: #{_fwd.1} parent=0 // pred_region
    _
  $region37: #{_fwd.1} parent=0 // pred_fallthru
    _
  // Predicated region
  $region38: #{_fwd.1} parent=0 // pred_check
    _
  $region39: #{_fwd.1} parent=0 // pred_check_branch
    %6012 = sbr.rel (0) target = $region41
  $region40: #{_fwd.1} parent=0 // pred_region
    _
  $region41: #{_fwd.1} parent=0 // pred_fallthru
    _

</llo_original>
